<compile_context>
chip_gen: v7x
topology: tpu7x:2x2x1
jax: 0.10.0
libtpu: 0.0.40
codegen_flags: <defaults>
</compile_context>

<pallas_src>
import functools

import jax
import jax.numpy as jnp
from jax.experimental import pallas as pl
from jax.experimental.pallas import tpu as pltpu


# ----------------------------------------------------------------------------
# fused Pallas kernel (whole post-embedding forward, one batch-block per step)
# ----------------------------------------------------------------------------
def _attr_network_kernel(x_ref, pad_ref, tf_ref, uemb_ref, iemb_ref,
                         wqkv_ref, bqkv_ref, wo_ref, bo_ref,
                         ln1w_ref, ln1b_ref, ln2w_ref, ln2b_ref,
                         w1_ref, b1_ref, w2_ref, b2_ref,
                         wattr_ref, battr_ref,
                         wuser_ref, buser_ref, witem_ref, bitem_ref,
                         wout_u_ref, bout_u_ref, wout_i_ref, bout_i_ref,
                         tfwb_ref, out_ref, *, num_heads, ffn_tile, ffn_elem_dtype):
    x4 = x_ref[...]                                    # (bb, 2, L, E) f32
    bb, _, L, E = x4.shape
    BB = bb * 2
    S = BB * L
    NL = wqkv_ref.shape[0]
    F = w1_ref.shape[2]
    nh = num_heads
    dh = E // nh

    pad = pad_ref[...]                                 # (bb, 2, L), 1.0 = padded key
    neg = pad * (-1e30)                                # finite additive mask bias
    negf = neg.reshape(BB, L)

    x = x4.reshape(BB, L, E)

    # ---- shared TransformerEncoder (m_attn): post-norm, ReLU FFN, eval dropout ----
    for l in range(NL):                                # static unroll (attn_layer_num)
        x2 = x.reshape(S, E)
        # fused QKV projection (bf16 operands, f32 accumulation); the 1/sqrt(dh)
        # scale is already folded into the Q columns of wqkv/bqkv at prep time.
        qkv = (jnp.dot(x2.astype(jnp.bfloat16), wqkv_ref[l],
                       preferred_element_type=jnp.float32) + bqkv_ref[l])   # (S, 3E)

        attn2 = jnp.zeros((S, E), jnp.float32)
        for h in range(nh):                            # static, tiny head count
            lo = h * dh
            q_h = qkv[:, lo:lo + dh].reshape(BB, L, dh)
            k_h = qkv[:, E + lo:E + lo + dh].reshape(BB, L, dh)
            v_h = qkv[:, 2 * E + lo:2 * E + lo + dh].reshape(BB, L, dh)
            s = jnp.einsum('bqd,bkd->bqk', q_h, k_h,
                           preferred_element_type=jnp.float32) + negf[:, None, :]
            m = jnp.max(s, axis=-1, keepdims=True)
            p = jnp.exp(s - m)
            p = p * pl.reciprocal(jnp.sum(p, axis=-1, keepdims=True), approx=True)
            ctx_h = jnp.einsum('bqk,bkd->bqd', p, v_h,
                               preferred_element_type=jnp.float32)          # (BB, L, dh)
            # per-head slice of the output projection -> no lane concat, MXU accumulate
            attn2 = attn2 + jnp.dot(ctx_h.reshape(S, dh).astype(jnp.bfloat16),
                                    wo_ref[l, h], preferred_element_type=jnp.float32)
        attn = (attn2 + bo_ref[l]).reshape(BB, L, E)

        # residual + LayerNorm1 (eps = 1e-5), f32
        h1 = x + attn
        mu1 = jnp.mean(h1, axis=-1, keepdims=True)
        var1 = jnp.mean((h1 - mu1) ** 2, axis=-1, keepdims=True)
        h1 = (h1 - mu1) * jax.lax.rsqrt(var1 + 1e-5) * ln1w_ref[l] + ln1b_ref[l]

        # F-tiled ReLU FFN: bf16 MXU operands, f32 accumulation; bias+ReLU in
        # ffn_elem_dtype (bf16 on v6e/v7x, f32 on v5e).
        h1_mx = h1.reshape(S, E).astype(jnp.bfloat16)
        n_chunks = F // ffn_tile
        layer = l

        def ffn_chunk(c, acc):
            f0 = pl.multiple_of(c * ffn_tile, ffn_tile)
            ffc = jnp.dot(h1_mx, w1_ref[layer, :, pl.ds(f0, ffn_tile)],
                          preferred_element_type=jnp.float32)
            ffc = (ffc.astype(ffn_elem_dtype)
                   + b1_ref[layer, :, pl.ds(f0, ffn_tile)].astype(ffn_elem_dtype))
            ffc = jnp.maximum(ffc, 0.0).astype(jnp.bfloat16)
            return acc + jnp.dot(ffc, w2_ref[layer, pl.ds(f0, ffn_tile), :],
                                 preferred_element_type=jnp.float32)

        ff = jax.lax.fori_loop(0, n_chunks, ffn_chunk,
                               jnp.zeros((S, E), jnp.float32), unroll=True)
        ff = (ff + b2_ref[l]).reshape(BB, L, E)

        # residual + LayerNorm2
        h2 = h1 + ff
        mu2 = jnp.mean(h2, axis=-1, keepdims=True)
        var2 = jnp.mean((h2 - mu2) ** 2, axis=-1, keepdims=True)
        x = (h2 - mu2) * jax.lax.rsqrt(var2 + 1e-5) * ln2w_ref[l] + ln2b_ref[l]

    # ---- score head (both sides at once) ----
    H = wattr_ref.shape[1]
    proj = (jnp.dot(x.reshape(S, E), wattr_ref[...],
                    preferred_element_type=jnp.float32)
            + battr_ref[...]).reshape(bb, 2, L, H)                          # m_attr_linear
    ent_u = (jnp.dot(uemb_ref[:, 0, :], wuser_ref[...],
                     preferred_element_type=jnp.float32) + buser_ref[...])  # (bb, H)
    ent_i = (jnp.dot(iemb_ref[:, 0, :], witem_ref[...],
                     preferred_element_type=jnp.float32) + bitem_ref[...])  # (bb, H)
    ent = jnp.stack([ent_u, ent_i], axis=1)                                 # (bb, 2, H)
    # matmul(attr, ent_x.unsqueeze(2)).squeeze()
    scores = jnp.sum(proj * ent[:, :, None, :], axis=-1)                    # (bb, 2, L)

    # m_attr_{item,user}_linear : Linear(1, 1) -> vectorized per-side scale/shift
    tfwb = tfwb_ref[...]                                                    # (2, 2)
    logits = scores + tf_ref[...] * tfwb[None, :, 0:1] + tfwb[None, :, 1:2]

    # masked max-pool over L (finite -1e30 bias instead of -inf)
    weighted = logits[..., None] * proj + neg[..., None]                    # (bb, 2, L, H)
    pooled = jnp.max(weighted, axis=2)                                      # (bb, 2, H)

    # m_output_linear_{user,item}; single (bb, 2, E) output store
    user_out = (jnp.dot(pooled[:, 0, :], wout_u_ref[...],
                        preferred_element_type=jnp.float32) + bout_u_ref[...])
    item_out = (jnp.dot(pooled[:, 1, :], wout_i_ref[...],
                        preferred_element_type=jnp.float32) + bout_i_ref[...])
    out_ref[...] = jnp.stack([user_out, item_out], axis=1)                  # (bb, 2, E)


# ----------------------------------------------------------------------------
# wrapper / glue
# ----------------------------------------------------------------------------
def generate_pad_mask(lens, max_len):
    # torch: mask = ~(arange(max_len) < len)  -> 1.0 where PADDED
    pos = jnp.arange(max_len, dtype=lens.dtype)[None, :]
    return (pos >= lens[:, None]).astype(jnp.float32)


def _pick_ffn_tile(F):
    for t in (512, 256, 128):
        if F % t == 0:
            return t
    return F


def _ffn_elem_dtype():
    # bf16 VPU exists on v6e/v7x; v5e (and older) has none -> keep f32 elementwise there.
    try:
        kind = jax.devices()[0].device_kind.lower()
    except Exception:
        return jnp.float32
    if any(t in kind for t in ('v2', 'v3', 'v4', 'v5')):
        return jnp.float32
    return jnp.bfloat16


def _batched_spec(shape, bb):
    zeros = (0,) * (len(shape) - 1)
    return pl.BlockSpec((bb,) + tuple(shape[1:]), lambda i: (i,) + zeros)


def _resident_spec(shape):
    zeros = (0,) * len(shape)
    return pl.BlockSpec(tuple(shape), lambda i: zeros)


def prepare_params(p, cfg):
    """One-time transform of raw (PyTorch-layout) params into kernel-ready layout:
    fold 1/sqrt(dh) into the Q projection, split the out-proj weight per head,
    cast the big matmul weights to bf16, pack the Linear(1,1) scalars."""
    E = cfg['attr_emb_size']
    nh = cfg['attn_head_num']
    dh = E // nh
    scale = 1.0 / float(dh) ** 0.5
    enc = p['enc']
    NL = enc['wqkv_t'].shape[0]

    kp = dict(p)
    kp['enc'] = dict(
        wqkv=enc['wqkv_t'].at[:, :, :E].multiply(scale).astype(jnp.bfloat16),
        bqkv=enc['b_qkv'].at[:, :, :E].multiply(scale),
        wo_h=enc['wo_t'].reshape(NL, nh, dh, E).astype(jnp.bfloat16),
        bo=enc['b_o'],
        ln1w=enc['ln1_w'], ln1b=enc['ln1_b'],
        ln2w=enc['ln2_w'], ln2b=enc['ln2_b'],
        w1=enc['w1_t'].astype(jnp.bfloat16), b1=enc['b1'],
        w2=enc['w2_t'].astype(jnp.bfloat16), b2=enc['b2'])
    # rows: [item side, user side]; cols: [weight, bias] of the Linear(1,1)s
    kp['tfwb'] = jnp.concatenate([
        jnp.concatenate([p['w_tf_item'], p['b_tf_item']], axis=1),
        jnp.concatenate([p['w_tf_user'], p['b_tf_user']], axis=1)], axis=0)
    return kp


def attr_network_forward(kp, cfg,
                         attr_item, attr_tf_item, attr_lens_item, item_ids,
                         attr_user, attr_tf_user, attr_lens_user, user_ids,
                         batch_block=None):
    nh = cfg['attn_head_num']
    E = cfg['attr_emb_size']
    B, L = attr_item.shape
    # TODO(synk): both attr sides are assumed to share the same padded max length L.
    assert attr_user.shape[1] == L

    # embedding gathers + mask generation (glue, plain JAX)
    x_item = kp['emb_attr_item'][attr_item]            # (B, L, E)
    x_user = kp['emb_attr_user'][attr_user]            # (B, L, E)
    user_emb = kp['emb_user'][user_ids][:, None, :]    # (B, 1, Eu)
    item_emb = kp['emb_item'][item_ids][:, None, :]    # (B, 1, Ei)
    mask_item = generate_pad_mask(attr_lens_item, L)
    mask_user = generate_pad_mask(attr_lens_user, L)

    # side-major stacking: one kernel processes both sides of each batch block
    x = jnp.stack([x_item, x_user], axis=1).astype(jnp.float32)   # (B, 2, L, E)
    pad = jnp.stack([mask_item, mask_user], axis=1)               # (B, 2, L)
    tf = jnp.stack([attr_tf_item, attr_tf_user], axis=1).astype(jnp.float32)

    bb = batch_block if batch_block is not None else min(B, 8)
    assert B % bb == 0
    nb = B // bb

    enc = kp['enc']
    weights = (enc['wqkv'], enc['bqkv'], enc['wo_h'], enc['bo'],
               enc['ln1w'], enc['ln1b'], enc['ln2w'], enc['ln2b'],
               enc['w1'], enc['b1'], enc['w2'], enc['b2'],
               kp['w_attr_t'], kp['b_attr'],
               kp['w_user_t'], kp['b_user'], kp['w_item_t'], kp['b_item'],
               kp['w_out_user_t'], kp['b_out_user'],
               kp['w_out_item_t'], kp['b_out_item'],
               kp['tfwb'])
    batched = (x, pad, tf, user_emb, item_emb)
    args = batched + weights

    in_specs = ([_batched_spec(a.shape, bb) for a in batched]
                + [_resident_spec(w.shape) for w in weights])
    out_specs = pl.BlockSpec((bb, 2, E), lambda i: (i, 0, 0))

    F = enc['w1'].shape[-1]
    out = pl.pallas_call(
        functools.partial(_attr_network_kernel, num_heads=nh,
                          ffn_tile=_pick_ffn_tile(F),
                          ffn_elem_dtype=_ffn_elem_dtype()),
        out_shape=jax.ShapeDtypeStruct((B, 2, E), jnp.float32),
        grid=(nb,),
        in_specs=in_specs,
        out_specs=out_specs,
        compiler_params=pltpu.CompilerParams(
            dimension_semantics=("parallel",),
            vmem_limit_bytes=32 * 1024 * 1024),
    )(*args)
    return out[:, 0, :], out[:, 1, :]                  # (user_output, item_output)


# ----------------------------------------------------------------------------
# parameters (raw, PyTorch-equivalent layout)
# ----------------------------------------------------------------------------
def init_params(key, cfg):
    E = cfg['attr_emb_size']
    F = cfg['dim_feedforward']
    H = cfg['output_hidden_size']
    Eu = cfg['user_emb_size']
    Ei = cfg['item_emb_size']
    NL = cfg['attn_layer_num']

    keys = iter(jax.random.split(key, 64))

    def rnd(shape, scale=0.1):
        return scale * jax.random.normal(next(keys), shape, jnp.float32)

    return {
        'emb_attr_item': rnd((cfg['vocab_size'], E)),   # m_input_attr_embedding_item
        'emb_attr_user': rnd((cfg['vocab_size'], E)),   # m_input_attr_embedding_user
        'emb_user': rnd((cfg['user_num'], Eu)),         # m_user_embedding
        'emb_item': rnd((cfg['item_num'], Ei)),         # m_item_embedding
        'enc': {                                        # shared TransformerEncoder
            'wqkv_t': rnd((NL, E, 3 * E)), 'b_qkv': rnd((NL, 1, 3 * E)),
            'wo_t': rnd((NL, E, E)), 'b_o': rnd((NL, 1, E)),
            'ln1_w': jnp.ones((NL, 1, E), jnp.float32),
            'ln1_b': jnp.zeros((NL, 1, E), jnp.float32),
            'ln2_w': jnp.ones((NL, 1, E), jnp.float32),
            'ln2_b': jnp.zeros((NL, 1, E), jnp.float32),
            'w1_t': rnd((NL, E, F)), 'b1': rnd((NL, 1, F)),
            'w2_t': rnd((NL, F, E)), 'b2': rnd((NL, 1, E)),
        },
        'w_attr_t': rnd((E, H)), 'b_attr': rnd((1, H)),         # m_attr_linear
        'w_user_t': rnd((Eu, H)), 'b_user': rnd((1, H)),        # m_user_linear
        'w_item_t': rnd((Ei, H)), 'b_item': rnd((1, H)),        # m_item_linear
        'w_tf_item': rnd((1, 1)), 'b_tf_item': rnd((1, 1)),     # m_attr_item_linear
        'w_tf_user': rnd((1, 1)), 'b_tf_user': rnd((1, 1)),     # m_attr_user_linear
        'w_out_user_t': rnd((H, E)), 'b_out_user': rnd((1, E)), # m_output_linear_user
        'w_out_item_t': rnd((H, E)), 'b_out_item': rnd((1, E)), # m_output_linear_item
    }


# ----------------------------------------------------------------------------
if __name__ == "__main__":
    cfg = dict(vocab_size=50, user_num=10, item_num=12,
               attr_emb_size=32, user_emb_size=24, item_emb_size=20,
               attn_head_num=2, attn_layer_num=2,
               output_hidden_size=16, dim_feedforward=2048)  # PyTorch default FFN width

    B, L = 2, 8
    key = jax.random.PRNGKey(0)
    kp0, k1, k2, k3, k4, k5, k6 = jax.random.split(key, 7)
    params = prepare_params(init_params(kp0, cfg), cfg)       # one-time weight prep

    attr_item = jax.random.randint(k1, (B, L), 0, cfg['vocab_size'])
    attr_tf_item = jax.random.uniform(k2, (B, L), jnp.float32)
    attr_lens_item = jnp.array([5, L], jnp.int32)             # max == L (as in the module)
    item_ids = jax.random.randint(k3, (B,), 0, cfg['item_num'])

    attr_user = jax.random.randint(k4, (B, L), 0, cfg['vocab_size'])
    attr_tf_user = jax.random.uniform(k5, (B, L), jnp.float32)
    attr_lens_user = jnp.array([L, 3], jnp.int32)
    user_ids = jax.random.randint(k6, (B,), 0, cfg['user_num'])

    user_out, item_out = attr_network_forward(
        params, cfg,
        attr_item, attr_tf_item, attr_lens_item, item_ids,
        attr_user, attr_tf_user, attr_lens_user, user_ids,
        batch_block=1)                                         # grid=(2,), "parallel"
    jax.block_until_ready((user_out, item_out))

    assert user_out.shape == (B, cfg['attr_emb_size'])
    assert item_out.shape == (B, cfg['attr_emb_size'])
    assert bool(jnp.isfinite(user_out).all()) and bool(jnp.isfinite(item_out).all())
    # TODO(synk): dropout inside TransformerEncoderLayer is implemented as eval-mode
    # identity (no RNG dropout in-kernel).
    print("KERNEL_OK")
</pallas_src>

<mosaic_0001>
module attributes {stable_mosaic.version = 11 : i64} {
  func.func @_attr_network_kernel(%arg0: i32, %arg1: memref<1x2x8x32xf32, #tpu.memory_space<vmem>>, %arg2: memref<1x2x8xf32, #tpu.memory_space<vmem>>, %arg3: memref<1x2x8xf32, #tpu.memory_space<vmem>>, %arg4: memref<1x1x24xf32, #tpu.memory_space<vmem>>, %arg5: memref<1x1x20xf32, #tpu.memory_space<vmem>>, %arg6: memref<2x32x96xbf16, #tpu.memory_space<vmem>>, %arg7: memref<2x1x96xf32, #tpu.memory_space<vmem>>, %arg8: memref<2x2x16x32xbf16, #tpu.memory_space<vmem>>, %arg9: memref<2x1x32xf32, #tpu.memory_space<vmem>>, %arg10: memref<2x1x32xf32, #tpu.memory_space<vmem>>, %arg11: memref<2x1x32xf32, #tpu.memory_space<vmem>>, %arg12: memref<2x1x32xf32, #tpu.memory_space<vmem>>, %arg13: memref<2x1x32xf32, #tpu.memory_space<vmem>>, %arg14: memref<2x32x2048xbf16, #tpu.memory_space<vmem>>, %arg15: memref<2x1x2048xf32, #tpu.memory_space<vmem>>, %arg16: memref<2x2048x32xbf16, #tpu.memory_space<vmem>>, %arg17: memref<2x1x32xf32, #tpu.memory_space<vmem>>, %arg18: memref<32x16xf32, #tpu.memory_space<vmem>>, %arg19: memref<1x16xf32, #tpu.memory_space<vmem>>, %arg20: memref<24x16xf32, #tpu.memory_space<vmem>>, %arg21: memref<1x16xf32, #tpu.memory_space<vmem>>, %arg22: memref<20x16xf32, #tpu.memory_space<vmem>>, %arg23: memref<1x16xf32, #tpu.memory_space<vmem>>, %arg24: memref<16x32xf32, #tpu.memory_space<vmem>>, %arg25: memref<1x32xf32, #tpu.memory_space<vmem>>, %arg26: memref<16x32xf32, #tpu.memory_space<vmem>>, %arg27: memref<1x32xf32, #tpu.memory_space<vmem>>, %arg28: memref<2x2xf32, #tpu.memory_space<vmem>>, %arg29: memref<1x2x32xf32, #tpu.memory_space<vmem>>) attributes {dimension_semantics = [#tpu.dimension_semantics<parallel>], iteration_bounds = array<i64: 2>, scalar_prefetch = 0 : i64, scratch_operands = 0 : i64, tpu.core_type = #tpu.core_type<tc>, window_params = [{transform_indices = @transform_0, window_bounds = array<i64: 1, 2, 8, 32>}, {transform_indices = @transform_1, window_bounds = array<i64: 1, 2, 8>}, {transform_indices = @transform_2, window_bounds = array<i64: 1, 2, 8>}, {transform_indices = @transform_3, window_bounds = array<i64: 1, 1, 24>}, {transform_indices = @transform_4, window_bounds = array<i64: 1, 1, 20>}, {pipeline_mode = #tpu.pipeline_mode<synchronous>, transform_indices = @transform_5, window_bounds = array<i64: 2, 32, 96>}, {pipeline_mode = #tpu.pipeline_mode<synchronous>, transform_indices = @transform_6, window_bounds = array<i64: 2, 1, 96>}, {pipeline_mode = #tpu.pipeline_mode<synchronous>, transform_indices = @transform_7, window_bounds = array<i64: 2, 2, 16, 32>}, {pipeline_mode = #tpu.pipeline_mode<synchronous>, transform_indices = @transform_8, window_bounds = array<i64: 2, 1, 32>}, {pipeline_mode = #tpu.pipeline_mode<synchronous>, transform_indices = @transform_9, window_bounds = array<i64: 2, 1, 32>}, {pipeline_mode = #tpu.pipeline_mode<synchronous>, transform_indices = @transform_10, window_bounds = array<i64: 2, 1, 32>}, {pipeline_mode = #tpu.pipeline_mode<synchronous>, transform_indices = @transform_11, window_bounds = array<i64: 2, 1, 32>}, {pipeline_mode = #tpu.pipeline_mode<synchronous>, transform_indices = @transform_12, window_bounds = array<i64: 2, 1, 32>}, {pipeline_mode = #tpu.pipeline_mode<synchronous>, transform_indices = @transform_13, window_bounds = array<i64: 2, 32, 2048>}, {pipeline_mode = #tpu.pipeline_mode<synchronous>, transform_indices = @transform_14, window_bounds = array<i64: 2, 1, 2048>}, {pipeline_mode = #tpu.pipeline_mode<synchronous>, transform_indices = @transform_15, window_bounds = array<i64: 2, 2048, 32>}, {pipeline_mode = #tpu.pipeline_mode<synchronous>, transform_indices = @transform_16, window_bounds = array<i64: 2, 1, 32>}, {pipeline_mode = #tpu.pipeline_mode<synchronous>, transform_indices = @transform_17, window_bounds = array<i64: 32, 16>}, {pipeline_mode = #tpu.pipeline_mode<synchronous>, transform_indices = @transform_18, window_bounds = array<i64: 1, 16>}, {pipeline_mode = #tpu.pipeline_mode<synchronous>, transform_indices = @transform_19, window_bounds = array<i64: 24, 16>}, {pipeline_mode = #tpu.pipeline_mode<synchronous>, transform_indices = @transform_20, window_bounds = array<i64: 1, 16>}, {pipeline_mode = #tpu.pipeline_mode<synchronous>, transform_indices = @transform_21, window_bounds = array<i64: 20, 16>}, {pipeline_mode = #tpu.pipeline_mode<synchronous>, transform_indices = @transform_22, window_bounds = array<i64: 1, 16>}, {pipeline_mode = #tpu.pipeline_mode<synchronous>, transform_indices = @transform_23, window_bounds = array<i64: 16, 32>}, {pipeline_mode = #tpu.pipeline_mode<synchronous>, transform_indices = @transform_24, window_bounds = array<i64: 1, 32>}, {pipeline_mode = #tpu.pipeline_mode<synchronous>, transform_indices = @transform_25, window_bounds = array<i64: 16, 32>}, {pipeline_mode = #tpu.pipeline_mode<synchronous>, transform_indices = @transform_26, window_bounds = array<i64: 1, 32>}, {pipeline_mode = #tpu.pipeline_mode<synchronous>, transform_indices = @transform_27, window_bounds = array<i64: 2, 2>}, {transform_indices = @transform_28, window_bounds = array<i64: 1, 2, 32>}]} {
    %c0 = arith.constant 0 : index
    %c0_0 = arith.constant 0 : index
    %c0_1 = arith.constant 0 : index
    %c0_2 = arith.constant 0 : index
    %0 = vector.load %arg1[%c0, %c0_0, %c0_1, %c0_2] : memref<1x2x8x32xf32, #tpu.memory_space<vmem>>, vector<1x2x8x32xf32>
    %c0_3 = arith.constant 0 : index
    %c0_4 = arith.constant 0 : index
    %c0_5 = arith.constant 0 : index
    %1 = vector.load %arg2[%c0_3, %c0_4, %c0_5] : memref<1x2x8xf32, #tpu.memory_space<vmem>>, vector<1x2x8xf32>
    %cst = arith.constant -1.000000e+30 : f32
    %2 = vector.broadcast %cst : f32 to vector<1x2x8xf32>
    %3 = arith.mulf %1, %2 : vector<1x2x8xf32>
    %4 = vector.shape_cast %3 : vector<1x2x8xf32> to vector<2x8xf32>
    %5 = vector.shape_cast %0 : vector<1x2x8x32xf32> to vector<2x8x32xf32>
    %6 = vector.shape_cast %5 : vector<2x8x32xf32> to vector<16x32xf32>
    %7 = arith.truncf %6 : vector<16x32xf32> to vector<16x32xbf16>
    %c0_6 = arith.constant 0 : index
    %c0_7 = arith.constant 0 : index
    %c0_8 = arith.constant 0 : index
    %8 = vector.load %arg6[%c0_6, %c0_7, %c0_8] : memref<2x32x96xbf16, #tpu.memory_space<vmem>>, vector<1x32x96xbf16>
    %9 = vector.shape_cast %8 : vector<1x32x96xbf16> to vector<32x96xbf16>
    %cst_9 = arith.constant dense<0.000000e+00> : vector<16x96xf32>
    %10 = tpu.matmul %7, %9, %cst_9 {dimension_numbers = #tpu.dot_dimension_numbers<[1], [0], [0], [1], [0, 0, 1, 1], [], []>} : vector<16x32xbf16>, vector<32x96xbf16>, vector<16x96xf32> -> vector<16x96xf32>
    %c0_10 = arith.constant 0 : index
    %c0_11 = arith.constant 0 : index
    %c0_12 = arith.constant 0 : index
    %11 = vector.load %arg7[%c0_10, %c0_11, %c0_12] : memref<2x1x96xf32, #tpu.memory_space<vmem>>, vector<1x1x96xf32>
    %12 = vector.shape_cast %11 : vector<1x1x96xf32> to vector<1x96xf32>
    %13 = vector.broadcast %12 : vector<1x96xf32> to vector<16x96xf32>
    %14 = arith.addf %10, %13 : vector<16x96xf32>
    %cst_13 = arith.constant 0.000000e+00 : f32
    %15 = vector.broadcast %cst_13 : f32 to vector<16x32xf32>
    %16 = vector.extract_strided_slice %14 {offsets = [0, 0], sizes = [16, 16], strides = [1, 1]} : vector<16x96xf32> to vector<16x16xf32>
    %17 = vector.shape_cast %16 : vector<16x16xf32> to vector<2x8x16xf32>
    %18 = vector.extract_strided_slice %14 {offsets = [0, 32], sizes = [16, 16], strides = [1, 1]} : vector<16x96xf32> to vector<16x16xf32>
    %19 = vector.shape_cast %18 : vector<16x16xf32> to vector<2x8x16xf32>
    %20 = vector.extract_strided_slice %14 {offsets = [0, 64], sizes = [16, 16], strides = [1, 1]} : vector<16x96xf32> to vector<16x16xf32>
    %21 = vector.shape_cast %20 : vector<16x16xf32> to vector<2x8x16xf32>
    "tpu.trace_start"() <{level = 10 : i32, message = "bqd,bkd->bqk"}> : () -> ()
    %cst_14 = arith.constant dense<0.000000e+00> : vector<2x8x8xf32>
    %22 = tpu.matmul %17, %19, %cst_14 {dimension_numbers = #tpu.dot_dimension_numbers<[2], [2], [1], [1], [0, 0, 0, 1, 1, 1], [0], [0]>} : vector<2x8x16xf32>, vector<2x8x16xf32>, vector<2x8x8xf32> -> vector<2x8x8xf32>
    "tpu.trace_stop"() : () -> ()
    %23 = vector.shape_cast %4 : vector<2x8xf32> to vector<2x1x8xf32>
    %24 = vector.broadcast %23 : vector<2x1x8xf32> to vector<2x8x8xf32>
    %25 = arith.addf %22, %24 : vector<2x8x8xf32>
    %cst_15 = arith.constant dense<0xFF800000> : vector<2x8xf32>
    %26 = vector.multi_reduction <maximumf>, %25, %cst_15 [2] : vector<2x8x8xf32> to vector<2x8xf32>
    %27 = vector.shape_cast %26 : vector<2x8xf32> to vector<2x8x1xf32>
    %28 = vector.broadcast %27 : vector<2x8x1xf32> to vector<2x8x8xf32>
    %29 = arith.subf %25, %28 : vector<2x8x8xf32>
    %30 = math.exp %29 : vector<2x8x8xf32>
    %cst_16 = arith.constant dense<0.000000e+00> : vector<2x8xf32>
    %31 = vector.multi_reduction <add>, %30, %cst_16 [2] : vector<2x8x8xf32> to vector<2x8xf32>
    %32 = vector.shape_cast %31 : vector<2x8xf32> to vector<2x8x1xf32>
    %33 = tpu.reciprocal %32 {approx = true} : vector<2x8x1xf32> -> vector<2x8x1xf32>
    %34 = vector.broadcast %33 : vector<2x8x1xf32> to vector<2x8x8xf32>
    %35 = arith.mulf %30, %34 : vector<2x8x8xf32>
    "tpu.trace_start"() <{level = 10 : i32, message = "bqk,bkd->bqd"}> : () -> ()
    %cst_17 = arith.constant dense<0.000000e+00> : vector<2x8x16xf32>
    %36 = tpu.matmul %35, %21, %cst_17 {dimension_numbers = #tpu.dot_dimension_numbers<[2], [1], [1], [2], [0, 0, 0, 1, 1, 2], [0], [0]>} : vector<2x8x8xf32>, vector<2x8x16xf32>, vector<2x8x16xf32> -> vector<2x8x16xf32>
    "tpu.trace_stop"() : () -> ()
    %37 = vector.shape_cast %36 : vector<2x8x16xf32> to vector<16x16xf32>
    %38 = arith.truncf %37 : vector<16x16xf32> to vector<16x16xbf16>
    %c0_18 = arith.constant 0 : index
    %c0_19 = arith.constant 0 : index
    %c0_20 = arith.constant 0 : index
    %c0_21 = arith.constant 0 : index
    %39 = vector.load %arg8[%c0_18, %c0_19, %c0_20, %c0_21] : memref<2x2x16x32xbf16, #tpu.memory_space<vmem>>, vector<1x1x16x32xbf16>
    %40 = vector.shape_cast %39 : vector<1x1x16x32xbf16> to vector<16x32xbf16>
    %cst_22 = arith.constant dense<0.000000e+00> : vector<16x32xf32>
    %41 = tpu.matmul %38, %40, %cst_22 {dimension_numbers = #tpu.dot_dimension_numbers<[1], [0], [0], [1], [0, 0, 1, 1], [], []>} : vector<16x16xbf16>, vector<16x32xbf16>, vector<16x32xf32> -> vector<16x32xf32>
    %42 = arith.addf %15, %41 : vector<16x32xf32>
    %43 = vector.extract_strided_slice %14 {offsets = [0, 16], sizes = [16, 16], strides = [1, 1]} : vector<16x96xf32> to vector<16x16xf32>
    %44 = vector.shape_cast %43 : vector<16x16xf32> to vector<2x8x16xf32>
    %45 = vector.extract_strided_slice %14 {offsets = [0, 48], sizes = [16, 16], strides = [1, 1]} : vector<16x96xf32> to vector<16x16xf32>
    %46 = vector.shape_cast %45 : vector<16x16xf32> to vector<2x8x16xf32>
    %47 = vector.extract_strided_slice %14 {offsets = [0, 80], sizes = [16, 16], strides = [1, 1]} : vector<16x96xf32> to vector<16x16xf32>
    %48 = vector.shape_cast %47 : vector<16x16xf32> to vector<2x8x16xf32>
    "tpu.trace_start"() <{level = 10 : i32, message = "bqd,bkd->bqk"}> : () -> ()
    %cst_23 = arith.constant dense<0.000000e+00> : vector<2x8x8xf32>
    %49 = tpu.matmul %44, %46, %cst_23 {dimension_numbers = #tpu.dot_dimension_numbers<[2], [2], [1], [1], [0, 0, 0, 1, 1, 1], [0], [0]>} : vector<2x8x16xf32>, vector<2x8x16xf32>, vector<2x8x8xf32> -> vector<2x8x8xf32>
    "tpu.trace_stop"() : () -> ()
    %50 = vector.shape_cast %4 : vector<2x8xf32> to vector<2x1x8xf32>
    %51 = vector.broadcast %50 : vector<2x1x8xf32> to vector<2x8x8xf32>
    %52 = arith.addf %49, %51 : vector<2x8x8xf32>
    %cst_24 = arith.constant dense<0xFF800000> : vector<2x8xf32>
    %53 = vector.multi_reduction <maximumf>, %52, %cst_24 [2] : vector<2x8x8xf32> to vector<2x8xf32>
    %54 = vector.shape_cast %53 : vector<2x8xf32> to vector<2x8x1xf32>
    %55 = vector.broadcast %54 : vector<2x8x1xf32> to vector<2x8x8xf32>
    %56 = arith.subf %52, %55 : vector<2x8x8xf32>
    %57 = math.exp %56 : vector<2x8x8xf32>
    %cst_25 = arith.constant dense<0.000000e+00> : vector<2x8xf32>
    %58 = vector.multi_reduction <add>, %57, %cst_25 [2] : vector<2x8x8xf32> to vector<2x8xf32>
    %59 = vector.shape_cast %58 : vector<2x8xf32> to vector<2x8x1xf32>
    %60 = tpu.reciprocal %59 {approx = true} : vector<2x8x1xf32> -> vector<2x8x1xf32>
    %61 = vector.broadcast %60 : vector<2x8x1xf32> to vector<2x8x8xf32>
    %62 = arith.mulf %57, %61 : vector<2x8x8xf32>
    "tpu.trace_start"() <{level = 10 : i32, message = "bqk,bkd->bqd"}> : () -> ()
    %cst_26 = arith.constant dense<0.000000e+00> : vector<2x8x16xf32>
    %63 = tpu.matmul %62, %48, %cst_26 {dimension_numbers = #tpu.dot_dimension_numbers<[2], [1], [1], [2], [0, 0, 0, 1, 1, 2], [0], [0]>} : vector<2x8x8xf32>, vector<2x8x16xf32>, vector<2x8x16xf32> -> vector<2x8x16xf32>
    "tpu.trace_stop"() : () -> ()
    %64 = vector.shape_cast %63 : vector<2x8x16xf32> to vector<16x16xf32>
    %65 = arith.truncf %64 : vector<16x16xf32> to vector<16x16xbf16>
    %c0_27 = arith.constant 0 : index
    %c1 = arith.constant 1 : index
    %c0_28 = arith.constant 0 : index
    %c0_29 = arith.constant 0 : index
    %66 = vector.load %arg8[%c0_27, %c1, %c0_28, %c0_29] : memref<2x2x16x32xbf16, #tpu.memory_space<vmem>>, vector<1x1x16x32xbf16>
    %67 = vector.shape_cast %66 : vector<1x1x16x32xbf16> to vector<16x32xbf16>
    %cst_30 = arith.constant dense<0.000000e+00> : vector<16x32xf32>
    %68 = tpu.matmul %65, %67, %cst_30 {dimension_numbers = #tpu.dot_dimension_numbers<[1], [0], [0], [1], [0, 0, 1, 1], [], []>} : vector<16x16xbf16>, vector<16x32xbf16>, vector<16x32xf32> -> vector<16x32xf32>
    %69 = arith.addf %42, %68 : vector<16x32xf32>
    %c0_31 = arith.constant 0 : index
    %c0_32 = arith.constant 0 : index
    %c0_33 = arith.constant 0 : index
    %70 = vector.load %arg9[%c0_31, %c0_32, %c0_33] : memref<2x1x32xf32, #tpu.memory_space<vmem>>, vector<1x1x32xf32>
    %71 = vector.shape_cast %70 : vector<1x1x32xf32> to vector<1x32xf32>
    %72 = vector.broadcast %71 : vector<1x32xf32> to vector<16x32xf32>
    %73 = arith.addf %69, %72 : vector<16x32xf32>
    %74 = vector.shape_cast %73 : vector<16x32xf32> to vector<2x8x32xf32>
    %75 = arith.addf %5, %74 : vector<2x8x32xf32>
    %cst_34 = arith.constant dense<0.000000e+00> : vector<2x8xf32>
    %76 = vector.multi_reduction <add>, %75, %cst_34 [2] : vector<2x8x32xf32> to vector<2x8xf32>
    %77 = vector.shape_cast %76 : vector<2x8xf32> to vector<2x8x1xf32>
    %cst_35 = arith.constant 3.200000e+01 : f32
    %78 = vector.broadcast %cst_35 : f32 to vector<2x8x1xf32>
    %79 = arith.divf %77, %78 : vector<2x8x1xf32>
    %80 = vector.broadcast %79 : vector<2x8x1xf32> to vector<2x8x32xf32>
    %81 = arith.subf %75, %80 : vector<2x8x32xf32>
    %82 = arith.mulf %81, %81 : vector<2x8x32xf32>
    %cst_36 = arith.constant dense<0.000000e+00> : vector<2x8xf32>
    %83 = vector.multi_reduction <add>, %82, %cst_36 [2] : vector<2x8x32xf32> to vector<2x8xf32>
    %84 = vector.shape_cast %83 : vector<2x8xf32> to vector<2x8x1xf32>
    %cst_37 = arith.constant 3.200000e+01 : f32
    %85 = vector.broadcast %cst_37 : f32 to vector<2x8x1xf32>
    %86 = arith.divf %84, %85 : vector<2x8x1xf32>
    %87 = vector.broadcast %79 : vector<2x8x1xf32> to vector<2x8x32xf32>
    %88 = arith.subf %75, %87 : vector<2x8x32xf32>
    %cst_38 = arith.constant 9.99999974E-6 : f32
    %89 = vector.broadcast %cst_38 : f32 to vector<2x8x1xf32>
    %90 = arith.addf %86, %89 : vector<2x8x1xf32>
    %91 = math.rsqrt %90 : vector<2x8x1xf32>
    %92 = vector.broadcast %91 : vector<2x8x1xf32> to vector<2x8x32xf32>
    %93 = arith.mulf %88, %92 : vector<2x8x32xf32>
    %c0_39 = arith.constant 0 : index
    %c0_40 = arith.constant 0 : index
    %c0_41 = arith.constant 0 : index
    %94 = vector.load %arg10[%c0_39, %c0_40, %c0_41] : memref<2x1x32xf32, #tpu.memory_space<vmem>>, vector<1x1x32xf32>
    %95 = vector.shape_cast %94 : vector<1x1x32xf32> to vector<1x32xf32>
    %96 = vector.shape_cast %95 : vector<1x32xf32> to vector<1x1x32xf32>
    %97 = vector.broadcast %96 : vector<1x1x32xf32> to vector<2x8x32xf32>
    %98 = arith.mulf %93, %97 : vector<2x8x32xf32>
    %c0_42 = arith.constant 0 : index
    %c0_43 = arith.constant 0 : index
    %c0_44 = arith.constant 0 : index
    %99 = vector.load %arg11[%c0_42, %c0_43, %c0_44] : memref<2x1x32xf32, #tpu.memory_space<vmem>>, vector<1x1x32xf32>
    %100 = vector.shape_cast %99 : vector<1x1x32xf32> to vector<1x32xf32>
    %101 = vector.shape_cast %100 : vector<1x32xf32> to vector<1x1x32xf32>
    %102 = vector.broadcast %101 : vector<1x1x32xf32> to vector<2x8x32xf32>
    %103 = arith.addf %98, %102 : vector<2x8x32xf32>
    %104 = vector.shape_cast %103 : vector<2x8x32xf32> to vector<16x32xf32>
    %105 = arith.truncf %104 : vector<16x32xf32> to vector<16x32xbf16>
    %cst_45 = arith.constant 0.000000e+00 : f32
    %106 = vector.broadcast %cst_45 : f32 to vector<16x32xf32>
    %c0_i32 = arith.constant 0 : i32
    %c512_i32 = arith.constant 512 : i32
    %107 = arith.muli %c0_i32, %c512_i32 : i32
    %108 = tpu.assume_multiple %107, 512 : i32
    %c0_46 = arith.constant 0 : index
    %c0_47 = arith.constant 0 : index
    %109 = arith.index_cast %108 : i32 to index
    %110 = vector.load %arg14[%c0_46, %c0_47, %109] : memref<2x32x2048xbf16, #tpu.memory_space<vmem>>, vector<1x32x512xbf16>
    %111 = vector.shape_cast %110 : vector<1x32x512xbf16> to vector<32x512xbf16>
    %cst_48 = arith.constant dense<0.000000e+00> : vector<16x512xf32>
    %112 = tpu.matmul %105, %111, %cst_48 {dimension_numbers = #tpu.dot_dimension_numbers<[1], [0], [0], [1], [0, 0, 1, 1], [], []>} : vector<16x32xbf16>, vector<32x512xbf16>, vector<16x512xf32> -> vector<16x512xf32>
    %113 = arith.truncf %112 : vector<16x512xf32> to vector<16x512xbf16>
    %c0_49 = arith.constant 0 : index
    %c0_50 = arith.constant 0 : index
    %114 = arith.index_cast %108 : i32 to index
    %115 = vector.load %arg15[%c0_49, %c0_50, %114] : memref<2x1x2048xf32, #tpu.memory_space<vmem>>, vector<1x1x512xf32>
    %116 = vector.shape_cast %115 : vector<1x1x512xf32> to vector<1x512xf32>
    %117 = arith.truncf %116 : vector<1x512xf32> to vector<1x512xbf16>
    %118 = vector.broadcast %117 : vector<1x512xbf16> to vector<16x512xbf16>
    %119 = arith.addf %113, %118 : vector<16x512xbf16>
    %cst_51 = arith.constant 0.000000e+00 : bf16
    %120 = vector.broadcast %cst_51 : bf16 to vector<16x512xbf16>
    %121 = arith.maximumf %119, %120 : vector<16x512xbf16>
    %c0_52 = arith.constant 0 : index
    %122 = arith.index_cast %108 : i32 to index
    %c0_53 = arith.constant 0 : index
    %123 = vector.load %arg16[%c0_52, %122, %c0_53] : memref<2x2048x32xbf16, #tpu.memory_space<vmem>>, vector<1x512x32xbf16>
    %124 = vector.shape_cast %123 : vector<1x512x32xbf16> to vector<512x32xbf16>
    %cst_54 = arith.constant dense<0.000000e+00> : vector<16x32xf32>
    %125 = tpu.matmul %121, %124, %cst_54 {dimension_numbers = #tpu.dot_dimension_numbers<[1], [0], [0], [1], [0, 0, 1, 1], [], []>} : vector<16x512xbf16>, vector<512x32xbf16>, vector<16x32xf32> -> vector<16x32xf32>
    %126 = arith.addf %106, %125 : vector<16x32xf32>
    %c1_i32 = arith.constant 1 : i32
    %c512_i32_55 = arith.constant 512 : i32
    %127 = arith.muli %c1_i32, %c512_i32_55 : i32
    %128 = tpu.assume_multiple %127, 512 : i32
    %c0_56 = arith.constant 0 : index
    %c0_57 = arith.constant 0 : index
    %129 = arith.index_cast %128 : i32 to index
    %130 = vector.load %arg14[%c0_56, %c0_57, %129] : memref<2x32x2048xbf16, #tpu.memory_space<vmem>>, vector<1x32x512xbf16>
    %131 = vector.shape_cast %130 : vector<1x32x512xbf16> to vector<32x512xbf16>
    %cst_58 = arith.constant dense<0.000000e+00> : vector<16x512xf32>
    %132 = tpu.matmul %105, %131, %cst_58 {dimension_numbers = #tpu.dot_dimension_numbers<[1], [0], [0], [1], [0, 0, 1, 1], [], []>} : vector<16x32xbf16>, vector<32x512xbf16>, vector<16x512xf32> -> vector<16x512xf32>
    %133 = arith.truncf %132 : vector<16x512xf32> to vector<16x512xbf16>
    %c0_59 = arith.constant 0 : index
    %c0_60 = arith.constant 0 : index
    %134 = arith.index_cast %128 : i32 to index
    %135 = vector.load %arg15[%c0_59, %c0_60, %134] : memref<2x1x2048xf32, #tpu.memory_space<vmem>>, vector<1x1x512xf32>
    %136 = vector.shape_cast %135 : vector<1x1x512xf32> to vector<1x512xf32>
    %137 = arith.truncf %136 : vector<1x512xf32> to vector<1x512xbf16>
    %138 = vector.broadcast %137 : vector<1x512xbf16> to vector<16x512xbf16>
    %139 = arith.addf %133, %138 : vector<16x512xbf16>
    %cst_61 = arith.constant 0.000000e+00 : bf16
    %140 = vector.broadcast %cst_61 : bf16 to vector<16x512xbf16>
    %141 = arith.maximumf %139, %140 : vector<16x512xbf16>
    %c0_62 = arith.constant 0 : index
    %142 = arith.index_cast %128 : i32 to index
    %c0_63 = arith.constant 0 : index
    %143 = vector.load %arg16[%c0_62, %142, %c0_63] : memref<2x2048x32xbf16, #tpu.memory_space<vmem>>, vector<1x512x32xbf16>
    %144 = vector.shape_cast %143 : vector<1x512x32xbf16> to vector<512x32xbf16>
    %cst_64 = arith.constant dense<0.000000e+00> : vector<16x32xf32>
    %145 = tpu.matmul %141, %144, %cst_64 {dimension_numbers = #tpu.dot_dimension_numbers<[1], [0], [0], [1], [0, 0, 1, 1], [], []>} : vector<16x512xbf16>, vector<512x32xbf16>, vector<16x32xf32> -> vector<16x32xf32>
    %146 = arith.addf %126, %145 : vector<16x32xf32>
    %c2_i32 = arith.constant 2 : i32
    %c512_i32_65 = arith.constant 512 : i32
    %147 = arith.muli %c2_i32, %c512_i32_65 : i32
    %148 = tpu.assume_multiple %147, 512 : i32
    %c0_66 = arith.constant 0 : index
    %c0_67 = arith.constant 0 : index
    %149 = arith.index_cast %148 : i32 to index
    %150 = vector.load %arg14[%c0_66, %c0_67, %149] : memref<2x32x2048xbf16, #tpu.memory_space<vmem>>, vector<1x32x512xbf16>
    %151 = vector.shape_cast %150 : vector<1x32x512xbf16> to vector<32x512xbf16>
    %cst_68 = arith.constant dense<0.000000e+00> : vector<16x512xf32>
    %152 = tpu.matmul %105, %151, %cst_68 {dimension_numbers = #tpu.dot_dimension_numbers<[1], [0], [0], [1], [0, 0, 1, 1], [], []>} : vector<16x32xbf16>, vector<32x512xbf16>, vector<16x512xf32> -> vector<16x512xf32>
    %153 = arith.truncf %152 : vector<16x512xf32> to vector<16x512xbf16>
    %c0_69 = arith.constant 0 : index
    %c0_70 = arith.constant 0 : index
    %154 = arith.index_cast %148 : i32 to index
    %155 = vector.load %arg15[%c0_69, %c0_70, %154] : memref<2x1x2048xf32, #tpu.memory_space<vmem>>, vector<1x1x512xf32>
    %156 = vector.shape_cast %155 : vector<1x1x512xf32> to vector<1x512xf32>
    %157 = arith.truncf %156 : vector<1x512xf32> to vector<1x512xbf16>
    %158 = vector.broadcast %157 : vector<1x512xbf16> to vector<16x512xbf16>
    %159 = arith.addf %153, %158 : vector<16x512xbf16>
    %cst_71 = arith.constant 0.000000e+00 : bf16
    %160 = vector.broadcast %cst_71 : bf16 to vector<16x512xbf16>
    %161 = arith.maximumf %159, %160 : vector<16x512xbf16>
    %c0_72 = arith.constant 0 : index
    %162 = arith.index_cast %148 : i32 to index
    %c0_73 = arith.constant 0 : index
    %163 = vector.load %arg16[%c0_72, %162, %c0_73] : memref<2x2048x32xbf16, #tpu.memory_space<vmem>>, vector<1x512x32xbf16>
    %164 = vector.shape_cast %163 : vector<1x512x32xbf16> to vector<512x32xbf16>
    %cst_74 = arith.constant dense<0.000000e+00> : vector<16x32xf32>
    %165 = tpu.matmul %161, %164, %cst_74 {dimension_numbers = #tpu.dot_dimension_numbers<[1], [0], [0], [1], [0, 0, 1, 1], [], []>} : vector<16x512xbf16>, vector<512x32xbf16>, vector<16x32xf32> -> vector<16x32xf32>
    %166 = arith.addf %146, %165 : vector<16x32xf32>
    %c3_i32 = arith.constant 3 : i32
    %c512_i32_75 = arith.constant 512 : i32
    %167 = arith.muli %c3_i32, %c512_i32_75 : i32
    %168 = tpu.assume_multiple %167, 512 : i32
    %c0_76 = arith.constant 0 : index
    %c0_77 = arith.constant 0 : index
    %169 = arith.index_cast %168 : i32 to index
    %170 = vector.load %arg14[%c0_76, %c0_77, %169] : memref<2x32x2048xbf16, #tpu.memory_space<vmem>>, vector<1x32x512xbf16>
    %171 = vector.shape_cast %170 : vector<1x32x512xbf16> to vector<32x512xbf16>
    %cst_78 = arith.constant dense<0.000000e+00> : vector<16x512xf32>
    %172 = tpu.matmul %105, %171, %cst_78 {dimension_numbers = #tpu.dot_dimension_numbers<[1], [0], [0], [1], [0, 0, 1, 1], [], []>} : vector<16x32xbf16>, vector<32x512xbf16>, vector<16x512xf32> -> vector<16x512xf32>
    %173 = arith.truncf %172 : vector<16x512xf32> to vector<16x512xbf16>
    %c0_79 = arith.constant 0 : index
    %c0_80 = arith.constant 0 : index
    %174 = arith.index_cast %168 : i32 to index
    %175 = vector.load %arg15[%c0_79, %c0_80, %174] : memref<2x1x2048xf32, #tpu.memory_space<vmem>>, vector<1x1x512xf32>
    %176 = vector.shape_cast %175 : vector<1x1x512xf32> to vector<1x512xf32>
    %177 = arith.truncf %176 : vector<1x512xf32> to vector<1x512xbf16>
    %178 = vector.broadcast %177 : vector<1x512xbf16> to vector<16x512xbf16>
    %179 = arith.addf %173, %178 : vector<16x512xbf16>
    %cst_81 = arith.constant 0.000000e+00 : bf16
    %180 = vector.broadcast %cst_81 : bf16 to vector<16x512xbf16>
    %181 = arith.maximumf %179, %180 : vector<16x512xbf16>
    %c0_82 = arith.constant 0 : index
    %182 = arith.index_cast %168 : i32 to index
    %c0_83 = arith.constant 0 : index
    %183 = vector.load %arg16[%c0_82, %182, %c0_83] : memref<2x2048x32xbf16, #tpu.memory_space<vmem>>, vector<1x512x32xbf16>
    %184 = vector.shape_cast %183 : vector<1x512x32xbf16> to vector<512x32xbf16>
    %cst_84 = arith.constant dense<0.000000e+00> : vector<16x32xf32>
    %185 = tpu.matmul %181, %184, %cst_84 {dimension_numbers = #tpu.dot_dimension_numbers<[1], [0], [0], [1], [0, 0, 1, 1], [], []>} : vector<16x512xbf16>, vector<512x32xbf16>, vector<16x32xf32> -> vector<16x32xf32>
    %186 = arith.addf %166, %185 : vector<16x32xf32>
    %c4_i32 = arith.constant 4 : i32
    %c0_85 = arith.constant 0 : index
    %c0_86 = arith.constant 0 : index
    %c0_87 = arith.constant 0 : index
    %187 = vector.load %arg17[%c0_85, %c0_86, %c0_87] : memref<2x1x32xf32, #tpu.memory_space<vmem>>, vector<1x1x32xf32>
    %188 = vector.shape_cast %187 : vector<1x1x32xf32> to vector<1x32xf32>
    %189 = vector.broadcast %188 : vector<1x32xf32> to vector<16x32xf32>
    %190 = arith.addf %186, %189 : vector<16x32xf32>
    %191 = vector.shape_cast %190 : vector<16x32xf32> to vector<2x8x32xf32>
    %192 = arith.addf %103, %191 : vector<2x8x32xf32>
    %cst_88 = arith.constant dense<0.000000e+00> : vector<2x8xf32>
    %193 = vector.multi_reduction <add>, %192, %cst_88 [2] : vector<2x8x32xf32> to vector<2x8xf32>
    %194 = vector.shape_cast %193 : vector<2x8xf32> to vector<2x8x1xf32>
    %cst_89 = arith.constant 3.200000e+01 : f32
    %195 = vector.broadcast %cst_89 : f32 to vector<2x8x1xf32>
    %196 = arith.divf %194, %195 : vector<2x8x1xf32>
    %197 = vector.broadcast %196 : vector<2x8x1xf32> to vector<2x8x32xf32>
    %198 = arith.subf %192, %197 : vector<2x8x32xf32>
    %199 = arith.mulf %198, %198 : vector<2x8x32xf32>
    %cst_90 = arith.constant dense<0.000000e+00> : vector<2x8xf32>
    %200 = vector.multi_reduction <add>, %199, %cst_90 [2] : vector<2x8x32xf32> to vector<2x8xf32>
    %201 = vector.shape_cast %200 : vector<2x8xf32> to vector<2x8x1xf32>
    %cst_91 = arith.constant 3.200000e+01 : f32
    %202 = vector.broadcast %cst_91 : f32 to vector<2x8x1xf32>
    %203 = arith.divf %201, %202 : vector<2x8x1xf32>
    %204 = vector.broadcast %196 : vector<2x8x1xf32> to vector<2x8x32xf32>
    %205 = arith.subf %192, %204 : vector<2x8x32xf32>
    %cst_92 = arith.constant 9.99999974E-6 : f32
    %206 = vector.broadcast %cst_92 : f32 to vector<2x8x1xf32>
    %207 = arith.addf %203, %206 : vector<2x8x1xf32>
    %208 = math.rsqrt %207 : vector<2x8x1xf32>
    %209 = vector.broadcast %208 : vector<2x8x1xf32> to vector<2x8x32xf32>
    %210 = arith.mulf %205, %209 : vector<2x8x32xf32>
    %c0_93 = arith.constant 0 : index
    %c0_94 = arith.constant 0 : index
    %c0_95 = arith.constant 0 : index
    %211 = vector.load %arg12[%c0_93, %c0_94, %c0_95] : memref<2x1x32xf32, #tpu.memory_space<vmem>>, vector<1x1x32xf32>
    %212 = vector.shape_cast %211 : vector<1x1x32xf32> to vector<1x32xf32>
    %213 = vector.shape_cast %212 : vector<1x32xf32> to vector<1x1x32xf32>
    %214 = vector.broadcast %213 : vector<1x1x32xf32> to vector<2x8x32xf32>
    %215 = arith.mulf %210, %214 : vector<2x8x32xf32>
    %c0_96 = arith.constant 0 : index
    %c0_97 = arith.constant 0 : index
    %c0_98 = arith.constant 0 : index
    %216 = vector.load %arg13[%c0_96, %c0_97, %c0_98] : memref<2x1x32xf32, #tpu.memory_space<vmem>>, vector<1x1x32xf32>
    %217 = vector.shape_cast %216 : vector<1x1x32xf32> to vector<1x32xf32>
    %218 = vector.shape_cast %217 : vector<1x32xf32> to vector<1x1x32xf32>
    %219 = vector.broadcast %218 : vector<1x1x32xf32> to vector<2x8x32xf32>
    %220 = arith.addf %215, %219 : vector<2x8x32xf32>
    %221 = vector.shape_cast %220 : vector<2x8x32xf32> to vector<16x32xf32>
    %222 = arith.truncf %221 : vector<16x32xf32> to vector<16x32xbf16>
    %c1_99 = arith.constant 1 : index
    %c0_100 = arith.constant 0 : index
    %c0_101 = arith.constant 0 : index
    %223 = vector.load %arg6[%c1_99, %c0_100, %c0_101] : memref<2x32x96xbf16, #tpu.memory_space<vmem>>, vector<1x32x96xbf16>
    %224 = vector.shape_cast %223 : vector<1x32x96xbf16> to vector<32x96xbf16>
    %cst_102 = arith.constant dense<0.000000e+00> : vector<16x96xf32>
    %225 = tpu.matmul %222, %224, %cst_102 {dimension_numbers = #tpu.dot_dimension_numbers<[1], [0], [0], [1], [0, 0, 1, 1], [], []>} : vector<16x32xbf16>, vector<32x96xbf16>, vector<16x96xf32> -> vector<16x96xf32>
    %c1_103 = arith.constant 1 : index
    %c0_104 = arith.constant 0 : index
    %c0_105 = arith.constant 0 : index
    %226 = vector.load %arg7[%c1_103, %c0_104, %c0_105] : memref<2x1x96xf32, #tpu.memory_space<vmem>>, vector<1x1x96xf32>
    %227 = vector.shape_cast %226 : vector<1x1x96xf32> to vector<1x96xf32>
    %228 = vector.broadcast %227 : vector<1x96xf32> to vector<16x96xf32>
    %229 = arith.addf %225, %228 : vector<16x96xf32>
    %cst_106 = arith.constant 0.000000e+00 : f32
    %230 = vector.broadcast %cst_106 : f32 to vector<16x32xf32>
    %231 = vector.extract_strided_slice %229 {offsets = [0, 0], sizes = [16, 16], strides = [1, 1]} : vector<16x96xf32> to vector<16x16xf32>
    %232 = vector.shape_cast %231 : vector<16x16xf32> to vector<2x8x16xf32>
    %233 = vector.extract_strided_slice %229 {offsets = [0, 32], sizes = [16, 16], strides = [1, 1]} : vector<16x96xf32> to vector<16x16xf32>
    %234 = vector.shape_cast %233 : vector<16x16xf32> to vector<2x8x16xf32>
    %235 = vector.extract_strided_slice %229 {offsets = [0, 64], sizes = [16, 16], strides = [1, 1]} : vector<16x96xf32> to vector<16x16xf32>
    %236 = vector.shape_cast %235 : vector<16x16xf32> to vector<2x8x16xf32>
    "tpu.trace_start"() <{level = 10 : i32, message = "bqd,bkd->bqk"}> : () -> ()
    %cst_107 = arith.constant dense<0.000000e+00> : vector<2x8x8xf32>
    %237 = tpu.matmul %232, %234, %cst_107 {dimension_numbers = #tpu.dot_dimension_numbers<[2], [2], [1], [1], [0, 0, 0, 1, 1, 1], [0], [0]>} : vector<2x8x16xf32>, vector<2x8x16xf32>, vector<2x8x8xf32> -> vector<2x8x8xf32>
    "tpu.trace_stop"() : () -> ()
    %238 = vector.shape_cast %4 : vector<2x8xf32> to vector<2x1x8xf32>
    %239 = vector.broadcast %238 : vector<2x1x8xf32> to vector<2x8x8xf32>
    %240 = arith.addf %237, %239 : vector<2x8x8xf32>
    %cst_108 = arith.constant dense<0xFF800000> : vector<2x8xf32>
    %241 = vector.multi_reduction <maximumf>, %240, %cst_108 [2] : vector<2x8x8xf32> to vector<2x8xf32>
    %242 = vector.shape_cast %241 : vector<2x8xf32> to vector<2x8x1xf32>
    %243 = vector.broadcast %242 : vector<2x8x1xf32> to vector<2x8x8xf32>
    %244 = arith.subf %240, %243 : vector<2x8x8xf32>
    %245 = math.exp %244 : vector<2x8x8xf32>
    %cst_109 = arith.constant dense<0.000000e+00> : vector<2x8xf32>
    %246 = vector.multi_reduction <add>, %245, %cst_109 [2] : vector<2x8x8xf32> to vector<2x8xf32>
    %247 = vector.shape_cast %246 : vector<2x8xf32> to vector<2x8x1xf32>
    %248 = tpu.reciprocal %247 {approx = true} : vector<2x8x1xf32> -> vector<2x8x1xf32>
    %249 = vector.broadcast %248 : vector<2x8x1xf32> to vector<2x8x8xf32>
    %250 = arith.mulf %245, %249 : vector<2x8x8xf32>
    "tpu.trace_start"() <{level = 10 : i32, message = "bqk,bkd->bqd"}> : () -> ()
    %cst_110 = arith.constant dense<0.000000e+00> : vector<2x8x16xf32>
    %251 = tpu.matmul %250, %236, %cst_110 {dimension_numbers = #tpu.dot_dimension_numbers<[2], [1], [1], [2], [0, 0, 0, 1, 1, 2], [0], [0]>} : vector<2x8x8xf32>, vector<2x8x16xf32>, vector<2x8x16xf32> -> vector<2x8x16xf32>
    "tpu.trace_stop"() : () -> ()
    %252 = vector.shape_cast %251 : vector<2x8x16xf32> to vector<16x16xf32>
    %253 = arith.truncf %252 : vector<16x16xf32> to vector<16x16xbf16>
    %c1_111 = arith.constant 1 : index
    %c0_112 = arith.constant 0 : index
    %c0_113 = arith.constant 0 : index
    %c0_114 = arith.constant 0 : index
    %254 = vector.load %arg8[%c1_111, %c0_112, %c0_113, %c0_114] : memref<2x2x16x32xbf16, #tpu.memory_space<vmem>>, vector<1x1x16x32xbf16>
    %255 = vector.shape_cast %254 : vector<1x1x16x32xbf16> to vector<16x32xbf16>
    %cst_115 = arith.constant dense<0.000000e+00> : vector<16x32xf32>
    %256 = tpu.matmul %253, %255, %cst_115 {dimension_numbers = #tpu.dot_dimension_numbers<[1], [0], [0], [1], [0, 0, 1, 1], [], []>} : vector<16x16xbf16>, vector<16x32xbf16>, vector<16x32xf32> -> vector<16x32xf32>
    %257 = arith.addf %230, %256 : vector<16x32xf32>
    %258 = vector.extract_strided_slice %229 {offsets = [0, 16], sizes = [16, 16], strides = [1, 1]} : vector<16x96xf32> to vector<16x16xf32>
    %259 = vector.shape_cast %258 : vector<16x16xf32> to vector<2x8x16xf32>
    %260 = vector.extract_strided_slice %229 {offsets = [0, 48], sizes = [16, 16], strides = [1, 1]} : vector<16x96xf32> to vector<16x16xf32>
    %261 = vector.shape_cast %260 : vector<16x16xf32> to vector<2x8x16xf32>
    %262 = vector.extract_strided_slice %229 {offsets = [0, 80], sizes = [16, 16], strides = [1, 1]} : vector<16x96xf32> to vector<16x16xf32>
    %263 = vector.shape_cast %262 : vector<16x16xf32> to vector<2x8x16xf32>
    "tpu.trace_start"() <{level = 10 : i32, message = "bqd,bkd->bqk"}> : () -> ()
    %cst_116 = arith.constant dense<0.000000e+00> : vector<2x8x8xf32>
    %264 = tpu.matmul %259, %261, %cst_116 {dimension_numbers = #tpu.dot_dimension_numbers<[2], [2], [1], [1], [0, 0, 0, 1, 1, 1], [0], [0]>} : vector<2x8x16xf32>, vector<2x8x16xf32>, vector<2x8x8xf32> -> vector<2x8x8xf32>
    "tpu.trace_stop"() : () -> ()
    %265 = vector.shape_cast %4 : vector<2x8xf32> to vector<2x1x8xf32>
    %266 = vector.broadcast %265 : vector<2x1x8xf32> to vector<2x8x8xf32>
    %267 = arith.addf %264, %266 : vector<2x8x8xf32>
    %cst_117 = arith.constant dense<0xFF800000> : vector<2x8xf32>
    %268 = vector.multi_reduction <maximumf>, %267, %cst_117 [2] : vector<2x8x8xf32> to vector<2x8xf32>
    %269 = vector.shape_cast %268 : vector<2x8xf32> to vector<2x8x1xf32>
    %270 = vector.broadcast %269 : vector<2x8x1xf32> to vector<2x8x8xf32>
    %271 = arith.subf %267, %270 : vector<2x8x8xf32>
    %272 = math.exp %271 : vector<2x8x8xf32>
    %cst_118 = arith.constant dense<0.000000e+00> : vector<2x8xf32>
    %273 = vector.multi_reduction <add>, %272, %cst_118 [2] : vector<2x8x8xf32> to vector<2x8xf32>
    %274 = vector.shape_cast %273 : vector<2x8xf32> to vector<2x8x1xf32>
    %275 = tpu.reciprocal %274 {approx = true} : vector<2x8x1xf32> -> vector<2x8x1xf32>
    %276 = vector.broadcast %275 : vector<2x8x1xf32> to vector<2x8x8xf32>
    %277 = arith.mulf %272, %276 : vector<2x8x8xf32>
    "tpu.trace_start"() <{level = 10 : i32, message = "bqk,bkd->bqd"}> : () -> ()
    %cst_119 = arith.constant dense<0.000000e+00> : vector<2x8x16xf32>
    %278 = tpu.matmul %277, %263, %cst_119 {dimension_numbers = #tpu.dot_dimension_numbers<[2], [1], [1], [2], [0, 0, 0, 1, 1, 2], [0], [0]>} : vector<2x8x8xf32>, vector<2x8x16xf32>, vector<2x8x16xf32> -> vector<2x8x16xf32>
    "tpu.trace_stop"() : () -> ()
    %279 = vector.shape_cast %278 : vector<2x8x16xf32> to vector<16x16xf32>
    %280 = arith.truncf %279 : vector<16x16xf32> to vector<16x16xbf16>
    %c1_120 = arith.constant 1 : index
    %c1_121 = arith.constant 1 : index
    %c0_122 = arith.constant 0 : index
    %c0_123 = arith.constant 0 : index
    %281 = vector.load %arg8[%c1_120, %c1_121, %c0_122, %c0_123] : memref<2x2x16x32xbf16, #tpu.memory_space<vmem>>, vector<1x1x16x32xbf16>
    %282 = vector.shape_cast %281 : vector<1x1x16x32xbf16> to vector<16x32xbf16>
    %cst_124 = arith.constant dense<0.000000e+00> : vector<16x32xf32>
    %283 = tpu.matmul %280, %282, %cst_124 {dimension_numbers = #tpu.dot_dimension_numbers<[1], [0], [0], [1], [0, 0, 1, 1], [], []>} : vector<16x16xbf16>, vector<16x32xbf16>, vector<16x32xf32> -> vector<16x32xf32>
    %284 = arith.addf %257, %283 : vector<16x32xf32>
    %c1_125 = arith.constant 1 : index
    %c0_126 = arith.constant 0 : index
    %c0_127 = arith.constant 0 : index
    %285 = vector.load %arg9[%c1_125, %c0_126, %c0_127] : memref<2x1x32xf32, #tpu.memory_space<vmem>>, vector<1x1x32xf32>
    %286 = vector.shape_cast %285 : vector<1x1x32xf32> to vector<1x32xf32>
    %287 = vector.broadcast %286 : vector<1x32xf32> to vector<16x32xf32>
    %288 = arith.addf %284, %287 : vector<16x32xf32>
    %289 = vector.shape_cast %288 : vector<16x32xf32> to vector<2x8x32xf32>
    %290 = arith.addf %220, %289 : vector<2x8x32xf32>
    %cst_128 = arith.constant dense<0.000000e+00> : vector<2x8xf32>
    %291 = vector.multi_reduction <add>, %290, %cst_128 [2] : vector<2x8x32xf32> to vector<2x8xf32>
    %292 = vector.shape_cast %291 : vector<2x8xf32> to vector<2x8x1xf32>
    %cst_129 = arith.constant 3.200000e+01 : f32
    %293 = vector.broadcast %cst_129 : f32 to vector<2x8x1xf32>
    %294 = arith.divf %292, %293 : vector<2x8x1xf32>
    %295 = vector.broadcast %294 : vector<2x8x1xf32> to vector<2x8x32xf32>
    %296 = arith.subf %290, %295 : vector<2x8x32xf32>
    %297 = arith.mulf %296, %296 : vector<2x8x32xf32>
    %cst_130 = arith.constant dense<0.000000e+00> : vector<2x8xf32>
    %298 = vector.multi_reduction <add>, %297, %cst_130 [2] : vector<2x8x32xf32> to vector<2x8xf32>
    %299 = vector.shape_cast %298 : vector<2x8xf32> to vector<2x8x1xf32>
    %cst_131 = arith.constant 3.200000e+01 : f32
    %300 = vector.broadcast %cst_131 : f32 to vector<2x8x1xf32>
    %301 = arith.divf %299, %300 : vector<2x8x1xf32>
    %302 = vector.broadcast %294 : vector<2x8x1xf32> to vector<2x8x32xf32>
    %303 = arith.subf %290, %302 : vector<2x8x32xf32>
    %cst_132 = arith.constant 9.99999974E-6 : f32
    %304 = vector.broadcast %cst_132 : f32 to vector<2x8x1xf32>
    %305 = arith.addf %301, %304 : vector<2x8x1xf32>
    %306 = math.rsqrt %305 : vector<2x8x1xf32>
    %307 = vector.broadcast %306 : vector<2x8x1xf32> to vector<2x8x32xf32>
    %308 = arith.mulf %303, %307 : vector<2x8x32xf32>
    %c1_133 = arith.constant 1 : index
    %c0_134 = arith.constant 0 : index
    %c0_135 = arith.constant 0 : index
    %309 = vector.load %arg10[%c1_133, %c0_134, %c0_135] : memref<2x1x32xf32, #tpu.memory_space<vmem>>, vector<1x1x32xf32>
    %310 = vector.shape_cast %309 : vector<1x1x32xf32> to vector<1x32xf32>
    %311 = vector.shape_cast %310 : vector<1x32xf32> to vector<1x1x32xf32>
    %312 = vector.broadcast %311 : vector<1x1x32xf32> to vector<2x8x32xf32>
    %313 = arith.mulf %308, %312 : vector<2x8x32xf32>
    %c1_136 = arith.constant 1 : index
    %c0_137 = arith.constant 0 : index
    %c0_138 = arith.constant 0 : index
    %314 = vector.load %arg11[%c1_136, %c0_137, %c0_138] : memref<2x1x32xf32, #tpu.memory_space<vmem>>, vector<1x1x32xf32>
    %315 = vector.shape_cast %314 : vector<1x1x32xf32> to vector<1x32xf32>
    %316 = vector.shape_cast %315 : vector<1x32xf32> to vector<1x1x32xf32>
    %317 = vector.broadcast %316 : vector<1x1x32xf32> to vector<2x8x32xf32>
    %318 = arith.addf %313, %317 : vector<2x8x32xf32>
    %319 = vector.shape_cast %318 : vector<2x8x32xf32> to vector<16x32xf32>
    %320 = arith.truncf %319 : vector<16x32xf32> to vector<16x32xbf16>
    %cst_139 = arith.constant 0.000000e+00 : f32
    %321 = vector.broadcast %cst_139 : f32 to vector<16x32xf32>
    %c0_i32_140 = arith.constant 0 : i32
    %c512_i32_141 = arith.constant 512 : i32
    %322 = arith.muli %c0_i32_140, %c512_i32_141 : i32
    %323 = tpu.assume_multiple %322, 512 : i32
    %c1_142 = arith.constant 1 : index
    %c0_143 = arith.constant 0 : index
    %324 = arith.index_cast %323 : i32 to index
    %325 = vector.load %arg14[%c1_142, %c0_143, %324] : memref<2x32x2048xbf16, #tpu.memory_space<vmem>>, vector<1x32x512xbf16>
    %326 = vector.shape_cast %325 : vector<1x32x512xbf16> to vector<32x512xbf16>
    %cst_144 = arith.constant dense<0.000000e+00> : vector<16x512xf32>
    %327 = tpu.matmul %320, %326, %cst_144 {dimension_numbers = #tpu.dot_dimension_numbers<[1], [0], [0], [1], [0, 0, 1, 1], [], []>} : vector<16x32xbf16>, vector<32x512xbf16>, vector<16x512xf32> -> vector<16x512xf32>
    %328 = arith.truncf %327 : vector<16x512xf32> to vector<16x512xbf16>
    %c1_145 = arith.constant 1 : index
    %c0_146 = arith.constant 0 : index
    %329 = arith.index_cast %323 : i32 to index
    %330 = vector.load %arg15[%c1_145, %c0_146, %329] : memref<2x1x2048xf32, #tpu.memory_space<vmem>>, vector<1x1x512xf32>
    %331 = vector.shape_cast %330 : vector<1x1x512xf32> to vector<1x512xf32>
    %332 = arith.truncf %331 : vector<1x512xf32> to vector<1x512xbf16>
    %333 = vector.broadcast %332 : vector<1x512xbf16> to vector<16x512xbf16>
    %334 = arith.addf %328, %333 : vector<16x512xbf16>
    %cst_147 = arith.constant 0.000000e+00 : bf16
    %335 = vector.broadcast %cst_147 : bf16 to vector<16x512xbf16>
    %336 = arith.maximumf %334, %335 : vector<16x512xbf16>
    %c1_148 = arith.constant 1 : index
    %337 = arith.index_cast %323 : i32 to index
    %c0_149 = arith.constant 0 : index
    %338 = vector.load %arg16[%c1_148, %337, %c0_149] : memref<2x2048x32xbf16, #tpu.memory_space<vmem>>, vector<1x512x32xbf16>
    %339 = vector.shape_cast %338 : vector<1x512x32xbf16> to vector<512x32xbf16>
    %cst_150 = arith.constant dense<0.000000e+00> : vector<16x32xf32>
    %340 = tpu.matmul %336, %339, %cst_150 {dimension_numbers = #tpu.dot_dimension_numbers<[1], [0], [0], [1], [0, 0, 1, 1], [], []>} : vector<16x512xbf16>, vector<512x32xbf16>, vector<16x32xf32> -> vector<16x32xf32>
    %341 = arith.addf %321, %340 : vector<16x32xf32>
    %c1_i32_151 = arith.constant 1 : i32
    %c512_i32_152 = arith.constant 512 : i32
    %342 = arith.muli %c1_i32_151, %c512_i32_152 : i32
    %343 = tpu.assume_multiple %342, 512 : i32
    %c1_153 = arith.constant 1 : index
    %c0_154 = arith.constant 0 : index
    %344 = arith.index_cast %343 : i32 to index
    %345 = vector.load %arg14[%c1_153, %c0_154, %344] : memref<2x32x2048xbf16, #tpu.memory_space<vmem>>, vector<1x32x512xbf16>
    %346 = vector.shape_cast %345 : vector<1x32x512xbf16> to vector<32x512xbf16>
    %cst_155 = arith.constant dense<0.000000e+00> : vector<16x512xf32>
    %347 = tpu.matmul %320, %346, %cst_155 {dimension_numbers = #tpu.dot_dimension_numbers<[1], [0], [0], [1], [0, 0, 1, 1], [], []>} : vector<16x32xbf16>, vector<32x512xbf16>, vector<16x512xf32> -> vector<16x512xf32>
    %348 = arith.truncf %347 : vector<16x512xf32> to vector<16x512xbf16>
    %c1_156 = arith.constant 1 : index
    %c0_157 = arith.constant 0 : index
    %349 = arith.index_cast %343 : i32 to index
    %350 = vector.load %arg15[%c1_156, %c0_157, %349] : memref<2x1x2048xf32, #tpu.memory_space<vmem>>, vector<1x1x512xf32>
    %351 = vector.shape_cast %350 : vector<1x1x512xf32> to vector<1x512xf32>
    %352 = arith.truncf %351 : vector<1x512xf32> to vector<1x512xbf16>
    %353 = vector.broadcast %352 : vector<1x512xbf16> to vector<16x512xbf16>
    %354 = arith.addf %348, %353 : vector<16x512xbf16>
    %cst_158 = arith.constant 0.000000e+00 : bf16
    %355 = vector.broadcast %cst_158 : bf16 to vector<16x512xbf16>
    %356 = arith.maximumf %354, %355 : vector<16x512xbf16>
    %c1_159 = arith.constant 1 : index
    %357 = arith.index_cast %343 : i32 to index
    %c0_160 = arith.constant 0 : index
    %358 = vector.load %arg16[%c1_159, %357, %c0_160] : memref<2x2048x32xbf16, #tpu.memory_space<vmem>>, vector<1x512x32xbf16>
    %359 = vector.shape_cast %358 : vector<1x512x32xbf16> to vector<512x32xbf16>
    %cst_161 = arith.constant dense<0.000000e+00> : vector<16x32xf32>
    %360 = tpu.matmul %356, %359, %cst_161 {dimension_numbers = #tpu.dot_dimension_numbers<[1], [0], [0], [1], [0, 0, 1, 1], [], []>} : vector<16x512xbf16>, vector<512x32xbf16>, vector<16x32xf32> -> vector<16x32xf32>
    %361 = arith.addf %341, %360 : vector<16x32xf32>
    %c2_i32_162 = arith.constant 2 : i32
    %c512_i32_163 = arith.constant 512 : i32
    %362 = arith.muli %c2_i32_162, %c512_i32_163 : i32
    %363 = tpu.assume_multiple %362, 512 : i32
    %c1_164 = arith.constant 1 : index
    %c0_165 = arith.constant 0 : index
    %364 = arith.index_cast %363 : i32 to index
    %365 = vector.load %arg14[%c1_164, %c0_165, %364] : memref<2x32x2048xbf16, #tpu.memory_space<vmem>>, vector<1x32x512xbf16>
    %366 = vector.shape_cast %365 : vector<1x32x512xbf16> to vector<32x512xbf16>
    %cst_166 = arith.constant dense<0.000000e+00> : vector<16x512xf32>
    %367 = tpu.matmul %320, %366, %cst_166 {dimension_numbers = #tpu.dot_dimension_numbers<[1], [0], [0], [1], [0, 0, 1, 1], [], []>} : vector<16x32xbf16>, vector<32x512xbf16>, vector<16x512xf32> -> vector<16x512xf32>
    %368 = arith.truncf %367 : vector<16x512xf32> to vector<16x512xbf16>
    %c1_167 = arith.constant 1 : index
    %c0_168 = arith.constant 0 : index
    %369 = arith.index_cast %363 : i32 to index
    %370 = vector.load %arg15[%c1_167, %c0_168, %369] : memref<2x1x2048xf32, #tpu.memory_space<vmem>>, vector<1x1x512xf32>
    %371 = vector.shape_cast %370 : vector<1x1x512xf32> to vector<1x512xf32>
    %372 = arith.truncf %371 : vector<1x512xf32> to vector<1x512xbf16>
    %373 = vector.broadcast %372 : vector<1x512xbf16> to vector<16x512xbf16>
    %374 = arith.addf %368, %373 : vector<16x512xbf16>
    %cst_169 = arith.constant 0.000000e+00 : bf16
    %375 = vector.broadcast %cst_169 : bf16 to vector<16x512xbf16>
    %376 = arith.maximumf %374, %375 : vector<16x512xbf16>
    %c1_170 = arith.constant 1 : index
    %377 = arith.index_cast %363 : i32 to index
    %c0_171 = arith.constant 0 : index
    %378 = vector.load %arg16[%c1_170, %377, %c0_171] : memref<2x2048x32xbf16, #tpu.memory_space<vmem>>, vector<1x512x32xbf16>
    %379 = vector.shape_cast %378 : vector<1x512x32xbf16> to vector<512x32xbf16>
    %cst_172 = arith.constant dense<0.000000e+00> : vector<16x32xf32>
    %380 = tpu.matmul %376, %379, %cst_172 {dimension_numbers = #tpu.dot_dimension_numbers<[1], [0], [0], [1], [0, 0, 1, 1], [], []>} : vector<16x512xbf16>, vector<512x32xbf16>, vector<16x32xf32> -> vector<16x32xf32>
    %381 = arith.addf %361, %380 : vector<16x32xf32>
    %c3_i32_173 = arith.constant 3 : i32
    %c512_i32_174 = arith.constant 512 : i32
    %382 = arith.muli %c3_i32_173, %c512_i32_174 : i32
    %383 = tpu.assume_multiple %382, 512 : i32
    %c1_175 = arith.constant 1 : index
    %c0_176 = arith.constant 0 : index
    %384 = arith.index_cast %383 : i32 to index
    %385 = vector.load %arg14[%c1_175, %c0_176, %384] : memref<2x32x2048xbf16, #tpu.memory_space<vmem>>, vector<1x32x512xbf16>
    %386 = vector.shape_cast %385 : vector<1x32x512xbf16> to vector<32x512xbf16>
    %cst_177 = arith.constant dense<0.000000e+00> : vector<16x512xf32>
    %387 = tpu.matmul %320, %386, %cst_177 {dimension_numbers = #tpu.dot_dimension_numbers<[1], [0], [0], [1], [0, 0, 1, 1], [], []>} : vector<16x32xbf16>, vector<32x512xbf16>, vector<16x512xf32> -> vector<16x512xf32>
    %388 = arith.truncf %387 : vector<16x512xf32> to vector<16x512xbf16>
    %c1_178 = arith.constant 1 : index
    %c0_179 = arith.constant 0 : index
    %389 = arith.index_cast %383 : i32 to index
    %390 = vector.load %arg15[%c1_178, %c0_179, %389] : memref<2x1x2048xf32, #tpu.memory_space<vmem>>, vector<1x1x512xf32>
    %391 = vector.shape_cast %390 : vector<1x1x512xf32> to vector<1x512xf32>
    %392 = arith.truncf %391 : vector<1x512xf32> to vector<1x512xbf16>
    %393 = vector.broadcast %392 : vector<1x512xbf16> to vector<16x512xbf16>
    %394 = arith.addf %388, %393 : vector<16x512xbf16>
    %cst_180 = arith.constant 0.000000e+00 : bf16
    %395 = vector.broadcast %cst_180 : bf16 to vector<16x512xbf16>
    %396 = arith.maximumf %394, %395 : vector<16x512xbf16>
    %c1_181 = arith.constant 1 : index
    %397 = arith.index_cast %383 : i32 to index
    %c0_182 = arith.constant 0 : index
    %398 = vector.load %arg16[%c1_181, %397, %c0_182] : memref<2x2048x32xbf16, #tpu.memory_space<vmem>>, vector<1x512x32xbf16>
    %399 = vector.shape_cast %398 : vector<1x512x32xbf16> to vector<512x32xbf16>
    %cst_183 = arith.constant dense<0.000000e+00> : vector<16x32xf32>
    %400 = tpu.matmul %396, %399, %cst_183 {dimension_numbers = #tpu.dot_dimension_numbers<[1], [0], [0], [1], [0, 0, 1, 1], [], []>} : vector<16x512xbf16>, vector<512x32xbf16>, vector<16x32xf32> -> vector<16x32xf32>
    %401 = arith.addf %381, %400 : vector<16x32xf32>
    %c4_i32_184 = arith.constant 4 : i32
    %c1_185 = arith.constant 1 : index
    %c0_186 = arith.constant 0 : index
    %c0_187 = arith.constant 0 : index
    %402 = vector.load %arg17[%c1_185, %c0_186, %c0_187] : memref<2x1x32xf32, #tpu.memory_space<vmem>>, vector<1x1x32xf32>
    %403 = vector.shape_cast %402 : vector<1x1x32xf32> to vector<1x32xf32>
    %404 = vector.broadcast %403 : vector<1x32xf32> to vector<16x32xf32>
    %405 = arith.addf %401, %404 : vector<16x32xf32>
    %406 = vector.shape_cast %405 : vector<16x32xf32> to vector<2x8x32xf32>
    %407 = arith.addf %318, %406 : vector<2x8x32xf32>
    %cst_188 = arith.constant dense<0.000000e+00> : vector<2x8xf32>
    %408 = vector.multi_reduction <add>, %407, %cst_188 [2] : vector<2x8x32xf32> to vector<2x8xf32>
    %409 = vector.shape_cast %408 : vector<2x8xf32> to vector<2x8x1xf32>
    %cst_189 = arith.constant 3.200000e+01 : f32
    %410 = vector.broadcast %cst_189 : f32 to vector<2x8x1xf32>
    %411 = arith.divf %409, %410 : vector<2x8x1xf32>
    %412 = vector.broadcast %411 : vector<2x8x1xf32> to vector<2x8x32xf32>
    %413 = arith.subf %407, %412 : vector<2x8x32xf32>
    %414 = arith.mulf %413, %413 : vector<2x8x32xf32>
    %cst_190 = arith.constant dense<0.000000e+00> : vector<2x8xf32>
    %415 = vector.multi_reduction <add>, %414, %cst_190 [2] : vector<2x8x32xf32> to vector<2x8xf32>
    %416 = vector.shape_cast %415 : vector<2x8xf32> to vector<2x8x1xf32>
    %cst_191 = arith.constant 3.200000e+01 : f32
    %417 = vector.broadcast %cst_191 : f32 to vector<2x8x1xf32>
    %418 = arith.divf %416, %417 : vector<2x8x1xf32>
    %419 = vector.broadcast %411 : vector<2x8x1xf32> to vector<2x8x32xf32>
    %420 = arith.subf %407, %419 : vector<2x8x32xf32>
    %cst_192 = arith.constant 9.99999974E-6 : f32
    %421 = vector.broadcast %cst_192 : f32 to vector<2x8x1xf32>
    %422 = arith.addf %418, %421 : vector<2x8x1xf32>
    %423 = math.rsqrt %422 : vector<2x8x1xf32>
    %424 = vector.broadcast %423 : vector<2x8x1xf32> to vector<2x8x32xf32>
    %425 = arith.mulf %420, %424 : vector<2x8x32xf32>
    %c1_193 = arith.constant 1 : index
    %c0_194 = arith.constant 0 : index
    %c0_195 = arith.constant 0 : index
    %426 = vector.load %arg12[%c1_193, %c0_194, %c0_195] : memref<2x1x32xf32, #tpu.memory_space<vmem>>, vector<1x1x32xf32>
    %427 = vector.shape_cast %426 : vector<1x1x32xf32> to vector<1x32xf32>
    %428 = vector.shape_cast %427 : vector<1x32xf32> to vector<1x1x32xf32>
    %429 = vector.broadcast %428 : vector<1x1x32xf32> to vector<2x8x32xf32>
    %430 = arith.mulf %425, %429 : vector<2x8x32xf32>
    %c1_196 = arith.constant 1 : index
    %c0_197 = arith.constant 0 : index
    %c0_198 = arith.constant 0 : index
    %431 = vector.load %arg13[%c1_196, %c0_197, %c0_198] : memref<2x1x32xf32, #tpu.memory_space<vmem>>, vector<1x1x32xf32>
    %432 = vector.shape_cast %431 : vector<1x1x32xf32> to vector<1x32xf32>
    %433 = vector.shape_cast %432 : vector<1x32xf32> to vector<1x1x32xf32>
    %434 = vector.broadcast %433 : vector<1x1x32xf32> to vector<2x8x32xf32>
    %435 = arith.addf %430, %434 : vector<2x8x32xf32>
    %436 = vector.shape_cast %435 : vector<2x8x32xf32> to vector<16x32xf32>
    %c0_199 = arith.constant 0 : index
    %c0_200 = arith.constant 0 : index
    %437 = vector.load %arg18[%c0_199, %c0_200] : memref<32x16xf32, #tpu.memory_space<vmem>>, vector<32x16xf32>
    %cst_201 = arith.constant dense<0.000000e+00> : vector<16x16xf32>
    %438 = tpu.matmul %436, %437, %cst_201 {dimension_numbers = #tpu.dot_dimension_numbers<[1], [0], [0], [1], [0, 0, 1, 1], [], []>} : vector<16x32xf32>, vector<32x16xf32>, vector<16x16xf32> -> vector<16x16xf32>
    %c0_202 = arith.constant 0 : index
    %c0_203 = arith.constant 0 : index
    %439 = vector.load %arg19[%c0_202, %c0_203] : memref<1x16xf32, #tpu.memory_space<vmem>>, vector<1x16xf32>
    %440 = vector.broadcast %439 : vector<1x16xf32> to vector<16x16xf32>
    %441 = arith.addf %438, %440 : vector<16x16xf32>
    %442 = vector.shape_cast %441 : vector<16x16xf32> to vector<1x2x8x16xf32>
    %c0_204 = arith.constant 0 : index
    %c0_205 = arith.constant 0 : index
    %c0_206 = arith.constant 0 : index
    %443 = vector.load %arg4[%c0_204, %c0_205, %c0_206] : memref<1x1x24xf32, #tpu.memory_space<vmem>>, vector<1x1x24xf32>
    %444 = vector.shape_cast %443 : vector<1x1x24xf32> to vector<1x24xf32>
    %c0_207 = arith.constant 0 : index
    %c0_208 = arith.constant 0 : index
    %445 = vector.load %arg20[%c0_207, %c0_208] : memref<24x16xf32, #tpu.memory_space<vmem>>, vector<24x16xf32>
    %cst_209 = arith.constant dense<0.000000e+00> : vector<1x16xf32>
    %446 = tpu.matmul %444, %445, %cst_209 {dimension_numbers = #tpu.dot_dimension_numbers<[1], [0], [0], [1], [0, 0, 1, 1], [], []>} : vector<1x24xf32>, vector<24x16xf32>, vector<1x16xf32> -> vector<1x16xf32>
    %c0_210 = arith.constant 0 : index
    %c0_211 = arith.constant 0 : index
    %447 = vector.load %arg21[%c0_210, %c0_211] : memref<1x16xf32, #tpu.memory_space<vmem>>, vector<1x16xf32>
    %448 = arith.addf %446, %447 : vector<1x16xf32>
    %c0_212 = arith.constant 0 : index
    %c0_213 = arith.constant 0 : index
    %c0_214 = arith.constant 0 : index
    %449 = vector.load %arg5[%c0_212, %c0_213, %c0_214] : memref<1x1x20xf32, #tpu.memory_space<vmem>>, vector<1x1x20xf32>
    %450 = vector.shape_cast %449 : vector<1x1x20xf32> to vector<1x20xf32>
    %c0_215 = arith.constant 0 : index
    %c0_216 = arith.constant 0 : index
    %451 = vector.load %arg22[%c0_215, %c0_216] : memref<20x16xf32, #tpu.memory_space<vmem>>, vector<20x16xf32>
    %cst_217 = arith.constant dense<0.000000e+00> : vector<1x16xf32>
    %452 = tpu.matmul %450, %451, %cst_217 {dimension_numbers = #tpu.dot_dimension_numbers<[1], [0], [0], [1], [0, 0, 1, 1], [], []>} : vector<1x20xf32>, vector<20x16xf32>, vector<1x16xf32> -> vector<1x16xf32>
    %c0_218 = arith.constant 0 : index
    %c0_219 = arith.constant 0 : index
    %453 = vector.load %arg23[%c0_218, %c0_219] : memref<1x16xf32, #tpu.memory_space<vmem>>, vector<1x16xf32>
    %454 = arith.addf %452, %453 : vector<1x16xf32>
    %455 = vector.shape_cast %448 : vector<1x16xf32> to vector<1x1x16xf32>
    %456 = vector.shape_cast %454 : vector<1x16xf32> to vector<1x1x16xf32>
    %457 = tpu.concatenate %455, %456 in 1 : vector<1x1x16xf32>, vector<1x1x16xf32> -> vector<1x2x16xf32>
    %458 = vector.shape_cast %457 : vector<1x2x16xf32> to vector<1x2x1x16xf32>
    %459 = vector.broadcast %458 : vector<1x2x1x16xf32> to vector<1x2x8x16xf32>
    %460 = arith.mulf %442, %459 : vector<1x2x8x16xf32>
    %cst_220 = arith.constant dense<0.000000e+00> : vector<1x2x8xf32>
    %461 = vector.multi_reduction <add>, %460, %cst_220 [3] : vector<1x2x8x16xf32> to vector<1x2x8xf32>
    %c0_221 = arith.constant 0 : index
    %c0_222 = arith.constant 0 : index
    %462 = vector.load %arg28[%c0_221, %c0_222] : memref<2x2xf32, #tpu.memory_space<vmem>>, vector<2x2xf32>
    %c0_223 = arith.constant 0 : index
    %c0_224 = arith.constant 0 : index
    %c0_225 = arith.constant 0 : index
    %463 = vector.load %arg3[%c0_223, %c0_224, %c0_225] : memref<1x2x8xf32, #tpu.memory_space<vmem>>, vector<1x2x8xf32>
    %464 = vector.extract_strided_slice %462 {offsets = [0, 0], sizes = [2, 1], strides = [1, 1]} : vector<2x2xf32> to vector<2x1xf32>
    %465 = vector.shape_cast %464 : vector<2x1xf32> to vector<1x2x1xf32>
    %466 = vector.broadcast %465 : vector<1x2x1xf32> to vector<1x2x8xf32>
    %467 = arith.mulf %463, %466 : vector<1x2x8xf32>
    %468 = arith.addf %461, %467 : vector<1x2x8xf32>
    %469 = vector.extract_strided_slice %462 {offsets = [0, 1], sizes = [2, 1], strides = [1, 1]} : vector<2x2xf32> to vector<2x1xf32>
    %470 = vector.shape_cast %469 : vector<2x1xf32> to vector<1x2x1xf32>
    %471 = vector.broadcast %470 : vector<1x2x1xf32> to vector<1x2x8xf32>
    %472 = arith.addf %468, %471 : vector<1x2x8xf32>
    %473 = vector.shape_cast %472 : vector<1x2x8xf32> to vector<1x2x8x1xf32>
    %474 = vector.broadcast %473 : vector<1x2x8x1xf32> to vector<1x2x8x16xf32>
    %475 = arith.mulf %474, %442 : vector<1x2x8x16xf32>
    %476 = vector.shape_cast %3 : vector<1x2x8xf32> to vector<1x2x8x1xf32>
    %477 = vector.broadcast %476 : vector<1x2x8x1xf32> to vector<1x2x8x16xf32>
    %478 = arith.addf %475, %477 : vector<1x2x8x16xf32>
    %cst_226 = arith.constant dense<0xFF800000> : vector<1x2x16xf32>
    %479 = vector.multi_reduction <maximumf>, %478, %cst_226 [2] : vector<1x2x8x16xf32> to vector<1x2x16xf32>
    %480 = vector.extract_strided_slice %479 {offsets = [0, 0, 0], sizes = [1, 1, 16], strides = [1, 1, 1]} : vector<1x2x16xf32> to vector<1x1x16xf32>
    %481 = vector.shape_cast %480 : vector<1x1x16xf32> to vector<1x16xf32>
    %c0_227 = arith.constant 0 : index
    %c0_228 = arith.constant 0 : index
    %482 = vector.load %arg24[%c0_227, %c0_228] : memref<16x32xf32, #tpu.memory_space<vmem>>, vector<16x32xf32>
    %cst_229 = arith.constant dense<0.000000e+00> : vector<1x32xf32>
    %483 = tpu.matmul %481, %482, %cst_229 {dimension_numbers = #tpu.dot_dimension_numbers<[1], [0], [0], [1], [0, 0, 1, 1], [], []>} : vector<1x16xf32>, vector<16x32xf32>, vector<1x32xf32> -> vector<1x32xf32>
    %c0_230 = arith.constant 0 : index
    %c0_231 = arith.constant 0 : index
    %484 = vector.load %arg25[%c0_230, %c0_231] : memref<1x32xf32, #tpu.memory_space<vmem>>, vector<1x32xf32>
    %485 = arith.addf %483, %484 : vector<1x32xf32>
    %486 = vector.extract_strided_slice %479 {offsets = [0, 1, 0], sizes = [1, 1, 16], strides = [1, 1, 1]} : vector<1x2x16xf32> to vector<1x1x16xf32>
    %487 = vector.shape_cast %486 : vector<1x1x16xf32> to vector<1x16xf32>
    %c0_232 = arith.constant 0 : index
    %c0_233 = arith.constant 0 : index
    %488 = vector.load %arg26[%c0_232, %c0_233] : memref<16x32xf32, #tpu.memory_space<vmem>>, vector<16x32xf32>
    %cst_234 = arith.constant dense<0.000000e+00> : vector<1x32xf32>
    %489 = tpu.matmul %487, %488, %cst_234 {dimension_numbers = #tpu.dot_dimension_numbers<[1], [0], [0], [1], [0, 0, 1, 1], [], []>} : vector<1x16xf32>, vector<16x32xf32>, vector<1x32xf32> -> vector<1x32xf32>
    %c0_235 = arith.constant 0 : index
    %c0_236 = arith.constant 0 : index
    %490 = vector.load %arg27[%c0_235, %c0_236] : memref<1x32xf32, #tpu.memory_space<vmem>>, vector<1x32xf32>
    %491 = arith.addf %489, %490 : vector<1x32xf32>
    %492 = vector.shape_cast %485 : vector<1x32xf32> to vector<1x1x32xf32>
    %493 = vector.shape_cast %491 : vector<1x32xf32> to vector<1x1x32xf32>
    %494 = tpu.concatenate %492, %493 in 1 : vector<1x1x32xf32>, vector<1x1x32xf32> -> vector<1x2x32xf32>
    %c0_237 = arith.constant 0 : index
    %c0_238 = arith.constant 0 : index
    %c0_239 = arith.constant 0 : index
    %495 = vector.load %arg29[%c0_237, %c0_238, %c0_239] : memref<1x2x32xf32, #tpu.memory_space<vmem>>, vector<1x2x32xf32>
    tpu.vector_store %arg29[%c0_237, %c0_238, %c0_239], %494 {strides = array<i32>} : memref<1x2x32xf32, #tpu.memory_space<vmem>>, vector<1x2x32xf32>,
    return
  }
  func.func @transform_0(%arg0: i32) -> (i32, i32, i32, i32) {
    %c0_i32 = arith.constant 0 : i32
    %c0_i32_0 = arith.constant 0 : i32
    %c0_i32_1 = arith.constant 0 : i32
    %c0_i32_2 = arith.constant 0 : i32
    return %arg0, %c0_i32, %c0_i32_0, %c0_i32_1 : i32, i32, i32, i32
  }
  func.func @transform_1(%arg0: i32) -> (i32, i32, i32) {
    %c0_i32 = arith.constant 0 : i32
    %c0_i32_0 = arith.constant 0 : i32
    %c0_i32_1 = arith.constant 0 : i32
    return %arg0, %c0_i32, %c0_i32_0 : i32, i32, i32
  }
  func.func @transform_2(%arg0: i32) -> (i32, i32, i32) {
    %c0_i32 = arith.constant 0 : i32
    %c0_i32_0 = arith.constant 0 : i32
    %c0_i32_1 = arith.constant 0 : i32
    return %arg0, %c0_i32, %c0_i32_0 : i32, i32, i32
  }
  func.func @transform_3(%arg0: i32) -> (i32, i32, i32) {
    %c0_i32 = arith.constant 0 : i32
    %c0_i32_0 = arith.constant 0 : i32
    %c0_i32_1 = arith.constant 0 : i32
    return %arg0, %c0_i32, %c0_i32_0 : i32, i32, i32
  }
  func.func @transform_4(%arg0: i32) -> (i32, i32, i32) {
    %c0_i32 = arith.constant 0 : i32
    %c0_i32_0 = arith.constant 0 : i32
    %c0_i32_1 = arith.constant 0 : i32
    return %arg0, %c0_i32, %c0_i32_0 : i32, i32, i32
  }
  func.func @transform_5(%arg0: i32) -> (i32, i32, i32) {
    %c0_i32 = arith.constant 0 : i32
    %c0_i32_0 = arith.constant 0 : i32
    %c0_i32_1 = arith.constant 0 : i32
    %c0_i32_2 = arith.constant 0 : i32
    return %c0_i32, %c0_i32_0, %c0_i32_1 : i32, i32, i32
  }
  func.func @transform_6(%arg0: i32) -> (i32, i32, i32) {
    %c0_i32 = arith.constant 0 : i32
    %c0_i32_0 = arith.constant 0 : i32
    %c0_i32_1 = arith.constant 0 : i32
    %c0_i32_2 = arith.constant 0 : i32
    return %c0_i32, %c0_i32_0, %c0_i32_1 : i32, i32, i32
  }
  func.func @transform_7(%arg0: i32) -> (i32, i32, i32, i32) {
    %c0_i32 = arith.constant 0 : i32
    %c0_i32_0 = arith.constant 0 : i32
    %c0_i32_1 = arith.constant 0 : i32
    %c0_i32_2 = arith.constant 0 : i32
    %c0_i32_3 = arith.constant 0 : i32
    return %c0_i32, %c0_i32_0, %c0_i32_1, %c0_i32_2 : i32, i32, i32, i32
  }
  func.func @transform_8(%arg0: i32) -> (i32, i32, i32) {
    %c0_i32 = arith.constant 0 : i32
    %c0_i32_0 = arith.constant 0 : i32
    %c0_i32_1 = arith.constant 0 : i32
    %c0_i32_2 = arith.constant 0 : i32
    return %c0_i32, %c0_i32_0, %c0_i32_1 : i32, i32, i32
  }
  func.func @transform_9(%arg0: i32) -> (i32, i32, i32) {
    %c0_i32 = arith.constant 0 : i32
    %c0_i32_0 = arith.constant 0 : i32
    %c0_i32_1 = arith.constant 0 : i32
    %c0_i32_2 = arith.constant 0 : i32
    return %c0_i32, %c0_i32_0, %c0_i32_1 : i32, i32, i32
  }
  func.func @transform_10(%arg0: i32) -> (i32, i32, i32) {
    %c0_i32 = arith.constant 0 : i32
    %c0_i32_0 = arith.constant 0 : i32
    %c0_i32_1 = arith.constant 0 : i32
    %c0_i32_2 = arith.constant 0 : i32
    return %c0_i32, %c0_i32_0, %c0_i32_1 : i32, i32, i32
  }
  func.func @transform_11(%arg0: i32) -> (i32, i32, i32) {
    %c0_i32 = arith.constant 0 : i32
    %c0_i32_0 = arith.constant 0 : i32
    %c0_i32_1 = arith.constant 0 : i32
    %c0_i32_2 = arith.constant 0 : i32
    return %c0_i32, %c0_i32_0, %c0_i32_1 : i32, i32, i32
  }
  func.func @transform_12(%arg0: i32) -> (i32, i32, i32) {
    %c0_i32 = arith.constant 0 : i32
    %c0_i32_0 = arith.constant 0 : i32
    %c0_i32_1 = arith.constant 0 : i32
    %c0_i32_2 = arith.constant 0 : i32
    return %c0_i32, %c0_i32_0, %c0_i32_1 : i32, i32, i32
  }
  func.func @transform_13(%arg0: i32) -> (i32, i32, i32) {
    %c0_i32 = arith.constant 0 : i32
    %c0_i32_0 = arith.constant 0 : i32
    %c0_i32_1 = arith.constant 0 : i32
    %c0_i32_2 = arith.constant 0 : i32
    return %c0_i32, %c0_i32_0, %c0_i32_1 : i32, i32, i32
  }
  func.func @transform_14(%arg0: i32) -> (i32, i32, i32) {
    %c0_i32 = arith.constant 0 : i32
    %c0_i32_0 = arith.constant 0 : i32
    %c0_i32_1 = arith.constant 0 : i32
    %c0_i32_2 = arith.constant 0 : i32
    return %c0_i32, %c0_i32_0, %c0_i32_1 : i32, i32, i32
  }
  func.func @transform_15(%arg0: i32) -> (i32, i32, i32) {
    %c0_i32 = arith.constant 0 : i32
    %c0_i32_0 = arith.constant 0 : i32
    %c0_i32_1 = arith.constant 0 : i32
    %c0_i32_2 = arith.constant 0 : i32
    return %c0_i32, %c0_i32_0, %c0_i32_1 : i32, i32, i32
  }
  func.func @transform_16(%arg0: i32) -> (i32, i32, i32) {
    %c0_i32 = arith.constant 0 : i32
    %c0_i32_0 = arith.constant 0 : i32
    %c0_i32_1 = arith.constant 0 : i32
    %c0_i32_2 = arith.constant 0 : i32
    return %c0_i32, %c0_i32_0, %c0_i32_1 : i32, i32, i32
  }
  func.func @transform_17(%arg0: i32) -> (i32, i32) {
    %c0_i32 = arith.constant 0 : i32
    %c0_i32_0 = arith.constant 0 : i32
    %c0_i32_1 = arith.constant 0 : i32
    return %c0_i32, %c0_i32_0 : i32, i32
  }
  func.func @transform_18(%arg0: i32) -> (i32, i32) {
    %c0_i32 = arith.constant 0 : i32
    %c0_i32_0 = arith.constant 0 : i32
    %c0_i32_1 = arith.constant 0 : i32
    return %c0_i32, %c0_i32_0 : i32, i32
  }
  func.func @transform_19(%arg0: i32) -> (i32, i32) {
    %c0_i32 = arith.constant 0 : i32
    %c0_i32_0 = arith.constant 0 : i32
    %c0_i32_1 = arith.constant 0 : i32
    return %c0_i32, %c0_i32_0 : i32, i32
  }
  func.func @transform_20(%arg0: i32) -> (i32, i32) {
    %c0_i32 = arith.constant 0 : i32
    %c0_i32_0 = arith.constant 0 : i32
    %c0_i32_1 = arith.constant 0 : i32
    return %c0_i32, %c0_i32_0 : i32, i32
  }
  func.func @transform_21(%arg0: i32) -> (i32, i32) {
    %c0_i32 = arith.constant 0 : i32
    %c0_i32_0 = arith.constant 0 : i32
    %c0_i32_1 = arith.constant 0 : i32
    return %c0_i32, %c0_i32_0 : i32, i32
  }
  func.func @transform_22(%arg0: i32) -> (i32, i32) {
    %c0_i32 = arith.constant 0 : i32
    %c0_i32_0 = arith.constant 0 : i32
    %c0_i32_1 = arith.constant 0 : i32
    return %c0_i32, %c0_i32_0 : i32, i32
  }
  func.func @transform_23(%arg0: i32) -> (i32, i32) {
    %c0_i32 = arith.constant 0 : i32
    %c0_i32_0 = arith.constant 0 : i32
    %c0_i32_1 = arith.constant 0 : i32
    return %c0_i32, %c0_i32_0 : i32, i32
  }
  func.func @transform_24(%arg0: i32) -> (i32, i32) {
    %c0_i32 = arith.constant 0 : i32
    %c0_i32_0 = arith.constant 0 : i32
    %c0_i32_1 = arith.constant 0 : i32
    return %c0_i32, %c0_i32_0 : i32, i32
  }
  func.func @transform_25(%arg0: i32) -> (i32, i32) {
    %c0_i32 = arith.constant 0 : i32
    %c0_i32_0 = arith.constant 0 : i32
    %c0_i32_1 = arith.constant 0 : i32
    return %c0_i32, %c0_i32_0 : i32, i32
  }
  func.func @transform_26(%arg0: i32) -> (i32, i32) {
    %c0_i32 = arith.constant 0 : i32
    %c0_i32_0 = arith.constant 0 : i32
    %c0_i32_1 = arith.constant 0 : i32
    return %c0_i32, %c0_i32_0 : i32, i32
  }
  func.func @transform_27(%arg0: i32) -> (i32, i32) {
    %c0_i32 = arith.constant 0 : i32
    %c0_i32_0 = arith.constant 0 : i32
    %c0_i32_1 = arith.constant 0 : i32
    return %c0_i32, %c0_i32_0 : i32, i32
  }
  func.func @transform_28(%arg0: i32) -> (i32, i32, i32) {
    %c0_i32 = arith.constant 0 : i32
    %c0_i32_0 = arith.constant 0 : i32
    %c0_i32_1 = arith.constant 0 : i32
    return %arg0, %c0_i32, %c0_i32_0 : i32, i32, i32
  }
}

</mosaic_0001>

<llo_original>
// kernel: tpu_custom_call.1
$region0: #{tpu_custom_call.1}
  #allocation0 [shape = 'u32[]', space=smem, size = 0x4, offset = 0x4, fixed_abs, tag = 'smem constant byte address 0x4 - core index']
  #allocation1 [shape = 'u32[144,128]{1,0:T(1,128)}', space=vmem, size = 0x12000, scoped, tag = 'internal scratch']
  %s0 = inlined_call_operand.vmem [shape: f32[2,2,8,32], index: 0, kind: input, shape index: {}]
  %s1 = inlined_call_operand.vmem [shape: f32[2,2,8], index: 1, kind: input, shape index: {}]
  %s2 = inlined_call_operand.vmem [shape: f32[2,2,8], index: 2, kind: input, shape index: {}]
  %s3 = inlined_call_operand.vmem [shape: f32[2,1,24], index: 3, kind: input, shape index: {}]
  %s4 = inlined_call_operand.vmem [shape: f32[2,1,20], index: 4, kind: input, shape index: {}]
  %s5 = inlined_call_operand.vmem [shape: bf16[2,32,96], index: 5, kind: input, shape index: {}]
  %s6 = inlined_call_operand.vmem [shape: f32[2,1,96], index: 6, kind: input, shape index: {}]
  %s7 = inlined_call_operand.vmem [shape: bf16[2,2,16,32], index: 7, kind: input, shape index: {}]
  %s8 = inlined_call_operand.vmem [shape: f32[2,1,32], index: 8, kind: input, shape index: {}]
  %s9 = inlined_call_operand.vmem [shape: f32[2,1,32], index: 9, kind: input, shape index: {}]
  %s10 = inlined_call_operand.vmem [shape: f32[2,1,32], index: 10, kind: input, shape index: {}]
  %s11 = inlined_call_operand.vmem [shape: f32[2,1,32], index: 11, kind: input, shape index: {}]
  %s12 = inlined_call_operand.vmem [shape: f32[2,1,32], index: 12, kind: input, shape index: {}]
  %s13 = inlined_call_operand.vmem [shape: bf16[2,32,2048], index: 13, kind: input, shape index: {}]
  %s14 = inlined_call_operand.vmem [shape: f32[2,1,2048], index: 14, kind: input, shape index: {}]
  %s15 = inlined_call_operand.vmem [shape: bf16[2,2048,32], index: 15, kind: input, shape index: {}]
  %s16 = inlined_call_operand.vmem [shape: f32[2,1,32], index: 16, kind: input, shape index: {}]
  %s17 = inlined_call_operand.vmem [shape: f32[32,16], index: 17, kind: input, shape index: {}]
  %s18 = inlined_call_operand.vmem [shape: f32[1,16], index: 18, kind: input, shape index: {}]
  %s19 = inlined_call_operand.vmem [shape: f32[24,16], index: 19, kind: input, shape index: {}]
  %s20 = inlined_call_operand.vmem [shape: f32[1,16], index: 20, kind: input, shape index: {}]
  %s21 = inlined_call_operand.vmem [shape: f32[20,16], index: 21, kind: input, shape index: {}]
  %s22 = inlined_call_operand.vmem [shape: f32[1,16], index: 22, kind: input, shape index: {}]
  %s23 = inlined_call_operand.vmem [shape: f32[16,32], index: 23, kind: input, shape index: {}]
  %s24 = inlined_call_operand.vmem [shape: f32[1,32], index: 24, kind: input, shape index: {}]
  %s25 = inlined_call_operand.vmem [shape: f32[16,32], index: 25, kind: input, shape index: {}]
  %s26 = inlined_call_operand.vmem [shape: f32[1,32], index: 26, kind: input, shape index: {}]
  %s27 = inlined_call_operand.vmem [shape: f32[2,2], index: 27, kind: input, shape index: {}]
  %s28 = inlined_call_operand.hbm [shape: f32[2,2,32], index: 28, kind: output, shape index: {}]
  %s29 = sld [smem:[#allocation0]]
  $region145: #{tpu_custom_call.1} parent=0
    _
  %s31 = ssub.s32 1, %s29
  %s32 = scalar_select 0, %s31, %s29
  $region1: #{tpu_custom_call.1} parent=0
    #allocation2 [shape = 'u8[2048]{0}', space=vmem, size = 0x800, scoped, tag = 'output window, operand 0']
    #allocation3 [shape = 's32[2]{0}', space=sflag, size = 0x8, scoped, tag = 'scoped memory for tpu_custom_call.1']
    %33 = vsyncpa [#allocation3], 0
    %s34 = scalar_lea.sflag [#allocation3], 1
    %35 = vsyncpa %s34, 0
    loop: start=0, step=1, limit=4
    $region2: #{tpu_custom_call.1} parent=1 // loop_pre_header
      _
    $region3: #{tpu_custom_call.1} parent=1 // loop_header
      %s37 = sphi 0, %s41
      %p38 = scmp.ge.s32.totalorder %s37, 4
      %s47 = sphi 0, %s49
      %s50 = sphi 0, %s47
      %s51 = sphi 0, %s50
      %s67 = sphi 0, %s51
      %s73 = sphi 0, %s75
      %s76 = sphi 0, %s73
      %s77 = sphi 0, %s76
      %s93 = sphi 0, %s77
      %s99 = sphi 0, %s101
      %s102 = sphi 0, %s99
      %s103 = sphi 0, %s102
      %s119 = sphi 0, %s103
      %s125 = sphi 0, %s127
      %s128 = sphi 0, %s125
      %s129 = sphi 0, %s128
      %s145 = sphi 0, %s129
      %s151 = sphi 0, %s153
      %s154 = sphi 0, %s151
      %s155 = sphi 0, %s154
      %s171 = sphi 0, %s155
      %s175 = sphi 0, %s175
      %s177 = sphi 0, %s175
      %s178 = sphi 0, %s177
      %s192 = sphi 0, %s178
      %s196 = sphi 0, %s196
      %s198 = sphi 0, %s196
      %s199 = sphi 0, %s198
      %s213 = sphi 0, %s199
      %s217 = sphi 0, %s217
      %s219 = sphi 0, %s217
      %s220 = sphi 0, %s219
      %s234 = sphi 0, %s220
      %s238 = sphi 0, %s238
      %s240 = sphi 0, %s238
      %s241 = sphi 0, %s240
      %s255 = sphi 0, %s241
      %s259 = sphi 0, %s259
      %s261 = sphi 0, %s259
      %s262 = sphi 0, %s261
      %s276 = sphi 0, %s262
      %s280 = sphi 0, %s280
      %s282 = sphi 0, %s280
      %s283 = sphi 0, %s282
      %s297 = sphi 0, %s283
      %s301 = sphi 0, %s301
      %s303 = sphi 0, %s301
      %s304 = sphi 0, %s303
      %s318 = sphi 0, %s304
      %s322 = sphi 0, %s322
      %s324 = sphi 0, %s322
      %s325 = sphi 0, %s324
      %s339 = sphi 0, %s325
      %s343 = sphi 0, %s343
      %s345 = sphi 0, %s343
      %s346 = sphi 0, %s345
      %s360 = sphi 0, %s346
      %s364 = sphi 0, %s364
      %s366 = sphi 0, %s364
      %s367 = sphi 0, %s366
      %s381 = sphi 0, %s367
      %s385 = sphi 0, %s385
      %s387 = sphi 0, %s385
      %s388 = sphi 0, %s387
      %s402 = sphi 0, %s388
      %s406 = sphi 0, %s406
      %s408 = sphi 0, %s406
      %s409 = sphi 0, %s408
      %s423 = sphi 0, %s409
      %s427 = sphi 0, %s427
      %s429 = sphi 0, %s427
      %s430 = sphi 0, %s429
      %s444 = sphi 0, %s430
      %s448 = sphi 0, %s448
      %s450 = sphi 0, %s448
      %s451 = sphi 0, %s450
      %s465 = sphi 0, %s451
      %s469 = sphi 0, %s469
      %s471 = sphi 0, %s469
      %s472 = sphi 0, %s471
      %s486 = sphi 0, %s472
      %s490 = sphi 0, %s490
      %s492 = sphi 0, %s490
      %s493 = sphi 0, %s492
      %s507 = sphi 0, %s493
      %s511 = sphi 0, %s511
      %s513 = sphi 0, %s511
      %s514 = sphi 0, %s513
      %s528 = sphi 0, %s514
      %s532 = sphi 0, %s532
      %s534 = sphi 0, %s532
      %s535 = sphi 0, %s534
      %s549 = sphi 0, %s535
      %s553 = sphi 0, %s553
      %s555 = sphi 0, %s553
      %s556 = sphi 0, %s555
      %s570 = sphi 0, %s556
      %s574 = sphi 0, %s574
      %s576 = sphi 0, %s574
      %s577 = sphi 0, %s576
      %s591 = sphi 0, %s577
      %s595 = sphi 0, %s595
      %s597 = sphi 0, %s595
      %s598 = sphi 0, %s597
      %s612 = sphi 0, %s598
      %s616 = sphi 0, %s616
      %s618 = sphi 0, %s616
      %s619 = sphi 0, %s618
      %s633 = sphi 0, %s619
      %s637 = sphi 0, %s637
      %s639 = sphi 0, %s637
      %s640 = sphi 0, %s639
      %s654 = sphi 0, %s640
      %s660 = sphi 0, %s662
      %s663 = sphi 0, %s660
      %s664 = sphi 0, %s663
      %s680 = sphi 0, %s664
    $region4: #{tpu_custom_call.1} parent=1 // loop_header_branch
      %40 = sbr.rel (%p38) target = $region8
    $region5: #{tpu_custom_call.1} parent=1 // loop_body
      %s42 = ssub.s32 %s37, 1
      %s43 = ssub.s32 %s37, 2
      %s44 = sadd.s32 %s37, 1
      %s45 = ssub.s32 %s37, %s44
      %p46 = scmp.eq.s32.totalorder %s45, 0
      %s48 = sadd.s32 %s47, 1
      %s49 = scalar_select %p46, %s47, %s48
      %p52 = pneg %p46
      %p53 = scmp.eq.s32.totalorder %s37, 1
      %p54 = por %p52, %p53
      %p55 = scmp.ne.s32.totalorder %s47, %s50
      %p56 = scmp.eq.s32.totalorder %s37, 0
      %p57 = por %p55, %p56
      %p58 = scmp.ne.s32.totalorder %s47, %s50
      %p59 = scmp.eq.s32.totalorder %s42, 1
      %p60 = por %p58, %p59
      %p61 = scmp.ne.s32.totalorder %s50, %s51
      %p62 = scmp.eq.s32.totalorder %s42, 0
      %p63 = por %p61, %p62
      %p64 = scmp.ne.s32.totalorder %s50, %s51
      %p65 = scmp.eq.s32.totalorder %s43, 1
      %p66 = por %p64, %p65
      %p68 = scmp.ne.s32.totalorder %s51, %s67
      %p69 = scmp.eq.s32.totalorder %s43, 0
      %p70 = por %p68, %p69
      %s71 = ssub.s32 %s37, %s44
      %p72 = scmp.eq.s32.totalorder %s71, 0
      %s74 = sadd.s32 %s73, 1
      %s75 = scalar_select %p72, %s73, %s74
      %p78 = pneg %p72
      %p79 = scmp.eq.s32.totalorder %s37, 1
      %p80 = por %p78, %p79
      %p81 = scmp.ne.s32.totalorder %s73, %s76
      %p82 = scmp.eq.s32.totalorder %s37, 0
      %p83 = por %p81, %p82
      %p84 = scmp.ne.s32.totalorder %s73, %s76
      %p85 = scmp.eq.s32.totalorder %s42, 1
      %p86 = por %p84, %p85
      %p87 = scmp.ne.s32.totalorder %s76, %s77
      %p88 = scmp.eq.s32.totalorder %s42, 0
      %p89 = por %p87, %p88
      %p90 = scmp.ne.s32.totalorder %s76, %s77
      %p91 = scmp.eq.s32.totalorder %s43, 1
      %p92 = por %p90, %p91
      %p94 = scmp.ne.s32.totalorder %s77, %s93
      %p95 = scmp.eq.s32.totalorder %s43, 0
      %p96 = por %p94, %p95
      %s97 = ssub.s32 %s37, %s44
      %p98 = scmp.eq.s32.totalorder %s97, 0
      %s100 = sadd.s32 %s99, 1
      %s101 = scalar_select %p98, %s99, %s100
      %p104 = pneg %p98
      %p105 = scmp.eq.s32.totalorder %s37, 1
      %p106 = por %p104, %p105
      %p107 = scmp.ne.s32.totalorder %s99, %s102
      %p108 = scmp.eq.s32.totalorder %s37, 0
      %p109 = por %p107, %p108
      %p110 = scmp.ne.s32.totalorder %s99, %s102
      %p111 = scmp.eq.s32.totalorder %s42, 1
      %p112 = por %p110, %p111
      %p113 = scmp.ne.s32.totalorder %s102, %s103
      %p114 = scmp.eq.s32.totalorder %s42, 0
      %p115 = por %p113, %p114
      %p116 = scmp.ne.s32.totalorder %s102, %s103
      %p117 = scmp.eq.s32.totalorder %s43, 1
      %p118 = por %p116, %p117
      %p120 = scmp.ne.s32.totalorder %s103, %s119
      %p121 = scmp.eq.s32.totalorder %s43, 0
      %p122 = por %p120, %p121
      %s123 = ssub.s32 %s37, %s44
      %p124 = scmp.eq.s32.totalorder %s123, 0
      %s126 = sadd.s32 %s125, 1
      %s127 = scalar_select %p124, %s125, %s126
      %p130 = pneg %p124
      %p131 = scmp.eq.s32.totalorder %s37, 1
      %p132 = por %p130, %p131
      %p133 = scmp.ne.s32.totalorder %s125, %s128
      %p134 = scmp.eq.s32.totalorder %s37, 0
      %p135 = por %p133, %p134
      %p136 = scmp.ne.s32.totalorder %s125, %s128
      %p137 = scmp.eq.s32.totalorder %s42, 1
      %p138 = por %p136, %p137
      %p139 = scmp.ne.s32.totalorder %s128, %s129
      %p140 = scmp.eq.s32.totalorder %s42, 0
      %p141 = por %p139, %p140
      %p142 = scmp.ne.s32.totalorder %s128, %s129
      %p143 = scmp.eq.s32.totalorder %s43, 1
      %p144 = por %p142, %p143
      %p146 = scmp.ne.s32.totalorder %s129, %s145
      %p147 = scmp.eq.s32.totalorder %s43, 0
      %p148 = por %p146, %p147
      %s149 = ssub.s32 %s37, %s44
      %p150 = scmp.eq.s32.totalorder %s149, 0
      %s152 = sadd.s32 %s151, 1
      %s153 = scalar_select %p150, %s151, %s152
      %p156 = pneg %p150
      %p157 = scmp.eq.s32.totalorder %s37, 1
      %p158 = por %p156, %p157
      %p159 = scmp.ne.s32.totalorder %s151, %s154
      %p160 = scmp.eq.s32.totalorder %s37, 0
      %p161 = por %p159, %p160
      %p162 = scmp.ne.s32.totalorder %s151, %s154
      %p163 = scmp.eq.s32.totalorder %s42, 1
      %p164 = por %p162, %p163
      %p165 = scmp.ne.s32.totalorder %s154, %s155
      %p166 = scmp.eq.s32.totalorder %s42, 0
      %p167 = por %p165, %p166
      %p168 = scmp.ne.s32.totalorder %s154, %s155
      %p169 = scmp.eq.s32.totalorder %s43, 1
      %p170 = por %p168, %p169
      %p172 = scmp.ne.s32.totalorder %s155, %s171
      %p173 = scmp.eq.s32.totalorder %s43, 0
      %p174 = por %p172, %p173
      %s176 = sadd.s32 %s175, 1
      %p179 = scmp.eq.s32.totalorder %s37, 1
      %p180 = scmp.ne.s32.totalorder %s175, %s177
      %p181 = scmp.eq.s32.totalorder %s37, 0
      %p182 = por %p180, %p181
      %p183 = scmp.ne.s32.totalorder %s175, %s177
      %p184 = scmp.eq.s32.totalorder %s42, 1
      %p185 = por %p183, %p184
      %p186 = scmp.ne.s32.totalorder %s177, %s178
      %p187 = scmp.eq.s32.totalorder %s42, 0
      %p188 = por %p186, %p187
      %p189 = scmp.ne.s32.totalorder %s177, %s178
      %p190 = scmp.eq.s32.totalorder %s43, 1
      %p191 = por %p189, %p190
      %p193 = scmp.ne.s32.totalorder %s178, %s192
      %p194 = scmp.eq.s32.totalorder %s43, 0
      %p195 = por %p193, %p194
      %s197 = sadd.s32 %s196, 1
      %p200 = scmp.eq.s32.totalorder %s37, 1
      %p201 = scmp.ne.s32.totalorder %s196, %s198
      %p202 = scmp.eq.s32.totalorder %s37, 0
      %p203 = por %p201, %p202
      %p204 = scmp.ne.s32.totalorder %s196, %s198
      %p205 = scmp.eq.s32.totalorder %s42, 1
      %p206 = por %p204, %p205
      %p207 = scmp.ne.s32.totalorder %s198, %s199
      %p208 = scmp.eq.s32.totalorder %s42, 0
      %p209 = por %p207, %p208
      %p210 = scmp.ne.s32.totalorder %s198, %s199
      %p211 = scmp.eq.s32.totalorder %s43, 1
      %p212 = por %p210, %p211
      %p214 = scmp.ne.s32.totalorder %s199, %s213
      %p215 = scmp.eq.s32.totalorder %s43, 0
      %p216 = por %p214, %p215
      %s218 = sadd.s32 %s217, 1
      %p221 = scmp.eq.s32.totalorder %s37, 1
      %p222 = scmp.ne.s32.totalorder %s217, %s219
      %p223 = scmp.eq.s32.totalorder %s37, 0
      %p224 = por %p222, %p223
      %p225 = scmp.ne.s32.totalorder %s217, %s219
      %p226 = scmp.eq.s32.totalorder %s42, 1
      %p227 = por %p225, %p226
      %p228 = scmp.ne.s32.totalorder %s219, %s220
      %p229 = scmp.eq.s32.totalorder %s42, 0
      %p230 = por %p228, %p229
      %p231 = scmp.ne.s32.totalorder %s219, %s220
      %p232 = scmp.eq.s32.totalorder %s43, 1
      %p233 = por %p231, %p232
      %p235 = scmp.ne.s32.totalorder %s220, %s234
      %p236 = scmp.eq.s32.totalorder %s43, 0
      %p237 = por %p235, %p236
      %s239 = sadd.s32 %s238, 1
      %p242 = scmp.eq.s32.totalorder %s37, 1
      %p243 = scmp.ne.s32.totalorder %s238, %s240
      %p244 = scmp.eq.s32.totalorder %s37, 0
      %p245 = por %p243, %p244
      %p246 = scmp.ne.s32.totalorder %s238, %s240
      %p247 = scmp.eq.s32.totalorder %s42, 1
      %p248 = por %p246, %p247
      %p249 = scmp.ne.s32.totalorder %s240, %s241
      %p250 = scmp.eq.s32.totalorder %s42, 0
      %p251 = por %p249, %p250
      %p252 = scmp.ne.s32.totalorder %s240, %s241
      %p253 = scmp.eq.s32.totalorder %s43, 1
      %p254 = por %p252, %p253
      %p256 = scmp.ne.s32.totalorder %s241, %s255
      %p257 = scmp.eq.s32.totalorder %s43, 0
      %p258 = por %p256, %p257
      %s260 = sadd.s32 %s259, 1
      %p263 = scmp.eq.s32.totalorder %s37, 1
      %p264 = scmp.ne.s32.totalorder %s259, %s261
      %p265 = scmp.eq.s32.totalorder %s37, 0
      %p266 = por %p264, %p265
      %p267 = scmp.ne.s32.totalorder %s259, %s261
      %p268 = scmp.eq.s32.totalorder %s42, 1
      %p269 = por %p267, %p268
      %p270 = scmp.ne.s32.totalorder %s261, %s262
      %p271 = scmp.eq.s32.totalorder %s42, 0
      %p272 = por %p270, %p271
      %p273 = scmp.ne.s32.totalorder %s261, %s262
      %p274 = scmp.eq.s32.totalorder %s43, 1
      %p275 = por %p273, %p274
      %p277 = scmp.ne.s32.totalorder %s262, %s276
      %p278 = scmp.eq.s32.totalorder %s43, 0
      %p279 = por %p277, %p278
      %s281 = sadd.s32 %s280, 1
      %p284 = scmp.eq.s32.totalorder %s37, 1
      %p285 = scmp.ne.s32.totalorder %s280, %s282
      %p286 = scmp.eq.s32.totalorder %s37, 0
      %p287 = por %p285, %p286
      %p288 = scmp.ne.s32.totalorder %s280, %s282
      %p289 = scmp.eq.s32.totalorder %s42, 1
      %p290 = por %p288, %p289
      %p291 = scmp.ne.s32.totalorder %s282, %s283
      %p292 = scmp.eq.s32.totalorder %s42, 0
      %p293 = por %p291, %p292
      %p294 = scmp.ne.s32.totalorder %s282, %s283
      %p295 = scmp.eq.s32.totalorder %s43, 1
      %p296 = por %p294, %p295
      %p298 = scmp.ne.s32.totalorder %s283, %s297
      %p299 = scmp.eq.s32.totalorder %s43, 0
      %p300 = por %p298, %p299
      %s302 = sadd.s32 %s301, 1
      %p305 = scmp.eq.s32.totalorder %s37, 1
      %p306 = scmp.ne.s32.totalorder %s301, %s303
      %p307 = scmp.eq.s32.totalorder %s37, 0
      %p308 = por %p306, %p307
      %p309 = scmp.ne.s32.totalorder %s301, %s303
      %p310 = scmp.eq.s32.totalorder %s42, 1
      %p311 = por %p309, %p310
      %p312 = scmp.ne.s32.totalorder %s303, %s304
      %p313 = scmp.eq.s32.totalorder %s42, 0
      %p314 = por %p312, %p313
      %p315 = scmp.ne.s32.totalorder %s303, %s304
      %p316 = scmp.eq.s32.totalorder %s43, 1
      %p317 = por %p315, %p316
      %p319 = scmp.ne.s32.totalorder %s304, %s318
      %p320 = scmp.eq.s32.totalorder %s43, 0
      %p321 = por %p319, %p320
      %s323 = sadd.s32 %s322, 1
      %p326 = scmp.eq.s32.totalorder %s37, 1
      %p327 = scmp.ne.s32.totalorder %s322, %s324
      %p328 = scmp.eq.s32.totalorder %s37, 0
      %p329 = por %p327, %p328
      %p330 = scmp.ne.s32.totalorder %s322, %s324
      %p331 = scmp.eq.s32.totalorder %s42, 1
      %p332 = por %p330, %p331
      %p333 = scmp.ne.s32.totalorder %s324, %s325
      %p334 = scmp.eq.s32.totalorder %s42, 0
      %p335 = por %p333, %p334
      %p336 = scmp.ne.s32.totalorder %s324, %s325
      %p337 = scmp.eq.s32.totalorder %s43, 1
      %p338 = por %p336, %p337
      %p340 = scmp.ne.s32.totalorder %s325, %s339
      %p341 = scmp.eq.s32.totalorder %s43, 0
      %p342 = por %p340, %p341
      %s344 = sadd.s32 %s343, 1
      %p347 = scmp.eq.s32.totalorder %s37, 1
      %p348 = scmp.ne.s32.totalorder %s343, %s345
      %p349 = scmp.eq.s32.totalorder %s37, 0
      %p350 = por %p348, %p349
      %p351 = scmp.ne.s32.totalorder %s343, %s345
      %p352 = scmp.eq.s32.totalorder %s42, 1
      %p353 = por %p351, %p352
      %p354 = scmp.ne.s32.totalorder %s345, %s346
      %p355 = scmp.eq.s32.totalorder %s42, 0
      %p356 = por %p354, %p355
      %p357 = scmp.ne.s32.totalorder %s345, %s346
      %p358 = scmp.eq.s32.totalorder %s43, 1
      %p359 = por %p357, %p358
      %p361 = scmp.ne.s32.totalorder %s346, %s360
      %p362 = scmp.eq.s32.totalorder %s43, 0
      %p363 = por %p361, %p362
      %s365 = sadd.s32 %s364, 1
      %p368 = scmp.eq.s32.totalorder %s37, 1
      %p369 = scmp.ne.s32.totalorder %s364, %s366
      %p370 = scmp.eq.s32.totalorder %s37, 0
      %p371 = por %p369, %p370
      %p372 = scmp.ne.s32.totalorder %s364, %s366
      %p373 = scmp.eq.s32.totalorder %s42, 1
      %p374 = por %p372, %p373
      %p375 = scmp.ne.s32.totalorder %s366, %s367
      %p376 = scmp.eq.s32.totalorder %s42, 0
      %p377 = por %p375, %p376
      %p378 = scmp.ne.s32.totalorder %s366, %s367
      %p379 = scmp.eq.s32.totalorder %s43, 1
      %p380 = por %p378, %p379
      %p382 = scmp.ne.s32.totalorder %s367, %s381
      %p383 = scmp.eq.s32.totalorder %s43, 0
      %p384 = por %p382, %p383
      %s386 = sadd.s32 %s385, 1
      %p389 = scmp.eq.s32.totalorder %s37, 1
      %p390 = scmp.ne.s32.totalorder %s385, %s387
      %p391 = scmp.eq.s32.totalorder %s37, 0
      %p392 = por %p390, %p391
      %p393 = scmp.ne.s32.totalorder %s385, %s387
      %p394 = scmp.eq.s32.totalorder %s42, 1
      %p395 = por %p393, %p394
      %p396 = scmp.ne.s32.totalorder %s387, %s388
      %p397 = scmp.eq.s32.totalorder %s42, 0
      %p398 = por %p396, %p397
      %p399 = scmp.ne.s32.totalorder %s387, %s388
      %p400 = scmp.eq.s32.totalorder %s43, 1
      %p401 = por %p399, %p400
      %p403 = scmp.ne.s32.totalorder %s388, %s402
      %p404 = scmp.eq.s32.totalorder %s43, 0
      %p405 = por %p403, %p404
      %s407 = sadd.s32 %s406, 1
      %p410 = scmp.eq.s32.totalorder %s37, 1
      %p411 = scmp.ne.s32.totalorder %s406, %s408
      %p412 = scmp.eq.s32.totalorder %s37, 0
      %p413 = por %p411, %p412
      %p414 = scmp.ne.s32.totalorder %s406, %s408
      %p415 = scmp.eq.s32.totalorder %s42, 1
      %p416 = por %p414, %p415
      %p417 = scmp.ne.s32.totalorder %s408, %s409
      %p418 = scmp.eq.s32.totalorder %s42, 0
      %p419 = por %p417, %p418
      %p420 = scmp.ne.s32.totalorder %s408, %s409
      %p421 = scmp.eq.s32.totalorder %s43, 1
      %p422 = por %p420, %p421
      %p424 = scmp.ne.s32.totalorder %s409, %s423
      %p425 = scmp.eq.s32.totalorder %s43, 0
      %p426 = por %p424, %p425
      %s428 = sadd.s32 %s427, 1
      %p431 = scmp.eq.s32.totalorder %s37, 1
      %p432 = scmp.ne.s32.totalorder %s427, %s429
      %p433 = scmp.eq.s32.totalorder %s37, 0
      %p434 = por %p432, %p433
      %p435 = scmp.ne.s32.totalorder %s427, %s429
      %p436 = scmp.eq.s32.totalorder %s42, 1
      %p437 = por %p435, %p436
      %p438 = scmp.ne.s32.totalorder %s429, %s430
      %p439 = scmp.eq.s32.totalorder %s42, 0
      %p440 = por %p438, %p439
      %p441 = scmp.ne.s32.totalorder %s429, %s430
      %p442 = scmp.eq.s32.totalorder %s43, 1
      %p443 = por %p441, %p442
      %p445 = scmp.ne.s32.totalorder %s430, %s444
      %p446 = scmp.eq.s32.totalorder %s43, 0
      %p447 = por %p445, %p446
      %s449 = sadd.s32 %s448, 1
      %p452 = scmp.eq.s32.totalorder %s37, 1
      %p453 = scmp.ne.s32.totalorder %s448, %s450
      %p454 = scmp.eq.s32.totalorder %s37, 0
      %p455 = por %p453, %p454
      %p456 = scmp.ne.s32.totalorder %s448, %s450
      %p457 = scmp.eq.s32.totalorder %s42, 1
      %p458 = por %p456, %p457
      %p459 = scmp.ne.s32.totalorder %s450, %s451
      %p460 = scmp.eq.s32.totalorder %s42, 0
      %p461 = por %p459, %p460
      %p462 = scmp.ne.s32.totalorder %s450, %s451
      %p463 = scmp.eq.s32.totalorder %s43, 1
      %p464 = por %p462, %p463
      %p466 = scmp.ne.s32.totalorder %s451, %s465
      %p467 = scmp.eq.s32.totalorder %s43, 0
      %p468 = por %p466, %p467
      %s470 = sadd.s32 %s469, 1
      %p473 = scmp.eq.s32.totalorder %s37, 1
      %p474 = scmp.ne.s32.totalorder %s469, %s471
      %p475 = scmp.eq.s32.totalorder %s37, 0
      %p476 = por %p474, %p475
      %p477 = scmp.ne.s32.totalorder %s469, %s471
      %p478 = scmp.eq.s32.totalorder %s42, 1
      %p479 = por %p477, %p478
      %p480 = scmp.ne.s32.totalorder %s471, %s472
      %p481 = scmp.eq.s32.totalorder %s42, 0
      %p482 = por %p480, %p481
      %p483 = scmp.ne.s32.totalorder %s471, %s472
      %p484 = scmp.eq.s32.totalorder %s43, 1
      %p485 = por %p483, %p484
      %p487 = scmp.ne.s32.totalorder %s472, %s486
      %p488 = scmp.eq.s32.totalorder %s43, 0
      %p489 = por %p487, %p488
      %s491 = sadd.s32 %s490, 1
      %p494 = scmp.eq.s32.totalorder %s37, 1
      %p495 = scmp.ne.s32.totalorder %s490, %s492
      %p496 = scmp.eq.s32.totalorder %s37, 0
      %p497 = por %p495, %p496
      %p498 = scmp.ne.s32.totalorder %s490, %s492
      %p499 = scmp.eq.s32.totalorder %s42, 1
      %p500 = por %p498, %p499
      %p501 = scmp.ne.s32.totalorder %s492, %s493
      %p502 = scmp.eq.s32.totalorder %s42, 0
      %p503 = por %p501, %p502
      %p504 = scmp.ne.s32.totalorder %s492, %s493
      %p505 = scmp.eq.s32.totalorder %s43, 1
      %p506 = por %p504, %p505
      %p508 = scmp.ne.s32.totalorder %s493, %s507
      %p509 = scmp.eq.s32.totalorder %s43, 0
      %p510 = por %p508, %p509
      %s512 = sadd.s32 %s511, 1
      %p515 = scmp.eq.s32.totalorder %s37, 1
      %p516 = scmp.ne.s32.totalorder %s511, %s513
      %p517 = scmp.eq.s32.totalorder %s37, 0
      %p518 = por %p516, %p517
      %p519 = scmp.ne.s32.totalorder %s511, %s513
      %p520 = scmp.eq.s32.totalorder %s42, 1
      %p521 = por %p519, %p520
      %p522 = scmp.ne.s32.totalorder %s513, %s514
      %p523 = scmp.eq.s32.totalorder %s42, 0
      %p524 = por %p522, %p523
      %p525 = scmp.ne.s32.totalorder %s513, %s514
      %p526 = scmp.eq.s32.totalorder %s43, 1
      %p527 = por %p525, %p526
      %p529 = scmp.ne.s32.totalorder %s514, %s528
      %p530 = scmp.eq.s32.totalorder %s43, 0
      %p531 = por %p529, %p530
      %s533 = sadd.s32 %s532, 1
      %p536 = scmp.eq.s32.totalorder %s37, 1
      %p537 = scmp.ne.s32.totalorder %s532, %s534
      %p538 = scmp.eq.s32.totalorder %s37, 0
      %p539 = por %p537, %p538
      %p540 = scmp.ne.s32.totalorder %s532, %s534
      %p541 = scmp.eq.s32.totalorder %s42, 1
      %p542 = por %p540, %p541
      %p543 = scmp.ne.s32.totalorder %s534, %s535
      %p544 = scmp.eq.s32.totalorder %s42, 0
      %p545 = por %p543, %p544
      %p546 = scmp.ne.s32.totalorder %s534, %s535
      %p547 = scmp.eq.s32.totalorder %s43, 1
      %p548 = por %p546, %p547
      %p550 = scmp.ne.s32.totalorder %s535, %s549
      %p551 = scmp.eq.s32.totalorder %s43, 0
      %p552 = por %p550, %p551
      %s554 = sadd.s32 %s553, 1
      %p557 = scmp.eq.s32.totalorder %s37, 1
      %p558 = scmp.ne.s32.totalorder %s553, %s555
      %p559 = scmp.eq.s32.totalorder %s37, 0
      %p560 = por %p558, %p559
      %p561 = scmp.ne.s32.totalorder %s553, %s555
      %p562 = scmp.eq.s32.totalorder %s42, 1
      %p563 = por %p561, %p562
      %p564 = scmp.ne.s32.totalorder %s555, %s556
      %p565 = scmp.eq.s32.totalorder %s42, 0
      %p566 = por %p564, %p565
      %p567 = scmp.ne.s32.totalorder %s555, %s556
      %p568 = scmp.eq.s32.totalorder %s43, 1
      %p569 = por %p567, %p568
      %p571 = scmp.ne.s32.totalorder %s556, %s570
      %p572 = scmp.eq.s32.totalorder %s43, 0
      %p573 = por %p571, %p572
      %s575 = sadd.s32 %s574, 1
      %p578 = scmp.eq.s32.totalorder %s37, 1
      %p579 = scmp.ne.s32.totalorder %s574, %s576
      %p580 = scmp.eq.s32.totalorder %s37, 0
      %p581 = por %p579, %p580
      %p582 = scmp.ne.s32.totalorder %s574, %s576
      %p583 = scmp.eq.s32.totalorder %s42, 1
      %p584 = por %p582, %p583
      %p585 = scmp.ne.s32.totalorder %s576, %s577
      %p586 = scmp.eq.s32.totalorder %s42, 0
      %p587 = por %p585, %p586
      %p588 = scmp.ne.s32.totalorder %s576, %s577
      %p589 = scmp.eq.s32.totalorder %s43, 1
      %p590 = por %p588, %p589
      %p592 = scmp.ne.s32.totalorder %s577, %s591
      %p593 = scmp.eq.s32.totalorder %s43, 0
      %p594 = por %p592, %p593
      %s596 = sadd.s32 %s595, 1
      %p599 = scmp.eq.s32.totalorder %s37, 1
      %p600 = scmp.ne.s32.totalorder %s595, %s597
      %p601 = scmp.eq.s32.totalorder %s37, 0
      %p602 = por %p600, %p601
      %p603 = scmp.ne.s32.totalorder %s595, %s597
      %p604 = scmp.eq.s32.totalorder %s42, 1
      %p605 = por %p603, %p604
      %p606 = scmp.ne.s32.totalorder %s597, %s598
      %p607 = scmp.eq.s32.totalorder %s42, 0
      %p608 = por %p606, %p607
      %p609 = scmp.ne.s32.totalorder %s597, %s598
      %p610 = scmp.eq.s32.totalorder %s43, 1
      %p611 = por %p609, %p610
      %p613 = scmp.ne.s32.totalorder %s598, %s612
      %p614 = scmp.eq.s32.totalorder %s43, 0
      %p615 = por %p613, %p614
      %s617 = sadd.s32 %s616, 1
      %p620 = scmp.eq.s32.totalorder %s37, 1
      %p621 = scmp.ne.s32.totalorder %s616, %s618
      %p622 = scmp.eq.s32.totalorder %s37, 0
      %p623 = por %p621, %p622
      %p624 = scmp.ne.s32.totalorder %s616, %s618
      %p625 = scmp.eq.s32.totalorder %s42, 1
      %p626 = por %p624, %p625
      %p627 = scmp.ne.s32.totalorder %s618, %s619
      %p628 = scmp.eq.s32.totalorder %s42, 0
      %p629 = por %p627, %p628
      %p630 = scmp.ne.s32.totalorder %s618, %s619
      %p631 = scmp.eq.s32.totalorder %s43, 1
      %p632 = por %p630, %p631
      %p634 = scmp.ne.s32.totalorder %s619, %s633
      %p635 = scmp.eq.s32.totalorder %s43, 0
      %p636 = por %p634, %p635
      %s638 = sadd.s32 %s637, 1
      %p641 = scmp.eq.s32.totalorder %s37, 1
      %p642 = scmp.ne.s32.totalorder %s637, %s639
      %p643 = scmp.eq.s32.totalorder %s37, 0
      %p644 = por %p642, %p643
      %p645 = scmp.ne.s32.totalorder %s637, %s639
      %p646 = scmp.eq.s32.totalorder %s42, 1
      %p647 = por %p645, %p646
      %p648 = scmp.ne.s32.totalorder %s639, %s640
      %p649 = scmp.eq.s32.totalorder %s42, 0
      %p650 = por %p648, %p649
      %p651 = scmp.ne.s32.totalorder %s639, %s640
      %p652 = scmp.eq.s32.totalorder %s43, 1
      %p653 = por %p651, %p652
      %p655 = scmp.ne.s32.totalorder %s640, %s654
      %p656 = scmp.eq.s32.totalorder %s43, 0
      %p657 = por %p655, %p656
      %s658 = ssub.s32 %s37, %s44
      %p659 = scmp.eq.s32.totalorder %s658, 0
      %s661 = sadd.s32 %s660, 1
      %s662 = scalar_select %p659, %s660, %s661
      %p665 = pneg %p659
      %p666 = scmp.eq.s32.totalorder %s37, 1
      %p667 = por %p665, %p666
      %p668 = scmp.ne.s32.totalorder %s660, %s663
      %p669 = scmp.eq.s32.totalorder %s37, 0
      %p670 = por %p668, %p669
      %p671 = scmp.ne.s32.totalorder %s660, %s663
      %p672 = scmp.eq.s32.totalorder %s42, 1
      %p673 = por %p671, %p672
      %p674 = scmp.ne.s32.totalorder %s663, %s664
      %p675 = scmp.eq.s32.totalorder %s42, 0
      %p676 = por %p674, %p675
      %p677 = scmp.ne.s32.totalorder %s663, %s664
      %p678 = scmp.eq.s32.totalorder %s43, 1
      %p679 = por %p677, %p678
      %p681 = scmp.ne.s32.totalorder %s664, %s680
      %p682 = scmp.eq.s32.totalorder %s43, 0
      %p683 = por %p681, %p682
      %p684 = scmp.le.s32.totalorder 1, %s37
      %p685 = scmp.lt.s32.totalorder %s37, 3
      %p686 = pnand %p684, %p685
      %p687 = pneg %p686
      // Predicated region
      $region9: #{tpu_custom_call.1} parent=5 // pred_check
        _
      $region10: #{tpu_custom_call.1} parent=5 // pred_check_branch
        %689 = sbr.rel (%p686) target = $region12
      $region11: #{tpu_custom_call.1} parent=5 // pred_region
        %s690 = ssub.s32 %s37, 1
        // Predicated region
        $region13: #{tpu_custom_call.1} parent=11 // pred_check
          %p691 = pneg %p188
        $region14: #{tpu_custom_call.1} parent=11 // pred_check_branch
          %693 = sbr.rel (%p691) target = $region16
        $region15: #{tpu_custom_call.1} parent=11 // pred_region
          _
        $region16: #{tpu_custom_call.1} parent=11 // pred_fallthru
          _
        // Predicated region
        $region17: #{tpu_custom_call.1} parent=11 // pred_check
          %p694 = pneg %p209
        $region18: #{tpu_custom_call.1} parent=11 // pred_check_branch
          %696 = sbr.rel (%p694) target = $region20
        $region19: #{tpu_custom_call.1} parent=11 // pred_region
          _
        $region20: #{tpu_custom_call.1} parent=11 // pred_fallthru
          _
        // Predicated region
        $region21: #{tpu_custom_call.1} parent=11 // pred_check
          %p697 = pneg %p230
        $region22: #{tpu_custom_call.1} parent=11 // pred_check_branch
          %699 = sbr.rel (%p697) target = $region24
        $region23: #{tpu_custom_call.1} parent=11 // pred_region
          _
        $region24: #{tpu_custom_call.1} parent=11 // pred_fallthru
          _
        // Predicated region
        $region25: #{tpu_custom_call.1} parent=11 // pred_check
          %p700 = pneg %p251
        $region26: #{tpu_custom_call.1} parent=11 // pred_check_branch
          %702 = sbr.rel (%p700) target = $region28
        $region27: #{tpu_custom_call.1} parent=11 // pred_region
          _
        $region28: #{tpu_custom_call.1} parent=11 // pred_fallthru
          _
        // Predicated region
        $region29: #{tpu_custom_call.1} parent=11 // pred_check
          %p703 = pneg %p272
        $region30: #{tpu_custom_call.1} parent=11 // pred_check_branch
          %705 = sbr.rel (%p703) target = $region32
        $region31: #{tpu_custom_call.1} parent=11 // pred_region
          _
        $region32: #{tpu_custom_call.1} parent=11 // pred_fallthru
          _
        // Predicated region
        $region33: #{tpu_custom_call.1} parent=11 // pred_check
          %p706 = pneg %p293
        $region34: #{tpu_custom_call.1} parent=11 // pred_check_branch
          %708 = sbr.rel (%p706) target = $region36
        $region35: #{tpu_custom_call.1} parent=11 // pred_region
          _
        $region36: #{tpu_custom_call.1} parent=11 // pred_fallthru
          _
        // Predicated region
        $region37: #{tpu_custom_call.1} parent=11 // pred_check
          %p709 = pneg %p314
        $region38: #{tpu_custom_call.1} parent=11 // pred_check_branch
          %711 = sbr.rel (%p709) target = $region40
        $region39: #{tpu_custom_call.1} parent=11 // pred_region
          _
        $region40: #{tpu_custom_call.1} parent=11 // pred_fallthru
          _
        // Predicated region
        $region41: #{tpu_custom_call.1} parent=11 // pred_check
          %p712 = pneg %p335
        $region42: #{tpu_custom_call.1} parent=11 // pred_check_branch
          %714 = sbr.rel (%p712) target = $region44
        $region43: #{tpu_custom_call.1} parent=11 // pred_region
          _
        $region44: #{tpu_custom_call.1} parent=11 // pred_fallthru
          _
        // Predicated region
        $region45: #{tpu_custom_call.1} parent=11 // pred_check
          %p715 = pneg %p356
        $region46: #{tpu_custom_call.1} parent=11 // pred_check_branch
          %717 = sbr.rel (%p715) target = $region48
        $region47: #{tpu_custom_call.1} parent=11 // pred_region
          _
        $region48: #{tpu_custom_call.1} parent=11 // pred_fallthru
          _
        // Predicated region
        $region49: #{tpu_custom_call.1} parent=11 // pred_check
          %p718 = pneg %p377
        $region50: #{tpu_custom_call.1} parent=11 // pred_check_branch
          %720 = sbr.rel (%p718) target = $region52
        $region51: #{tpu_custom_call.1} parent=11 // pred_region
          _
        $region52: #{tpu_custom_call.1} parent=11 // pred_fallthru
          _
        // Predicated region
        $region53: #{tpu_custom_call.1} parent=11 // pred_check
          %p721 = pneg %p398
        $region54: #{tpu_custom_call.1} parent=11 // pred_check_branch
          %723 = sbr.rel (%p721) target = $region56
        $region55: #{tpu_custom_call.1} parent=11 // pred_region
          _
        $region56: #{tpu_custom_call.1} parent=11 // pred_fallthru
          _
        // Predicated region
        $region57: #{tpu_custom_call.1} parent=11 // pred_check
          %p724 = pneg %p419
        $region58: #{tpu_custom_call.1} parent=11 // pred_check_branch
          %726 = sbr.rel (%p724) target = $region60
        $region59: #{tpu_custom_call.1} parent=11 // pred_region
          _
        $region60: #{tpu_custom_call.1} parent=11 // pred_fallthru
          _
        // Predicated region
        $region61: #{tpu_custom_call.1} parent=11 // pred_check
          %p727 = pneg %p440
        $region62: #{tpu_custom_call.1} parent=11 // pred_check_branch
          %729 = sbr.rel (%p727) target = $region64
        $region63: #{tpu_custom_call.1} parent=11 // pred_region
          _
        $region64: #{tpu_custom_call.1} parent=11 // pred_fallthru
          _
        // Predicated region
        $region65: #{tpu_custom_call.1} parent=11 // pred_check
          %p730 = pneg %p461
        $region66: #{tpu_custom_call.1} parent=11 // pred_check_branch
          %732 = sbr.rel (%p730) target = $region68
        $region67: #{tpu_custom_call.1} parent=11 // pred_region
          _
        $region68: #{tpu_custom_call.1} parent=11 // pred_fallthru
          _
        // Predicated region
        $region69: #{tpu_custom_call.1} parent=11 // pred_check
          %p733 = pneg %p482
        $region70: #{tpu_custom_call.1} parent=11 // pred_check_branch
          %735 = sbr.rel (%p733) target = $region72
        $region71: #{tpu_custom_call.1} parent=11 // pred_region
          _
        $region72: #{tpu_custom_call.1} parent=11 // pred_fallthru
          _
        // Predicated region
        $region73: #{tpu_custom_call.1} parent=11 // pred_check
          %p736 = pneg %p503
        $region74: #{tpu_custom_call.1} parent=11 // pred_check_branch
          %738 = sbr.rel (%p736) target = $region76
        $region75: #{tpu_custom_call.1} parent=11 // pred_region
          _
        $region76: #{tpu_custom_call.1} parent=11 // pred_fallthru
          _
        // Predicated region
        $region77: #{tpu_custom_call.1} parent=11 // pred_check
          %p739 = pneg %p524
        $region78: #{tpu_custom_call.1} parent=11 // pred_check_branch
          %741 = sbr.rel (%p739) target = $region80
        $region79: #{tpu_custom_call.1} parent=11 // pred_region
          _
        $region80: #{tpu_custom_call.1} parent=11 // pred_fallthru
          _
        // Predicated region
        $region81: #{tpu_custom_call.1} parent=11 // pred_check
          %p742 = pneg %p545
        $region82: #{tpu_custom_call.1} parent=11 // pred_check_branch
          %744 = sbr.rel (%p742) target = $region84
        $region83: #{tpu_custom_call.1} parent=11 // pred_region
          _
        $region84: #{tpu_custom_call.1} parent=11 // pred_fallthru
          _
        // Predicated region
        $region85: #{tpu_custom_call.1} parent=11 // pred_check
          %p745 = pneg %p566
        $region86: #{tpu_custom_call.1} parent=11 // pred_check_branch
          %747 = sbr.rel (%p745) target = $region88
        $region87: #{tpu_custom_call.1} parent=11 // pred_region
          _
        $region88: #{tpu_custom_call.1} parent=11 // pred_fallthru
          _
        // Predicated region
        $region89: #{tpu_custom_call.1} parent=11 // pred_check
          %p748 = pneg %p587
        $region90: #{tpu_custom_call.1} parent=11 // pred_check_branch
          %750 = sbr.rel (%p748) target = $region92
        $region91: #{tpu_custom_call.1} parent=11 // pred_region
          _
        $region92: #{tpu_custom_call.1} parent=11 // pred_fallthru
          _
        // Predicated region
        $region93: #{tpu_custom_call.1} parent=11 // pred_check
          %p751 = pneg %p608
        $region94: #{tpu_custom_call.1} parent=11 // pred_check_branch
          %753 = sbr.rel (%p751) target = $region96
        $region95: #{tpu_custom_call.1} parent=11 // pred_region
          _
        $region96: #{tpu_custom_call.1} parent=11 // pred_fallthru
          _
        // Predicated region
        $region97: #{tpu_custom_call.1} parent=11 // pred_check
          %p754 = pneg %p629
        $region98: #{tpu_custom_call.1} parent=11 // pred_check_branch
          %756 = sbr.rel (%p754) target = $region100
        $region99: #{tpu_custom_call.1} parent=11 // pred_region
          _
        $region100: #{tpu_custom_call.1} parent=11 // pred_fallthru
          _
        // Predicated region
        $region101: #{tpu_custom_call.1} parent=11 // pred_check
          %p757 = pneg %p650
        $region102: #{tpu_custom_call.1} parent=11 // pred_check_branch
          %759 = sbr.rel (%p757) target = $region104
        $region103: #{tpu_custom_call.1} parent=11 // pred_region
          _
        $region104: #{tpu_custom_call.1} parent=11 // pred_fallthru
          _
      $region12: #{tpu_custom_call.1} parent=5 // pred_fallthru
        _
      %p760 = scmp.lt.s32.totalorder %s37, 2
      // Predicated region
      $region105: #{tpu_custom_call.1} parent=5 // pred_check
        %p761 = pneg %p760
      $region106: #{tpu_custom_call.1} parent=5 // pred_check_branch
        %763 = sbr.rel (%p761) target = $region108
      $region107: #{tpu_custom_call.1} parent=5 // pred_region
        // Predicated region
        $region109: #{tpu_custom_call.1} parent=107 // pred_check
          %p764 = pneg %p57
        $region110: #{tpu_custom_call.1} parent=107 // pred_check_branch
          %766 = sbr.rel (%p764) target = $region112
        $region111: #{tpu_custom_call.1} parent=107 // pred_region
          %p767 = scmp.lt.s32.totalorder %s37, 1
          %s768 = scalar_select %p767, %s37, 1
          %s769 = smul.addr %s768, 2
          %s770 = smul.addr %s769, 8
          %s771 = scalar_lea.vmem %s0, %s770
        $region112: #{tpu_custom_call.1} parent=107 // pred_fallthru
          _
        // Predicated region
        $region113: #{tpu_custom_call.1} parent=107 // pred_check
          %p772 = pneg %p83
        $region114: #{tpu_custom_call.1} parent=107 // pred_check_branch
          %774 = sbr.rel (%p772) target = $region116
        $region115: #{tpu_custom_call.1} parent=107 // pred_region
          %p775 = scmp.lt.s32.totalorder %s37, 1
          %s776 = scalar_select %p775, %s37, 1
          %s777 = smul.addr %s776, 2
          %s778 = scalar_lea.vmem %s1, %s777
        $region116: #{tpu_custom_call.1} parent=107 // pred_fallthru
          _
        // Predicated region
        $region117: #{tpu_custom_call.1} parent=107 // pred_check
          %p779 = pneg %p109
        $region118: #{tpu_custom_call.1} parent=107 // pred_check_branch
          %781 = sbr.rel (%p779) target = $region120
        $region119: #{tpu_custom_call.1} parent=107 // pred_region
          %p782 = scmp.lt.s32.totalorder %s37, 1
          %s783 = scalar_select %p782, %s37, 1
          %s784 = smul.addr %s783, 2
          %s785 = scalar_lea.vmem %s2, %s784
        $region120: #{tpu_custom_call.1} parent=107 // pred_fallthru
          _
        // Predicated region
        $region121: #{tpu_custom_call.1} parent=107 // pred_check
          %p786 = pneg %p135
        $region122: #{tpu_custom_call.1} parent=107 // pred_check_branch
          %788 = sbr.rel (%p786) target = $region124
        $region123: #{tpu_custom_call.1} parent=107 // pred_region
          %p789 = scmp.lt.s32.totalorder %s37, 1
          %s790 = scalar_select %p789, %s37, 1
          %s791 = scalar_lea.vmem %s3, %s790
        $region124: #{tpu_custom_call.1} parent=107 // pred_fallthru
          _
        // Predicated region
        $region125: #{tpu_custom_call.1} parent=107 // pred_check
          %p792 = pneg %p161
        $region126: #{tpu_custom_call.1} parent=107 // pred_check_branch
          %794 = sbr.rel (%p792) target = $region128
        $region127: #{tpu_custom_call.1} parent=107 // pred_region
          %p795 = scmp.lt.s32.totalorder %s37, 1
          %s796 = scalar_select %p795, %s37, 1
          %s797 = scalar_lea.vmem %s4, %s796
        $region128: #{tpu_custom_call.1} parent=107 // pred_fallthru
          _
      $region108: #{tpu_custom_call.1} parent=5 // pred_fallthru
        _
      %p798 = scmp.le.s32.totalorder 1, %s37
      %p799 = scmp.lt.s32.totalorder %s37, 3
      %p800 = pnand %p798, %p799
      %p801 = pneg %p800
      // Predicated region
      $region129: #{tpu_custom_call.1} parent=5 // pred_check
        _
      $region130: #{tpu_custom_call.1} parent=5 // pred_check_branch
        %803 = sbr.rel (%p800) target = $region132
      $region131: #{tpu_custom_call.1} parent=5 // pred_region
        %s804 = ssub.s32 %s37, 1
        %p805 = scmp.lt.s32.totalorder %s42, 1
        %s806 = scalar_select %p805, %s42, 1
        %s807 = smul.addr %s806, 2
        %s808 = smul.addr %s807, 8
        %s809 = scalar_lea.vmem %s0, %s808
        %p810 = pneg %p63
        %p811 = pneg %p60
        %p812 = scmp.lt.s32.totalorder %s42, 1
        %s813 = scalar_select %p812, %s42, 1
        %s814 = smul.addr %s813, 2
        %s815 = scalar_lea.vmem %s1, %s814
        %p816 = pneg %p89
        %p817 = pneg %p86
        %p818 = scmp.lt.s32.totalorder %s42, 1
        %s819 = scalar_select %p818, %s42, 1
        %s820 = smul.addr %s819, 2
        %s821 = scalar_lea.vmem %s2, %s820
        %p822 = pneg %p115
        %p823 = pneg %p112
        %p824 = scmp.lt.s32.totalorder %s42, 1
        %s825 = scalar_select %p824, %s42, 1
        %s826 = scalar_lea.vmem %s3, %s825
        %p827 = pneg %p141
        %p828 = pneg %p138
        %p829 = scmp.lt.s32.totalorder %s42, 1
        %s830 = scalar_select %p829, %s42, 1
        %s831 = scalar_lea.vmem %s4, %s830
        %p832 = pneg %p167
        %p833 = pneg %p164
        %p834 = pneg %p188
        %p835 = pneg %p185
        %p836 = pneg %p209
        %p837 = pneg %p206
        %p838 = pneg %p230
        %p839 = pneg %p227
        %p840 = pneg %p251
        %p841 = pneg %p248
        %p842 = pneg %p272
        %p843 = pneg %p269
        %p844 = pneg %p293
        %p845 = pneg %p290
        %p846 = pneg %p314
        %p847 = pneg %p311
        %p848 = pneg %p335
        %p849 = pneg %p332
        %p850 = pneg %p356
        %p851 = pneg %p353
        %p852 = pneg %p377
        %p853 = pneg %p374
        %p854 = pneg %p398
        %p855 = pneg %p395
        %p856 = pneg %p419
        %p857 = pneg %p416
        %p858 = pneg %p440
        %p859 = pneg %p437
        %p860 = pneg %p461
        %p861 = pneg %p458
        %p862 = pneg %p482
        %p863 = pneg %p479
        %p864 = pneg %p503
        %p865 = pneg %p500
        %p866 = pneg %p524
        %p867 = pneg %p521
        %p868 = pneg %p545
        %p869 = pneg %p542
        %p870 = pneg %p566
        %p871 = pneg %p563
        %p872 = pneg %p587
        %p873 = pneg %p584
        %p874 = pneg %p608
        %p875 = pneg %p605
        %p876 = pneg %p629
        %p877 = pneg %p626
        %p878 = pneg %p650
        %p879 = pneg %p647
        %p880 = pneg %p676
        %p881 = pneg %p673
        %s882 = sand.u32 %s663, 1
        %s883 = scalar_lea.sflag [#allocation3], %s882
        %s884 = sand.u32 %s663, 1
        %s885 = smul.addr %s884, 2
        %s886 = scalar_lea.vmem [#allocation2], %s885
        %p887 = scmp.lt.s32.totalorder %s42, 1
        %s888 = scalar_select %p887, %s42, 1
        %s889 = smul.addr %s888, 2
        %s890 = smul.addr %s889, 8
        %s891 = scalar_lea.vmem %s0, %s890
        %p892 = scmp.lt.s32.totalorder %s42, 1
        %s893 = scalar_select %p892, %s42, 1
        %s894 = smul.addr %s893, 2
        %s895 = scalar_lea.vmem %s1, %s894
        %p896 = scmp.lt.s32.totalorder %s42, 1
        %s897 = scalar_select %p896, %s42, 1
        %s898 = smul.addr %s897, 2
        %s899 = scalar_lea.vmem %s2, %s898
        %p900 = scmp.lt.s32.totalorder %s42, 1
        %s901 = scalar_select %p900, %s42, 1
        %s902 = scalar_lea.vmem %s3, %s901
        %p903 = scmp.lt.s32.totalorder %s42, 1
        %s904 = scalar_select %p903, %s42, 1
        %s905 = scalar_lea.vmem %s4, %s904
        %v907 = vld [vmem:[%s891] sm:$0xff]
        %v908 = vld [vmem:[%s891 + $0x8] sm:$0xff]
        %v909 = vld [vmem:[%s895] sm:$0x3]
        %v910 = vmul.f32 %v909, -1e+30
        %v911 = vpack.c.bf16 %v908, %v907
        %v912 = vld [vmem:[%s5] sm:$0xf]
        %v913 = vld [vmem:[%s5 + $0x4] sm:$0xf]
        %v914 = vld [vmem:[%s5 + $0x8] sm:$0xf]
        %v915 = vld [vmem:[%s5 + $0xc] sm:$0xf]
        %v916 = vld [vmem:[%s6] sm:$0x1]
        %v918 = vlaneseq
        %v919 = vshrl.u32 %v918, 7
        %v920 = vsub.s32 0, %v919
        %v921 = vrot.slane %v916, %v920
        %v927 = vunpack.c.l.b16 %v912
        %v928 = vunpack.c.l.b16 %v913
        %v929 = vunpack.c.l.b16 %v914
        %v930 = vunpack.c.l.b16 %v915
        %v931 = vpack.c.b16 %v928, %v927
        %v932 = vpack.c.b16 %v930, %v929
        %vm935 = vcmask 261120
        %v937 = vsel %vm935, %v911, 0
        %939 = vmatprep.subr.bf16.mxu0 0
        %940 = vmatpush1.bf16.msra.mxu0 %v931
        %941 = vmatprep.subr.bf16.mxu0 0
        %942 = vmatpush1.bf16.msra.mxu0 %v932
        %943 = vmatprep.subr.bf16.mxu0 0
        %944 = vmatpush1.bf16.msra.mxu0 0
        %945 = vmatprep.subr.bf16.mxu0 0
        %946 = vmatpush1.bf16.msra.mxu0 0
        %947 = vmatprep.subr.bf16.mxu0 0
        %948 = vmatpush1.bf16.msra.mxu0 0
        %949 = vmatprep.subr.bf16.mxu0 0
        %950 = vmatpush1.bf16.msra.mxu0 0
        %951 = vmatprep.subr.bf16.mxu0 0
        %952 = vmatpush1.bf16.msra.mxu0 0
        %953 = vmatprep.subr.bf16.mxu0 0
        %954 = vmatpush1.bf16.msra.mxu0 0
        %955 = vmatprep.subr.bf16.mxu0 0
        %956 = vmatpush1.bf16.msra.mxu0 0
        %957 = vmatprep.subr.bf16.mxu0 0
        %958 = vmatpush1.bf16.msra.mxu0 0
        %959 = vmatprep.subr.bf16.mxu0 0
        %960 = vmatpush1.bf16.msra.mxu0 0
        %961 = vmatprep.subr.bf16.mxu0 0
        %962 = vmatpush1.bf16.msra.mxu0 0
        %963 = vmatprep.subr.bf16.mxu0 0
        %964 = vmatpush1.bf16.msra.mxu0 0
        %965 = vmatprep.subr.bf16.mxu0 0
        %966 = vmatpush1.bf16.msra.mxu0 0
        %967 = vmatprep.subr.bf16.mxu0 0
        %968 = vmatpush1.bf16.msra.mxu0 0
        %969 = vmatprep.subr.bf16.mxu0 0
        %970 = vmatpush1.bf16.msra.mxu0 0
        %971 = vmatprep.mubr.bf16.mxu0 0
        %972 = vmatmul.mubr.bf16.gmra.mrb[0].mxu0 %v937
        %v973 = vpop.f32.mrb[0].mxu0
        %v974 = vadd.f32 %v921, %v973
        %v975 = vpop.f32.mrb[0].mxu0
        %v976 = vpop.f32.mrb[0].mxu0
        %v977 = vadd.f32 %v921, %v976
        %v978 = vpop.f32.mrb[0].mxu0
        %979 = vdwg.mxu0
        %v982 = vunpack.c.l.s4 1966171168
        %v983 = vunpack.c.0.s8 %v982
        %v984 = vlaneseq
        %v985 = vshrl.u32 %v984, 7
        %v986 = vsub.s32 %v983, %v985
        %v987 = vrot.slane %v910, %v986
        %v988 = vcombine.high %v987, %v987
        %v990 = vunpack.c.l.s4 1966171168
        %v991 = vunpack.c.0.s8 %v990
        %v992 = vlaneseq
        %v993 = vshrl.u32 %v992, 7
        %v994 = vsub.s32 %v991, %v993
        %v995 = vrot.slane %v987, %v994
        %v997 = vunpack.c.l.s4 1966171168
        %v998 = vunpack.c.0.s8 %v997
        %v999 = vlaneseq
        %v1000 = vshrl.u32 %v999, 7
        %v1001 = vsub.s32 %v998, %v1000
        %v1002 = vrot.slane %v988, %v1001
        %v1003 = vlaneseq
        %v1004 = vshrl.u32 %v1003, 7
        %v1005 = vsub.s32 0, %v1004
        %v1006 = vrot.slane %v995, %v1005
        %v1007 = vlaneseq
        %v1008 = vshrl.u32 %v1007, 7
        %v1009 = vsub.s32 0, %v1008
        %v1010 = vrot.slane %v1002, %v1009
        %1014 = vrot.lane.b32.xlu0 %v974, 96
        %v1015 = vpop.permute.xlu0 %1014
        %vm1016 = vcmask 130048
        %v1017 = vsel %vm1016, %v974, 0
        %v1019 = vsel %vm1016, %v1015, 0
        %1021 = vmatprep.subr.mxu0 0.0
        %1022 = vmatpush1.xpose.msra.mxu0 %v1019
        %1023 = vmatprep.subr.mxu0 0.0
        %1024 = vmatpush1.xpose.msra.mxu0 0.0
        %1025 = vmatprep.subr.mxu0 0.0
        %1026 = vmatpush1.xpose.msra.mxu0 0.0
        %1027 = vmatprep.subr.mxu0 0.0
        %1028 = vmatpush1.xpose.msra.mxu0 0.0
        %1029 = vmatprep.subr.mxu0 0.0
        %1030 = vmatpush1.xpose.msra.mxu0 0.0
        %1031 = vmatprep.subr.mxu0 0.0
        %1032 = vmatpush1.xpose.msra.mxu0 0.0
        %1033 = vmatprep.subr.mxu0 0.0
        %1034 = vmatpush1.xpose.msra.mxu0 0.0
        %1035 = vmatprep.subr.mxu0 0.0
        %1036 = vmatpush1.xpose.msra.mxu0 0.0
        %1037 = vmatprep.subr.mxu0 0.0
        %1038 = vmatpush1.xpose.msra.mxu0 0.0
        %1039 = vmatprep.subr.mxu0 0.0
        %1040 = vmatpush1.xpose.msra.mxu0 0.0
        %1041 = vmatprep.subr.mxu0 0.0
        %1042 = vmatpush1.xpose.msra.mxu0 0.0
        %1043 = vmatprep.subr.mxu0 0.0
        %1044 = vmatpush1.xpose.msra.mxu0 0.0
        %1045 = vmatprep.subr.mxu0 0.0
        %1046 = vmatpush1.xpose.msra.mxu0 0.0
        %1047 = vmatprep.subr.mxu0 0.0
        %1048 = vmatpush1.xpose.msra.mxu0 0.0
        %1049 = vmatprep.subr.mxu0 0.0
        %1050 = vmatpush1.xpose.msra.mxu0 0.0
        %1051 = vmatprep.subr.mxu0 0.0
        %1052 = vmatpush1.xpose.msra.mxu0 0.0
        %1053 = vmatprep.subr.mxu0 0.0
        %1054 = vmatpush1.xpose.msra.mxu0 0.0
        %1055 = vmatprep.subr.mxu0 0.0
        %1056 = vmatpush1.xpose.msra.mxu0 0.0
        %1057 = vmatprep.subr.mxu0 0.0
        %1058 = vmatpush1.xpose.msra.mxu0 0.0
        %1059 = vmatprep.subr.mxu0 0.0
        %1060 = vmatpush1.xpose.msra.mxu0 0.0
        %1061 = vmatprep.subr.mxu0 0.0
        %1062 = vmatpush1.xpose.msra.mxu0 0.0
        %1063 = vmatprep.subr.mxu0 0.0
        %1064 = vmatpush1.xpose.msra.mxu0 0.0
        %1065 = vmatprep.subr.mxu0 0.0
        %1066 = vmatpush1.xpose.msra.mxu0 0.0
        %1067 = vmatprep.subr.mxu0 0.0
        %1068 = vmatpush1.xpose.msra.mxu0 0.0
        %1069 = vmatprep.subr.mxu0 0.0
        %1070 = vmatpush1.xpose.msra.mxu0 0.0
        %1071 = vmatprep.subr.mxu0 0.0
        %1072 = vmatpush1.xpose.msra.mxu0 0.0
        %1073 = vmatprep.subr.mxu0 0.0
        %1074 = vmatpush1.xpose.msra.mxu0 0.0
        %1075 = vmatprep.subr.mxu0 0.0
        %1076 = vmatpush1.xpose.msra.mxu0 0.0
        %1077 = vmatprep.subr.mxu0 0.0
        %1078 = vmatpush1.xpose.msra.mxu0 0.0
        %1079 = vmatprep.subr.mxu0 0.0
        %1080 = vmatpush1.xpose.msra.mxu0 0.0
        %1081 = vmatprep.subr.mxu0 0.0
        %1082 = vmatpush1.xpose.msra.mxu0 0.0
        %1083 = vmatprep.subr.mxu0 0.0
        %1084 = vmatpush1.xpose.msra.mxu0 0.0
        %1085 = vmatprep.mubr.f32.mxu0 0.0
        %1086 = vmatmul.mubr.f32.gmra.mrb[0].mxu0 %v1017
        %v1087 = vpop.f32.mrb[0].mxu0
        %v1088 = vadd.f32 %v1006, %v1087
        %v1089 = vpop.f32.mrb[0].mxu0
        %1090 = vdwg.mxu0
        %1092 = vrot.lane.b32.xlu0 %v977, 96
        %v1093 = vpop.permute.xlu0 %1092
        %v1094 = vsel %vm1016, %v977, 0
        %v1096 = vsel %vm1016, %v1093, 0
        %1098 = vmatprep.subr.mxu0 0.0
        %1099 = vmatpush1.xpose.msra.mxu0 %v1096
        %1100 = vmatprep.subr.mxu0 0.0
        %1101 = vmatpush1.xpose.msra.mxu0 0.0
        %1102 = vmatprep.subr.mxu0 0.0
        %1103 = vmatpush1.xpose.msra.mxu0 0.0
        %1104 = vmatprep.subr.mxu0 0.0
        %1105 = vmatpush1.xpose.msra.mxu0 0.0
        %1106 = vmatprep.subr.mxu0 0.0
        %1107 = vmatpush1.xpose.msra.mxu0 0.0
        %1108 = vmatprep.subr.mxu0 0.0
        %1109 = vmatpush1.xpose.msra.mxu0 0.0
        %1110 = vmatprep.subr.mxu0 0.0
        %1111 = vmatpush1.xpose.msra.mxu0 0.0
        %1112 = vmatprep.subr.mxu0 0.0
        %1113 = vmatpush1.xpose.msra.mxu0 0.0
        %1114 = vmatprep.subr.mxu0 0.0
        %1115 = vmatpush1.xpose.msra.mxu0 0.0
        %1116 = vmatprep.subr.mxu0 0.0
        %1117 = vmatpush1.xpose.msra.mxu0 0.0
        %1118 = vmatprep.subr.mxu0 0.0
        %1119 = vmatpush1.xpose.msra.mxu0 0.0
        %1120 = vmatprep.subr.mxu0 0.0
        %1121 = vmatpush1.xpose.msra.mxu0 0.0
        %1122 = vmatprep.subr.mxu0 0.0
        %1123 = vmatpush1.xpose.msra.mxu0 0.0
        %1124 = vmatprep.subr.mxu0 0.0
        %1125 = vmatpush1.xpose.msra.mxu0 0.0
        %1126 = vmatprep.subr.mxu0 0.0
        %1127 = vmatpush1.xpose.msra.mxu0 0.0
        %1128 = vmatprep.subr.mxu0 0.0
        %1129 = vmatpush1.xpose.msra.mxu0 0.0
        %1130 = vmatprep.subr.mxu0 0.0
        %1131 = vmatpush1.xpose.msra.mxu0 0.0
        %1132 = vmatprep.subr.mxu0 0.0
        %1133 = vmatpush1.xpose.msra.mxu0 0.0
        %1134 = vmatprep.subr.mxu0 0.0
        %1135 = vmatpush1.xpose.msra.mxu0 0.0
        %1136 = vmatprep.subr.mxu0 0.0
        %1137 = vmatpush1.xpose.msra.mxu0 0.0
        %1138 = vmatprep.subr.mxu0 0.0
        %1139 = vmatpush1.xpose.msra.mxu0 0.0
        %1140 = vmatprep.subr.mxu0 0.0
        %1141 = vmatpush1.xpose.msra.mxu0 0.0
        %1142 = vmatprep.subr.mxu0 0.0
        %1143 = vmatpush1.xpose.msra.mxu0 0.0
        %1144 = vmatprep.subr.mxu0 0.0
        %1145 = vmatpush1.xpose.msra.mxu0 0.0
        %1146 = vmatprep.subr.mxu0 0.0
        %1147 = vmatpush1.xpose.msra.mxu0 0.0
        %1148 = vmatprep.subr.mxu0 0.0
        %1149 = vmatpush1.xpose.msra.mxu0 0.0
        %1150 = vmatprep.subr.mxu0 0.0
        %1151 = vmatpush1.xpose.msra.mxu0 0.0
        %1152 = vmatprep.subr.mxu0 0.0
        %1153 = vmatpush1.xpose.msra.mxu0 0.0
        %1154 = vmatprep.subr.mxu0 0.0
        %1155 = vmatpush1.xpose.msra.mxu0 0.0
        %1156 = vmatprep.subr.mxu0 0.0
        %1157 = vmatpush1.xpose.msra.mxu0 0.0
        %1158 = vmatprep.subr.mxu0 0.0
        %1159 = vmatpush1.xpose.msra.mxu0 0.0
        %1160 = vmatprep.subr.mxu0 0.0
        %1161 = vmatpush1.xpose.msra.mxu0 0.0
        %1162 = vmatprep.mubr.f32.mxu0 0.0
        %1163 = vmatmul.mubr.f32.gmra.mrb[0].mxu0 %v1094
        %v1164 = vpop.f32.mrb[0].mxu0
        %v1165 = vadd.f32 %v1010, %v1164
        %v1166 = vpop.f32.mrb[0].mxu0
        %1167 = vdwg.mxu0
        %vm1168 = vcmask 64512
        %v1169 = vsel %vm1168, %v1088, -inf
        %1170 = vmax.xlane.f32.xlu0 %v1169
        %v1171 = vpop.xlane.xlu0 %1170
        %v1172 = vsel %vm1168, %v1165, -inf
        %1173 = vmax.xlane.f32.xlu0 %v1172
        %v1174 = vpop.xlane.xlu0 %1173
        %v1175 = vsub.f32 %v1088, %v1171
        %v1176 = vsub.f32 %v1165, %v1174
        %v1177 = vmul.f32 %v1175, 1.442695
        %v1178 = vpow.pop %v1177
        %v1179 = vmul.f32 %v1176, 1.442695
        %v1180 = vpow.pop %v1179
        %v1181 = vsel %vm1168, %v1178, 0.0
        %1182 = vadd.xlane.f32.xlu0 %v1181
        %v1183 = vpop.xlane.xlu0 %1182
        %v1184 = vsel %vm1168, %v1180, 0.0
        %1185 = vadd.xlane.f32.xlu0 %v1184
        %v1186 = vpop.xlane.xlu0 %1185
        %v1187 = vrcp.pop %v1183
        %v1188 = vrcp.pop %v1186
        %v1189 = vmul.f32 %v1178, %v1187
        %v1190 = vmul.f32 %v1180, %v1188
        %1191 = vrot.lane.b32.xlu0 %v974, 64
        %v1192 = vpop.permute.xlu0 %1191
        %v1195 = vsel %vm1168, %v1189, 0
        %1197 = vmatprep.subr.mxu0 0.0
        %1198 = vmatpush1.msra.mxu0 %v1192
        %1199 = vmatprep.subr.mxu0 0.0
        %1200 = vmatpush1.msra.mxu0 0.0
        %1201 = vmatprep.subr.mxu0 0.0
        %1202 = vmatpush1.msra.mxu0 0.0
        %1203 = vmatprep.subr.mxu0 0.0
        %1204 = vmatpush1.msra.mxu0 0.0
        %1205 = vmatprep.subr.mxu0 0.0
        %1206 = vmatpush1.msra.mxu0 0.0
        %1207 = vmatprep.subr.mxu0 0.0
        %1208 = vmatpush1.msra.mxu0 0.0
        %1209 = vmatprep.subr.mxu0 0.0
        %1210 = vmatpush1.msra.mxu0 0.0
        %1211 = vmatprep.subr.mxu0 0.0
        %1212 = vmatpush1.msra.mxu0 0.0
        %1213 = vmatprep.subr.mxu0 0.0
        %1214 = vmatpush1.msra.mxu0 0.0
        %1215 = vmatprep.subr.mxu0 0.0
        %1216 = vmatpush1.msra.mxu0 0.0
        %1217 = vmatprep.subr.mxu0 0.0
        %1218 = vmatpush1.msra.mxu0 0.0
        %1219 = vmatprep.subr.mxu0 0.0
        %1220 = vmatpush1.msra.mxu0 0.0
        %1221 = vmatprep.subr.mxu0 0.0
        %1222 = vmatpush1.msra.mxu0 0.0
        %1223 = vmatprep.subr.mxu0 0.0
        %1224 = vmatpush1.msra.mxu0 0.0
        %1225 = vmatprep.subr.mxu0 0.0
        %1226 = vmatpush1.msra.mxu0 0.0
        %1227 = vmatprep.subr.mxu0 0.0
        %1228 = vmatpush1.msra.mxu0 0.0
        %1229 = vmatprep.subr.mxu0 0.0
        %1230 = vmatpush1.msra.mxu0 0.0
        %1231 = vmatprep.subr.mxu0 0.0
        %1232 = vmatpush1.msra.mxu0 0.0
        %1233 = vmatprep.subr.mxu0 0.0
        %1234 = vmatpush1.msra.mxu0 0.0
        %1235 = vmatprep.subr.mxu0 0.0
        %1236 = vmatpush1.msra.mxu0 0.0
        %1237 = vmatprep.subr.mxu0 0.0
        %1238 = vmatpush1.msra.mxu0 0.0
        %1239 = vmatprep.subr.mxu0 0.0
        %1240 = vmatpush1.msra.mxu0 0.0
        %1241 = vmatprep.subr.mxu0 0.0
        %1242 = vmatpush1.msra.mxu0 0.0
        %1243 = vmatprep.subr.mxu0 0.0
        %1244 = vmatpush1.msra.mxu0 0.0
        %1245 = vmatprep.subr.mxu0 0.0
        %1246 = vmatpush1.msra.mxu0 0.0
        %1247 = vmatprep.subr.mxu0 0.0
        %1248 = vmatpush1.msra.mxu0 0.0
        %1249 = vmatprep.subr.mxu0 0.0
        %1250 = vmatpush1.msra.mxu0 0.0
        %1251 = vmatprep.subr.mxu0 0.0
        %1252 = vmatpush1.msra.mxu0 0.0
        %1253 = vmatprep.subr.mxu0 0.0
        %1254 = vmatpush1.msra.mxu0 0.0
        %1255 = vmatprep.subr.mxu0 0.0
        %1256 = vmatpush1.msra.mxu0 0.0
        %1257 = vmatprep.subr.mxu0 0.0
        %1258 = vmatpush1.msra.mxu0 0.0
        %1259 = vmatprep.subr.mxu0 0.0
        %1260 = vmatpush1.msra.mxu0 0.0
        %1261 = vmatprep.mubr.f32.mxu0 0.0
        %1262 = vmatmul.mubr.f32.gmra.mrb[0].mxu0 %v1195
        %v1263 = vpop.f32.mrb[0].mxu0
        %v1264 = vadd.f32 0.0, %v1263
        %v1265 = vpop.f32.mrb[0].mxu0
        %1266 = vdwg.mxu0
        %1267 = vrot.lane.b32.xlu0 %v977, 64
        %v1268 = vpop.permute.xlu0 %1267
        %v1271 = vsel %vm1168, %v1190, 0
        %1273 = vmatprep.subr.mxu0 0.0
        %1274 = vmatpush1.msra.mxu0 %v1268
        %1275 = vmatprep.subr.mxu0 0.0
        %1276 = vmatpush1.msra.mxu0 0.0
        %1277 = vmatprep.subr.mxu0 0.0
        %1278 = vmatpush1.msra.mxu0 0.0
        %1279 = vmatprep.subr.mxu0 0.0
        %1280 = vmatpush1.msra.mxu0 0.0
        %1281 = vmatprep.subr.mxu0 0.0
        %1282 = vmatpush1.msra.mxu0 0.0
        %1283 = vmatprep.subr.mxu0 0.0
        %1284 = vmatpush1.msra.mxu0 0.0
        %1285 = vmatprep.subr.mxu0 0.0
        %1286 = vmatpush1.msra.mxu0 0.0
        %1287 = vmatprep.subr.mxu0 0.0
        %1288 = vmatpush1.msra.mxu0 0.0
        %1289 = vmatprep.subr.mxu0 0.0
        %1290 = vmatpush1.msra.mxu0 0.0
        %1291 = vmatprep.subr.mxu0 0.0
        %1292 = vmatpush1.msra.mxu0 0.0
        %1293 = vmatprep.subr.mxu0 0.0
        %1294 = vmatpush1.msra.mxu0 0.0
        %1295 = vmatprep.subr.mxu0 0.0
        %1296 = vmatpush1.msra.mxu0 0.0
        %1297 = vmatprep.subr.mxu0 0.0
        %1298 = vmatpush1.msra.mxu0 0.0
        %1299 = vmatprep.subr.mxu0 0.0
        %1300 = vmatpush1.msra.mxu0 0.0
        %1301 = vmatprep.subr.mxu0 0.0
        %1302 = vmatpush1.msra.mxu0 0.0
        %1303 = vmatprep.subr.mxu0 0.0
        %1304 = vmatpush1.msra.mxu0 0.0
        %1305 = vmatprep.subr.mxu0 0.0
        %1306 = vmatpush1.msra.mxu0 0.0
        %1307 = vmatprep.subr.mxu0 0.0
        %1308 = vmatpush1.msra.mxu0 0.0
        %1309 = vmatprep.subr.mxu0 0.0
        %1310 = vmatpush1.msra.mxu0 0.0
        %1311 = vmatprep.subr.mxu0 0.0
        %1312 = vmatpush1.msra.mxu0 0.0
        %1313 = vmatprep.subr.mxu0 0.0
        %1314 = vmatpush1.msra.mxu0 0.0
        %1315 = vmatprep.subr.mxu0 0.0
        %1316 = vmatpush1.msra.mxu0 0.0
        %1317 = vmatprep.subr.mxu0 0.0
        %1318 = vmatpush1.msra.mxu0 0.0
        %1319 = vmatprep.subr.mxu0 0.0
        %1320 = vmatpush1.msra.mxu0 0.0
        %1321 = vmatprep.subr.mxu0 0.0
        %1322 = vmatpush1.msra.mxu0 0.0
        %1323 = vmatprep.subr.mxu0 0.0
        %1324 = vmatpush1.msra.mxu0 0.0
        %1325 = vmatprep.subr.mxu0 0.0
        %1326 = vmatpush1.msra.mxu0 0.0
        %1327 = vmatprep.subr.mxu0 0.0
        %1328 = vmatpush1.msra.mxu0 0.0
        %1329 = vmatprep.subr.mxu0 0.0
        %1330 = vmatpush1.msra.mxu0 0.0
        %1331 = vmatprep.subr.mxu0 0.0
        %1332 = vmatpush1.msra.mxu0 0.0
        %1333 = vmatprep.subr.mxu0 0.0
        %1334 = vmatpush1.msra.mxu0 0.0
        %1335 = vmatprep.subr.mxu0 0.0
        %1336 = vmatpush1.msra.mxu0 0.0
        %1337 = vmatprep.mubr.f32.mxu0 0.0
        %1338 = vmatmul.mubr.f32.gmra.mrb[0].mxu0 %v1271
        %v1339 = vpop.f32.mrb[0].mxu0
        %v1340 = vadd.f32 0.0, %v1339
        %v1341 = vpop.f32.mrb[0].mxu0
        %1342 = vdwg.mxu0
        %v1343 = vpack.c.bf16 %v1340, %v1264
        %v1344 = vld [vmem:[%s7] sm:$0xf]
        %v1345 = vld [vmem:[%s7 + $0x4] sm:$0xf]
        %1346 = vrot.lane.b32.xlu0 %v974, 112
        %v1347 = vpop.permute.xlu0 %1346
        %1348 = vrot.lane.b32.xlu0 %v974, 80
        %v1349 = vpop.permute.xlu0 %1348
        %v1350 = vsel %vm1016, %v1347, 0
        %v1352 = vsel %vm1016, %v1349, 0
        %1354 = vmatprep.subr.mxu0 0.0
        %1355 = vmatpush1.xpose.msra.mxu0 %v1352
        %1356 = vmatprep.subr.mxu0 0.0
        %1357 = vmatpush1.xpose.msra.mxu0 0.0
        %1358 = vmatprep.subr.mxu0 0.0
        %1359 = vmatpush1.xpose.msra.mxu0 0.0
        %1360 = vmatprep.subr.mxu0 0.0
        %1361 = vmatpush1.xpose.msra.mxu0 0.0
        %1362 = vmatprep.subr.mxu0 0.0
        %1363 = vmatpush1.xpose.msra.mxu0 0.0
        %1364 = vmatprep.subr.mxu0 0.0
        %1365 = vmatpush1.xpose.msra.mxu0 0.0
        %1366 = vmatprep.subr.mxu0 0.0
        %1367 = vmatpush1.xpose.msra.mxu0 0.0
        %1368 = vmatprep.subr.mxu0 0.0
        %1369 = vmatpush1.xpose.msra.mxu0 0.0
        %1370 = vmatprep.subr.mxu0 0.0
        %1371 = vmatpush1.xpose.msra.mxu0 0.0
        %1372 = vmatprep.subr.mxu0 0.0
        %1373 = vmatpush1.xpose.msra.mxu0 0.0
        %1374 = vmatprep.subr.mxu0 0.0
        %1375 = vmatpush1.xpose.msra.mxu0 0.0
        %1376 = vmatprep.subr.mxu0 0.0
        %1377 = vmatpush1.xpose.msra.mxu0 0.0
        %1378 = vmatprep.subr.mxu0 0.0
        %1379 = vmatpush1.xpose.msra.mxu0 0.0
        %1380 = vmatprep.subr.mxu0 0.0
        %1381 = vmatpush1.xpose.msra.mxu0 0.0
        %1382 = vmatprep.subr.mxu0 0.0
        %1383 = vmatpush1.xpose.msra.mxu0 0.0
        %1384 = vmatprep.subr.mxu0 0.0
        %1385 = vmatpush1.xpose.msra.mxu0 0.0
        %1386 = vmatprep.subr.mxu0 0.0
        %1387 = vmatpush1.xpose.msra.mxu0 0.0
        %1388 = vmatprep.subr.mxu0 0.0
        %1389 = vmatpush1.xpose.msra.mxu0 0.0
        %1390 = vmatprep.subr.mxu0 0.0
        %1391 = vmatpush1.xpose.msra.mxu0 0.0
        %1392 = vmatprep.subr.mxu0 0.0
        %1393 = vmatpush1.xpose.msra.mxu0 0.0
        %1394 = vmatprep.subr.mxu0 0.0
        %1395 = vmatpush1.xpose.msra.mxu0 0.0
        %1396 = vmatprep.subr.mxu0 0.0
        %1397 = vmatpush1.xpose.msra.mxu0 0.0
        %1398 = vmatprep.subr.mxu0 0.0
        %1399 = vmatpush1.xpose.msra.mxu0 0.0
        %1400 = vmatprep.subr.mxu0 0.0
        %1401 = vmatpush1.xpose.msra.mxu0 0.0
        %1402 = vmatprep.subr.mxu0 0.0
        %1403 = vmatpush1.xpose.msra.mxu0 0.0
        %1404 = vmatprep.subr.mxu0 0.0
        %1405 = vmatpush1.xpose.msra.mxu0 0.0
        %1406 = vmatprep.subr.mxu0 0.0
        %1407 = vmatpush1.xpose.msra.mxu0 0.0
        %1408 = vmatprep.subr.mxu0 0.0
        %1409 = vmatpush1.xpose.msra.mxu0 0.0
        %1410 = vmatprep.subr.mxu0 0.0
        %1411 = vmatpush1.xpose.msra.mxu0 0.0
        %1412 = vmatprep.subr.mxu0 0.0
        %1413 = vmatpush1.xpose.msra.mxu0 0.0
        %1414 = vmatprep.subr.mxu0 0.0
        %1415 = vmatpush1.xpose.msra.mxu0 0.0
        %1416 = vmatprep.subr.mxu0 0.0
        %1417 = vmatpush1.xpose.msra.mxu0 0.0
        %1418 = vmatprep.mubr.f32.mxu0 0.0
        %1419 = vmatmul.mubr.f32.gmra.mrb[0].mxu0 %v1350
        %v1420 = vpop.f32.mrb[0].mxu0
        %v1421 = vadd.f32 %v1006, %v1420
        %v1422 = vpop.f32.mrb[0].mxu0
        %1423 = vdwg.mxu0
        %1424 = vrot.lane.b32.xlu0 %v977, 112
        %v1425 = vpop.permute.xlu0 %1424
        %1426 = vrot.lane.b32.xlu0 %v977, 80
        %v1427 = vpop.permute.xlu0 %1426
        %v1428 = vsel %vm1016, %v1425, 0
        %v1430 = vsel %vm1016, %v1427, 0
        %1432 = vmatprep.subr.mxu0 0.0
        %1433 = vmatpush1.xpose.msra.mxu0 %v1430
        %1434 = vmatprep.subr.mxu0 0.0
        %1435 = vmatpush1.xpose.msra.mxu0 0.0
        %1436 = vmatprep.subr.mxu0 0.0
        %1437 = vmatpush1.xpose.msra.mxu0 0.0
        %1438 = vmatprep.subr.mxu0 0.0
        %1439 = vmatpush1.xpose.msra.mxu0 0.0
        %1440 = vmatprep.subr.mxu0 0.0
        %1441 = vmatpush1.xpose.msra.mxu0 0.0
        %1442 = vmatprep.subr.mxu0 0.0
        %1443 = vmatpush1.xpose.msra.mxu0 0.0
        %1444 = vmatprep.subr.mxu0 0.0
        %1445 = vmatpush1.xpose.msra.mxu0 0.0
        %1446 = vmatprep.subr.mxu0 0.0
        %1447 = vmatpush1.xpose.msra.mxu0 0.0
        %1448 = vmatprep.subr.mxu0 0.0
        %1449 = vmatpush1.xpose.msra.mxu0 0.0
        %1450 = vmatprep.subr.mxu0 0.0
        %1451 = vmatpush1.xpose.msra.mxu0 0.0
        %1452 = vmatprep.subr.mxu0 0.0
        %1453 = vmatpush1.xpose.msra.mxu0 0.0
        %1454 = vmatprep.subr.mxu0 0.0
        %1455 = vmatpush1.xpose.msra.mxu0 0.0
        %1456 = vmatprep.subr.mxu0 0.0
        %1457 = vmatpush1.xpose.msra.mxu0 0.0
        %1458 = vmatprep.subr.mxu0 0.0
        %1459 = vmatpush1.xpose.msra.mxu0 0.0
        %1460 = vmatprep.subr.mxu0 0.0
        %1461 = vmatpush1.xpose.msra.mxu0 0.0
        %1462 = vmatprep.subr.mxu0 0.0
        %1463 = vmatpush1.xpose.msra.mxu0 0.0
        %1464 = vmatprep.subr.mxu0 0.0
        %1465 = vmatpush1.xpose.msra.mxu0 0.0
        %1466 = vmatprep.subr.mxu0 0.0
        %1467 = vmatpush1.xpose.msra.mxu0 0.0
        %1468 = vmatprep.subr.mxu0 0.0
        %1469 = vmatpush1.xpose.msra.mxu0 0.0
        %1470 = vmatprep.subr.mxu0 0.0
        %1471 = vmatpush1.xpose.msra.mxu0 0.0
        %1472 = vmatprep.subr.mxu0 0.0
        %1473 = vmatpush1.xpose.msra.mxu0 0.0
        %1474 = vmatprep.subr.mxu0 0.0
        %1475 = vmatpush1.xpose.msra.mxu0 0.0
        %1476 = vmatprep.subr.mxu0 0.0
        %1477 = vmatpush1.xpose.msra.mxu0 0.0
        %1478 = vmatprep.subr.mxu0 0.0
        %1479 = vmatpush1.xpose.msra.mxu0 0.0
        %1480 = vmatprep.subr.mxu0 0.0
        %1481 = vmatpush1.xpose.msra.mxu0 0.0
        %1482 = vmatprep.subr.mxu0 0.0
        %1483 = vmatpush1.xpose.msra.mxu0 0.0
        %1484 = vmatprep.subr.mxu0 0.0
        %1485 = vmatpush1.xpose.msra.mxu0 0.0
        %1486 = vmatprep.subr.mxu0 0.0
        %1487 = vmatpush1.xpose.msra.mxu0 0.0
        %1488 = vmatprep.subr.mxu0 0.0
        %1489 = vmatpush1.xpose.msra.mxu0 0.0
        %1490 = vmatprep.subr.mxu0 0.0
        %1491 = vmatpush1.xpose.msra.mxu0 0.0
        %1492 = vmatprep.subr.mxu0 0.0
        %1493 = vmatpush1.xpose.msra.mxu0 0.0
        %1494 = vmatprep.subr.mxu0 0.0
        %1495 = vmatpush1.xpose.msra.mxu0 0.0
        %1496 = vmatprep.mubr.f32.mxu0 0.0
        %1497 = vmatmul.mubr.f32.gmra.mrb[0].mxu0 %v1428
        %v1498 = vpop.f32.mrb[0].mxu0
        %v1499 = vadd.f32 %v1010, %v1498
        %v1500 = vpop.f32.mrb[0].mxu0
        %1501 = vdwg.mxu0
        %v1502 = vsel %vm1168, %v1421, -inf
        %1503 = vmax.xlane.f32.xlu0 %v1502
        %v1504 = vpop.xlane.xlu0 %1503
        %v1505 = vsel %vm1168, %v1499, -inf
        %1506 = vmax.xlane.f32.xlu0 %v1505
        %v1507 = vpop.xlane.xlu0 %1506
        %v1508 = vsub.f32 %v1421, %v1504
        %v1509 = vsub.f32 %v1499, %v1507
        %v1510 = vmul.f32 %v1508, 1.442695
        %v1511 = vpow.pop %v1510
        %v1512 = vmul.f32 %v1509, 1.442695
        %v1513 = vpow.pop %v1512
        %v1514 = vsel %vm1168, %v1511, 0.0
        %1515 = vadd.xlane.f32.xlu0 %v1514
        %v1516 = vpop.xlane.xlu0 %1515
        %v1517 = vsel %vm1168, %v1513, 0.0
        %1518 = vadd.xlane.f32.xlu0 %v1517
        %v1519 = vpop.xlane.xlu0 %1518
        %v1520 = vrcp.pop %v1516
        %v1521 = vrcp.pop %v1519
        %v1522 = vmul.f32 %v1511, %v1520
        %v1523 = vmul.f32 %v1513, %v1521
        %1524 = vrot.lane.b32.xlu0 %v974, 48
        %v1525 = vpop.permute.xlu0 %1524
        %v1528 = vsel %vm1168, %v1522, 0
        %1530 = vmatprep.subr.mxu0 0.0
        %1531 = vmatpush1.msra.mxu0 %v1525
        %1532 = vmatprep.subr.mxu0 0.0
        %1533 = vmatpush1.msra.mxu0 0.0
        %1534 = vmatprep.subr.mxu0 0.0
        %1535 = vmatpush1.msra.mxu0 0.0
        %1536 = vmatprep.subr.mxu0 0.0
        %1537 = vmatpush1.msra.mxu0 0.0
        %1538 = vmatprep.subr.mxu0 0.0
        %1539 = vmatpush1.msra.mxu0 0.0
        %1540 = vmatprep.subr.mxu0 0.0
        %1541 = vmatpush1.msra.mxu0 0.0
        %1542 = vmatprep.subr.mxu0 0.0
        %1543 = vmatpush1.msra.mxu0 0.0
        %1544 = vmatprep.subr.mxu0 0.0
        %1545 = vmatpush1.msra.mxu0 0.0
        %1546 = vmatprep.subr.mxu0 0.0
        %1547 = vmatpush1.msra.mxu0 0.0
        %1548 = vmatprep.subr.mxu0 0.0
        %1549 = vmatpush1.msra.mxu0 0.0
        %1550 = vmatprep.subr.mxu0 0.0
        %1551 = vmatpush1.msra.mxu0 0.0
        %1552 = vmatprep.subr.mxu0 0.0
        %1553 = vmatpush1.msra.mxu0 0.0
        %1554 = vmatprep.subr.mxu0 0.0
        %1555 = vmatpush1.msra.mxu0 0.0
        %1556 = vmatprep.subr.mxu0 0.0
        %1557 = vmatpush1.msra.mxu0 0.0
        %1558 = vmatprep.subr.mxu0 0.0
        %1559 = vmatpush1.msra.mxu0 0.0
        %1560 = vmatprep.subr.mxu0 0.0
        %1561 = vmatpush1.msra.mxu0 0.0
        %1562 = vmatprep.subr.mxu0 0.0
        %1563 = vmatpush1.msra.mxu0 0.0
        %1564 = vmatprep.subr.mxu0 0.0
        %1565 = vmatpush1.msra.mxu0 0.0
        %1566 = vmatprep.subr.mxu0 0.0
        %1567 = vmatpush1.msra.mxu0 0.0
        %1568 = vmatprep.subr.mxu0 0.0
        %1569 = vmatpush1.msra.mxu0 0.0
        %1570 = vmatprep.subr.mxu0 0.0
        %1571 = vmatpush1.msra.mxu0 0.0
        %1572 = vmatprep.subr.mxu0 0.0
        %1573 = vmatpush1.msra.mxu0 0.0
        %1574 = vmatprep.subr.mxu0 0.0
        %1575 = vmatpush1.msra.mxu0 0.0
        %1576 = vmatprep.subr.mxu0 0.0
        %1577 = vmatpush1.msra.mxu0 0.0
        %1578 = vmatprep.subr.mxu0 0.0
        %1579 = vmatpush1.msra.mxu0 0.0
        %1580 = vmatprep.subr.mxu0 0.0
        %1581 = vmatpush1.msra.mxu0 0.0
        %1582 = vmatprep.subr.mxu0 0.0
        %1583 = vmatpush1.msra.mxu0 0.0
        %1584 = vmatprep.subr.mxu0 0.0
        %1585 = vmatpush1.msra.mxu0 0.0
        %1586 = vmatprep.subr.mxu0 0.0
        %1587 = vmatpush1.msra.mxu0 0.0
        %1588 = vmatprep.subr.mxu0 0.0
        %1589 = vmatpush1.msra.mxu0 0.0
        %1590 = vmatprep.subr.mxu0 0.0
        %1591 = vmatpush1.msra.mxu0 0.0
        %1592 = vmatprep.subr.mxu0 0.0
        %1593 = vmatpush1.msra.mxu0 0.0
        %1594 = vmatprep.mubr.f32.mxu0 0.0
        %1595 = vmatmul.mubr.f32.gmra.mrb[0].mxu0 %v1528
        %v1596 = vpop.f32.mrb[0].mxu0
        %v1597 = vadd.f32 0.0, %v1596
        %v1598 = vpop.f32.mrb[0].mxu0
        %1599 = vdwg.mxu0
        %1600 = vrot.lane.b32.xlu0 %v977, 48
        %v1601 = vpop.permute.xlu0 %1600
        %v1604 = vsel %vm1168, %v1523, 0
        %1606 = vmatprep.subr.mxu0 0.0
        %1607 = vmatpush1.msra.mxu0 %v1601
        %1608 = vmatprep.subr.mxu0 0.0
        %1609 = vmatpush1.msra.mxu0 0.0
        %1610 = vmatprep.subr.mxu0 0.0
        %1611 = vmatpush1.msra.mxu0 0.0
        %1612 = vmatprep.subr.mxu0 0.0
        %1613 = vmatpush1.msra.mxu0 0.0
        %1614 = vmatprep.subr.mxu0 0.0
        %1615 = vmatpush1.msra.mxu0 0.0
        %1616 = vmatprep.subr.mxu0 0.0
        %1617 = vmatpush1.msra.mxu0 0.0
        %1618 = vmatprep.subr.mxu0 0.0
        %1619 = vmatpush1.msra.mxu0 0.0
        %1620 = vmatprep.subr.mxu0 0.0
        %1621 = vmatpush1.msra.mxu0 0.0
        %1622 = vmatprep.subr.mxu0 0.0
        %1623 = vmatpush1.msra.mxu0 0.0
        %1624 = vmatprep.subr.mxu0 0.0
        %1625 = vmatpush1.msra.mxu0 0.0
        %1626 = vmatprep.subr.mxu0 0.0
        %1627 = vmatpush1.msra.mxu0 0.0
        %1628 = vmatprep.subr.mxu0 0.0
        %1629 = vmatpush1.msra.mxu0 0.0
        %1630 = vmatprep.subr.mxu0 0.0
        %1631 = vmatpush1.msra.mxu0 0.0
        %1632 = vmatprep.subr.mxu0 0.0
        %1633 = vmatpush1.msra.mxu0 0.0
        %1634 = vmatprep.subr.mxu0 0.0
        %1635 = vmatpush1.msra.mxu0 0.0
        %1636 = vmatprep.subr.mxu0 0.0
        %1637 = vmatpush1.msra.mxu0 0.0
        %1638 = vmatprep.subr.mxu0 0.0
        %1639 = vmatpush1.msra.mxu0 0.0
        %1640 = vmatprep.subr.mxu0 0.0
        %1641 = vmatpush1.msra.mxu0 0.0
        %1642 = vmatprep.subr.mxu0 0.0
        %1643 = vmatpush1.msra.mxu0 0.0
        %1644 = vmatprep.subr.mxu0 0.0
        %1645 = vmatpush1.msra.mxu0 0.0
        %1646 = vmatprep.subr.mxu0 0.0
        %1647 = vmatpush1.msra.mxu0 0.0
        %1648 = vmatprep.subr.mxu0 0.0
        %1649 = vmatpush1.msra.mxu0 0.0
        %1650 = vmatprep.subr.mxu0 0.0
        %1651 = vmatpush1.msra.mxu0 0.0
        %1652 = vmatprep.subr.mxu0 0.0
        %1653 = vmatpush1.msra.mxu0 0.0
        %1654 = vmatprep.subr.mxu0 0.0
        %1655 = vmatpush1.msra.mxu0 0.0
        %1656 = vmatprep.subr.mxu0 0.0
        %1657 = vmatpush1.msra.mxu0 0.0
        %1658 = vmatprep.subr.mxu0 0.0
        %1659 = vmatpush1.msra.mxu0 0.0
        %1660 = vmatprep.subr.mxu0 0.0
        %1661 = vmatpush1.msra.mxu0 0.0
        %1662 = vmatprep.subr.mxu0 0.0
        %1663 = vmatpush1.msra.mxu0 0.0
        %1664 = vmatprep.subr.mxu0 0.0
        %1665 = vmatpush1.msra.mxu0 0.0
        %1666 = vmatprep.subr.mxu0 0.0
        %1667 = vmatpush1.msra.mxu0 0.0
        %1668 = vmatprep.subr.mxu0 0.0
        %1669 = vmatpush1.msra.mxu0 0.0
        %1670 = vmatprep.mubr.f32.mxu0 0.0
        %1671 = vmatmul.mubr.f32.gmra.mrb[0].mxu0 %v1604
        %v1672 = vpop.f32.mrb[0].mxu0
        %v1673 = vadd.f32 0.0, %v1672
        %v1674 = vpop.f32.mrb[0].mxu0
        %1675 = vdwg.mxu0
        %v1676 = vpack.c.bf16 %v1673, %v1597
        %s1677 = scalar_lea.vmem %s7, 8
        %v1678 = vld [vmem:[%s1677] sm:$0xf]
        %v1679 = vld [vmem:[%s1677 + $0x4] sm:$0xf]
        %v1682 = vunpack.c.l.b16 %v1678
        %v1683 = vunpack.c.l.b16 %v1679
        %v1684 = vpack.c.b16 %v1683, %v1682
        %v1687 = vsel %vm1016, %v1676, 0
        %1689 = vmatprep.subr.bf16.mxu0 0
        %1690 = vmatpush1.bf16.msra.mxu0 %v1684
        %1691 = vmatprep.subr.bf16.mxu0 0
        %1692 = vmatpush1.bf16.msra.mxu0 0
        %1693 = vmatprep.subr.bf16.mxu0 0
        %1694 = vmatpush1.bf16.msra.mxu0 0
        %1695 = vmatprep.subr.bf16.mxu0 0
        %1696 = vmatpush1.bf16.msra.mxu0 0
        %1697 = vmatprep.subr.bf16.mxu0 0
        %1698 = vmatpush1.bf16.msra.mxu0 0
        %1699 = vmatprep.subr.bf16.mxu0 0
        %1700 = vmatpush1.bf16.msra.mxu0 0
        %1701 = vmatprep.subr.bf16.mxu0 0
        %1702 = vmatpush1.bf16.msra.mxu0 0
        %1703 = vmatprep.subr.bf16.mxu0 0
        %1704 = vmatpush1.bf16.msra.mxu0 0
        %1705 = vmatprep.subr.bf16.mxu0 0
        %1706 = vmatpush1.bf16.msra.mxu0 0
        %1707 = vmatprep.subr.bf16.mxu0 0
        %1708 = vmatpush1.bf16.msra.mxu0 0
        %1709 = vmatprep.subr.bf16.mxu0 0
        %1710 = vmatpush1.bf16.msra.mxu0 0
        %1711 = vmatprep.subr.bf16.mxu0 0
        %1712 = vmatpush1.bf16.msra.mxu0 0
        %1713 = vmatprep.subr.bf16.mxu0 0
        %1714 = vmatpush1.bf16.msra.mxu0 0
        %1715 = vmatprep.subr.bf16.mxu0 0
        %1716 = vmatpush1.bf16.msra.mxu0 0
        %1717 = vmatprep.subr.bf16.mxu0 0
        %1718 = vmatpush1.bf16.msra.mxu0 0
        %1719 = vmatprep.subr.bf16.mxu0 0
        %1720 = vmatpush1.bf16.msra.mxu0 0
        %1721 = vmatprep.mubr.bf16.mxu0 0
        %1722 = vmatmul.mubr.bf16.gmra.mrb[0].mxu0 %v1687
        %v1723 = vpop.f32.mrb[0].mxu0
        %v1724 = vadd.f32 0.0, %v1723
        %v1725 = vpop.f32.mrb[0].mxu0
        %v1726 = vpop.f32.mrb[0].mxu0
        %v1727 = vadd.f32 0.0, %v1726
        %v1728 = vpop.f32.mrb[0].mxu0
        %1729 = vdwg.mxu0
        %v1732 = vunpack.c.l.b16 %v1344
        %v1733 = vunpack.c.l.b16 %v1345
        %v1734 = vpack.c.b16 %v1733, %v1732
        %v1737 = vsel %vm1016, %v1343, 0
        %1739 = vmatprep.subr.bf16.mxu0 0
        %1740 = vmatpush1.bf16.msra.mxu0 %v1734
        %1741 = vmatprep.subr.bf16.mxu0 0
        %1742 = vmatpush1.bf16.msra.mxu0 0
        %1743 = vmatprep.subr.bf16.mxu0 0
        %1744 = vmatpush1.bf16.msra.mxu0 0
        %1745 = vmatprep.subr.bf16.mxu0 0
        %1746 = vmatpush1.bf16.msra.mxu0 0
        %1747 = vmatprep.subr.bf16.mxu0 0
        %1748 = vmatpush1.bf16.msra.mxu0 0
        %1749 = vmatprep.subr.bf16.mxu0 0
        %1750 = vmatpush1.bf16.msra.mxu0 0
        %1751 = vmatprep.subr.bf16.mxu0 0
        %1752 = vmatpush1.bf16.msra.mxu0 0
        %1753 = vmatprep.subr.bf16.mxu0 0
        %1754 = vmatpush1.bf16.msra.mxu0 0
        %1755 = vmatprep.subr.bf16.mxu0 0
        %1756 = vmatpush1.bf16.msra.mxu0 0
        %1757 = vmatprep.subr.bf16.mxu0 0
        %1758 = vmatpush1.bf16.msra.mxu0 0
        %1759 = vmatprep.subr.bf16.mxu0 0
        %1760 = vmatpush1.bf16.msra.mxu0 0
        %1761 = vmatprep.subr.bf16.mxu0 0
        %1762 = vmatpush1.bf16.msra.mxu0 0
        %1763 = vmatprep.subr.bf16.mxu0 0
        %1764 = vmatpush1.bf16.msra.mxu0 0
        %1765 = vmatprep.subr.bf16.mxu0 0
        %1766 = vmatpush1.bf16.msra.mxu0 0
        %1767 = vmatprep.subr.bf16.mxu0 0
        %1768 = vmatpush1.bf16.msra.mxu0 0
        %1769 = vmatprep.subr.bf16.mxu0 0
        %1770 = vmatpush1.bf16.msra.mxu0 0
        %1771 = vmatprep.mubr.bf16.mxu0 0
        %1772 = vmatmul.mubr.bf16.gmra.mrb[0].mxu0 %v1737
        %v1773 = vpop.f32.mrb[0].mxu0
        %v1774 = vadd.f32 %v1724, %v1773
        %v1775 = vpop.f32.mrb[0].mxu0
        %v1776 = vpop.f32.mrb[0].mxu0
        %v1777 = vadd.f32 %v1727, %v1776
        %v1778 = vpop.f32.mrb[0].mxu0
        %1779 = vdwg.mxu0
        %v1780 = vld [vmem:[%s8] sm:$0x1]
        %v1782 = vlaneseq
        %v1783 = vshrl.u32 %v1782, 7
        %v1784 = vsub.s32 0, %v1783
        %v1785 = vrot.slane %v1780, %v1784
        %v1787 = vadd.f32 %v1774, %v1785
        %v1788 = vadd.f32 %v1777, %v1785
        %v1789 = vadd.f32 %v907, %v1787
        %v1790 = vadd.f32 %v908, %v1788
        %v1791 = vsel %vm935, %v1789, 0.0
        %1792 = vadd.xlane.f32.xlu0 %v1791
        %v1793 = vpop.xlane.xlu0 %1792
        %v1794 = vsel %vm935, %v1790, 0.0
        %1795 = vadd.xlane.f32.xlu0 %v1794
        %v1796 = vpop.xlane.xlu0 %1795
        %v1797 = vrcp.pop 32.0
        %v1798 = vmul.f32 %v1793, %v1797
        %v1799 = vmul.f32 %v1796, %v1797
        %v1800 = vsub.f32 %v1789, %v1798
        %v1801 = vsub.f32 %v1790, %v1799
        %v1802 = vmul.f32 %v1800, %v1800
        %v1803 = vmul.f32 %v1801, %v1801
        %v1804 = vsel %vm935, %v1802, 0.0
        %1805 = vadd.xlane.f32.xlu0 %v1804
        %v1806 = vpop.xlane.xlu0 %1805
        %v1807 = vsel %vm935, %v1803, 0.0
        %1808 = vadd.xlane.f32.xlu0 %v1807
        %v1809 = vpop.xlane.xlu0 %1808
        %v1810 = vmul.f32 %v1806, %v1797
        %v1811 = vmul.f32 %v1809, %v1797
        %v1812 = vadd.f32 %v1810, 1e-05
        %v1813 = vadd.f32 %v1811, 1e-05
        %v1814 = vrsqrt.pop %v1812
        %v1815 = vrsqrt.pop %v1813
        %v1816 = vmul.f32 %v1800, %v1814
        %v1817 = vmul.f32 %v1801, %v1815
        %v1818 = vld [vmem:[%s9] sm:$0x1]
        %v1820 = vlaneseq
        %v1821 = vshrl.u32 %v1820, 7
        %v1822 = vsub.s32 0, %v1821
        %v1823 = vrot.slane %v1818, %v1822
        %v1825 = vmul.f32 %v1816, %v1823
        %v1826 = vmul.f32 %v1817, %v1823
        %v1827 = vld [vmem:[%s10] sm:$0x1]
        %v1829 = vlaneseq
        %v1830 = vshrl.u32 %v1829, 7
        %v1831 = vsub.s32 0, %v1830
        %v1832 = vrot.slane %v1827, %v1831
        %v1834 = vadd.f32 %v1825, %v1832
        %v1835 = vadd.f32 %v1826, %v1832
        %v1836 = vpack.c.bf16 %v1835, %v1834
        %v1837 = vld [vmem:[%s13] sm:$0xff]
        %v1838 = vld [vmem:[%s13 + $0x8] sm:$0xff]
        %v1839 = vld [vmem:[%s13 + $0x40] sm:$0xff]
        %v1840 = vld [vmem:[%s13 + $0x48] sm:$0xff]
        %v1841 = vld [vmem:[%s13 + $0x80] sm:$0xff]
        %v1842 = vld [vmem:[%s13 + $0x88] sm:$0xff]
        %v1843 = vld [vmem:[%s13 + $0xc0] sm:$0xff]
        %v1844 = vld [vmem:[%s13 + $0xc8] sm:$0xff]
        %v1853 = vunpack.c.l.b16 %v1837
        %v1854 = vunpack.c.h.b16 %v1837
        %v1855 = vunpack.c.l.b16 %v1838
        %v1856 = vunpack.c.h.b16 %v1838
        %v1857 = vunpack.c.l.b16 %v1839
        %v1858 = vunpack.c.h.b16 %v1839
        %v1859 = vunpack.c.l.b16 %v1840
        %v1860 = vunpack.c.h.b16 %v1840
        %v1861 = vunpack.c.l.b16 %v1841
        %v1862 = vunpack.c.h.b16 %v1841
        %v1863 = vunpack.c.l.b16 %v1842
        %v1864 = vunpack.c.h.b16 %v1842
        %v1865 = vunpack.c.l.b16 %v1843
        %v1866 = vunpack.c.h.b16 %v1843
        %v1867 = vunpack.c.l.b16 %v1844
        %v1868 = vunpack.c.h.b16 %v1844
        %v1869 = vpack.c.b16 %v1857, %v1853
        %v1870 = vpack.c.b16 %v1858, %v1854
        %v1871 = vpack.c.b16 %v1859, %v1855
        %v1872 = vpack.c.b16 %v1860, %v1856
        %v1873 = vpack.c.b16 %v1865, %v1861
        %v1874 = vpack.c.b16 %v1866, %v1862
        %v1875 = vpack.c.b16 %v1867, %v1863
        %v1876 = vpack.c.b16 %v1868, %v1864
        %v1886 = vsel %vm935, %v1836, 0
        %1888 = vmatprep.subr.bf16.mxu0 %v1870
        %1889 = vmatpush1.bf16.msra.mxu0 %v1869
        %1890 = vmatprep.subr.bf16.mxu0 %v1874
        %1891 = vmatpush1.bf16.msra.mxu0 %v1873
        %1892 = vmatprep.subr.bf16.mxu0 0
        %1893 = vmatpush1.bf16.msra.mxu0 0
        %1894 = vmatprep.subr.bf16.mxu0 0
        %1895 = vmatpush1.bf16.msra.mxu0 0
        %1896 = vmatprep.subr.bf16.mxu0 0
        %1897 = vmatpush1.bf16.msra.mxu0 0
        %1898 = vmatprep.subr.bf16.mxu0 0
        %1899 = vmatpush1.bf16.msra.mxu0 0
        %1900 = vmatprep.subr.bf16.mxu0 0
        %1901 = vmatpush1.bf16.msra.mxu0 0
        %1902 = vmatprep.subr.bf16.mxu0 0
        %1903 = vmatpush1.bf16.msra.mxu0 0
        %1904 = vmatprep.subr.bf16.mxu0 0
        %1905 = vmatpush1.bf16.msra.mxu0 0
        %1906 = vmatprep.subr.bf16.mxu0 0
        %1907 = vmatpush1.bf16.msra.mxu0 0
        %1908 = vmatprep.subr.bf16.mxu0 0
        %1909 = vmatpush1.bf16.msra.mxu0 0
        %1910 = vmatprep.subr.bf16.mxu0 0
        %1911 = vmatpush1.bf16.msra.mxu0 0
        %1912 = vmatprep.subr.bf16.mxu0 0
        %1913 = vmatpush1.bf16.msra.mxu0 0
        %1914 = vmatprep.subr.bf16.mxu0 0
        %1915 = vmatpush1.bf16.msra.mxu0 0
        %1916 = vmatprep.subr.bf16.mxu0 0
        %1917 = vmatpush1.bf16.msra.mxu0 0
        %1918 = vmatprep.subr.bf16.mxu0 0
        %1919 = vmatpush1.bf16.msra.mxu0 0
        %1920 = vmatprep.mubr.bf16.mxu0 0
        %1921 = vmatmul.mubr.bf16.gmra.mrb[0].mxu0 %v1886
        %v1922 = vpop.f32.mrb[0].mxu0
        %v1923 = vadd.f32 0.0, %v1922
        %v1924 = vpop.f32.mrb[0].mxu0
        %v1925 = vadd.f32 0.0, %v1924
        %v1926 = vpop.f32.mrb[0].mxu0
        %v1927 = vadd.f32 0.0, %v1926
        %v1928 = vpop.f32.mrb[0].mxu0
        %v1929 = vadd.f32 0.0, %v1928
        %1930 = vdwg.mxu0
        %1931 = vmatprep.subr.bf16.mxu0 %v1872
        %1932 = vmatpush1.bf16.msra.mxu0 %v1871
        %1933 = vmatprep.subr.bf16.mxu0 %v1876
        %1934 = vmatpush1.bf16.msra.mxu0 %v1875
        %1935 = vmatprep.subr.bf16.mxu0 0
        %1936 = vmatpush1.bf16.msra.mxu0 0
        %1937 = vmatprep.subr.bf16.mxu0 0
        %1938 = vmatpush1.bf16.msra.mxu0 0
        %1939 = vmatprep.subr.bf16.mxu0 0
        %1940 = vmatpush1.bf16.msra.mxu0 0
        %1941 = vmatprep.subr.bf16.mxu0 0
        %1942 = vmatpush1.bf16.msra.mxu0 0
        %1943 = vmatprep.subr.bf16.mxu0 0
        %1944 = vmatpush1.bf16.msra.mxu0 0
        %1945 = vmatprep.subr.bf16.mxu0 0
        %1946 = vmatpush1.bf16.msra.mxu0 0
        %1947 = vmatprep.subr.bf16.mxu0 0
        %1948 = vmatpush1.bf16.msra.mxu0 0
        %1949 = vmatprep.subr.bf16.mxu0 0
        %1950 = vmatpush1.bf16.msra.mxu0 0
        %1951 = vmatprep.subr.bf16.mxu0 0
        %1952 = vmatpush1.bf16.msra.mxu0 0
        %1953 = vmatprep.subr.bf16.mxu0 0
        %1954 = vmatpush1.bf16.msra.mxu0 0
        %1955 = vmatprep.subr.bf16.mxu0 0
        %1956 = vmatpush1.bf16.msra.mxu0 0
        %1957 = vmatprep.subr.bf16.mxu0 0
        %1958 = vmatpush1.bf16.msra.mxu0 0
        %1959 = vmatprep.subr.bf16.mxu0 0
        %1960 = vmatpush1.bf16.msra.mxu0 0
        %1961 = vmatprep.subr.bf16.mxu0 0
        %1962 = vmatpush1.bf16.msra.mxu0 0
        %1963 = vmatprep.mubr.bf16.mxu0 0
        %1964 = vmatmul.mubr.bf16.gmra.mrb[0].mxu0 %v1886
        %v1965 = vpop.f32.mrb[0].mxu0
        %v1966 = vadd.f32 0.0, %v1965
        %v1967 = vpop.f32.mrb[0].mxu0
        %v1968 = vadd.f32 0.0, %v1967
        %v1969 = vpop.f32.mrb[0].mxu0
        %v1970 = vadd.f32 0.0, %v1969
        %v1971 = vpop.f32.mrb[0].mxu0
        %v1972 = vadd.f32 0.0, %v1971
        %1973 = vdwg.mxu0
        %v1974 = vpack.c.bf16 %v1927, %v1923
        %v1975 = vpack.c.bf16 %v1929, %v1925
        %v1976 = vpack.c.bf16 %v1970, %v1966
        %v1977 = vpack.c.bf16 %v1972, %v1968
        %v1978 = vld [vmem:[%s14] sm:$0xf]
        %v1980 = vlaneseq
        %v1981 = vshrl.u32 %v1980, 7
        %v1982 = vsub.s32 0, %v1981
        %v1983 = vrot.slane %v1978, %v1982
        %v1984 = vlaneseq
        %v1985 = vshrl.u32 %v1984, 7
        %v1986 = vsub.s32 1, %v1985
        %v1987 = vrot.slane %v1978, %v1986
        %v1988 = vlaneseq
        %v1989 = vshrl.u32 %v1988, 7
        %v1990 = vsub.s32 2, %v1989
        %v1991 = vrot.slane %v1978, %v1990
        %v1992 = vlaneseq
        %v1993 = vshrl.u32 %v1992, 7
        %v1994 = vsub.s32 3, %v1993
        %v1995 = vrot.slane %v1978, %v1994
        %v2000 = vpack.c.bf16 %v1983, %v1983
        %v2001 = vpack.c.bf16 %v1987, %v1987
        %v2002 = vpack.c.bf16 %v1991, %v1991
        %v2003 = vpack.c.bf16 %v1995, %v1995
        %v2005 = vpack.i.b16 %v2000, %v2000
        %v2007 = vlaneseq
        %v2008 = vshrl.u32 %v2007, 7
        %v2009 = vsub.s32 0, %v2008
        %v2010 = vrot.slane %v2005, %v2009
        %v2012 = vpack.i.b16 %v2001, %v2001
        %v2014 = vlaneseq
        %v2015 = vshrl.u32 %v2014, 7
        %v2016 = vsub.s32 0, %v2015
        %v2017 = vrot.slane %v2012, %v2016
        %v2019 = vpack.i.b16 %v2002, %v2002
        %v2021 = vlaneseq
        %v2022 = vshrl.u32 %v2021, 7
        %v2023 = vsub.s32 0, %v2022
        %v2024 = vrot.slane %v2019, %v2023
        %v2026 = vpack.i.b16 %v2003, %v2003
        %v2028 = vlaneseq
        %v2029 = vshrl.u32 %v2028, 7
        %v2030 = vsub.s32 0, %v2029
        %v2031 = vrot.slane %v2026, %v2030
        %v2032 = vadd.bf16 %v1974, %v2010
        %v2033 = vadd.bf16 %v1975, %v2017
        %v2034 = vadd.bf16 %v1976, %v2024
        %v2035 = vadd.bf16 %v1977, %v2031
        %v2036 = vmax.bf16 %v2032, 0
        %v2037 = vmax.bf16 %v2033, 0
        %v2038 = vmax.bf16 %v2034, 0
        %v2039 = vmax.bf16 %v2035, 0
        %v2040 = vld [vmem:[%s15] sm:$0xf]
        %v2041 = vld [vmem:[%s15 + $0x4] sm:$0xf]
        %v2042 = vld [vmem:[%s15 + $0x8] sm:$0xf]
        %v2043 = vld [vmem:[%s15 + $0xc] sm:$0xf]
        %v2044 = vld [vmem:[%s15 + $0x10] sm:$0xf]
        %v2045 = vld [vmem:[%s15 + $0x14] sm:$0xf]
        %v2046 = vld [vmem:[%s15 + $0x18] sm:$0xf]
        %v2047 = vld [vmem:[%s15 + $0x1c] sm:$0xf]
        %v2048 = vld [vmem:[%s15 + $0x20] sm:$0xf]
        %v2049 = vld [vmem:[%s15 + $0x24] sm:$0xf]
        %v2050 = vld [vmem:[%s15 + $0x28] sm:$0xf]
        %v2051 = vld [vmem:[%s15 + $0x2c] sm:$0xf]
        %v2052 = vld [vmem:[%s15 + $0x30] sm:$0xf]
        %v2053 = vld [vmem:[%s15 + $0x34] sm:$0xf]
        %v2054 = vld [vmem:[%s15 + $0x38] sm:$0xf]
        %v2055 = vld [vmem:[%s15 + $0x3c] sm:$0xf]
        %v2056 = vld [vmem:[%s15 + $0x40] sm:$0xf]
        %v2057 = vld [vmem:[%s15 + $0x44] sm:$0xf]
        %v2058 = vld [vmem:[%s15 + $0x48] sm:$0xf]
        %v2059 = vld [vmem:[%s15 + $0x4c] sm:$0xf]
        %v2060 = vld [vmem:[%s15 + $0x50] sm:$0xf]
        %v2061 = vld [vmem:[%s15 + $0x54] sm:$0xf]
        %v2062 = vld [vmem:[%s15 + $0x58] sm:$0xf]
        %v2063 = vld [vmem:[%s15 + $0x5c] sm:$0xf]
        %v2064 = vld [vmem:[%s15 + $0x60] sm:$0xf]
        %v2065 = vld [vmem:[%s15 + $0x64] sm:$0xf]
        %v2066 = vld [vmem:[%s15 + $0x68] sm:$0xf]
        %v2067 = vld [vmem:[%s15 + $0x6c] sm:$0xf]
        %v2068 = vld [vmem:[%s15 + $0x70] sm:$0xf]
        %v2069 = vld [vmem:[%s15 + $0x74] sm:$0xf]
        %v2070 = vld [vmem:[%s15 + $0x78] sm:$0xf]
        %v2071 = vld [vmem:[%s15 + $0x7c] sm:$0xf]
        %v2072 = vld [vmem:[%s15 + $0x80] sm:$0xf]
        %v2073 = vld [vmem:[%s15 + $0x84] sm:$0xf]
        %v2074 = vld [vmem:[%s15 + $0x88] sm:$0xf]
        %v2075 = vld [vmem:[%s15 + $0x8c] sm:$0xf]
        %v2076 = vld [vmem:[%s15 + $0x90] sm:$0xf]
        %v2077 = vld [vmem:[%s15 + $0x94] sm:$0xf]
        %v2078 = vld [vmem:[%s15 + $0x98] sm:$0xf]
        %v2079 = vld [vmem:[%s15 + $0x9c] sm:$0xf]
        %v2080 = vld [vmem:[%s15 + $0xa0] sm:$0xf]
        %v2081 = vld [vmem:[%s15 + $0xa4] sm:$0xf]
        %v2082 = vld [vmem:[%s15 + $0xa8] sm:$0xf]
        %v2083 = vld [vmem:[%s15 + $0xac] sm:$0xf]
        %v2084 = vld [vmem:[%s15 + $0xb0] sm:$0xf]
        %v2085 = vld [vmem:[%s15 + $0xb4] sm:$0xf]
        %v2086 = vld [vmem:[%s15 + $0xb8] sm:$0xf]
        %v2087 = vld [vmem:[%s15 + $0xbc] sm:$0xf]
        %v2088 = vld [vmem:[%s15 + $0xc0] sm:$0xf]
        %v2089 = vld [vmem:[%s15 + $0xc4] sm:$0xf]
        %v2090 = vld [vmem:[%s15 + $0xc8] sm:$0xf]
        %v2091 = vld [vmem:[%s15 + $0xcc] sm:$0xf]
        %v2092 = vld [vmem:[%s15 + $0xd0] sm:$0xf]
        %v2093 = vld [vmem:[%s15 + $0xd4] sm:$0xf]
        %v2094 = vld [vmem:[%s15 + $0xd8] sm:$0xf]
        %v2095 = vld [vmem:[%s15 + $0xdc] sm:$0xf]
        %v2096 = vld [vmem:[%s15 + $0xe0] sm:$0xf]
        %v2097 = vld [vmem:[%s15 + $0xe4] sm:$0xf]
        %v2098 = vld [vmem:[%s15 + $0xe8] sm:$0xf]
        %v2099 = vld [vmem:[%s15 + $0xec] sm:$0xf]
        %v2100 = vld [vmem:[%s15 + $0xf0] sm:$0xf]
        %v2101 = vld [vmem:[%s15 + $0xf4] sm:$0xf]
        %v2102 = vld [vmem:[%s15 + $0xf8] sm:$0xf]
        %v2103 = vld [vmem:[%s15 + $0xfc] sm:$0xf]
        %s2104 = scalar_lea.vmem %s13, 16
        %v2105 = vld [vmem:[%s2104] sm:$0xff]
        %v2106 = vld [vmem:[%s2104 + $0x8] sm:$0xff]
        %v2107 = vld [vmem:[%s2104 + $0x40] sm:$0xff]
        %v2108 = vld [vmem:[%s2104 + $0x48] sm:$0xff]
        %v2109 = vld [vmem:[%s2104 + $0x80] sm:$0xff]
        %v2110 = vld [vmem:[%s2104 + $0x88] sm:$0xff]
        %v2111 = vld [vmem:[%s2104 + $0xc0] sm:$0xff]
        %v2112 = vld [vmem:[%s2104 + $0xc8] sm:$0xff]
        %v2121 = vunpack.c.l.b16 %v2105
        %v2122 = vunpack.c.h.b16 %v2105
        %v2123 = vunpack.c.l.b16 %v2106
        %v2124 = vunpack.c.h.b16 %v2106
        %v2125 = vunpack.c.l.b16 %v2107
        %v2126 = vunpack.c.h.b16 %v2107
        %v2127 = vunpack.c.l.b16 %v2108
        %v2128 = vunpack.c.h.b16 %v2108
        %v2129 = vunpack.c.l.b16 %v2109
        %v2130 = vunpack.c.h.b16 %v2109
        %v2131 = vunpack.c.l.b16 %v2110
        %v2132 = vunpack.c.h.b16 %v2110
        %v2133 = vunpack.c.l.b16 %v2111
        %v2134 = vunpack.c.h.b16 %v2111
        %v2135 = vunpack.c.l.b16 %v2112
        %v2136 = vunpack.c.h.b16 %v2112
        %v2137 = vpack.c.b16 %v2125, %v2121
        %v2138 = vpack.c.b16 %v2126, %v2122
        %v2139 = vpack.c.b16 %v2127, %v2123
        %v2140 = vpack.c.b16 %v2128, %v2124
        %v2141 = vpack.c.b16 %v2133, %v2129
        %v2142 = vpack.c.b16 %v2134, %v2130
        %v2143 = vpack.c.b16 %v2135, %v2131
        %v2144 = vpack.c.b16 %v2136, %v2132
        %2153 = vmatprep.subr.bf16.mxu0 %v2138
        %2154 = vmatpush1.bf16.msra.mxu0 %v2137
        %2155 = vmatprep.subr.bf16.mxu0 %v2142
        %2156 = vmatpush1.bf16.msra.mxu0 %v2141
        %2157 = vmatprep.subr.bf16.mxu0 0
        %2158 = vmatpush1.bf16.msra.mxu0 0
        %2159 = vmatprep.subr.bf16.mxu0 0
        %2160 = vmatpush1.bf16.msra.mxu0 0
        %2161 = vmatprep.subr.bf16.mxu0 0
        %2162 = vmatpush1.bf16.msra.mxu0 0
        %2163 = vmatprep.subr.bf16.mxu0 0
        %2164 = vmatpush1.bf16.msra.mxu0 0
        %2165 = vmatprep.subr.bf16.mxu0 0
        %2166 = vmatpush1.bf16.msra.mxu0 0
        %2167 = vmatprep.subr.bf16.mxu0 0
        %2168 = vmatpush1.bf16.msra.mxu0 0
        %2169 = vmatprep.subr.bf16.mxu0 0
        %2170 = vmatpush1.bf16.msra.mxu0 0
        %2171 = vmatprep.subr.bf16.mxu0 0
        %2172 = vmatpush1.bf16.msra.mxu0 0
        %2173 = vmatprep.subr.bf16.mxu0 0
        %2174 = vmatpush1.bf16.msra.mxu0 0
        %2175 = vmatprep.subr.bf16.mxu0 0
        %2176 = vmatpush1.bf16.msra.mxu0 0
        %2177 = vmatprep.subr.bf16.mxu0 0
        %2178 = vmatpush1.bf16.msra.mxu0 0
        %2179 = vmatprep.subr.bf16.mxu0 0
        %2180 = vmatpush1.bf16.msra.mxu0 0
        %2181 = vmatprep.subr.bf16.mxu0 0
        %2182 = vmatpush1.bf16.msra.mxu0 0
        %2183 = vmatprep.subr.bf16.mxu0 0
        %2184 = vmatpush1.bf16.msra.mxu0 0
        %2185 = vmatprep.mubr.bf16.mxu0 0
        %2186 = vmatmul.mubr.bf16.gmra.mrb[0].mxu0 %v1886
        %v2187 = vpop.f32.mrb[0].mxu0
        %v2188 = vadd.f32 0.0, %v2187
        %v2189 = vpop.f32.mrb[0].mxu0
        %v2190 = vadd.f32 0.0, %v2189
        %v2191 = vpop.f32.mrb[0].mxu0
        %v2192 = vadd.f32 0.0, %v2191
        %v2193 = vpop.f32.mrb[0].mxu0
        %v2194 = vadd.f32 0.0, %v2193
        %2195 = vdwg.mxu0
        %2196 = vmatprep.subr.bf16.mxu0 %v2140
        %2197 = vmatpush1.bf16.msra.mxu0 %v2139
        %2198 = vmatprep.subr.bf16.mxu0 %v2144
        %2199 = vmatpush1.bf16.msra.mxu0 %v2143
        %2200 = vmatprep.subr.bf16.mxu0 0
        %2201 = vmatpush1.bf16.msra.mxu0 0
        %2202 = vmatprep.subr.bf16.mxu0 0
        %2203 = vmatpush1.bf16.msra.mxu0 0
        %2204 = vmatprep.subr.bf16.mxu0 0
        %2205 = vmatpush1.bf16.msra.mxu0 0
        %2206 = vmatprep.subr.bf16.mxu0 0
        %2207 = vmatpush1.bf16.msra.mxu0 0
        %2208 = vmatprep.subr.bf16.mxu0 0
        %2209 = vmatpush1.bf16.msra.mxu0 0
        %2210 = vmatprep.subr.bf16.mxu0 0
        %2211 = vmatpush1.bf16.msra.mxu0 0
        %2212 = vmatprep.subr.bf16.mxu0 0
        %2213 = vmatpush1.bf16.msra.mxu0 0
        %2214 = vmatprep.subr.bf16.mxu0 0
        %2215 = vmatpush1.bf16.msra.mxu0 0
        %2216 = vmatprep.subr.bf16.mxu0 0
        %2217 = vmatpush1.bf16.msra.mxu0 0
        %2218 = vmatprep.subr.bf16.mxu0 0
        %2219 = vmatpush1.bf16.msra.mxu0 0
        %2220 = vmatprep.subr.bf16.mxu0 0
        %2221 = vmatpush1.bf16.msra.mxu0 0
        %2222 = vmatprep.subr.bf16.mxu0 0
        %2223 = vmatpush1.bf16.msra.mxu0 0
        %2224 = vmatprep.subr.bf16.mxu0 0
        %2225 = vmatpush1.bf16.msra.mxu0 0
        %2226 = vmatprep.subr.bf16.mxu0 0
        %2227 = vmatpush1.bf16.msra.mxu0 0
        %2228 = vmatprep.mubr.bf16.mxu0 0
        %2229 = vmatmul.mubr.bf16.gmra.mrb[0].mxu0 %v1886
        %v2230 = vpop.f32.mrb[0].mxu0
        %v2231 = vadd.f32 0.0, %v2230
        %v2232 = vpop.f32.mrb[0].mxu0
        %v2233 = vadd.f32 0.0, %v2232
        %v2234 = vpop.f32.mrb[0].mxu0
        %v2235 = vadd.f32 0.0, %v2234
        %v2236 = vpop.f32.mrb[0].mxu0
        %v2237 = vadd.f32 0.0, %v2236
        %2238 = vdwg.mxu0
        %v2239 = vpack.c.bf16 %v2192, %v2188
        %v2240 = vpack.c.bf16 %v2194, %v2190
        %v2241 = vpack.c.bf16 %v2235, %v2231
        %v2242 = vpack.c.bf16 %v2237, %v2233
        %s2243 = scalar_lea.vmem %s14, 4
        %v2244 = vld [vmem:[%s2243] sm:$0xf]
        %v2246 = vlaneseq
        %v2247 = vshrl.u32 %v2246, 7
        %v2248 = vsub.s32 0, %v2247
        %v2249 = vrot.slane %v2244, %v2248
        %v2250 = vlaneseq
        %v2251 = vshrl.u32 %v2250, 7
        %v2252 = vsub.s32 1, %v2251
        %v2253 = vrot.slane %v2244, %v2252
        %v2254 = vlaneseq
        %v2255 = vshrl.u32 %v2254, 7
        %v2256 = vsub.s32 2, %v2255
        %v2257 = vrot.slane %v2244, %v2256
        %v2258 = vlaneseq
        %v2259 = vshrl.u32 %v2258, 7
        %v2260 = vsub.s32 3, %v2259
        %v2261 = vrot.slane %v2244, %v2260
        %v2266 = vpack.c.bf16 %v2249, %v2249
        %v2267 = vpack.c.bf16 %v2253, %v2253
        %v2268 = vpack.c.bf16 %v2257, %v2257
        %v2269 = vpack.c.bf16 %v2261, %v2261
        %v2271 = vpack.i.b16 %v2266, %v2266
        %v2273 = vlaneseq
        %v2274 = vshrl.u32 %v2273, 7
        %v2275 = vsub.s32 0, %v2274
        %v2276 = vrot.slane %v2271, %v2275
        %v2278 = vpack.i.b16 %v2267, %v2267
        %v2280 = vlaneseq
        %v2281 = vshrl.u32 %v2280, 7
        %v2282 = vsub.s32 0, %v2281
        %v2283 = vrot.slane %v2278, %v2282
        %v2285 = vpack.i.b16 %v2268, %v2268
        %v2287 = vlaneseq
        %v2288 = vshrl.u32 %v2287, 7
        %v2289 = vsub.s32 0, %v2288
        %v2290 = vrot.slane %v2285, %v2289
        %v2292 = vpack.i.b16 %v2269, %v2269
        %v2294 = vlaneseq
        %v2295 = vshrl.u32 %v2294, 7
        %v2296 = vsub.s32 0, %v2295
        %v2297 = vrot.slane %v2292, %v2296
        %v2298 = vadd.bf16 %v2239, %v2276
        %v2299 = vadd.bf16 %v2240, %v2283
        %v2300 = vadd.bf16 %v2241, %v2290
        %v2301 = vadd.bf16 %v2242, %v2297
        %v2302 = vmax.bf16 %v2298, 0
        %v2303 = vmax.bf16 %v2299, 0
        %v2304 = vmax.bf16 %v2300, 0
        %v2305 = vmax.bf16 %v2301, 0
        %s2306 = scalar_lea.vmem %s15, 256
        %v2307 = vld [vmem:[%s2306] sm:$0xf]
        %v2308 = vld [vmem:[%s2306 + $0x4] sm:$0xf]
        %v2309 = vld [vmem:[%s2306 + $0x8] sm:$0xf]
        %v2310 = vld [vmem:[%s2306 + $0xc] sm:$0xf]
        %v2311 = vld [vmem:[%s2306 + $0x10] sm:$0xf]
        %v2312 = vld [vmem:[%s2306 + $0x14] sm:$0xf]
        %v2313 = vld [vmem:[%s2306 + $0x18] sm:$0xf]
        %v2314 = vld [vmem:[%s2306 + $0x1c] sm:$0xf]
        %v2315 = vld [vmem:[%s2306 + $0x20] sm:$0xf]
        %v2316 = vld [vmem:[%s2306 + $0x24] sm:$0xf]
        %v2317 = vld [vmem:[%s2306 + $0x28] sm:$0xf]
        %v2318 = vld [vmem:[%s2306 + $0x2c] sm:$0xf]
        %v2319 = vld [vmem:[%s2306 + $0x30] sm:$0xf]
        %v2320 = vld [vmem:[%s2306 + $0x34] sm:$0xf]
        %v2321 = vld [vmem:[%s2306 + $0x38] sm:$0xf]
        %v2322 = vld [vmem:[%s2306 + $0x3c] sm:$0xf]
        %v2323 = vld [vmem:[%s2306 + $0x40] sm:$0xf]
        %v2324 = vld [vmem:[%s2306 + $0x44] sm:$0xf]
        %v2325 = vld [vmem:[%s2306 + $0x48] sm:$0xf]
        %v2326 = vld [vmem:[%s2306 + $0x4c] sm:$0xf]
        %v2327 = vld [vmem:[%s2306 + $0x50] sm:$0xf]
        %v2328 = vld [vmem:[%s2306 + $0x54] sm:$0xf]
        %v2329 = vld [vmem:[%s2306 + $0x58] sm:$0xf]
        %v2330 = vld [vmem:[%s2306 + $0x5c] sm:$0xf]
        %v2331 = vld [vmem:[%s2306 + $0x60] sm:$0xf]
        %v2332 = vld [vmem:[%s2306 + $0x64] sm:$0xf]
        %v2333 = vld [vmem:[%s2306 + $0x68] sm:$0xf]
        %v2334 = vld [vmem:[%s2306 + $0x6c] sm:$0xf]
        %v2335 = vld [vmem:[%s2306 + $0x70] sm:$0xf]
        %v2336 = vld [vmem:[%s2306 + $0x74] sm:$0xf]
        %v2337 = vld [vmem:[%s2306 + $0x78] sm:$0xf]
        %v2338 = vld [vmem:[%s2306 + $0x7c] sm:$0xf]
        %v2339 = vld [vmem:[%s2306 + $0x80] sm:$0xf]
        %v2340 = vld [vmem:[%s2306 + $0x84] sm:$0xf]
        %v2341 = vld [vmem:[%s2306 + $0x88] sm:$0xf]
        %v2342 = vld [vmem:[%s2306 + $0x8c] sm:$0xf]
        %v2343 = vld [vmem:[%s2306 + $0x90] sm:$0xf]
        %v2344 = vld [vmem:[%s2306 + $0x94] sm:$0xf]
        %v2345 = vld [vmem:[%s2306 + $0x98] sm:$0xf]
        %v2346 = vld [vmem:[%s2306 + $0x9c] sm:$0xf]
        %v2347 = vld [vmem:[%s2306 + $0xa0] sm:$0xf]
        %v2348 = vld [vmem:[%s2306 + $0xa4] sm:$0xf]
        %v2349 = vld [vmem:[%s2306 + $0xa8] sm:$0xf]
        %v2350 = vld [vmem:[%s2306 + $0xac] sm:$0xf]
        %v2351 = vld [vmem:[%s2306 + $0xb0] sm:$0xf]
        %v2352 = vld [vmem:[%s2306 + $0xb4] sm:$0xf]
        %v2353 = vld [vmem:[%s2306 + $0xb8] sm:$0xf]
        %v2354 = vld [vmem:[%s2306 + $0xbc] sm:$0xf]
        %v2355 = vld [vmem:[%s2306 + $0xc0] sm:$0xf]
        %v2356 = vld [vmem:[%s2306 + $0xc4] sm:$0xf]
        %v2357 = vld [vmem:[%s2306 + $0xc8] sm:$0xf]
        %v2358 = vld [vmem:[%s2306 + $0xcc] sm:$0xf]
        %v2359 = vld [vmem:[%s2306 + $0xd0] sm:$0xf]
        %v2360 = vld [vmem:[%s2306 + $0xd4] sm:$0xf]
        %v2361 = vld [vmem:[%s2306 + $0xd8] sm:$0xf]
        %v2362 = vld [vmem:[%s2306 + $0xdc] sm:$0xf]
        %v2363 = vld [vmem:[%s2306 + $0xe0] sm:$0xf]
        %v2364 = vld [vmem:[%s2306 + $0xe4] sm:$0xf]
        %v2365 = vld [vmem:[%s2306 + $0xe8] sm:$0xf]
        %v2366 = vld [vmem:[%s2306 + $0xec] sm:$0xf]
        %v2367 = vld [vmem:[%s2306 + $0xf0] sm:$0xf]
        %v2368 = vld [vmem:[%s2306 + $0xf4] sm:$0xf]
        %v2369 = vld [vmem:[%s2306 + $0xf8] sm:$0xf]
        %v2370 = vld [vmem:[%s2306 + $0xfc] sm:$0xf]
        %v2435 = vunpack.c.l.b16 %v2307
        %v2436 = vunpack.c.l.b16 %v2308
        %v2437 = vunpack.c.l.b16 %v2309
        %v2438 = vunpack.c.l.b16 %v2310
        %v2439 = vunpack.c.l.b16 %v2311
        %v2440 = vunpack.c.l.b16 %v2312
        %v2441 = vunpack.c.l.b16 %v2313
        %v2442 = vunpack.c.l.b16 %v2314
        %v2443 = vunpack.c.l.b16 %v2315
        %v2444 = vunpack.c.l.b16 %v2316
        %v2445 = vunpack.c.l.b16 %v2317
        %v2446 = vunpack.c.l.b16 %v2318
        %v2447 = vunpack.c.l.b16 %v2319
        %v2448 = vunpack.c.l.b16 %v2320
        %v2449 = vunpack.c.l.b16 %v2321
        %v2450 = vunpack.c.l.b16 %v2322
        %v2451 = vunpack.c.l.b16 %v2323
        %v2452 = vunpack.c.l.b16 %v2324
        %v2453 = vunpack.c.l.b16 %v2325
        %v2454 = vunpack.c.l.b16 %v2326
        %v2455 = vunpack.c.l.b16 %v2327
        %v2456 = vunpack.c.l.b16 %v2328
        %v2457 = vunpack.c.l.b16 %v2329
        %v2458 = vunpack.c.l.b16 %v2330
        %v2459 = vunpack.c.l.b16 %v2331
        %v2460 = vunpack.c.l.b16 %v2332
        %v2461 = vunpack.c.l.b16 %v2333
        %v2462 = vunpack.c.l.b16 %v2334
        %v2463 = vunpack.c.l.b16 %v2335
        %v2464 = vunpack.c.l.b16 %v2336
        %v2465 = vunpack.c.l.b16 %v2337
        %v2466 = vunpack.c.l.b16 %v2338
        %v2467 = vunpack.c.l.b16 %v2339
        %v2468 = vunpack.c.l.b16 %v2340
        %v2469 = vunpack.c.l.b16 %v2341
        %v2470 = vunpack.c.l.b16 %v2342
        %v2471 = vunpack.c.l.b16 %v2343
        %v2472 = vunpack.c.l.b16 %v2344
        %v2473 = vunpack.c.l.b16 %v2345
        %v2474 = vunpack.c.l.b16 %v2346
        %v2475 = vunpack.c.l.b16 %v2347
        %v2476 = vunpack.c.l.b16 %v2348
        %v2477 = vunpack.c.l.b16 %v2349
        %v2478 = vunpack.c.l.b16 %v2350
        %v2479 = vunpack.c.l.b16 %v2351
        %v2480 = vunpack.c.l.b16 %v2352
        %v2481 = vunpack.c.l.b16 %v2353
        %v2482 = vunpack.c.l.b16 %v2354
        %v2483 = vunpack.c.l.b16 %v2355
        %v2484 = vunpack.c.l.b16 %v2356
        %v2485 = vunpack.c.l.b16 %v2357
        %v2486 = vunpack.c.l.b16 %v2358
        %v2487 = vunpack.c.l.b16 %v2359
        %v2488 = vunpack.c.l.b16 %v2360
        %v2489 = vunpack.c.l.b16 %v2361
        %v2490 = vunpack.c.l.b16 %v2362
        %v2491 = vunpack.c.l.b16 %v2363
        %v2492 = vunpack.c.l.b16 %v2364
        %v2493 = vunpack.c.l.b16 %v2365
        %v2494 = vunpack.c.l.b16 %v2366
        %v2495 = vunpack.c.l.b16 %v2367
        %v2496 = vunpack.c.l.b16 %v2368
        %v2497 = vunpack.c.l.b16 %v2369
        %v2498 = vunpack.c.l.b16 %v2370
        %v2499 = vpack.c.b16 %v2436, %v2435
        %v2500 = vpack.c.b16 %v2438, %v2437
        %v2501 = vpack.c.b16 %v2440, %v2439
        %v2502 = vpack.c.b16 %v2442, %v2441
        %v2503 = vpack.c.b16 %v2444, %v2443
        %v2504 = vpack.c.b16 %v2446, %v2445
        %v2505 = vpack.c.b16 %v2448, %v2447
        %v2506 = vpack.c.b16 %v2450, %v2449
        %v2507 = vpack.c.b16 %v2452, %v2451
        %v2508 = vpack.c.b16 %v2454, %v2453
        %v2509 = vpack.c.b16 %v2456, %v2455
        %v2510 = vpack.c.b16 %v2458, %v2457
        %v2511 = vpack.c.b16 %v2460, %v2459
        %v2512 = vpack.c.b16 %v2462, %v2461
        %v2513 = vpack.c.b16 %v2464, %v2463
        %v2514 = vpack.c.b16 %v2466, %v2465
        %v2515 = vpack.c.b16 %v2468, %v2467
        %v2516 = vpack.c.b16 %v2470, %v2469
        %v2517 = vpack.c.b16 %v2472, %v2471
        %v2518 = vpack.c.b16 %v2474, %v2473
        %v2519 = vpack.c.b16 %v2476, %v2475
        %v2520 = vpack.c.b16 %v2478, %v2477
        %v2521 = vpack.c.b16 %v2480, %v2479
        %v2522 = vpack.c.b16 %v2482, %v2481
        %v2523 = vpack.c.b16 %v2484, %v2483
        %v2524 = vpack.c.b16 %v2486, %v2485
        %v2525 = vpack.c.b16 %v2488, %v2487
        %v2526 = vpack.c.b16 %v2490, %v2489
        %v2527 = vpack.c.b16 %v2492, %v2491
        %v2528 = vpack.c.b16 %v2494, %v2493
        %v2529 = vpack.c.b16 %v2496, %v2495
        %v2530 = vpack.c.b16 %v2498, %v2497
        %2563 = vmatprep.subr.bf16.mxu0 0
        %2564 = vmatpush1.bf16.msra.mxu0 %v2499
        %2565 = vmatprep.subr.bf16.mxu0 0
        %2566 = vmatpush1.bf16.msra.mxu0 %v2500
        %2567 = vmatprep.subr.bf16.mxu0 0
        %2568 = vmatpush1.bf16.msra.mxu0 %v2501
        %2569 = vmatprep.subr.bf16.mxu0 0
        %2570 = vmatpush1.bf16.msra.mxu0 %v2502
        %2571 = vmatprep.subr.bf16.mxu0 0
        %2572 = vmatpush1.bf16.msra.mxu0 %v2503
        %2573 = vmatprep.subr.bf16.mxu0 0
        %2574 = vmatpush1.bf16.msra.mxu0 %v2504
        %2575 = vmatprep.subr.bf16.mxu0 0
        %2576 = vmatpush1.bf16.msra.mxu0 %v2505
        %2577 = vmatprep.subr.bf16.mxu0 0
        %2578 = vmatpush1.bf16.msra.mxu0 %v2506
        %2579 = vmatprep.subr.bf16.mxu0 0
        %2580 = vmatpush1.bf16.msra.mxu0 %v2507
        %2581 = vmatprep.subr.bf16.mxu0 0
        %2582 = vmatpush1.bf16.msra.mxu0 %v2508
        %2583 = vmatprep.subr.bf16.mxu0 0
        %2584 = vmatpush1.bf16.msra.mxu0 %v2509
        %2585 = vmatprep.subr.bf16.mxu0 0
        %2586 = vmatpush1.bf16.msra.mxu0 %v2510
        %2587 = vmatprep.subr.bf16.mxu0 0
        %2588 = vmatpush1.bf16.msra.mxu0 %v2511
        %2589 = vmatprep.subr.bf16.mxu0 0
        %2590 = vmatpush1.bf16.msra.mxu0 %v2512
        %2591 = vmatprep.subr.bf16.mxu0 0
        %2592 = vmatpush1.bf16.msra.mxu0 %v2513
        %2593 = vmatprep.subr.bf16.mxu0 0
        %2594 = vmatpush1.bf16.msra.mxu0 %v2514
        %2595 = vmatprep.mubr.bf16.mxu0 %v2303
        %2596 = vmatmul.mubr.bf16.gmra.mrb[0].mxu0 %v2302
        %v2597 = vpop.f32.mrb[0].mxu0
        %v2598 = vadd.f32 0.0, %v2597
        %v2599 = vpop.f32.mrb[0].mxu0
        %v2600 = vpop.f32.mrb[0].mxu0
        %v2601 = vadd.f32 0.0, %v2600
        %v2602 = vpop.f32.mrb[0].mxu0
        %2603 = vdwg.mxu0
        %2604 = vmatprep.subr.bf16.mxu0 0
        %2605 = vmatpush1.bf16.msra.mxu0 %v2515
        %2606 = vmatprep.subr.bf16.mxu0 0
        %2607 = vmatpush1.bf16.msra.mxu0 %v2516
        %2608 = vmatprep.subr.bf16.mxu0 0
        %2609 = vmatpush1.bf16.msra.mxu0 %v2517
        %2610 = vmatprep.subr.bf16.mxu0 0
        %2611 = vmatpush1.bf16.msra.mxu0 %v2518
        %2612 = vmatprep.subr.bf16.mxu0 0
        %2613 = vmatpush1.bf16.msra.mxu0 %v2519
        %2614 = vmatprep.subr.bf16.mxu0 0
        %2615 = vmatpush1.bf16.msra.mxu0 %v2520
        %2616 = vmatprep.subr.bf16.mxu0 0
        %2617 = vmatpush1.bf16.msra.mxu0 %v2521
        %2618 = vmatprep.subr.bf16.mxu0 0
        %2619 = vmatpush1.bf16.msra.mxu0 %v2522
        %2620 = vmatprep.subr.bf16.mxu0 0
        %2621 = vmatpush1.bf16.msra.mxu0 %v2523
        %2622 = vmatprep.subr.bf16.mxu0 0
        %2623 = vmatpush1.bf16.msra.mxu0 %v2524
        %2624 = vmatprep.subr.bf16.mxu0 0
        %2625 = vmatpush1.bf16.msra.mxu0 %v2525
        %2626 = vmatprep.subr.bf16.mxu0 0
        %2627 = vmatpush1.bf16.msra.mxu0 %v2526
        %2628 = vmatprep.subr.bf16.mxu0 0
        %2629 = vmatpush1.bf16.msra.mxu0 %v2527
        %2630 = vmatprep.subr.bf16.mxu0 0
        %2631 = vmatpush1.bf16.msra.mxu0 %v2528
        %2632 = vmatprep.subr.bf16.mxu0 0
        %2633 = vmatpush1.bf16.msra.mxu0 %v2529
        %2634 = vmatprep.subr.bf16.mxu0 0
        %2635 = vmatpush1.bf16.msra.mxu0 %v2530
        %2636 = vmatprep.mubr.bf16.mxu0 %v2305
        %2637 = vmatmul.mubr.bf16.gmra.mrb[0].mxu0 %v2304
        %v2638 = vpop.f32.mrb[0].mxu0
        %v2639 = vadd.f32 %v2598, %v2638
        %v2640 = vpop.f32.mrb[0].mxu0
        %v2641 = vpop.f32.mrb[0].mxu0
        %v2642 = vadd.f32 %v2601, %v2641
        %v2643 = vpop.f32.mrb[0].mxu0
        %2644 = vdwg.mxu0
        %v2709 = vunpack.c.l.b16 %v2040
        %v2710 = vunpack.c.l.b16 %v2041
        %v2711 = vunpack.c.l.b16 %v2042
        %v2712 = vunpack.c.l.b16 %v2043
        %v2713 = vunpack.c.l.b16 %v2044
        %v2714 = vunpack.c.l.b16 %v2045
        %v2715 = vunpack.c.l.b16 %v2046
        %v2716 = vunpack.c.l.b16 %v2047
        %v2717 = vunpack.c.l.b16 %v2048
        %v2718 = vunpack.c.l.b16 %v2049
        %v2719 = vunpack.c.l.b16 %v2050
        %v2720 = vunpack.c.l.b16 %v2051
        %v2721 = vunpack.c.l.b16 %v2052
        %v2722 = vunpack.c.l.b16 %v2053
        %v2723 = vunpack.c.l.b16 %v2054
        %v2724 = vunpack.c.l.b16 %v2055
        %v2725 = vunpack.c.l.b16 %v2056
        %v2726 = vunpack.c.l.b16 %v2057
        %v2727 = vunpack.c.l.b16 %v2058
        %v2728 = vunpack.c.l.b16 %v2059
        %v2729 = vunpack.c.l.b16 %v2060
        %v2730 = vunpack.c.l.b16 %v2061
        %v2731 = vunpack.c.l.b16 %v2062
        %v2732 = vunpack.c.l.b16 %v2063
        %v2733 = vunpack.c.l.b16 %v2064
        %v2734 = vunpack.c.l.b16 %v2065
        %v2735 = vunpack.c.l.b16 %v2066
        %v2736 = vunpack.c.l.b16 %v2067
        %v2737 = vunpack.c.l.b16 %v2068
        %v2738 = vunpack.c.l.b16 %v2069
        %v2739 = vunpack.c.l.b16 %v2070
        %v2740 = vunpack.c.l.b16 %v2071
        %v2741 = vunpack.c.l.b16 %v2072
        %v2742 = vunpack.c.l.b16 %v2073
        %v2743 = vunpack.c.l.b16 %v2074
        %v2744 = vunpack.c.l.b16 %v2075
        %v2745 = vunpack.c.l.b16 %v2076
        %v2746 = vunpack.c.l.b16 %v2077
        %v2747 = vunpack.c.l.b16 %v2078
        %v2748 = vunpack.c.l.b16 %v2079
        %v2749 = vunpack.c.l.b16 %v2080
        %v2750 = vunpack.c.l.b16 %v2081
        %v2751 = vunpack.c.l.b16 %v2082
        %v2752 = vunpack.c.l.b16 %v2083
        %v2753 = vunpack.c.l.b16 %v2084
        %v2754 = vunpack.c.l.b16 %v2085
        %v2755 = vunpack.c.l.b16 %v2086
        %v2756 = vunpack.c.l.b16 %v2087
        %v2757 = vunpack.c.l.b16 %v2088
        %v2758 = vunpack.c.l.b16 %v2089
        %v2759 = vunpack.c.l.b16 %v2090
        %v2760 = vunpack.c.l.b16 %v2091
        %v2761 = vunpack.c.l.b16 %v2092
        %v2762 = vunpack.c.l.b16 %v2093
        %v2763 = vunpack.c.l.b16 %v2094
        %v2764 = vunpack.c.l.b16 %v2095
        %v2765 = vunpack.c.l.b16 %v2096
        %v2766 = vunpack.c.l.b16 %v2097
        %v2767 = vunpack.c.l.b16 %v2098
        %v2768 = vunpack.c.l.b16 %v2099
        %v2769 = vunpack.c.l.b16 %v2100
        %v2770 = vunpack.c.l.b16 %v2101
        %v2771 = vunpack.c.l.b16 %v2102
        %v2772 = vunpack.c.l.b16 %v2103
        %v2773 = vpack.c.b16 %v2710, %v2709
        %v2774 = vpack.c.b16 %v2712, %v2711
        %v2775 = vpack.c.b16 %v2714, %v2713
        %v2776 = vpack.c.b16 %v2716, %v2715
        %v2777 = vpack.c.b16 %v2718, %v2717
        %v2778 = vpack.c.b16 %v2720, %v2719
        %v2779 = vpack.c.b16 %v2722, %v2721
        %v2780 = vpack.c.b16 %v2724, %v2723
        %v2781 = vpack.c.b16 %v2726, %v2725
        %v2782 = vpack.c.b16 %v2728, %v2727
        %v2783 = vpack.c.b16 %v2730, %v2729
        %v2784 = vpack.c.b16 %v2732, %v2731
        %v2785 = vpack.c.b16 %v2734, %v2733
        %v2786 = vpack.c.b16 %v2736, %v2735
        %v2787 = vpack.c.b16 %v2738, %v2737
        %v2788 = vpack.c.b16 %v2740, %v2739
        %v2789 = vpack.c.b16 %v2742, %v2741
        %v2790 = vpack.c.b16 %v2744, %v2743
        %v2791 = vpack.c.b16 %v2746, %v2745
        %v2792 = vpack.c.b16 %v2748, %v2747
        %v2793 = vpack.c.b16 %v2750, %v2749
        %v2794 = vpack.c.b16 %v2752, %v2751
        %v2795 = vpack.c.b16 %v2754, %v2753
        %v2796 = vpack.c.b16 %v2756, %v2755
        %v2797 = vpack.c.b16 %v2758, %v2757
        %v2798 = vpack.c.b16 %v2760, %v2759
        %v2799 = vpack.c.b16 %v2762, %v2761
        %v2800 = vpack.c.b16 %v2764, %v2763
        %v2801 = vpack.c.b16 %v2766, %v2765
        %v2802 = vpack.c.b16 %v2768, %v2767
        %v2803 = vpack.c.b16 %v2770, %v2769
        %v2804 = vpack.c.b16 %v2772, %v2771
        %2837 = vmatprep.subr.bf16.mxu0 0
        %2838 = vmatpush1.bf16.msra.mxu0 %v2773
        %2839 = vmatprep.subr.bf16.mxu0 0
        %2840 = vmatpush1.bf16.msra.mxu0 %v2774
        %2841 = vmatprep.subr.bf16.mxu0 0
        %2842 = vmatpush1.bf16.msra.mxu0 %v2775
        %2843 = vmatprep.subr.bf16.mxu0 0
        %2844 = vmatpush1.bf16.msra.mxu0 %v2776
        %2845 = vmatprep.subr.bf16.mxu0 0
        %2846 = vmatpush1.bf16.msra.mxu0 %v2777
        %2847 = vmatprep.subr.bf16.mxu0 0
        %2848 = vmatpush1.bf16.msra.mxu0 %v2778
        %2849 = vmatprep.subr.bf16.mxu0 0
        %2850 = vmatpush1.bf16.msra.mxu0 %v2779
        %2851 = vmatprep.subr.bf16.mxu0 0
        %2852 = vmatpush1.bf16.msra.mxu0 %v2780
        %2853 = vmatprep.subr.bf16.mxu0 0
        %2854 = vmatpush1.bf16.msra.mxu0 %v2781
        %2855 = vmatprep.subr.bf16.mxu0 0
        %2856 = vmatpush1.bf16.msra.mxu0 %v2782
        %2857 = vmatprep.subr.bf16.mxu0 0
        %2858 = vmatpush1.bf16.msra.mxu0 %v2783
        %2859 = vmatprep.subr.bf16.mxu0 0
        %2860 = vmatpush1.bf16.msra.mxu0 %v2784
        %2861 = vmatprep.subr.bf16.mxu0 0
        %2862 = vmatpush1.bf16.msra.mxu0 %v2785
        %2863 = vmatprep.subr.bf16.mxu0 0
        %2864 = vmatpush1.bf16.msra.mxu0 %v2786
        %2865 = vmatprep.subr.bf16.mxu0 0
        %2866 = vmatpush1.bf16.msra.mxu0 %v2787
        %2867 = vmatprep.subr.bf16.mxu0 0
        %2868 = vmatpush1.bf16.msra.mxu0 %v2788
        %2869 = vmatprep.mubr.bf16.mxu0 %v2037
        %2870 = vmatmul.mubr.bf16.gmra.mrb[0].mxu0 %v2036
        %v2871 = vpop.f32.mrb[0].mxu0
        %v2872 = vadd.f32 %v2639, %v2871
        %v2873 = vpop.f32.mrb[0].mxu0
        %v2874 = vpop.f32.mrb[0].mxu0
        %v2875 = vadd.f32 %v2642, %v2874
        %v2876 = vpop.f32.mrb[0].mxu0
        %2877 = vdwg.mxu0
        %2878 = vmatprep.subr.bf16.mxu0 0
        %2879 = vmatpush1.bf16.msra.mxu0 %v2789
        %2880 = vmatprep.subr.bf16.mxu0 0
        %2881 = vmatpush1.bf16.msra.mxu0 %v2790
        %2882 = vmatprep.subr.bf16.mxu0 0
        %2883 = vmatpush1.bf16.msra.mxu0 %v2791
        %2884 = vmatprep.subr.bf16.mxu0 0
        %2885 = vmatpush1.bf16.msra.mxu0 %v2792
        %2886 = vmatprep.subr.bf16.mxu0 0
        %2887 = vmatpush1.bf16.msra.mxu0 %v2793
        %2888 = vmatprep.subr.bf16.mxu0 0
        %2889 = vmatpush1.bf16.msra.mxu0 %v2794
        %2890 = vmatprep.subr.bf16.mxu0 0
        %2891 = vmatpush1.bf16.msra.mxu0 %v2795
        %2892 = vmatprep.subr.bf16.mxu0 0
        %2893 = vmatpush1.bf16.msra.mxu0 %v2796
        %2894 = vmatprep.subr.bf16.mxu0 0
        %2895 = vmatpush1.bf16.msra.mxu0 %v2797
        %2896 = vmatprep.subr.bf16.mxu0 0
        %2897 = vmatpush1.bf16.msra.mxu0 %v2798
        %2898 = vmatprep.subr.bf16.mxu0 0
        %2899 = vmatpush1.bf16.msra.mxu0 %v2799
        %2900 = vmatprep.subr.bf16.mxu0 0
        %2901 = vmatpush1.bf16.msra.mxu0 %v2800
        %2902 = vmatprep.subr.bf16.mxu0 0
        %2903 = vmatpush1.bf16.msra.mxu0 %v2801
        %2904 = vmatprep.subr.bf16.mxu0 0
        %2905 = vmatpush1.bf16.msra.mxu0 %v2802
        %2906 = vmatprep.subr.bf16.mxu0 0
        %2907 = vmatpush1.bf16.msra.mxu0 %v2803
        %2908 = vmatprep.subr.bf16.mxu0 0
        %2909 = vmatpush1.bf16.msra.mxu0 %v2804
        %2910 = vmatprep.mubr.bf16.mxu0 %v2039
        %2911 = vmatmul.mubr.bf16.gmra.mrb[0].mxu0 %v2038
        %v2912 = vpop.f32.mrb[0].mxu0
        %v2913 = vadd.f32 %v2872, %v2912
        %v2914 = vpop.f32.mrb[0].mxu0
        %v2915 = vpop.f32.mrb[0].mxu0
        %v2916 = vadd.f32 %v2875, %v2915
        %v2917 = vpop.f32.mrb[0].mxu0
        %2918 = vdwg.mxu0
        %s2919 = scalar_lea.vmem %s13, 32
        %v2920 = vld [vmem:[%s2919] sm:$0xff]
        %v2921 = vld [vmem:[%s2919 + $0x8] sm:$0xff]
        %v2922 = vld [vmem:[%s2919 + $0x40] sm:$0xff]
        %v2923 = vld [vmem:[%s2919 + $0x48] sm:$0xff]
        %v2924 = vld [vmem:[%s2919 + $0x80] sm:$0xff]
        %v2925 = vld [vmem:[%s2919 + $0x88] sm:$0xff]
        %v2926 = vld [vmem:[%s2919 + $0xc0] sm:$0xff]
        %v2927 = vld [vmem:[%s2919 + $0xc8] sm:$0xff]
        %v2936 = vunpack.c.l.b16 %v2920
        %v2937 = vunpack.c.h.b16 %v2920
        %v2938 = vunpack.c.l.b16 %v2921
        %v2939 = vunpack.c.h.b16 %v2921
        %v2940 = vunpack.c.l.b16 %v2922
        %v2941 = vunpack.c.h.b16 %v2922
        %v2942 = vunpack.c.l.b16 %v2923
        %v2943 = vunpack.c.h.b16 %v2923
        %v2944 = vunpack.c.l.b16 %v2924
        %v2945 = vunpack.c.h.b16 %v2924
        %v2946 = vunpack.c.l.b16 %v2925
        %v2947 = vunpack.c.h.b16 %v2925
        %v2948 = vunpack.c.l.b16 %v2926
        %v2949 = vunpack.c.h.b16 %v2926
        %v2950 = vunpack.c.l.b16 %v2927
        %v2951 = vunpack.c.h.b16 %v2927
        %v2952 = vpack.c.b16 %v2940, %v2936
        %v2953 = vpack.c.b16 %v2941, %v2937
        %v2954 = vpack.c.b16 %v2942, %v2938
        %v2955 = vpack.c.b16 %v2943, %v2939
        %v2956 = vpack.c.b16 %v2948, %v2944
        %v2957 = vpack.c.b16 %v2949, %v2945
        %v2958 = vpack.c.b16 %v2950, %v2946
        %v2959 = vpack.c.b16 %v2951, %v2947
        %2968 = vmatprep.subr.bf16.mxu0 %v2953
        %2969 = vmatpush1.bf16.msra.mxu0 %v2952
        %2970 = vmatprep.subr.bf16.mxu0 %v2957
        %2971 = vmatpush1.bf16.msra.mxu0 %v2956
        %2972 = vmatprep.subr.bf16.mxu0 0
        %2973 = vmatpush1.bf16.msra.mxu0 0
        %2974 = vmatprep.subr.bf16.mxu0 0
        %2975 = vmatpush1.bf16.msra.mxu0 0
        %2976 = vmatprep.subr.bf16.mxu0 0
        %2977 = vmatpush1.bf16.msra.mxu0 0
        %2978 = vmatprep.subr.bf16.mxu0 0
        %2979 = vmatpush1.bf16.msra.mxu0 0
        %2980 = vmatprep.subr.bf16.mxu0 0
        %2981 = vmatpush1.bf16.msra.mxu0 0
        %2982 = vmatprep.subr.bf16.mxu0 0
        %2983 = vmatpush1.bf16.msra.mxu0 0
        %2984 = vmatprep.subr.bf16.mxu0 0
        %2985 = vmatpush1.bf16.msra.mxu0 0
        %2986 = vmatprep.subr.bf16.mxu0 0
        %2987 = vmatpush1.bf16.msra.mxu0 0
        %2988 = vmatprep.subr.bf16.mxu0 0
        %2989 = vmatpush1.bf16.msra.mxu0 0
        %2990 = vmatprep.subr.bf16.mxu0 0
        %2991 = vmatpush1.bf16.msra.mxu0 0
        %2992 = vmatprep.subr.bf16.mxu0 0
        %2993 = vmatpush1.bf16.msra.mxu0 0
        %2994 = vmatprep.subr.bf16.mxu0 0
        %2995 = vmatpush1.bf16.msra.mxu0 0
        %2996 = vmatprep.subr.bf16.mxu0 0
        %2997 = vmatpush1.bf16.msra.mxu0 0
        %2998 = vmatprep.subr.bf16.mxu0 0
        %2999 = vmatpush1.bf16.msra.mxu0 0
        %3000 = vmatprep.mubr.bf16.mxu0 0
        %3001 = vmatmul.mubr.bf16.gmra.mrb[0].mxu0 %v1886
        %v3002 = vpop.f32.mrb[0].mxu0
        %v3003 = vadd.f32 0.0, %v3002
        %v3004 = vpop.f32.mrb[0].mxu0
        %v3005 = vadd.f32 0.0, %v3004
        %v3006 = vpop.f32.mrb[0].mxu0
        %v3007 = vadd.f32 0.0, %v3006
        %v3008 = vpop.f32.mrb[0].mxu0
        %v3009 = vadd.f32 0.0, %v3008
        %3010 = vdwg.mxu0
        %3011 = vmatprep.subr.bf16.mxu0 %v2955
        %3012 = vmatpush1.bf16.msra.mxu0 %v2954
        %3013 = vmatprep.subr.bf16.mxu0 %v2959
        %3014 = vmatpush1.bf16.msra.mxu0 %v2958
        %3015 = vmatprep.subr.bf16.mxu0 0
        %3016 = vmatpush1.bf16.msra.mxu0 0
        %3017 = vmatprep.subr.bf16.mxu0 0
        %3018 = vmatpush1.bf16.msra.mxu0 0
        %3019 = vmatprep.subr.bf16.mxu0 0
        %3020 = vmatpush1.bf16.msra.mxu0 0
        %3021 = vmatprep.subr.bf16.mxu0 0
        %3022 = vmatpush1.bf16.msra.mxu0 0
        %3023 = vmatprep.subr.bf16.mxu0 0
        %3024 = vmatpush1.bf16.msra.mxu0 0
        %3025 = vmatprep.subr.bf16.mxu0 0
        %3026 = vmatpush1.bf16.msra.mxu0 0
        %3027 = vmatprep.subr.bf16.mxu0 0
        %3028 = vmatpush1.bf16.msra.mxu0 0
        %3029 = vmatprep.subr.bf16.mxu0 0
        %3030 = vmatpush1.bf16.msra.mxu0 0
        %3031 = vmatprep.subr.bf16.mxu0 0
        %3032 = vmatpush1.bf16.msra.mxu0 0
        %3033 = vmatprep.subr.bf16.mxu0 0
        %3034 = vmatpush1.bf16.msra.mxu0 0
        %3035 = vmatprep.subr.bf16.mxu0 0
        %3036 = vmatpush1.bf16.msra.mxu0 0
        %3037 = vmatprep.subr.bf16.mxu0 0
        %3038 = vmatpush1.bf16.msra.mxu0 0
        %3039 = vmatprep.subr.bf16.mxu0 0
        %3040 = vmatpush1.bf16.msra.mxu0 0
        %3041 = vmatprep.subr.bf16.mxu0 0
        %3042 = vmatpush1.bf16.msra.mxu0 0
        %3043 = vmatprep.mubr.bf16.mxu0 0
        %3044 = vmatmul.mubr.bf16.gmra.mrb[0].mxu0 %v1886
        %v3045 = vpop.f32.mrb[0].mxu0
        %v3046 = vadd.f32 0.0, %v3045
        %v3047 = vpop.f32.mrb[0].mxu0
        %v3048 = vadd.f32 0.0, %v3047
        %v3049 = vpop.f32.mrb[0].mxu0
        %v3050 = vadd.f32 0.0, %v3049
        %v3051 = vpop.f32.mrb[0].mxu0
        %v3052 = vadd.f32 0.0, %v3051
        %3053 = vdwg.mxu0
        %v3054 = vpack.c.bf16 %v3007, %v3003
        %v3055 = vpack.c.bf16 %v3009, %v3005
        %v3056 = vpack.c.bf16 %v3050, %v3046
        %v3057 = vpack.c.bf16 %v3052, %v3048
        %s3058 = scalar_lea.vmem %s14, 8
        %v3059 = vld [vmem:[%s3058] sm:$0xf]
        %v3061 = vlaneseq
        %v3062 = vshrl.u32 %v3061, 7
        %v3063 = vsub.s32 0, %v3062
        %v3064 = vrot.slane %v3059, %v3063
        %v3065 = vlaneseq
        %v3066 = vshrl.u32 %v3065, 7
        %v3067 = vsub.s32 1, %v3066
        %v3068 = vrot.slane %v3059, %v3067
        %v3069 = vlaneseq
        %v3070 = vshrl.u32 %v3069, 7
        %v3071 = vsub.s32 2, %v3070
        %v3072 = vrot.slane %v3059, %v3071
        %v3073 = vlaneseq
        %v3074 = vshrl.u32 %v3073, 7
        %v3075 = vsub.s32 3, %v3074
        %v3076 = vrot.slane %v3059, %v3075
        %v3081 = vpack.c.bf16 %v3064, %v3064
        %v3082 = vpack.c.bf16 %v3068, %v3068
        %v3083 = vpack.c.bf16 %v3072, %v3072
        %v3084 = vpack.c.bf16 %v3076, %v3076
        %v3086 = vpack.i.b16 %v3081, %v3081
        %v3088 = vlaneseq
        %v3089 = vshrl.u32 %v3088, 7
        %v3090 = vsub.s32 0, %v3089
        %v3091 = vrot.slane %v3086, %v3090
        %v3093 = vpack.i.b16 %v3082, %v3082
        %v3095 = vlaneseq
        %v3096 = vshrl.u32 %v3095, 7
        %v3097 = vsub.s32 0, %v3096
        %v3098 = vrot.slane %v3093, %v3097
        %v3100 = vpack.i.b16 %v3083, %v3083
        %v3102 = vlaneseq
        %v3103 = vshrl.u32 %v3102, 7
        %v3104 = vsub.s32 0, %v3103
        %v3105 = vrot.slane %v3100, %v3104
        %v3107 = vpack.i.b16 %v3084, %v3084
        %v3109 = vlaneseq
        %v3110 = vshrl.u32 %v3109, 7
        %v3111 = vsub.s32 0, %v3110
        %v3112 = vrot.slane %v3107, %v3111
        %v3113 = vadd.bf16 %v3054, %v3091
        %v3114 = vadd.bf16 %v3055, %v3098
        %v3115 = vadd.bf16 %v3056, %v3105
        %v3116 = vadd.bf16 %v3057, %v3112
        %v3117 = vmax.bf16 %v3113, 0
        %v3118 = vmax.bf16 %v3114, 0
        %v3119 = vmax.bf16 %v3115, 0
        %v3120 = vmax.bf16 %v3116, 0
        %s3121 = scalar_lea.vmem %s15, 512
        %v3122 = vld [vmem:[%s3121] sm:$0xf]
        %v3123 = vld [vmem:[%s3121 + $0x4] sm:$0xf]
        %v3124 = vld [vmem:[%s3121 + $0x8] sm:$0xf]
        %v3125 = vld [vmem:[%s3121 + $0xc] sm:$0xf]
        %v3126 = vld [vmem:[%s3121 + $0x10] sm:$0xf]
        %v3127 = vld [vmem:[%s3121 + $0x14] sm:$0xf]
        %v3128 = vld [vmem:[%s3121 + $0x18] sm:$0xf]
        %v3129 = vld [vmem:[%s3121 + $0x1c] sm:$0xf]
        %v3130 = vld [vmem:[%s3121 + $0x20] sm:$0xf]
        %v3131 = vld [vmem:[%s3121 + $0x24] sm:$0xf]
        %v3132 = vld [vmem:[%s3121 + $0x28] sm:$0xf]
        %v3133 = vld [vmem:[%s3121 + $0x2c] sm:$0xf]
        %v3134 = vld [vmem:[%s3121 + $0x30] sm:$0xf]
        %v3135 = vld [vmem:[%s3121 + $0x34] sm:$0xf]
        %v3136 = vld [vmem:[%s3121 + $0x38] sm:$0xf]
        %v3137 = vld [vmem:[%s3121 + $0x3c] sm:$0xf]
        %v3138 = vld [vmem:[%s3121 + $0x40] sm:$0xf]
        %v3139 = vld [vmem:[%s3121 + $0x44] sm:$0xf]
        %v3140 = vld [vmem:[%s3121 + $0x48] sm:$0xf]
        %v3141 = vld [vmem:[%s3121 + $0x4c] sm:$0xf]
        %v3142 = vld [vmem:[%s3121 + $0x50] sm:$0xf]
        %v3143 = vld [vmem:[%s3121 + $0x54] sm:$0xf]
        %v3144 = vld [vmem:[%s3121 + $0x58] sm:$0xf]
        %v3145 = vld [vmem:[%s3121 + $0x5c] sm:$0xf]
        %v3146 = vld [vmem:[%s3121 + $0x60] sm:$0xf]
        %v3147 = vld [vmem:[%s3121 + $0x64] sm:$0xf]
        %v3148 = vld [vmem:[%s3121 + $0x68] sm:$0xf]
        %v3149 = vld [vmem:[%s3121 + $0x6c] sm:$0xf]
        %v3150 = vld [vmem:[%s3121 + $0x70] sm:$0xf]
        %v3151 = vld [vmem:[%s3121 + $0x74] sm:$0xf]
        %v3152 = vld [vmem:[%s3121 + $0x78] sm:$0xf]
        %v3153 = vld [vmem:[%s3121 + $0x7c] sm:$0xf]
        %v3154 = vld [vmem:[%s3121 + $0x80] sm:$0xf]
        %v3155 = vld [vmem:[%s3121 + $0x84] sm:$0xf]
        %v3156 = vld [vmem:[%s3121 + $0x88] sm:$0xf]
        %v3157 = vld [vmem:[%s3121 + $0x8c] sm:$0xf]
        %v3158 = vld [vmem:[%s3121 + $0x90] sm:$0xf]
        %v3159 = vld [vmem:[%s3121 + $0x94] sm:$0xf]
        %v3160 = vld [vmem:[%s3121 + $0x98] sm:$0xf]
        %v3161 = vld [vmem:[%s3121 + $0x9c] sm:$0xf]
        %v3162 = vld [vmem:[%s3121 + $0xa0] sm:$0xf]
        %v3163 = vld [vmem:[%s3121 + $0xa4] sm:$0xf]
        %v3164 = vld [vmem:[%s3121 + $0xa8] sm:$0xf]
        %v3165 = vld [vmem:[%s3121 + $0xac] sm:$0xf]
        %v3166 = vld [vmem:[%s3121 + $0xb0] sm:$0xf]
        %v3167 = vld [vmem:[%s3121 + $0xb4] sm:$0xf]
        %v3168 = vld [vmem:[%s3121 + $0xb8] sm:$0xf]
        %v3169 = vld [vmem:[%s3121 + $0xbc] sm:$0xf]
        %v3170 = vld [vmem:[%s3121 + $0xc0] sm:$0xf]
        %v3171 = vld [vmem:[%s3121 + $0xc4] sm:$0xf]
        %v3172 = vld [vmem:[%s3121 + $0xc8] sm:$0xf]
        %v3173 = vld [vmem:[%s3121 + $0xcc] sm:$0xf]
        %v3174 = vld [vmem:[%s3121 + $0xd0] sm:$0xf]
        %v3175 = vld [vmem:[%s3121 + $0xd4] sm:$0xf]
        %v3176 = vld [vmem:[%s3121 + $0xd8] sm:$0xf]
        %v3177 = vld [vmem:[%s3121 + $0xdc] sm:$0xf]
        %v3178 = vld [vmem:[%s3121 + $0xe0] sm:$0xf]
        %v3179 = vld [vmem:[%s3121 + $0xe4] sm:$0xf]
        %v3180 = vld [vmem:[%s3121 + $0xe8] sm:$0xf]
        %v3181 = vld [vmem:[%s3121 + $0xec] sm:$0xf]
        %v3182 = vld [vmem:[%s3121 + $0xf0] sm:$0xf]
        %v3183 = vld [vmem:[%s3121 + $0xf4] sm:$0xf]
        %v3184 = vld [vmem:[%s3121 + $0xf8] sm:$0xf]
        %v3185 = vld [vmem:[%s3121 + $0xfc] sm:$0xf]
        %v3250 = vunpack.c.l.b16 %v3122
        %v3251 = vunpack.c.l.b16 %v3123
        %v3252 = vunpack.c.l.b16 %v3124
        %v3253 = vunpack.c.l.b16 %v3125
        %v3254 = vunpack.c.l.b16 %v3126
        %v3255 = vunpack.c.l.b16 %v3127
        %v3256 = vunpack.c.l.b16 %v3128
        %v3257 = vunpack.c.l.b16 %v3129
        %v3258 = vunpack.c.l.b16 %v3130
        %v3259 = vunpack.c.l.b16 %v3131
        %v3260 = vunpack.c.l.b16 %v3132
        %v3261 = vunpack.c.l.b16 %v3133
        %v3262 = vunpack.c.l.b16 %v3134
        %v3263 = vunpack.c.l.b16 %v3135
        %v3264 = vunpack.c.l.b16 %v3136
        %v3265 = vunpack.c.l.b16 %v3137
        %v3266 = vunpack.c.l.b16 %v3138
        %v3267 = vunpack.c.l.b16 %v3139
        %v3268 = vunpack.c.l.b16 %v3140
        %v3269 = vunpack.c.l.b16 %v3141
        %v3270 = vunpack.c.l.b16 %v3142
        %v3271 = vunpack.c.l.b16 %v3143
        %v3272 = vunpack.c.l.b16 %v3144
        %v3273 = vunpack.c.l.b16 %v3145
        %v3274 = vunpack.c.l.b16 %v3146
        %v3275 = vunpack.c.l.b16 %v3147
        %v3276 = vunpack.c.l.b16 %v3148
        %v3277 = vunpack.c.l.b16 %v3149
        %v3278 = vunpack.c.l.b16 %v3150
        %v3279 = vunpack.c.l.b16 %v3151
        %v3280 = vunpack.c.l.b16 %v3152
        %v3281 = vunpack.c.l.b16 %v3153
        %v3282 = vunpack.c.l.b16 %v3154
        %v3283 = vunpack.c.l.b16 %v3155
        %v3284 = vunpack.c.l.b16 %v3156
        %v3285 = vunpack.c.l.b16 %v3157
        %v3286 = vunpack.c.l.b16 %v3158
        %v3287 = vunpack.c.l.b16 %v3159
        %v3288 = vunpack.c.l.b16 %v3160
        %v3289 = vunpack.c.l.b16 %v3161
        %v3290 = vunpack.c.l.b16 %v3162
        %v3291 = vunpack.c.l.b16 %v3163
        %v3292 = vunpack.c.l.b16 %v3164
        %v3293 = vunpack.c.l.b16 %v3165
        %v3294 = vunpack.c.l.b16 %v3166
        %v3295 = vunpack.c.l.b16 %v3167
        %v3296 = vunpack.c.l.b16 %v3168
        %v3297 = vunpack.c.l.b16 %v3169
        %v3298 = vunpack.c.l.b16 %v3170
        %v3299 = vunpack.c.l.b16 %v3171
        %v3300 = vunpack.c.l.b16 %v3172
        %v3301 = vunpack.c.l.b16 %v3173
        %v3302 = vunpack.c.l.b16 %v3174
        %v3303 = vunpack.c.l.b16 %v3175
        %v3304 = vunpack.c.l.b16 %v3176
        %v3305 = vunpack.c.l.b16 %v3177
        %v3306 = vunpack.c.l.b16 %v3178
        %v3307 = vunpack.c.l.b16 %v3179
        %v3308 = vunpack.c.l.b16 %v3180
        %v3309 = vunpack.c.l.b16 %v3181
        %v3310 = vunpack.c.l.b16 %v3182
        %v3311 = vunpack.c.l.b16 %v3183
        %v3312 = vunpack.c.l.b16 %v3184
        %v3313 = vunpack.c.l.b16 %v3185
        %v3314 = vpack.c.b16 %v3251, %v3250
        %v3315 = vpack.c.b16 %v3253, %v3252
        %v3316 = vpack.c.b16 %v3255, %v3254
        %v3317 = vpack.c.b16 %v3257, %v3256
        %v3318 = vpack.c.b16 %v3259, %v3258
        %v3319 = vpack.c.b16 %v3261, %v3260
        %v3320 = vpack.c.b16 %v3263, %v3262
        %v3321 = vpack.c.b16 %v3265, %v3264
        %v3322 = vpack.c.b16 %v3267, %v3266
        %v3323 = vpack.c.b16 %v3269, %v3268
        %v3324 = vpack.c.b16 %v3271, %v3270
        %v3325 = vpack.c.b16 %v3273, %v3272
        %v3326 = vpack.c.b16 %v3275, %v3274
        %v3327 = vpack.c.b16 %v3277, %v3276
        %v3328 = vpack.c.b16 %v3279, %v3278
        %v3329 = vpack.c.b16 %v3281, %v3280
        %v3330 = vpack.c.b16 %v3283, %v3282
        %v3331 = vpack.c.b16 %v3285, %v3284
        %v3332 = vpack.c.b16 %v3287, %v3286
        %v3333 = vpack.c.b16 %v3289, %v3288
        %v3334 = vpack.c.b16 %v3291, %v3290
        %v3335 = vpack.c.b16 %v3293, %v3292
        %v3336 = vpack.c.b16 %v3295, %v3294
        %v3337 = vpack.c.b16 %v3297, %v3296
        %v3338 = vpack.c.b16 %v3299, %v3298
        %v3339 = vpack.c.b16 %v3301, %v3300
        %v3340 = vpack.c.b16 %v3303, %v3302
        %v3341 = vpack.c.b16 %v3305, %v3304
        %v3342 = vpack.c.b16 %v3307, %v3306
        %v3343 = vpack.c.b16 %v3309, %v3308
        %v3344 = vpack.c.b16 %v3311, %v3310
        %v3345 = vpack.c.b16 %v3313, %v3312
        %3378 = vmatprep.subr.bf16.mxu0 0
        %3379 = vmatpush1.bf16.msra.mxu0 %v3314
        %3380 = vmatprep.subr.bf16.mxu0 0
        %3381 = vmatpush1.bf16.msra.mxu0 %v3315
        %3382 = vmatprep.subr.bf16.mxu0 0
        %3383 = vmatpush1.bf16.msra.mxu0 %v3316
        %3384 = vmatprep.subr.bf16.mxu0 0
        %3385 = vmatpush1.bf16.msra.mxu0 %v3317
        %3386 = vmatprep.subr.bf16.mxu0 0
        %3387 = vmatpush1.bf16.msra.mxu0 %v3318
        %3388 = vmatprep.subr.bf16.mxu0 0
        %3389 = vmatpush1.bf16.msra.mxu0 %v3319
        %3390 = vmatprep.subr.bf16.mxu0 0
        %3391 = vmatpush1.bf16.msra.mxu0 %v3320
        %3392 = vmatprep.subr.bf16.mxu0 0
        %3393 = vmatpush1.bf16.msra.mxu0 %v3321
        %3394 = vmatprep.subr.bf16.mxu0 0
        %3395 = vmatpush1.bf16.msra.mxu0 %v3322
        %3396 = vmatprep.subr.bf16.mxu0 0
        %3397 = vmatpush1.bf16.msra.mxu0 %v3323
        %3398 = vmatprep.subr.bf16.mxu0 0
        %3399 = vmatpush1.bf16.msra.mxu0 %v3324
        %3400 = vmatprep.subr.bf16.mxu0 0
        %3401 = vmatpush1.bf16.msra.mxu0 %v3325
        %3402 = vmatprep.subr.bf16.mxu0 0
        %3403 = vmatpush1.bf16.msra.mxu0 %v3326
        %3404 = vmatprep.subr.bf16.mxu0 0
        %3405 = vmatpush1.bf16.msra.mxu0 %v3327
        %3406 = vmatprep.subr.bf16.mxu0 0
        %3407 = vmatpush1.bf16.msra.mxu0 %v3328
        %3408 = vmatprep.subr.bf16.mxu0 0
        %3409 = vmatpush1.bf16.msra.mxu0 %v3329
        %3410 = vmatprep.mubr.bf16.mxu0 %v3118
        %3411 = vmatmul.mubr.bf16.gmra.mrb[0].mxu0 %v3117
        %v3412 = vpop.f32.mrb[0].mxu0
        %v3413 = vadd.f32 0.0, %v3412
        %v3414 = vpop.f32.mrb[0].mxu0
        %v3415 = vpop.f32.mrb[0].mxu0
        %v3416 = vadd.f32 0.0, %v3415
        %v3417 = vpop.f32.mrb[0].mxu0
        %3418 = vdwg.mxu0
        %3419 = vmatprep.subr.bf16.mxu0 0
        %3420 = vmatpush1.bf16.msra.mxu0 %v3330
        %3421 = vmatprep.subr.bf16.mxu0 0
        %3422 = vmatpush1.bf16.msra.mxu0 %v3331
        %3423 = vmatprep.subr.bf16.mxu0 0
        %3424 = vmatpush1.bf16.msra.mxu0 %v3332
        %3425 = vmatprep.subr.bf16.mxu0 0
        %3426 = vmatpush1.bf16.msra.mxu0 %v3333
        %3427 = vmatprep.subr.bf16.mxu0 0
        %3428 = vmatpush1.bf16.msra.mxu0 %v3334
        %3429 = vmatprep.subr.bf16.mxu0 0
        %3430 = vmatpush1.bf16.msra.mxu0 %v3335
        %3431 = vmatprep.subr.bf16.mxu0 0
        %3432 = vmatpush1.bf16.msra.mxu0 %v3336
        %3433 = vmatprep.subr.bf16.mxu0 0
        %3434 = vmatpush1.bf16.msra.mxu0 %v3337
        %3435 = vmatprep.subr.bf16.mxu0 0
        %3436 = vmatpush1.bf16.msra.mxu0 %v3338
        %3437 = vmatprep.subr.bf16.mxu0 0
        %3438 = vmatpush1.bf16.msra.mxu0 %v3339
        %3439 = vmatprep.subr.bf16.mxu0 0
        %3440 = vmatpush1.bf16.msra.mxu0 %v3340
        %3441 = vmatprep.subr.bf16.mxu0 0
        %3442 = vmatpush1.bf16.msra.mxu0 %v3341
        %3443 = vmatprep.subr.bf16.mxu0 0
        %3444 = vmatpush1.bf16.msra.mxu0 %v3342
        %3445 = vmatprep.subr.bf16.mxu0 0
        %3446 = vmatpush1.bf16.msra.mxu0 %v3343
        %3447 = vmatprep.subr.bf16.mxu0 0
        %3448 = vmatpush1.bf16.msra.mxu0 %v3344
        %3449 = vmatprep.subr.bf16.mxu0 0
        %3450 = vmatpush1.bf16.msra.mxu0 %v3345
        %3451 = vmatprep.mubr.bf16.mxu0 %v3120
        %3452 = vmatmul.mubr.bf16.gmra.mrb[0].mxu0 %v3119
        %v3453 = vpop.f32.mrb[0].mxu0
        %v3454 = vadd.f32 %v3413, %v3453
        %v3455 = vpop.f32.mrb[0].mxu0
        %v3456 = vpop.f32.mrb[0].mxu0
        %v3457 = vadd.f32 %v3416, %v3456
        %v3458 = vpop.f32.mrb[0].mxu0
        %3459 = vdwg.mxu0
        %v3460 = vadd.f32 %v2913, %v3454
        %v3461 = vadd.f32 %v2916, %v3457
        %s3462 = scalar_lea.vmem %s13, 48
        %v3463 = vld [vmem:[%s3462] sm:$0xff]
        %v3464 = vld [vmem:[%s3462 + $0x8] sm:$0xff]
        %v3465 = vld [vmem:[%s3462 + $0x40] sm:$0xff]
        %v3466 = vld [vmem:[%s3462 + $0x48] sm:$0xff]
        %v3467 = vld [vmem:[%s3462 + $0x80] sm:$0xff]
        %v3468 = vld [vmem:[%s3462 + $0x88] sm:$0xff]
        %v3469 = vld [vmem:[%s3462 + $0xc0] sm:$0xff]
        %v3470 = vld [vmem:[%s3462 + $0xc8] sm:$0xff]
        %v3479 = vunpack.c.l.b16 %v3463
        %v3480 = vunpack.c.h.b16 %v3463
        %v3481 = vunpack.c.l.b16 %v3464
        %v3482 = vunpack.c.h.b16 %v3464
        %v3483 = vunpack.c.l.b16 %v3465
        %v3484 = vunpack.c.h.b16 %v3465
        %v3485 = vunpack.c.l.b16 %v3466
        %v3486 = vunpack.c.h.b16 %v3466
        %v3487 = vunpack.c.l.b16 %v3467
        %v3488 = vunpack.c.h.b16 %v3467
        %v3489 = vunpack.c.l.b16 %v3468
        %v3490 = vunpack.c.h.b16 %v3468
        %v3491 = vunpack.c.l.b16 %v3469
        %v3492 = vunpack.c.h.b16 %v3469
        %v3493 = vunpack.c.l.b16 %v3470
        %v3494 = vunpack.c.h.b16 %v3470
        %v3495 = vpack.c.b16 %v3483, %v3479
        %v3496 = vpack.c.b16 %v3484, %v3480
        %v3497 = vpack.c.b16 %v3485, %v3481
        %v3498 = vpack.c.b16 %v3486, %v3482
        %v3499 = vpack.c.b16 %v3491, %v3487
        %v3500 = vpack.c.b16 %v3492, %v3488
        %v3501 = vpack.c.b16 %v3493, %v3489
        %v3502 = vpack.c.b16 %v3494, %v3490
        %3511 = vmatprep.subr.bf16.mxu0 %v3496
        %3512 = vmatpush1.bf16.msra.mxu0 %v3495
        %3513 = vmatprep.subr.bf16.mxu0 %v3500
        %3514 = vmatpush1.bf16.msra.mxu0 %v3499
        %3515 = vmatprep.subr.bf16.mxu0 0
        %3516 = vmatpush1.bf16.msra.mxu0 0
        %3517 = vmatprep.subr.bf16.mxu0 0
        %3518 = vmatpush1.bf16.msra.mxu0 0
        %3519 = vmatprep.subr.bf16.mxu0 0
        %3520 = vmatpush1.bf16.msra.mxu0 0
        %3521 = vmatprep.subr.bf16.mxu0 0
        %3522 = vmatpush1.bf16.msra.mxu0 0
        %3523 = vmatprep.subr.bf16.mxu0 0
        %3524 = vmatpush1.bf16.msra.mxu0 0
        %3525 = vmatprep.subr.bf16.mxu0 0
        %3526 = vmatpush1.bf16.msra.mxu0 0
        %3527 = vmatprep.subr.bf16.mxu0 0
        %3528 = vmatpush1.bf16.msra.mxu0 0
        %3529 = vmatprep.subr.bf16.mxu0 0
        %3530 = vmatpush1.bf16.msra.mxu0 0
        %3531 = vmatprep.subr.bf16.mxu0 0
        %3532 = vmatpush1.bf16.msra.mxu0 0
        %3533 = vmatprep.subr.bf16.mxu0 0
        %3534 = vmatpush1.bf16.msra.mxu0 0
        %3535 = vmatprep.subr.bf16.mxu0 0
        %3536 = vmatpush1.bf16.msra.mxu0 0
        %3537 = vmatprep.subr.bf16.mxu0 0
        %3538 = vmatpush1.bf16.msra.mxu0 0
        %3539 = vmatprep.subr.bf16.mxu0 0
        %3540 = vmatpush1.bf16.msra.mxu0 0
        %3541 = vmatprep.subr.bf16.mxu0 0
        %3542 = vmatpush1.bf16.msra.mxu0 0
        %3543 = vmatprep.mubr.bf16.mxu0 0
        %3544 = vmatmul.mubr.bf16.gmra.mrb[0].mxu0 %v1886
        %v3545 = vpop.f32.mrb[0].mxu0
        %v3546 = vadd.f32 0.0, %v3545
        %v3547 = vpop.f32.mrb[0].mxu0
        %v3548 = vadd.f32 0.0, %v3547
        %v3549 = vpop.f32.mrb[0].mxu0
        %v3550 = vadd.f32 0.0, %v3549
        %v3551 = vpop.f32.mrb[0].mxu0
        %v3552 = vadd.f32 0.0, %v3551
        %3553 = vdwg.mxu0
        %3554 = vmatprep.subr.bf16.mxu0 %v3498
        %3555 = vmatpush1.bf16.msra.mxu0 %v3497
        %3556 = vmatprep.subr.bf16.mxu0 %v3502
        %3557 = vmatpush1.bf16.msra.mxu0 %v3501
        %3558 = vmatprep.subr.bf16.mxu0 0
        %3559 = vmatpush1.bf16.msra.mxu0 0
        %3560 = vmatprep.subr.bf16.mxu0 0
        %3561 = vmatpush1.bf16.msra.mxu0 0
        %3562 = vmatprep.subr.bf16.mxu0 0
        %3563 = vmatpush1.bf16.msra.mxu0 0
        %3564 = vmatprep.subr.bf16.mxu0 0
        %3565 = vmatpush1.bf16.msra.mxu0 0
        %3566 = vmatprep.subr.bf16.mxu0 0
        %3567 = vmatpush1.bf16.msra.mxu0 0
        %3568 = vmatprep.subr.bf16.mxu0 0
        %3569 = vmatpush1.bf16.msra.mxu0 0
        %3570 = vmatprep.subr.bf16.mxu0 0
        %3571 = vmatpush1.bf16.msra.mxu0 0
        %3572 = vmatprep.subr.bf16.mxu0 0
        %3573 = vmatpush1.bf16.msra.mxu0 0
        %3574 = vmatprep.subr.bf16.mxu0 0
        %3575 = vmatpush1.bf16.msra.mxu0 0
        %3576 = vmatprep.subr.bf16.mxu0 0
        %3577 = vmatpush1.bf16.msra.mxu0 0
        %3578 = vmatprep.subr.bf16.mxu0 0
        %3579 = vmatpush1.bf16.msra.mxu0 0
        %3580 = vmatprep.subr.bf16.mxu0 0
        %3581 = vmatpush1.bf16.msra.mxu0 0
        %3582 = vmatprep.subr.bf16.mxu0 0
        %3583 = vmatpush1.bf16.msra.mxu0 0
        %3584 = vmatprep.subr.bf16.mxu0 0
        %3585 = vmatpush1.bf16.msra.mxu0 0
        %3586 = vmatprep.mubr.bf16.mxu0 0
        %3587 = vmatmul.mubr.bf16.gmra.mrb[0].mxu0 %v1886
        %v3588 = vpop.f32.mrb[0].mxu0
        %v3589 = vadd.f32 0.0, %v3588
        %v3590 = vpop.f32.mrb[0].mxu0
        %v3591 = vadd.f32 0.0, %v3590
        %v3592 = vpop.f32.mrb[0].mxu0
        %v3593 = vadd.f32 0.0, %v3592
        %v3594 = vpop.f32.mrb[0].mxu0
        %v3595 = vadd.f32 0.0, %v3594
        %3596 = vdwg.mxu0
        %v3597 = vpack.c.bf16 %v3550, %v3546
        %v3598 = vpack.c.bf16 %v3552, %v3548
        %v3599 = vpack.c.bf16 %v3593, %v3589
        %v3600 = vpack.c.bf16 %v3595, %v3591
        %s3601 = scalar_lea.vmem %s14, 12
        %v3602 = vld [vmem:[%s3601] sm:$0xf]
        %v3604 = vlaneseq
        %v3605 = vshrl.u32 %v3604, 7
        %v3606 = vsub.s32 0, %v3605
        %v3607 = vrot.slane %v3602, %v3606
        %v3608 = vlaneseq
        %v3609 = vshrl.u32 %v3608, 7
        %v3610 = vsub.s32 1, %v3609
        %v3611 = vrot.slane %v3602, %v3610
        %v3612 = vlaneseq
        %v3613 = vshrl.u32 %v3612, 7
        %v3614 = vsub.s32 2, %v3613
        %v3615 = vrot.slane %v3602, %v3614
        %v3616 = vlaneseq
        %v3617 = vshrl.u32 %v3616, 7
        %v3618 = vsub.s32 3, %v3617
        %v3619 = vrot.slane %v3602, %v3618
        %v3624 = vpack.c.bf16 %v3607, %v3607
        %v3625 = vpack.c.bf16 %v3611, %v3611
        %v3626 = vpack.c.bf16 %v3615, %v3615
        %v3627 = vpack.c.bf16 %v3619, %v3619
        %v3629 = vpack.i.b16 %v3624, %v3624
        %v3631 = vlaneseq
        %v3632 = vshrl.u32 %v3631, 7
        %v3633 = vsub.s32 0, %v3632
        %v3634 = vrot.slane %v3629, %v3633
        %v3636 = vpack.i.b16 %v3625, %v3625
        %v3638 = vlaneseq
        %v3639 = vshrl.u32 %v3638, 7
        %v3640 = vsub.s32 0, %v3639
        %v3641 = vrot.slane %v3636, %v3640
        %v3643 = vpack.i.b16 %v3626, %v3626
        %v3645 = vlaneseq
        %v3646 = vshrl.u32 %v3645, 7
        %v3647 = vsub.s32 0, %v3646
        %v3648 = vrot.slane %v3643, %v3647
        %v3650 = vpack.i.b16 %v3627, %v3627
        %v3652 = vlaneseq
        %v3653 = vshrl.u32 %v3652, 7
        %v3654 = vsub.s32 0, %v3653
        %v3655 = vrot.slane %v3650, %v3654
        %v3656 = vadd.bf16 %v3597, %v3634
        %v3657 = vadd.bf16 %v3598, %v3641
        %v3658 = vadd.bf16 %v3599, %v3648
        %v3659 = vadd.bf16 %v3600, %v3655
        %v3660 = vmax.bf16 %v3656, 0
        %v3661 = vmax.bf16 %v3657, 0
        %v3662 = vmax.bf16 %v3658, 0
        %v3663 = vmax.bf16 %v3659, 0
        %s3664 = scalar_lea.vmem %s15, 768
        %v3665 = vld [vmem:[%s3664] sm:$0xf]
        %v3666 = vld [vmem:[%s3664 + $0x4] sm:$0xf]
        %v3667 = vld [vmem:[%s3664 + $0x8] sm:$0xf]
        %v3668 = vld [vmem:[%s3664 + $0xc] sm:$0xf]
        %v3669 = vld [vmem:[%s3664 + $0x10] sm:$0xf]
        %v3670 = vld [vmem:[%s3664 + $0x14] sm:$0xf]
        %v3671 = vld [vmem:[%s3664 + $0x18] sm:$0xf]
        %v3672 = vld [vmem:[%s3664 + $0x1c] sm:$0xf]
        %v3673 = vld [vmem:[%s3664 + $0x20] sm:$0xf]
        %v3674 = vld [vmem:[%s3664 + $0x24] sm:$0xf]
        %v3675 = vld [vmem:[%s3664 + $0x28] sm:$0xf]
        %v3676 = vld [vmem:[%s3664 + $0x2c] sm:$0xf]
        %v3677 = vld [vmem:[%s3664 + $0x30] sm:$0xf]
        %v3678 = vld [vmem:[%s3664 + $0x34] sm:$0xf]
        %v3679 = vld [vmem:[%s3664 + $0x38] sm:$0xf]
        %v3680 = vld [vmem:[%s3664 + $0x3c] sm:$0xf]
        %v3681 = vld [vmem:[%s3664 + $0x40] sm:$0xf]
        %v3682 = vld [vmem:[%s3664 + $0x44] sm:$0xf]
        %v3683 = vld [vmem:[%s3664 + $0x48] sm:$0xf]
        %v3684 = vld [vmem:[%s3664 + $0x4c] sm:$0xf]
        %v3685 = vld [vmem:[%s3664 + $0x50] sm:$0xf]
        %v3686 = vld [vmem:[%s3664 + $0x54] sm:$0xf]
        %v3687 = vld [vmem:[%s3664 + $0x58] sm:$0xf]
        %v3688 = vld [vmem:[%s3664 + $0x5c] sm:$0xf]
        %v3689 = vld [vmem:[%s3664 + $0x60] sm:$0xf]
        %v3690 = vld [vmem:[%s3664 + $0x64] sm:$0xf]
        %v3691 = vld [vmem:[%s3664 + $0x68] sm:$0xf]
        %v3692 = vld [vmem:[%s3664 + $0x6c] sm:$0xf]
        %v3693 = vld [vmem:[%s3664 + $0x70] sm:$0xf]
        %v3694 = vld [vmem:[%s3664 + $0x74] sm:$0xf]
        %v3695 = vld [vmem:[%s3664 + $0x78] sm:$0xf]
        %v3696 = vld [vmem:[%s3664 + $0x7c] sm:$0xf]
        %v3697 = vld [vmem:[%s3664 + $0x80] sm:$0xf]
        %v3698 = vld [vmem:[%s3664 + $0x84] sm:$0xf]
        %v3699 = vld [vmem:[%s3664 + $0x88] sm:$0xf]
        %v3700 = vld [vmem:[%s3664 + $0x8c] sm:$0xf]
        %v3701 = vld [vmem:[%s3664 + $0x90] sm:$0xf]
        %v3702 = vld [vmem:[%s3664 + $0x94] sm:$0xf]
        %v3703 = vld [vmem:[%s3664 + $0x98] sm:$0xf]
        %v3704 = vld [vmem:[%s3664 + $0x9c] sm:$0xf]
        %v3705 = vld [vmem:[%s3664 + $0xa0] sm:$0xf]
        %v3706 = vld [vmem:[%s3664 + $0xa4] sm:$0xf]
        %v3707 = vld [vmem:[%s3664 + $0xa8] sm:$0xf]
        %v3708 = vld [vmem:[%s3664 + $0xac] sm:$0xf]
        %v3709 = vld [vmem:[%s3664 + $0xb0] sm:$0xf]
        %v3710 = vld [vmem:[%s3664 + $0xb4] sm:$0xf]
        %v3711 = vld [vmem:[%s3664 + $0xb8] sm:$0xf]
        %v3712 = vld [vmem:[%s3664 + $0xbc] sm:$0xf]
        %v3713 = vld [vmem:[%s3664 + $0xc0] sm:$0xf]
        %v3714 = vld [vmem:[%s3664 + $0xc4] sm:$0xf]
        %v3715 = vld [vmem:[%s3664 + $0xc8] sm:$0xf]
        %v3716 = vld [vmem:[%s3664 + $0xcc] sm:$0xf]
        %v3717 = vld [vmem:[%s3664 + $0xd0] sm:$0xf]
        %v3718 = vld [vmem:[%s3664 + $0xd4] sm:$0xf]
        %v3719 = vld [vmem:[%s3664 + $0xd8] sm:$0xf]
        %v3720 = vld [vmem:[%s3664 + $0xdc] sm:$0xf]
        %v3721 = vld [vmem:[%s3664 + $0xe0] sm:$0xf]
        %v3722 = vld [vmem:[%s3664 + $0xe4] sm:$0xf]
        %v3723 = vld [vmem:[%s3664 + $0xe8] sm:$0xf]
        %v3724 = vld [vmem:[%s3664 + $0xec] sm:$0xf]
        %v3725 = vld [vmem:[%s3664 + $0xf0] sm:$0xf]
        %v3726 = vld [vmem:[%s3664 + $0xf4] sm:$0xf]
        %v3727 = vld [vmem:[%s3664 + $0xf8] sm:$0xf]
        %v3728 = vld [vmem:[%s3664 + $0xfc] sm:$0xf]
        %v3793 = vunpack.c.l.b16 %v3665
        %v3794 = vunpack.c.l.b16 %v3666
        %v3795 = vunpack.c.l.b16 %v3667
        %v3796 = vunpack.c.l.b16 %v3668
        %v3797 = vunpack.c.l.b16 %v3669
        %v3798 = vunpack.c.l.b16 %v3670
        %v3799 = vunpack.c.l.b16 %v3671
        %v3800 = vunpack.c.l.b16 %v3672
        %v3801 = vunpack.c.l.b16 %v3673
        %v3802 = vunpack.c.l.b16 %v3674
        %v3803 = vunpack.c.l.b16 %v3675
        %v3804 = vunpack.c.l.b16 %v3676
        %v3805 = vunpack.c.l.b16 %v3677
        %v3806 = vunpack.c.l.b16 %v3678
        %v3807 = vunpack.c.l.b16 %v3679
        %v3808 = vunpack.c.l.b16 %v3680
        %v3809 = vunpack.c.l.b16 %v3681
        %v3810 = vunpack.c.l.b16 %v3682
        %v3811 = vunpack.c.l.b16 %v3683
        %v3812 = vunpack.c.l.b16 %v3684
        %v3813 = vunpack.c.l.b16 %v3685
        %v3814 = vunpack.c.l.b16 %v3686
        %v3815 = vunpack.c.l.b16 %v3687
        %v3816 = vunpack.c.l.b16 %v3688
        %v3817 = vunpack.c.l.b16 %v3689
        %v3818 = vunpack.c.l.b16 %v3690
        %v3819 = vunpack.c.l.b16 %v3691
        %v3820 = vunpack.c.l.b16 %v3692
        %v3821 = vunpack.c.l.b16 %v3693
        %v3822 = vunpack.c.l.b16 %v3694
        %v3823 = vunpack.c.l.b16 %v3695
        %v3824 = vunpack.c.l.b16 %v3696
        %v3825 = vunpack.c.l.b16 %v3697
        %v3826 = vunpack.c.l.b16 %v3698
        %v3827 = vunpack.c.l.b16 %v3699
        %v3828 = vunpack.c.l.b16 %v3700
        %v3829 = vunpack.c.l.b16 %v3701
        %v3830 = vunpack.c.l.b16 %v3702
        %v3831 = vunpack.c.l.b16 %v3703
        %v3832 = vunpack.c.l.b16 %v3704
        %v3833 = vunpack.c.l.b16 %v3705
        %v3834 = vunpack.c.l.b16 %v3706
        %v3835 = vunpack.c.l.b16 %v3707
        %v3836 = vunpack.c.l.b16 %v3708
        %v3837 = vunpack.c.l.b16 %v3709
        %v3838 = vunpack.c.l.b16 %v3710
        %v3839 = vunpack.c.l.b16 %v3711
        %v3840 = vunpack.c.l.b16 %v3712
        %v3841 = vunpack.c.l.b16 %v3713
        %v3842 = vunpack.c.l.b16 %v3714
        %v3843 = vunpack.c.l.b16 %v3715
        %v3844 = vunpack.c.l.b16 %v3716
        %v3845 = vunpack.c.l.b16 %v3717
        %v3846 = vunpack.c.l.b16 %v3718
        %v3847 = vunpack.c.l.b16 %v3719
        %v3848 = vunpack.c.l.b16 %v3720
        %v3849 = vunpack.c.l.b16 %v3721
        %v3850 = vunpack.c.l.b16 %v3722
        %v3851 = vunpack.c.l.b16 %v3723
        %v3852 = vunpack.c.l.b16 %v3724
        %v3853 = vunpack.c.l.b16 %v3725
        %v3854 = vunpack.c.l.b16 %v3726
        %v3855 = vunpack.c.l.b16 %v3727
        %v3856 = vunpack.c.l.b16 %v3728
        %v3857 = vpack.c.b16 %v3794, %v3793
        %v3858 = vpack.c.b16 %v3796, %v3795
        %v3859 = vpack.c.b16 %v3798, %v3797
        %v3860 = vpack.c.b16 %v3800, %v3799
        %v3861 = vpack.c.b16 %v3802, %v3801
        %v3862 = vpack.c.b16 %v3804, %v3803
        %v3863 = vpack.c.b16 %v3806, %v3805
        %v3864 = vpack.c.b16 %v3808, %v3807
        %v3865 = vpack.c.b16 %v3810, %v3809
        %v3866 = vpack.c.b16 %v3812, %v3811
        %v3867 = vpack.c.b16 %v3814, %v3813
        %v3868 = vpack.c.b16 %v3816, %v3815
        %v3869 = vpack.c.b16 %v3818, %v3817
        %v3870 = vpack.c.b16 %v3820, %v3819
        %v3871 = vpack.c.b16 %v3822, %v3821
        %v3872 = vpack.c.b16 %v3824, %v3823
        %v3873 = vpack.c.b16 %v3826, %v3825
        %v3874 = vpack.c.b16 %v3828, %v3827
        %v3875 = vpack.c.b16 %v3830, %v3829
        %v3876 = vpack.c.b16 %v3832, %v3831
        %v3877 = vpack.c.b16 %v3834, %v3833
        %v3878 = vpack.c.b16 %v3836, %v3835
        %v3879 = vpack.c.b16 %v3838, %v3837
        %v3880 = vpack.c.b16 %v3840, %v3839
        %v3881 = vpack.c.b16 %v3842, %v3841
        %v3882 = vpack.c.b16 %v3844, %v3843
        %v3883 = vpack.c.b16 %v3846, %v3845
        %v3884 = vpack.c.b16 %v3848, %v3847
        %v3885 = vpack.c.b16 %v3850, %v3849
        %v3886 = vpack.c.b16 %v3852, %v3851
        %v3887 = vpack.c.b16 %v3854, %v3853
        %v3888 = vpack.c.b16 %v3856, %v3855
        %3921 = vmatprep.subr.bf16.mxu0 0
        %3922 = vmatpush1.bf16.msra.mxu0 %v3857
        %3923 = vmatprep.subr.bf16.mxu0 0
        %3924 = vmatpush1.bf16.msra.mxu0 %v3858
        %3925 = vmatprep.subr.bf16.mxu0 0
        %3926 = vmatpush1.bf16.msra.mxu0 %v3859
        %3927 = vmatprep.subr.bf16.mxu0 0
        %3928 = vmatpush1.bf16.msra.mxu0 %v3860
        %3929 = vmatprep.subr.bf16.mxu0 0
        %3930 = vmatpush1.bf16.msra.mxu0 %v3861
        %3931 = vmatprep.subr.bf16.mxu0 0
        %3932 = vmatpush1.bf16.msra.mxu0 %v3862
        %3933 = vmatprep.subr.bf16.mxu0 0
        %3934 = vmatpush1.bf16.msra.mxu0 %v3863
        %3935 = vmatprep.subr.bf16.mxu0 0
        %3936 = vmatpush1.bf16.msra.mxu0 %v3864
        %3937 = vmatprep.subr.bf16.mxu0 0
        %3938 = vmatpush1.bf16.msra.mxu0 %v3865
        %3939 = vmatprep.subr.bf16.mxu0 0
        %3940 = vmatpush1.bf16.msra.mxu0 %v3866
        %3941 = vmatprep.subr.bf16.mxu0 0
        %3942 = vmatpush1.bf16.msra.mxu0 %v3867
        %3943 = vmatprep.subr.bf16.mxu0 0
        %3944 = vmatpush1.bf16.msra.mxu0 %v3868
        %3945 = vmatprep.subr.bf16.mxu0 0
        %3946 = vmatpush1.bf16.msra.mxu0 %v3869
        %3947 = vmatprep.subr.bf16.mxu0 0
        %3948 = vmatpush1.bf16.msra.mxu0 %v3870
        %3949 = vmatprep.subr.bf16.mxu0 0
        %3950 = vmatpush1.bf16.msra.mxu0 %v3871
        %3951 = vmatprep.subr.bf16.mxu0 0
        %3952 = vmatpush1.bf16.msra.mxu0 %v3872
        %3953 = vmatprep.mubr.bf16.mxu0 %v3661
        %3954 = vmatmul.mubr.bf16.gmra.mrb[0].mxu0 %v3660
        %v3955 = vpop.f32.mrb[0].mxu0
        %v3956 = vadd.f32 0.0, %v3955
        %v3957 = vpop.f32.mrb[0].mxu0
        %v3958 = vpop.f32.mrb[0].mxu0
        %v3959 = vadd.f32 0.0, %v3958
        %v3960 = vpop.f32.mrb[0].mxu0
        %3961 = vdwg.mxu0
        %3962 = vmatprep.subr.bf16.mxu0 0
        %3963 = vmatpush1.bf16.msra.mxu0 %v3873
        %3964 = vmatprep.subr.bf16.mxu0 0
        %3965 = vmatpush1.bf16.msra.mxu0 %v3874
        %3966 = vmatprep.subr.bf16.mxu0 0
        %3967 = vmatpush1.bf16.msra.mxu0 %v3875
        %3968 = vmatprep.subr.bf16.mxu0 0
        %3969 = vmatpush1.bf16.msra.mxu0 %v3876
        %3970 = vmatprep.subr.bf16.mxu0 0
        %3971 = vmatpush1.bf16.msra.mxu0 %v3877
        %3972 = vmatprep.subr.bf16.mxu0 0
        %3973 = vmatpush1.bf16.msra.mxu0 %v3878
        %3974 = vmatprep.subr.bf16.mxu0 0
        %3975 = vmatpush1.bf16.msra.mxu0 %v3879
        %3976 = vmatprep.subr.bf16.mxu0 0
        %3977 = vmatpush1.bf16.msra.mxu0 %v3880
        %3978 = vmatprep.subr.bf16.mxu0 0
        %3979 = vmatpush1.bf16.msra.mxu0 %v3881
        %3980 = vmatprep.subr.bf16.mxu0 0
        %3981 = vmatpush1.bf16.msra.mxu0 %v3882
        %3982 = vmatprep.subr.bf16.mxu0 0
        %3983 = vmatpush1.bf16.msra.mxu0 %v3883
        %3984 = vmatprep.subr.bf16.mxu0 0
        %3985 = vmatpush1.bf16.msra.mxu0 %v3884
        %3986 = vmatprep.subr.bf16.mxu0 0
        %3987 = vmatpush1.bf16.msra.mxu0 %v3885
        %3988 = vmatprep.subr.bf16.mxu0 0
        %3989 = vmatpush1.bf16.msra.mxu0 %v3886
        %3990 = vmatprep.subr.bf16.mxu0 0
        %3991 = vmatpush1.bf16.msra.mxu0 %v3887
        %3992 = vmatprep.subr.bf16.mxu0 0
        %3993 = vmatpush1.bf16.msra.mxu0 %v3888
        %3994 = vmatprep.mubr.bf16.mxu0 %v3663
        %3995 = vmatmul.mubr.bf16.gmra.mrb[0].mxu0 %v3662
        %v3996 = vpop.f32.mrb[0].mxu0
        %v3997 = vadd.f32 %v3956, %v3996
        %v3998 = vpop.f32.mrb[0].mxu0
        %v3999 = vpop.f32.mrb[0].mxu0
        %v4000 = vadd.f32 %v3959, %v3999
        %v4001 = vpop.f32.mrb[0].mxu0
        %4002 = vdwg.mxu0
        %v4003 = vadd.f32 %v3460, %v3997
        %v4004 = vadd.f32 %v3461, %v4000
        %v4005 = vld [vmem:[%s16] sm:$0x1]
        %v4007 = vlaneseq
        %v4008 = vshrl.u32 %v4007, 7
        %v4009 = vsub.s32 0, %v4008
        %v4010 = vrot.slane %v4005, %v4009
        %v4012 = vadd.f32 %v4003, %v4010
        %v4013 = vadd.f32 %v4004, %v4010
        %v4014 = vadd.f32 %v1834, %v4012
        %v4015 = vadd.f32 %v1835, %v4013
        %v4016 = vsel %vm935, %v4014, 0.0
        %4017 = vadd.xlane.f32.xlu0 %v4016
        %v4018 = vpop.xlane.xlu0 %4017
        %v4019 = vsel %vm935, %v4015, 0.0
        %4020 = vadd.xlane.f32.xlu0 %v4019
        %v4021 = vpop.xlane.xlu0 %4020
        %v4022 = vmul.f32 %v4018, %v1797
        %v4023 = vmul.f32 %v4021, %v1797
        %v4024 = vsub.f32 %v4014, %v4022
        %v4025 = vsub.f32 %v4015, %v4023
        %v4026 = vmul.f32 %v4024, %v4024
        %v4027 = vmul.f32 %v4025, %v4025
        %v4028 = vsel %vm935, %v4026, 0.0
        %4029 = vadd.xlane.f32.xlu0 %v4028
        %v4030 = vpop.xlane.xlu0 %4029
        %v4031 = vsel %vm935, %v4027, 0.0
        %4032 = vadd.xlane.f32.xlu0 %v4031
        %v4033 = vpop.xlane.xlu0 %4032
        %v4034 = vmul.f32 %v4030, %v1797
        %v4035 = vmul.f32 %v4033, %v1797
        %v4036 = vadd.f32 %v4034, 1e-05
        %v4037 = vadd.f32 %v4035, 1e-05
        %v4038 = vrsqrt.pop %v4036
        %v4039 = vrsqrt.pop %v4037
        %v4040 = vmul.f32 %v4024, %v4038
        %v4041 = vmul.f32 %v4025, %v4039
        %v4042 = vld [vmem:[%s11] sm:$0x1]
        %v4044 = vlaneseq
        %v4045 = vshrl.u32 %v4044, 7
        %v4046 = vsub.s32 0, %v4045
        %v4047 = vrot.slane %v4042, %v4046
        %v4049 = vmul.f32 %v4040, %v4047
        %v4050 = vmul.f32 %v4041, %v4047
        %v4051 = vld [vmem:[%s12] sm:$0x1]
        %v4053 = vlaneseq
        %v4054 = vshrl.u32 %v4053, 7
        %v4055 = vsub.s32 0, %v4054
        %v4056 = vrot.slane %v4051, %v4055
        %v4058 = vadd.f32 %v4049, %v4056
        %v4059 = vadd.f32 %v4050, %v4056
        %v4060 = vpack.c.bf16 %v4059, %v4058
        %s4061 = scalar_lea.vmem %s5, 16
        %v4062 = vld [vmem:[%s4061] sm:$0xf]
        %v4063 = vld [vmem:[%s4061 + $0x4] sm:$0xf]
        %v4064 = vld [vmem:[%s4061 + $0x8] sm:$0xf]
        %v4065 = vld [vmem:[%s4061 + $0xc] sm:$0xf]
        %s4066 = scalar_lea.vmem %s6, 1
        %v4067 = vld [vmem:[%s4066] sm:$0x1]
        %v4069 = vlaneseq
        %v4070 = vshrl.u32 %v4069, 7
        %v4071 = vsub.s32 0, %v4070
        %v4072 = vrot.slane %v4067, %v4071
        %v4078 = vunpack.c.l.b16 %v4062
        %v4079 = vunpack.c.l.b16 %v4063
        %v4080 = vunpack.c.l.b16 %v4064
        %v4081 = vunpack.c.l.b16 %v4065
        %v4082 = vpack.c.b16 %v4079, %v4078
        %v4083 = vpack.c.b16 %v4081, %v4080
        %v4087 = vsel %vm935, %v4060, 0
        %4089 = vmatprep.subr.bf16.mxu0 0
        %4090 = vmatpush1.bf16.msra.mxu0 %v4082
        %4091 = vmatprep.subr.bf16.mxu0 0
        %4092 = vmatpush1.bf16.msra.mxu0 %v4083
        %4093 = vmatprep.subr.bf16.mxu0 0
        %4094 = vmatpush1.bf16.msra.mxu0 0
        %4095 = vmatprep.subr.bf16.mxu0 0
        %4096 = vmatpush1.bf16.msra.mxu0 0
        %4097 = vmatprep.subr.bf16.mxu0 0
        %4098 = vmatpush1.bf16.msra.mxu0 0
        %4099 = vmatprep.subr.bf16.mxu0 0
        %4100 = vmatpush1.bf16.msra.mxu0 0
        %4101 = vmatprep.subr.bf16.mxu0 0
        %4102 = vmatpush1.bf16.msra.mxu0 0
        %4103 = vmatprep.subr.bf16.mxu0 0
        %4104 = vmatpush1.bf16.msra.mxu0 0
        %4105 = vmatprep.subr.bf16.mxu0 0
        %4106 = vmatpush1.bf16.msra.mxu0 0
        %4107 = vmatprep.subr.bf16.mxu0 0
        %4108 = vmatpush1.bf16.msra.mxu0 0
        %4109 = vmatprep.subr.bf16.mxu0 0
        %4110 = vmatpush1.bf16.msra.mxu0 0
        %4111 = vmatprep.subr.bf16.mxu0 0
        %4112 = vmatpush1.bf16.msra.mxu0 0
        %4113 = vmatprep.subr.bf16.mxu0 0
        %4114 = vmatpush1.bf16.msra.mxu0 0
        %4115 = vmatprep.subr.bf16.mxu0 0
        %4116 = vmatpush1.bf16.msra.mxu0 0
        %4117 = vmatprep.subr.bf16.mxu0 0
        %4118 = vmatpush1.bf16.msra.mxu0 0
        %4119 = vmatprep.subr.bf16.mxu0 0
        %4120 = vmatpush1.bf16.msra.mxu0 0
        %4121 = vmatprep.mubr.bf16.mxu0 0
        %4122 = vmatmul.mubr.bf16.gmra.mrb[0].mxu0 %v4087
        %v4123 = vpop.f32.mrb[0].mxu0
        %v4124 = vadd.f32 %v4072, %v4123
        %v4125 = vpop.f32.mrb[0].mxu0
        %v4126 = vpop.f32.mrb[0].mxu0
        %v4127 = vadd.f32 %v4072, %v4126
        %v4128 = vpop.f32.mrb[0].mxu0
        %4129 = vdwg.mxu0
        %4131 = vrot.lane.b32.xlu0 %v4124, 96
        %v4132 = vpop.permute.xlu0 %4131
        %v4133 = vsel %vm1016, %v4124, 0
        %v4135 = vsel %vm1016, %v4132, 0
        %4137 = vmatprep.subr.mxu0 0.0
        %4138 = vmatpush1.xpose.msra.mxu0 %v4135
        %4139 = vmatprep.subr.mxu0 0.0
        %4140 = vmatpush1.xpose.msra.mxu0 0.0
        %4141 = vmatprep.subr.mxu0 0.0
        %4142 = vmatpush1.xpose.msra.mxu0 0.0
        %4143 = vmatprep.subr.mxu0 0.0
        %4144 = vmatpush1.xpose.msra.mxu0 0.0
        %4145 = vmatprep.subr.mxu0 0.0
        %4146 = vmatpush1.xpose.msra.mxu0 0.0
        %4147 = vmatprep.subr.mxu0 0.0
        %4148 = vmatpush1.xpose.msra.mxu0 0.0
        %4149 = vmatprep.subr.mxu0 0.0
        %4150 = vmatpush1.xpose.msra.mxu0 0.0
        %4151 = vmatprep.subr.mxu0 0.0
        %4152 = vmatpush1.xpose.msra.mxu0 0.0
        %4153 = vmatprep.subr.mxu0 0.0
        %4154 = vmatpush1.xpose.msra.mxu0 0.0
        %4155 = vmatprep.subr.mxu0 0.0
        %4156 = vmatpush1.xpose.msra.mxu0 0.0
        %4157 = vmatprep.subr.mxu0 0.0
        %4158 = vmatpush1.xpose.msra.mxu0 0.0
        %4159 = vmatprep.subr.mxu0 0.0
        %4160 = vmatpush1.xpose.msra.mxu0 0.0
        %4161 = vmatprep.subr.mxu0 0.0
        %4162 = vmatpush1.xpose.msra.mxu0 0.0
        %4163 = vmatprep.subr.mxu0 0.0
        %4164 = vmatpush1.xpose.msra.mxu0 0.0
        %4165 = vmatprep.subr.mxu0 0.0
        %4166 = vmatpush1.xpose.msra.mxu0 0.0
        %4167 = vmatprep.subr.mxu0 0.0
        %4168 = vmatpush1.xpose.msra.mxu0 0.0
        %4169 = vmatprep.subr.mxu0 0.0
        %4170 = vmatpush1.xpose.msra.mxu0 0.0
        %4171 = vmatprep.subr.mxu0 0.0
        %4172 = vmatpush1.xpose.msra.mxu0 0.0
        %4173 = vmatprep.subr.mxu0 0.0
        %4174 = vmatpush1.xpose.msra.mxu0 0.0
        %4175 = vmatprep.subr.mxu0 0.0
        %4176 = vmatpush1.xpose.msra.mxu0 0.0
        %4177 = vmatprep.subr.mxu0 0.0
        %4178 = vmatpush1.xpose.msra.mxu0 0.0
        %4179 = vmatprep.subr.mxu0 0.0
        %4180 = vmatpush1.xpose.msra.mxu0 0.0
        %4181 = vmatprep.subr.mxu0 0.0
        %4182 = vmatpush1.xpose.msra.mxu0 0.0
        %4183 = vmatprep.subr.mxu0 0.0
        %4184 = vmatpush1.xpose.msra.mxu0 0.0
        %4185 = vmatprep.subr.mxu0 0.0
        %4186 = vmatpush1.xpose.msra.mxu0 0.0
        %4187 = vmatprep.subr.mxu0 0.0
        %4188 = vmatpush1.xpose.msra.mxu0 0.0
        %4189 = vmatprep.subr.mxu0 0.0
        %4190 = vmatpush1.xpose.msra.mxu0 0.0
        %4191 = vmatprep.subr.mxu0 0.0
        %4192 = vmatpush1.xpose.msra.mxu0 0.0
        %4193 = vmatprep.subr.mxu0 0.0
        %4194 = vmatpush1.xpose.msra.mxu0 0.0
        %4195 = vmatprep.subr.mxu0 0.0
        %4196 = vmatpush1.xpose.msra.mxu0 0.0
        %4197 = vmatprep.subr.mxu0 0.0
        %4198 = vmatpush1.xpose.msra.mxu0 0.0
        %4199 = vmatprep.subr.mxu0 0.0
        %4200 = vmatpush1.xpose.msra.mxu0 0.0
        %4201 = vmatprep.mubr.f32.mxu0 0.0
        %4202 = vmatmul.mubr.f32.gmra.mrb[0].mxu0 %v4133
        %v4203 = vpop.f32.mrb[0].mxu0
        %v4204 = vadd.f32 %v1006, %v4203
        %v4205 = vpop.f32.mrb[0].mxu0
        %4206 = vdwg.mxu0
        %4208 = vrot.lane.b32.xlu0 %v4127, 96
        %v4209 = vpop.permute.xlu0 %4208
        %v4210 = vsel %vm1016, %v4127, 0
        %v4212 = vsel %vm1016, %v4209, 0
        %4214 = vmatprep.subr.mxu0 0.0
        %4215 = vmatpush1.xpose.msra.mxu0 %v4212
        %4216 = vmatprep.subr.mxu0 0.0
        %4217 = vmatpush1.xpose.msra.mxu0 0.0
        %4218 = vmatprep.subr.mxu0 0.0
        %4219 = vmatpush1.xpose.msra.mxu0 0.0
        %4220 = vmatprep.subr.mxu0 0.0
        %4221 = vmatpush1.xpose.msra.mxu0 0.0
        %4222 = vmatprep.subr.mxu0 0.0
        %4223 = vmatpush1.xpose.msra.mxu0 0.0
        %4224 = vmatprep.subr.mxu0 0.0
        %4225 = vmatpush1.xpose.msra.mxu0 0.0
        %4226 = vmatprep.subr.mxu0 0.0
        %4227 = vmatpush1.xpose.msra.mxu0 0.0
        %4228 = vmatprep.subr.mxu0 0.0
        %4229 = vmatpush1.xpose.msra.mxu0 0.0
        %4230 = vmatprep.subr.mxu0 0.0
        %4231 = vmatpush1.xpose.msra.mxu0 0.0
        %4232 = vmatprep.subr.mxu0 0.0
        %4233 = vmatpush1.xpose.msra.mxu0 0.0
        %4234 = vmatprep.subr.mxu0 0.0
        %4235 = vmatpush1.xpose.msra.mxu0 0.0
        %4236 = vmatprep.subr.mxu0 0.0
        %4237 = vmatpush1.xpose.msra.mxu0 0.0
        %4238 = vmatprep.subr.mxu0 0.0
        %4239 = vmatpush1.xpose.msra.mxu0 0.0
        %4240 = vmatprep.subr.mxu0 0.0
        %4241 = vmatpush1.xpose.msra.mxu0 0.0
        %4242 = vmatprep.subr.mxu0 0.0
        %4243 = vmatpush1.xpose.msra.mxu0 0.0
        %4244 = vmatprep.subr.mxu0 0.0
        %4245 = vmatpush1.xpose.msra.mxu0 0.0
        %4246 = vmatprep.subr.mxu0 0.0
        %4247 = vmatpush1.xpose.msra.mxu0 0.0
        %4248 = vmatprep.subr.mxu0 0.0
        %4249 = vmatpush1.xpose.msra.mxu0 0.0
        %4250 = vmatprep.subr.mxu0 0.0
        %4251 = vmatpush1.xpose.msra.mxu0 0.0
        %4252 = vmatprep.subr.mxu0 0.0
        %4253 = vmatpush1.xpose.msra.mxu0 0.0
        %4254 = vmatprep.subr.mxu0 0.0
        %4255 = vmatpush1.xpose.msra.mxu0 0.0
        %4256 = vmatprep.subr.mxu0 0.0
        %4257 = vmatpush1.xpose.msra.mxu0 0.0
        %4258 = vmatprep.subr.mxu0 0.0
        %4259 = vmatpush1.xpose.msra.mxu0 0.0
        %4260 = vmatprep.subr.mxu0 0.0
        %4261 = vmatpush1.xpose.msra.mxu0 0.0
        %4262 = vmatprep.subr.mxu0 0.0
        %4263 = vmatpush1.xpose.msra.mxu0 0.0
        %4264 = vmatprep.subr.mxu0 0.0
        %4265 = vmatpush1.xpose.msra.mxu0 0.0
        %4266 = vmatprep.subr.mxu0 0.0
        %4267 = vmatpush1.xpose.msra.mxu0 0.0
        %4268 = vmatprep.subr.mxu0 0.0
        %4269 = vmatpush1.xpose.msra.mxu0 0.0
        %4270 = vmatprep.subr.mxu0 0.0
        %4271 = vmatpush1.xpose.msra.mxu0 0.0
        %4272 = vmatprep.subr.mxu0 0.0
        %4273 = vmatpush1.xpose.msra.mxu0 0.0
        %4274 = vmatprep.subr.mxu0 0.0
        %4275 = vmatpush1.xpose.msra.mxu0 0.0
        %4276 = vmatprep.subr.mxu0 0.0
        %4277 = vmatpush1.xpose.msra.mxu0 0.0
        %4278 = vmatprep.mubr.f32.mxu0 0.0
        %4279 = vmatmul.mubr.f32.gmra.mrb[0].mxu0 %v4210
        %v4280 = vpop.f32.mrb[0].mxu0
        %v4281 = vadd.f32 %v1010, %v4280
        %v4282 = vpop.f32.mrb[0].mxu0
        %4283 = vdwg.mxu0
        %v4284 = vsel %vm1168, %v4204, -inf
        %4285 = vmax.xlane.f32.xlu0 %v4284
        %v4286 = vpop.xlane.xlu0 %4285
        %v4287 = vsel %vm1168, %v4281, -inf
        %4288 = vmax.xlane.f32.xlu0 %v4287
        %v4289 = vpop.xlane.xlu0 %4288
        %v4290 = vsub.f32 %v4204, %v4286
        %v4291 = vsub.f32 %v4281, %v4289
        %v4292 = vmul.f32 %v4290, 1.442695
        %v4293 = vpow.pop %v4292
        %v4294 = vmul.f32 %v4291, 1.442695
        %v4295 = vpow.pop %v4294
        %v4296 = vsel %vm1168, %v4293, 0.0
        %4297 = vadd.xlane.f32.xlu0 %v4296
        %v4298 = vpop.xlane.xlu0 %4297
        %v4299 = vsel %vm1168, %v4295, 0.0
        %4300 = vadd.xlane.f32.xlu0 %v4299
        %v4301 = vpop.xlane.xlu0 %4300
        %v4302 = vrcp.pop %v4298
        %v4303 = vrcp.pop %v4301
        %v4304 = vmul.f32 %v4293, %v4302
        %v4305 = vmul.f32 %v4295, %v4303
        %4306 = vrot.lane.b32.xlu0 %v4124, 64
        %v4307 = vpop.permute.xlu0 %4306
        %v4310 = vsel %vm1168, %v4304, 0
        %4312 = vmatprep.subr.mxu0 0.0
        %4313 = vmatpush1.msra.mxu0 %v4307
        %4314 = vmatprep.subr.mxu0 0.0
        %4315 = vmatpush1.msra.mxu0 0.0
        %4316 = vmatprep.subr.mxu0 0.0
        %4317 = vmatpush1.msra.mxu0 0.0
        %4318 = vmatprep.subr.mxu0 0.0
        %4319 = vmatpush1.msra.mxu0 0.0
        %4320 = vmatprep.subr.mxu0 0.0
        %4321 = vmatpush1.msra.mxu0 0.0
        %4322 = vmatprep.subr.mxu0 0.0
        %4323 = vmatpush1.msra.mxu0 0.0
        %4324 = vmatprep.subr.mxu0 0.0
        %4325 = vmatpush1.msra.mxu0 0.0
        %4326 = vmatprep.subr.mxu0 0.0
        %4327 = vmatpush1.msra.mxu0 0.0
        %4328 = vmatprep.subr.mxu0 0.0
        %4329 = vmatpush1.msra.mxu0 0.0
        %4330 = vmatprep.subr.mxu0 0.0
        %4331 = vmatpush1.msra.mxu0 0.0
        %4332 = vmatprep.subr.mxu0 0.0
        %4333 = vmatpush1.msra.mxu0 0.0
        %4334 = vmatprep.subr.mxu0 0.0
        %4335 = vmatpush1.msra.mxu0 0.0
        %4336 = vmatprep.subr.mxu0 0.0
        %4337 = vmatpush1.msra.mxu0 0.0
        %4338 = vmatprep.subr.mxu0 0.0
        %4339 = vmatpush1.msra.mxu0 0.0
        %4340 = vmatprep.subr.mxu0 0.0
        %4341 = vmatpush1.msra.mxu0 0.0
        %4342 = vmatprep.subr.mxu0 0.0
        %4343 = vmatpush1.msra.mxu0 0.0
        %4344 = vmatprep.subr.mxu0 0.0
        %4345 = vmatpush1.msra.mxu0 0.0
        %4346 = vmatprep.subr.mxu0 0.0
        %4347 = vmatpush1.msra.mxu0 0.0
        %4348 = vmatprep.subr.mxu0 0.0
        %4349 = vmatpush1.msra.mxu0 0.0
        %4350 = vmatprep.subr.mxu0 0.0
        %4351 = vmatpush1.msra.mxu0 0.0
        %4352 = vmatprep.subr.mxu0 0.0
        %4353 = vmatpush1.msra.mxu0 0.0
        %4354 = vmatprep.subr.mxu0 0.0
        %4355 = vmatpush1.msra.mxu0 0.0
        %4356 = vmatprep.subr.mxu0 0.0
        %4357 = vmatpush1.msra.mxu0 0.0
        %4358 = vmatprep.subr.mxu0 0.0
        %4359 = vmatpush1.msra.mxu0 0.0
        %4360 = vmatprep.subr.mxu0 0.0
        %4361 = vmatpush1.msra.mxu0 0.0
        %4362 = vmatprep.subr.mxu0 0.0
        %4363 = vmatpush1.msra.mxu0 0.0
        %4364 = vmatprep.subr.mxu0 0.0
        %4365 = vmatpush1.msra.mxu0 0.0
        %4366 = vmatprep.subr.mxu0 0.0
        %4367 = vmatpush1.msra.mxu0 0.0
        %4368 = vmatprep.subr.mxu0 0.0
        %4369 = vmatpush1.msra.mxu0 0.0
        %4370 = vmatprep.subr.mxu0 0.0
        %4371 = vmatpush1.msra.mxu0 0.0
        %4372 = vmatprep.subr.mxu0 0.0
        %4373 = vmatpush1.msra.mxu0 0.0
        %4374 = vmatprep.subr.mxu0 0.0
        %4375 = vmatpush1.msra.mxu0 0.0
        %4376 = vmatprep.mubr.f32.mxu0 0.0
        %4377 = vmatmul.mubr.f32.gmra.mrb[0].mxu0 %v4310
        %v4378 = vpop.f32.mrb[0].mxu0
        %v4379 = vadd.f32 0.0, %v4378
        %v4380 = vpop.f32.mrb[0].mxu0
        %4381 = vdwg.mxu0
        %4382 = vrot.lane.b32.xlu0 %v4127, 64
        %v4383 = vpop.permute.xlu0 %4382
        %v4386 = vsel %vm1168, %v4305, 0
        %4388 = vmatprep.subr.mxu0 0.0
        %4389 = vmatpush1.msra.mxu0 %v4383
        %4390 = vmatprep.subr.mxu0 0.0
        %4391 = vmatpush1.msra.mxu0 0.0
        %4392 = vmatprep.subr.mxu0 0.0
        %4393 = vmatpush1.msra.mxu0 0.0
        %4394 = vmatprep.subr.mxu0 0.0
        %4395 = vmatpush1.msra.mxu0 0.0
        %4396 = vmatprep.subr.mxu0 0.0
        %4397 = vmatpush1.msra.mxu0 0.0
        %4398 = vmatprep.subr.mxu0 0.0
        %4399 = vmatpush1.msra.mxu0 0.0
        %4400 = vmatprep.subr.mxu0 0.0
        %4401 = vmatpush1.msra.mxu0 0.0
        %4402 = vmatprep.subr.mxu0 0.0
        %4403 = vmatpush1.msra.mxu0 0.0
        %4404 = vmatprep.subr.mxu0 0.0
        %4405 = vmatpush1.msra.mxu0 0.0
        %4406 = vmatprep.subr.mxu0 0.0
        %4407 = vmatpush1.msra.mxu0 0.0
        %4408 = vmatprep.subr.mxu0 0.0
        %4409 = vmatpush1.msra.mxu0 0.0
        %4410 = vmatprep.subr.mxu0 0.0
        %4411 = vmatpush1.msra.mxu0 0.0
        %4412 = vmatprep.subr.mxu0 0.0
        %4413 = vmatpush1.msra.mxu0 0.0
        %4414 = vmatprep.subr.mxu0 0.0
        %4415 = vmatpush1.msra.mxu0 0.0
        %4416 = vmatprep.subr.mxu0 0.0
        %4417 = vmatpush1.msra.mxu0 0.0
        %4418 = vmatprep.subr.mxu0 0.0
        %4419 = vmatpush1.msra.mxu0 0.0
        %4420 = vmatprep.subr.mxu0 0.0
        %4421 = vmatpush1.msra.mxu0 0.0
        %4422 = vmatprep.subr.mxu0 0.0
        %4423 = vmatpush1.msra.mxu0 0.0
        %4424 = vmatprep.subr.mxu0 0.0
        %4425 = vmatpush1.msra.mxu0 0.0
        %4426 = vmatprep.subr.mxu0 0.0
        %4427 = vmatpush1.msra.mxu0 0.0
        %4428 = vmatprep.subr.mxu0 0.0
        %4429 = vmatpush1.msra.mxu0 0.0
        %4430 = vmatprep.subr.mxu0 0.0
        %4431 = vmatpush1.msra.mxu0 0.0
        %4432 = vmatprep.subr.mxu0 0.0
        %4433 = vmatpush1.msra.mxu0 0.0
        %4434 = vmatprep.subr.mxu0 0.0
        %4435 = vmatpush1.msra.mxu0 0.0
        %4436 = vmatprep.subr.mxu0 0.0
        %4437 = vmatpush1.msra.mxu0 0.0
        %4438 = vmatprep.subr.mxu0 0.0
        %4439 = vmatpush1.msra.mxu0 0.0
        %4440 = vmatprep.subr.mxu0 0.0
        %4441 = vmatpush1.msra.mxu0 0.0
        %4442 = vmatprep.subr.mxu0 0.0
        %4443 = vmatpush1.msra.mxu0 0.0
        %4444 = vmatprep.subr.mxu0 0.0
        %4445 = vmatpush1.msra.mxu0 0.0
        %4446 = vmatprep.subr.mxu0 0.0
        %4447 = vmatpush1.msra.mxu0 0.0
        %4448 = vmatprep.subr.mxu0 0.0
        %4449 = vmatpush1.msra.mxu0 0.0
        %4450 = vmatprep.subr.mxu0 0.0
        %4451 = vmatpush1.msra.mxu0 0.0
        %4452 = vmatprep.mubr.f32.mxu0 0.0
        %4453 = vmatmul.mubr.f32.gmra.mrb[0].mxu0 %v4386
        %v4454 = vpop.f32.mrb[0].mxu0
        %v4455 = vadd.f32 0.0, %v4454
        %v4456 = vpop.f32.mrb[0].mxu0
        %4457 = vdwg.mxu0
        %v4458 = vpack.c.bf16 %v4455, %v4379
        %s4459 = scalar_lea.vmem %s7, 16
        %v4460 = vld [vmem:[%s4459] sm:$0xf]
        %v4461 = vld [vmem:[%s4459 + $0x4] sm:$0xf]
        %4462 = vrot.lane.b32.xlu0 %v4124, 112
        %v4463 = vpop.permute.xlu0 %4462
        %4464 = vrot.lane.b32.xlu0 %v4124, 80
        %v4465 = vpop.permute.xlu0 %4464
        %v4466 = vsel %vm1016, %v4463, 0
        %v4468 = vsel %vm1016, %v4465, 0
        %4470 = vmatprep.subr.mxu0 0.0
        %4471 = vmatpush1.xpose.msra.mxu0 %v4468
        %4472 = vmatprep.subr.mxu0 0.0
        %4473 = vmatpush1.xpose.msra.mxu0 0.0
        %4474 = vmatprep.subr.mxu0 0.0
        %4475 = vmatpush1.xpose.msra.mxu0 0.0
        %4476 = vmatprep.subr.mxu0 0.0
        %4477 = vmatpush1.xpose.msra.mxu0 0.0
        %4478 = vmatprep.subr.mxu0 0.0
        %4479 = vmatpush1.xpose.msra.mxu0 0.0
        %4480 = vmatprep.subr.mxu0 0.0
        %4481 = vmatpush1.xpose.msra.mxu0 0.0
        %4482 = vmatprep.subr.mxu0 0.0
        %4483 = vmatpush1.xpose.msra.mxu0 0.0
        %4484 = vmatprep.subr.mxu0 0.0
        %4485 = vmatpush1.xpose.msra.mxu0 0.0
        %4486 = vmatprep.subr.mxu0 0.0
        %4487 = vmatpush1.xpose.msra.mxu0 0.0
        %4488 = vmatprep.subr.mxu0 0.0
        %4489 = vmatpush1.xpose.msra.mxu0 0.0
        %4490 = vmatprep.subr.mxu0 0.0
        %4491 = vmatpush1.xpose.msra.mxu0 0.0
        %4492 = vmatprep.subr.mxu0 0.0
        %4493 = vmatpush1.xpose.msra.mxu0 0.0
        %4494 = vmatprep.subr.mxu0 0.0
        %4495 = vmatpush1.xpose.msra.mxu0 0.0
        %4496 = vmatprep.subr.mxu0 0.0
        %4497 = vmatpush1.xpose.msra.mxu0 0.0
        %4498 = vmatprep.subr.mxu0 0.0
        %4499 = vmatpush1.xpose.msra.mxu0 0.0
        %4500 = vmatprep.subr.mxu0 0.0
        %4501 = vmatpush1.xpose.msra.mxu0 0.0
        %4502 = vmatprep.subr.mxu0 0.0
        %4503 = vmatpush1.xpose.msra.mxu0 0.0
        %4504 = vmatprep.subr.mxu0 0.0
        %4505 = vmatpush1.xpose.msra.mxu0 0.0
        %4506 = vmatprep.subr.mxu0 0.0
        %4507 = vmatpush1.xpose.msra.mxu0 0.0
        %4508 = vmatprep.subr.mxu0 0.0
        %4509 = vmatpush1.xpose.msra.mxu0 0.0
        %4510 = vmatprep.subr.mxu0 0.0
        %4511 = vmatpush1.xpose.msra.mxu0 0.0
        %4512 = vmatprep.subr.mxu0 0.0
        %4513 = vmatpush1.xpose.msra.mxu0 0.0
        %4514 = vmatprep.subr.mxu0 0.0
        %4515 = vmatpush1.xpose.msra.mxu0 0.0
        %4516 = vmatprep.subr.mxu0 0.0
        %4517 = vmatpush1.xpose.msra.mxu0 0.0
        %4518 = vmatprep.subr.mxu0 0.0
        %4519 = vmatpush1.xpose.msra.mxu0 0.0
        %4520 = vmatprep.subr.mxu0 0.0
        %4521 = vmatpush1.xpose.msra.mxu0 0.0
        %4522 = vmatprep.subr.mxu0 0.0
        %4523 = vmatpush1.xpose.msra.mxu0 0.0
        %4524 = vmatprep.subr.mxu0 0.0
        %4525 = vmatpush1.xpose.msra.mxu0 0.0
        %4526 = vmatprep.subr.mxu0 0.0
        %4527 = vmatpush1.xpose.msra.mxu0 0.0
        %4528 = vmatprep.subr.mxu0 0.0
        %4529 = vmatpush1.xpose.msra.mxu0 0.0
        %4530 = vmatprep.subr.mxu0 0.0
        %4531 = vmatpush1.xpose.msra.mxu0 0.0
        %4532 = vmatprep.subr.mxu0 0.0
        %4533 = vmatpush1.xpose.msra.mxu0 0.0
        %4534 = vmatprep.mubr.f32.mxu0 0.0
        %4535 = vmatmul.mubr.f32.gmra.mrb[0].mxu0 %v4466
        %v4536 = vpop.f32.mrb[0].mxu0
        %v4537 = vadd.f32 %v1006, %v4536
        %v4538 = vpop.f32.mrb[0].mxu0
        %4539 = vdwg.mxu0
        %4540 = vrot.lane.b32.xlu0 %v4127, 112
        %v4541 = vpop.permute.xlu0 %4540
        %4542 = vrot.lane.b32.xlu0 %v4127, 80
        %v4543 = vpop.permute.xlu0 %4542
        %v4544 = vsel %vm1016, %v4541, 0
        %v4546 = vsel %vm1016, %v4543, 0
        %4548 = vmatprep.subr.mxu0 0.0
        %4549 = vmatpush1.xpose.msra.mxu0 %v4546
        %4550 = vmatprep.subr.mxu0 0.0
        %4551 = vmatpush1.xpose.msra.mxu0 0.0
        %4552 = vmatprep.subr.mxu0 0.0
        %4553 = vmatpush1.xpose.msra.mxu0 0.0
        %4554 = vmatprep.subr.mxu0 0.0
        %4555 = vmatpush1.xpose.msra.mxu0 0.0
        %4556 = vmatprep.subr.mxu0 0.0
        %4557 = vmatpush1.xpose.msra.mxu0 0.0
        %4558 = vmatprep.subr.mxu0 0.0
        %4559 = vmatpush1.xpose.msra.mxu0 0.0
        %4560 = vmatprep.subr.mxu0 0.0
        %4561 = vmatpush1.xpose.msra.mxu0 0.0
        %4562 = vmatprep.subr.mxu0 0.0
        %4563 = vmatpush1.xpose.msra.mxu0 0.0
        %4564 = vmatprep.subr.mxu0 0.0
        %4565 = vmatpush1.xpose.msra.mxu0 0.0
        %4566 = vmatprep.subr.mxu0 0.0
        %4567 = vmatpush1.xpose.msra.mxu0 0.0
        %4568 = vmatprep.subr.mxu0 0.0
        %4569 = vmatpush1.xpose.msra.mxu0 0.0
        %4570 = vmatprep.subr.mxu0 0.0
        %4571 = vmatpush1.xpose.msra.mxu0 0.0
        %4572 = vmatprep.subr.mxu0 0.0
        %4573 = vmatpush1.xpose.msra.mxu0 0.0
        %4574 = vmatprep.subr.mxu0 0.0
        %4575 = vmatpush1.xpose.msra.mxu0 0.0
        %4576 = vmatprep.subr.mxu0 0.0
        %4577 = vmatpush1.xpose.msra.mxu0 0.0
        %4578 = vmatprep.subr.mxu0 0.0
        %4579 = vmatpush1.xpose.msra.mxu0 0.0
        %4580 = vmatprep.subr.mxu0 0.0
        %4581 = vmatpush1.xpose.msra.mxu0 0.0
        %4582 = vmatprep.subr.mxu0 0.0
        %4583 = vmatpush1.xpose.msra.mxu0 0.0
        %4584 = vmatprep.subr.mxu0 0.0
        %4585 = vmatpush1.xpose.msra.mxu0 0.0
        %4586 = vmatprep.subr.mxu0 0.0
        %4587 = vmatpush1.xpose.msra.mxu0 0.0
        %4588 = vmatprep.subr.mxu0 0.0
        %4589 = vmatpush1.xpose.msra.mxu0 0.0
        %4590 = vmatprep.subr.mxu0 0.0
        %4591 = vmatpush1.xpose.msra.mxu0 0.0
        %4592 = vmatprep.subr.mxu0 0.0
        %4593 = vmatpush1.xpose.msra.mxu0 0.0
        %4594 = vmatprep.subr.mxu0 0.0
        %4595 = vmatpush1.xpose.msra.mxu0 0.0
        %4596 = vmatprep.subr.mxu0 0.0
        %4597 = vmatpush1.xpose.msra.mxu0 0.0
        %4598 = vmatprep.subr.mxu0 0.0
        %4599 = vmatpush1.xpose.msra.mxu0 0.0
        %4600 = vmatprep.subr.mxu0 0.0
        %4601 = vmatpush1.xpose.msra.mxu0 0.0
        %4602 = vmatprep.subr.mxu0 0.0
        %4603 = vmatpush1.xpose.msra.mxu0 0.0
        %4604 = vmatprep.subr.mxu0 0.0
        %4605 = vmatpush1.xpose.msra.mxu0 0.0
        %4606 = vmatprep.subr.mxu0 0.0
        %4607 = vmatpush1.xpose.msra.mxu0 0.0
        %4608 = vmatprep.subr.mxu0 0.0
        %4609 = vmatpush1.xpose.msra.mxu0 0.0
        %4610 = vmatprep.subr.mxu0 0.0
        %4611 = vmatpush1.xpose.msra.mxu0 0.0
        %4612 = vmatprep.mubr.f32.mxu0 0.0
        %4613 = vmatmul.mubr.f32.gmra.mrb[0].mxu0 %v4544
        %v4614 = vpop.f32.mrb[0].mxu0
        %v4615 = vadd.f32 %v1010, %v4614
        %v4616 = vpop.f32.mrb[0].mxu0
        %4617 = vdwg.mxu0
        %v4618 = vsel %vm1168, %v4537, -inf
        %4619 = vmax.xlane.f32.xlu0 %v4618
        %v4620 = vpop.xlane.xlu0 %4619
        %v4621 = vsel %vm1168, %v4615, -inf
        %4622 = vmax.xlane.f32.xlu0 %v4621
        %v4623 = vpop.xlane.xlu0 %4622
        %v4624 = vsub.f32 %v4537, %v4620
        %v4625 = vsub.f32 %v4615, %v4623
        %v4626 = vmul.f32 %v4624, 1.442695
        %v4627 = vpow.pop %v4626
        %v4628 = vmul.f32 %v4625, 1.442695
        %v4629 = vpow.pop %v4628
        %v4630 = vsel %vm1168, %v4627, 0.0
        %4631 = vadd.xlane.f32.xlu0 %v4630
        %v4632 = vpop.xlane.xlu0 %4631
        %v4633 = vsel %vm1168, %v4629, 0.0
        %4634 = vadd.xlane.f32.xlu0 %v4633
        %v4635 = vpop.xlane.xlu0 %4634
        %v4636 = vrcp.pop %v4632
        %v4637 = vrcp.pop %v4635
        %v4638 = vmul.f32 %v4627, %v4636
        %v4639 = vmul.f32 %v4629, %v4637
        %4640 = vrot.lane.b32.xlu0 %v4124, 48
        %v4641 = vpop.permute.xlu0 %4640
        %v4644 = vsel %vm1168, %v4638, 0
        %4646 = vmatprep.subr.mxu0 0.0
        %4647 = vmatpush1.msra.mxu0 %v4641
        %4648 = vmatprep.subr.mxu0 0.0
        %4649 = vmatpush1.msra.mxu0 0.0
        %4650 = vmatprep.subr.mxu0 0.0
        %4651 = vmatpush1.msra.mxu0 0.0
        %4652 = vmatprep.subr.mxu0 0.0
        %4653 = vmatpush1.msra.mxu0 0.0
        %4654 = vmatprep.subr.mxu0 0.0
        %4655 = vmatpush1.msra.mxu0 0.0
        %4656 = vmatprep.subr.mxu0 0.0
        %4657 = vmatpush1.msra.mxu0 0.0
        %4658 = vmatprep.subr.mxu0 0.0
        %4659 = vmatpush1.msra.mxu0 0.0
        %4660 = vmatprep.subr.mxu0 0.0
        %4661 = vmatpush1.msra.mxu0 0.0
        %4662 = vmatprep.subr.mxu0 0.0
        %4663 = vmatpush1.msra.mxu0 0.0
        %4664 = vmatprep.subr.mxu0 0.0
        %4665 = vmatpush1.msra.mxu0 0.0
        %4666 = vmatprep.subr.mxu0 0.0
        %4667 = vmatpush1.msra.mxu0 0.0
        %4668 = vmatprep.subr.mxu0 0.0
        %4669 = vmatpush1.msra.mxu0 0.0
        %4670 = vmatprep.subr.mxu0 0.0
        %4671 = vmatpush1.msra.mxu0 0.0
        %4672 = vmatprep.subr.mxu0 0.0
        %4673 = vmatpush1.msra.mxu0 0.0
        %4674 = vmatprep.subr.mxu0 0.0
        %4675 = vmatpush1.msra.mxu0 0.0
        %4676 = vmatprep.subr.mxu0 0.0
        %4677 = vmatpush1.msra.mxu0 0.0
        %4678 = vmatprep.subr.mxu0 0.0
        %4679 = vmatpush1.msra.mxu0 0.0
        %4680 = vmatprep.subr.mxu0 0.0
        %4681 = vmatpush1.msra.mxu0 0.0
        %4682 = vmatprep.subr.mxu0 0.0
        %4683 = vmatpush1.msra.mxu0 0.0
        %4684 = vmatprep.subr.mxu0 0.0
        %4685 = vmatpush1.msra.mxu0 0.0
        %4686 = vmatprep.subr.mxu0 0.0
        %4687 = vmatpush1.msra.mxu0 0.0
        %4688 = vmatprep.subr.mxu0 0.0
        %4689 = vmatpush1.msra.mxu0 0.0
        %4690 = vmatprep.subr.mxu0 0.0
        %4691 = vmatpush1.msra.mxu0 0.0
        %4692 = vmatprep.subr.mxu0 0.0
        %4693 = vmatpush1.msra.mxu0 0.0
        %4694 = vmatprep.subr.mxu0 0.0
        %4695 = vmatpush1.msra.mxu0 0.0
        %4696 = vmatprep.subr.mxu0 0.0
        %4697 = vmatpush1.msra.mxu0 0.0
        %4698 = vmatprep.subr.mxu0 0.0
        %4699 = vmatpush1.msra.mxu0 0.0
        %4700 = vmatprep.subr.mxu0 0.0
        %4701 = vmatpush1.msra.mxu0 0.0
        %4702 = vmatprep.subr.mxu0 0.0
        %4703 = vmatpush1.msra.mxu0 0.0
        %4704 = vmatprep.subr.mxu0 0.0
        %4705 = vmatpush1.msra.mxu0 0.0
        %4706 = vmatprep.subr.mxu0 0.0
        %4707 = vmatpush1.msra.mxu0 0.0
        %4708 = vmatprep.subr.mxu0 0.0
        %4709 = vmatpush1.msra.mxu0 0.0
        %4710 = vmatprep.mubr.f32.mxu0 0.0
        %4711 = vmatmul.mubr.f32.gmra.mrb[0].mxu0 %v4644
        %v4712 = vpop.f32.mrb[0].mxu0
        %v4713 = vadd.f32 0.0, %v4712
        %v4714 = vpop.f32.mrb[0].mxu0
        %4715 = vdwg.mxu0
        %4716 = vrot.lane.b32.xlu0 %v4127, 48
        %v4717 = vpop.permute.xlu0 %4716
        %v4720 = vsel %vm1168, %v4639, 0
        %4722 = vmatprep.subr.mxu0 0.0
        %4723 = vmatpush1.msra.mxu0 %v4717
        %4724 = vmatprep.subr.mxu0 0.0
        %4725 = vmatpush1.msra.mxu0 0.0
        %4726 = vmatprep.subr.mxu0 0.0
        %4727 = vmatpush1.msra.mxu0 0.0
        %4728 = vmatprep.subr.mxu0 0.0
        %4729 = vmatpush1.msra.mxu0 0.0
        %4730 = vmatprep.subr.mxu0 0.0
        %4731 = vmatpush1.msra.mxu0 0.0
        %4732 = vmatprep.subr.mxu0 0.0
        %4733 = vmatpush1.msra.mxu0 0.0
        %4734 = vmatprep.subr.mxu0 0.0
        %4735 = vmatpush1.msra.mxu0 0.0
        %4736 = vmatprep.subr.mxu0 0.0
        %4737 = vmatpush1.msra.mxu0 0.0
        %4738 = vmatprep.subr.mxu0 0.0
        %4739 = vmatpush1.msra.mxu0 0.0
        %4740 = vmatprep.subr.mxu0 0.0
        %4741 = vmatpush1.msra.mxu0 0.0
        %4742 = vmatprep.subr.mxu0 0.0
        %4743 = vmatpush1.msra.mxu0 0.0
        %4744 = vmatprep.subr.mxu0 0.0
        %4745 = vmatpush1.msra.mxu0 0.0
        %4746 = vmatprep.subr.mxu0 0.0
        %4747 = vmatpush1.msra.mxu0 0.0
        %4748 = vmatprep.subr.mxu0 0.0
        %4749 = vmatpush1.msra.mxu0 0.0
        %4750 = vmatprep.subr.mxu0 0.0
        %4751 = vmatpush1.msra.mxu0 0.0
        %4752 = vmatprep.subr.mxu0 0.0
        %4753 = vmatpush1.msra.mxu0 0.0
        %4754 = vmatprep.subr.mxu0 0.0
        %4755 = vmatpush1.msra.mxu0 0.0
        %4756 = vmatprep.subr.mxu0 0.0
        %4757 = vmatpush1.msra.mxu0 0.0
        %4758 = vmatprep.subr.mxu0 0.0
        %4759 = vmatpush1.msra.mxu0 0.0
        %4760 = vmatprep.subr.mxu0 0.0
        %4761 = vmatpush1.msra.mxu0 0.0
        %4762 = vmatprep.subr.mxu0 0.0
        %4763 = vmatpush1.msra.mxu0 0.0
        %4764 = vmatprep.subr.mxu0 0.0
        %4765 = vmatpush1.msra.mxu0 0.0
        %4766 = vmatprep.subr.mxu0 0.0
        %4767 = vmatpush1.msra.mxu0 0.0
        %4768 = vmatprep.subr.mxu0 0.0
        %4769 = vmatpush1.msra.mxu0 0.0
        %4770 = vmatprep.subr.mxu0 0.0
        %4771 = vmatpush1.msra.mxu0 0.0
        %4772 = vmatprep.subr.mxu0 0.0
        %4773 = vmatpush1.msra.mxu0 0.0
        %4774 = vmatprep.subr.mxu0 0.0
        %4775 = vmatpush1.msra.mxu0 0.0
        %4776 = vmatprep.subr.mxu0 0.0
        %4777 = vmatpush1.msra.mxu0 0.0
        %4778 = vmatprep.subr.mxu0 0.0
        %4779 = vmatpush1.msra.mxu0 0.0
        %4780 = vmatprep.subr.mxu0 0.0
        %4781 = vmatpush1.msra.mxu0 0.0
        %4782 = vmatprep.subr.mxu0 0.0
        %4783 = vmatpush1.msra.mxu0 0.0
        %4784 = vmatprep.subr.mxu0 0.0
        %4785 = vmatpush1.msra.mxu0 0.0
        %4786 = vmatprep.mubr.f32.mxu0 0.0
        %4787 = vmatmul.mubr.f32.gmra.mrb[0].mxu0 %v4720
        %v4788 = vpop.f32.mrb[0].mxu0
        %v4789 = vadd.f32 0.0, %v4788
        %v4790 = vpop.f32.mrb[0].mxu0
        %4791 = vdwg.mxu0
        %v4792 = vpack.c.bf16 %v4789, %v4713
        %s4793 = scalar_lea.vmem %s7, 24
        %v4794 = vld [vmem:[%s4793] sm:$0xf]
        %v4795 = vld [vmem:[%s4793 + $0x4] sm:$0xf]
        %v4798 = vunpack.c.l.b16 %v4794
        %v4799 = vunpack.c.l.b16 %v4795
        %v4800 = vpack.c.b16 %v4799, %v4798
        %v4803 = vsel %vm1016, %v4792, 0
        %4805 = vmatprep.subr.bf16.mxu0 0
        %4806 = vmatpush1.bf16.msra.mxu0 %v4800
        %4807 = vmatprep.subr.bf16.mxu0 0
        %4808 = vmatpush1.bf16.msra.mxu0 0
        %4809 = vmatprep.subr.bf16.mxu0 0
        %4810 = vmatpush1.bf16.msra.mxu0 0
        %4811 = vmatprep.subr.bf16.mxu0 0
        %4812 = vmatpush1.bf16.msra.mxu0 0
        %4813 = vmatprep.subr.bf16.mxu0 0
        %4814 = vmatpush1.bf16.msra.mxu0 0
        %4815 = vmatprep.subr.bf16.mxu0 0
        %4816 = vmatpush1.bf16.msra.mxu0 0
        %4817 = vmatprep.subr.bf16.mxu0 0
        %4818 = vmatpush1.bf16.msra.mxu0 0
        %4819 = vmatprep.subr.bf16.mxu0 0
        %4820 = vmatpush1.bf16.msra.mxu0 0
        %4821 = vmatprep.subr.bf16.mxu0 0
        %4822 = vmatpush1.bf16.msra.mxu0 0
        %4823 = vmatprep.subr.bf16.mxu0 0
        %4824 = vmatpush1.bf16.msra.mxu0 0
        %4825 = vmatprep.subr.bf16.mxu0 0
        %4826 = vmatpush1.bf16.msra.mxu0 0
        %4827 = vmatprep.subr.bf16.mxu0 0
        %4828 = vmatpush1.bf16.msra.mxu0 0
        %4829 = vmatprep.subr.bf16.mxu0 0
        %4830 = vmatpush1.bf16.msra.mxu0 0
        %4831 = vmatprep.subr.bf16.mxu0 0
        %4832 = vmatpush1.bf16.msra.mxu0 0
        %4833 = vmatprep.subr.bf16.mxu0 0
        %4834 = vmatpush1.bf16.msra.mxu0 0
        %4835 = vmatprep.subr.bf16.mxu0 0
        %4836 = vmatpush1.bf16.msra.mxu0 0
        %4837 = vmatprep.mubr.bf16.mxu0 0
        %4838 = vmatmul.mubr.bf16.gmra.mrb[0].mxu0 %v4803
        %v4839 = vpop.f32.mrb[0].mxu0
        %v4840 = vadd.f32 0.0, %v4839
        %v4841 = vpop.f32.mrb[0].mxu0
        %v4842 = vpop.f32.mrb[0].mxu0
        %v4843 = vadd.f32 0.0, %v4842
        %v4844 = vpop.f32.mrb[0].mxu0
        %4845 = vdwg.mxu0
        %v4848 = vunpack.c.l.b16 %v4460
        %v4849 = vunpack.c.l.b16 %v4461
        %v4850 = vpack.c.b16 %v4849, %v4848
        %v4853 = vsel %vm1016, %v4458, 0
        %4855 = vmatprep.subr.bf16.mxu0 0
        %4856 = vmatpush1.bf16.msra.mxu0 %v4850
        %4857 = vmatprep.subr.bf16.mxu0 0
        %4858 = vmatpush1.bf16.msra.mxu0 0
        %4859 = vmatprep.subr.bf16.mxu0 0
        %4860 = vmatpush1.bf16.msra.mxu0 0
        %4861 = vmatprep.subr.bf16.mxu0 0
        %4862 = vmatpush1.bf16.msra.mxu0 0
        %4863 = vmatprep.subr.bf16.mxu0 0
        %4864 = vmatpush1.bf16.msra.mxu0 0
        %4865 = vmatprep.subr.bf16.mxu0 0
        %4866 = vmatpush1.bf16.msra.mxu0 0
        %4867 = vmatprep.subr.bf16.mxu0 0
        %4868 = vmatpush1.bf16.msra.mxu0 0
        %4869 = vmatprep.subr.bf16.mxu0 0
        %4870 = vmatpush1.bf16.msra.mxu0 0
        %4871 = vmatprep.subr.bf16.mxu0 0
        %4872 = vmatpush1.bf16.msra.mxu0 0
        %4873 = vmatprep.subr.bf16.mxu0 0
        %4874 = vmatpush1.bf16.msra.mxu0 0
        %4875 = vmatprep.subr.bf16.mxu0 0
        %4876 = vmatpush1.bf16.msra.mxu0 0
        %4877 = vmatprep.subr.bf16.mxu0 0
        %4878 = vmatpush1.bf16.msra.mxu0 0
        %4879 = vmatprep.subr.bf16.mxu0 0
        %4880 = vmatpush1.bf16.msra.mxu0 0
        %4881 = vmatprep.subr.bf16.mxu0 0
        %4882 = vmatpush1.bf16.msra.mxu0 0
        %4883 = vmatprep.subr.bf16.mxu0 0
        %4884 = vmatpush1.bf16.msra.mxu0 0
        %4885 = vmatprep.subr.bf16.mxu0 0
        %4886 = vmatpush1.bf16.msra.mxu0 0
        %4887 = vmatprep.mubr.bf16.mxu0 0
        %4888 = vmatmul.mubr.bf16.gmra.mrb[0].mxu0 %v4853
        %v4889 = vpop.f32.mrb[0].mxu0
        %v4890 = vadd.f32 %v4840, %v4889
        %v4891 = vpop.f32.mrb[0].mxu0
        %v4892 = vpop.f32.mrb[0].mxu0
        %v4893 = vadd.f32 %v4843, %v4892
        %v4894 = vpop.f32.mrb[0].mxu0
        %4895 = vdwg.mxu0
        %s4896 = scalar_lea.vmem %s8, 1
        %v4897 = vld [vmem:[%s4896] sm:$0x1]
        %v4899 = vlaneseq
        %v4900 = vshrl.u32 %v4899, 7
        %v4901 = vsub.s32 0, %v4900
        %v4902 = vrot.slane %v4897, %v4901
        %v4904 = vadd.f32 %v4890, %v4902
        %v4905 = vadd.f32 %v4893, %v4902
        %v4906 = vadd.f32 %v4058, %v4904
        %v4907 = vadd.f32 %v4059, %v4905
        %v4908 = vsel %vm935, %v4906, 0.0
        %4909 = vadd.xlane.f32.xlu0 %v4908
        %v4910 = vpop.xlane.xlu0 %4909
        %v4911 = vsel %vm935, %v4907, 0.0
        %4912 = vadd.xlane.f32.xlu0 %v4911
        %v4913 = vpop.xlane.xlu0 %4912
        %v4914 = vmul.f32 %v4910, %v1797
        %v4915 = vmul.f32 %v4913, %v1797
        %v4916 = vsub.f32 %v4906, %v4914
        %v4917 = vsub.f32 %v4907, %v4915
        %v4918 = vmul.f32 %v4916, %v4916
        %v4919 = vmul.f32 %v4917, %v4917
        %v4920 = vsel %vm935, %v4918, 0.0
        %4921 = vadd.xlane.f32.xlu0 %v4920
        %v4922 = vpop.xlane.xlu0 %4921
        %v4923 = vsel %vm935, %v4919, 0.0
        %4924 = vadd.xlane.f32.xlu0 %v4923
        %v4925 = vpop.xlane.xlu0 %4924
        %v4926 = vmul.f32 %v4922, %v1797
        %v4927 = vmul.f32 %v4925, %v1797
        %v4928 = vadd.f32 %v4926, 1e-05
        %v4929 = vadd.f32 %v4927, 1e-05
        %v4930 = vrsqrt.pop %v4928
        %v4931 = vrsqrt.pop %v4929
        %v4932 = vmul.f32 %v4916, %v4930
        %v4933 = vmul.f32 %v4917, %v4931
        %s4934 = scalar_lea.vmem %s9, 1
        %v4935 = vld [vmem:[%s4934] sm:$0x1]
        %v4937 = vlaneseq
        %v4938 = vshrl.u32 %v4937, 7
        %v4939 = vsub.s32 0, %v4938
        %v4940 = vrot.slane %v4935, %v4939
        %v4942 = vmul.f32 %v4932, %v4940
        %v4943 = vmul.f32 %v4933, %v4940
        %s4944 = scalar_lea.vmem %s10, 1
        %v4945 = vld [vmem:[%s4944] sm:$0x1]
        %v4947 = vlaneseq
        %v4948 = vshrl.u32 %v4947, 7
        %v4949 = vsub.s32 0, %v4948
        %v4950 = vrot.slane %v4945, %v4949
        %v4952 = vadd.f32 %v4942, %v4950
        %v4953 = vadd.f32 %v4943, %v4950
        %v4954 = vpack.c.bf16 %v4953, %v4952
        %s4955 = sadd.s32 0, 64
        %s4956 = smul.addr %s4955, 4
        %s4957 = scalar_lea.vmem %s13, %s4956
        %v4958 = vld [vmem:[%s4957] sm:$0xff]
        %v4959 = vld [vmem:[%s4957 + $0x8] sm:$0xff]
        %v4960 = vld [vmem:[%s4957 + $0x40] sm:$0xff]
        %v4961 = vld [vmem:[%s4957 + $0x48] sm:$0xff]
        %v4962 = vld [vmem:[%s4957 + $0x80] sm:$0xff]
        %v4963 = vld [vmem:[%s4957 + $0x88] sm:$0xff]
        %v4964 = vld [vmem:[%s4957 + $0xc0] sm:$0xff]
        %v4965 = vld [vmem:[%s4957 + $0xc8] sm:$0xff]
        %v4974 = vunpack.c.l.b16 %v4958
        %v4975 = vunpack.c.h.b16 %v4958
        %v4976 = vunpack.c.l.b16 %v4959
        %v4977 = vunpack.c.h.b16 %v4959
        %v4978 = vunpack.c.l.b16 %v4960
        %v4979 = vunpack.c.h.b16 %v4960
        %v4980 = vunpack.c.l.b16 %v4961
        %v4981 = vunpack.c.h.b16 %v4961
        %v4982 = vunpack.c.l.b16 %v4962
        %v4983 = vunpack.c.h.b16 %v4962
        %v4984 = vunpack.c.l.b16 %v4963
        %v4985 = vunpack.c.h.b16 %v4963
        %v4986 = vunpack.c.l.b16 %v4964
        %v4987 = vunpack.c.h.b16 %v4964
        %v4988 = vunpack.c.l.b16 %v4965
        %v4989 = vunpack.c.h.b16 %v4965
        %v4990 = vpack.c.b16 %v4978, %v4974
        %v4991 = vpack.c.b16 %v4979, %v4975
        %v4992 = vpack.c.b16 %v4980, %v4976
        %v4993 = vpack.c.b16 %v4981, %v4977
        %v4994 = vpack.c.b16 %v4986, %v4982
        %v4995 = vpack.c.b16 %v4987, %v4983
        %v4996 = vpack.c.b16 %v4988, %v4984
        %v4997 = vpack.c.b16 %v4989, %v4985
        %v5007 = vsel %vm935, %v4954, 0
        %5009 = vmatprep.subr.bf16.mxu0 %v4991
        %5010 = vmatpush1.bf16.msra.mxu0 %v4990
        %5011 = vmatprep.subr.bf16.mxu0 %v4995
        %5012 = vmatpush1.bf16.msra.mxu0 %v4994
        %5013 = vmatprep.subr.bf16.mxu0 0
        %5014 = vmatpush1.bf16.msra.mxu0 0
        %5015 = vmatprep.subr.bf16.mxu0 0
        %5016 = vmatpush1.bf16.msra.mxu0 0
        %5017 = vmatprep.subr.bf16.mxu0 0
        %5018 = vmatpush1.bf16.msra.mxu0 0
        %5019 = vmatprep.subr.bf16.mxu0 0
        %5020 = vmatpush1.bf16.msra.mxu0 0
        %5021 = vmatprep.subr.bf16.mxu0 0
        %5022 = vmatpush1.bf16.msra.mxu0 0
        %5023 = vmatprep.subr.bf16.mxu0 0
        %5024 = vmatpush1.bf16.msra.mxu0 0
        %5025 = vmatprep.subr.bf16.mxu0 0
        %5026 = vmatpush1.bf16.msra.mxu0 0
        %5027 = vmatprep.subr.bf16.mxu0 0
        %5028 = vmatpush1.bf16.msra.mxu0 0
        %5029 = vmatprep.subr.bf16.mxu0 0
        %5030 = vmatpush1.bf16.msra.mxu0 0
        %5031 = vmatprep.subr.bf16.mxu0 0
        %5032 = vmatpush1.bf16.msra.mxu0 0
        %5033 = vmatprep.subr.bf16.mxu0 0
        %5034 = vmatpush1.bf16.msra.mxu0 0
        %5035 = vmatprep.subr.bf16.mxu0 0
        %5036 = vmatpush1.bf16.msra.mxu0 0
        %5037 = vmatprep.subr.bf16.mxu0 0
        %5038 = vmatpush1.bf16.msra.mxu0 0
        %5039 = vmatprep.subr.bf16.mxu0 0
        %5040 = vmatpush1.bf16.msra.mxu0 0
        %5041 = vmatprep.mubr.bf16.mxu0 0
        %5042 = vmatmul.mubr.bf16.gmra.mrb[0].mxu0 %v5007
        %v5043 = vpop.f32.mrb[0].mxu0
        %v5044 = vadd.f32 0.0, %v5043
        %v5045 = vpop.f32.mrb[0].mxu0
        %v5046 = vadd.f32 0.0, %v5045
        %v5047 = vpop.f32.mrb[0].mxu0
        %v5048 = vadd.f32 0.0, %v5047
        %v5049 = vpop.f32.mrb[0].mxu0
        %v5050 = vadd.f32 0.0, %v5049
        %5051 = vdwg.mxu0
        %5052 = vmatprep.subr.bf16.mxu0 %v4993
        %5053 = vmatpush1.bf16.msra.mxu0 %v4992
        %5054 = vmatprep.subr.bf16.mxu0 %v4997
        %5055 = vmatpush1.bf16.msra.mxu0 %v4996
        %5056 = vmatprep.subr.bf16.mxu0 0
        %5057 = vmatpush1.bf16.msra.mxu0 0
        %5058 = vmatprep.subr.bf16.mxu0 0
        %5059 = vmatpush1.bf16.msra.mxu0 0
        %5060 = vmatprep.subr.bf16.mxu0 0
        %5061 = vmatpush1.bf16.msra.mxu0 0
        %5062 = vmatprep.subr.bf16.mxu0 0
        %5063 = vmatpush1.bf16.msra.mxu0 0
        %5064 = vmatprep.subr.bf16.mxu0 0
        %5065 = vmatpush1.bf16.msra.mxu0 0
        %5066 = vmatprep.subr.bf16.mxu0 0
        %5067 = vmatpush1.bf16.msra.mxu0 0
        %5068 = vmatprep.subr.bf16.mxu0 0
        %5069 = vmatpush1.bf16.msra.mxu0 0
        %5070 = vmatprep.subr.bf16.mxu0 0
        %5071 = vmatpush1.bf16.msra.mxu0 0
        %5072 = vmatprep.subr.bf16.mxu0 0
        %5073 = vmatpush1.bf16.msra.mxu0 0
        %5074 = vmatprep.subr.bf16.mxu0 0
        %5075 = vmatpush1.bf16.msra.mxu0 0
        %5076 = vmatprep.subr.bf16.mxu0 0
        %5077 = vmatpush1.bf16.msra.mxu0 0
        %5078 = vmatprep.subr.bf16.mxu0 0
        %5079 = vmatpush1.bf16.msra.mxu0 0
        %5080 = vmatprep.subr.bf16.mxu0 0
        %5081 = vmatpush1.bf16.msra.mxu0 0
        %5082 = vmatprep.subr.bf16.mxu0 0
        %5083 = vmatpush1.bf16.msra.mxu0 0
        %5084 = vmatprep.mubr.bf16.mxu0 0
        %5085 = vmatmul.mubr.bf16.gmra.mrb[0].mxu0 %v5007
        %v5086 = vpop.f32.mrb[0].mxu0
        %v5087 = vadd.f32 0.0, %v5086
        %v5088 = vpop.f32.mrb[0].mxu0
        %v5089 = vadd.f32 0.0, %v5088
        %v5090 = vpop.f32.mrb[0].mxu0
        %v5091 = vadd.f32 0.0, %v5090
        %v5092 = vpop.f32.mrb[0].mxu0
        %v5093 = vadd.f32 0.0, %v5092
        %5094 = vdwg.mxu0
        %v5095 = vpack.c.bf16 %v5048, %v5044
        %v5096 = vpack.c.bf16 %v5050, %v5046
        %v5097 = vpack.c.bf16 %v5091, %v5087
        %v5098 = vpack.c.bf16 %v5093, %v5089
        %s5099 = sadd.s32 0, 16
        %s5100 = scalar_lea.vmem %s14, %s5099
        %v5101 = vld [vmem:[%s5100] sm:$0xf]
        %v5103 = vlaneseq
        %v5104 = vshrl.u32 %v5103, 7
        %v5105 = vsub.s32 0, %v5104
        %v5106 = vrot.slane %v5101, %v5105
        %v5107 = vlaneseq
        %v5108 = vshrl.u32 %v5107, 7
        %v5109 = vsub.s32 1, %v5108
        %v5110 = vrot.slane %v5101, %v5109
        %v5111 = vlaneseq
        %v5112 = vshrl.u32 %v5111, 7
        %v5113 = vsub.s32 2, %v5112
        %v5114 = vrot.slane %v5101, %v5113
        %v5115 = vlaneseq
        %v5116 = vshrl.u32 %v5115, 7
        %v5117 = vsub.s32 3, %v5116
        %v5118 = vrot.slane %v5101, %v5117
        %v5123 = vpack.c.bf16 %v5106, %v5106
        %v5124 = vpack.c.bf16 %v5110, %v5110
        %v5125 = vpack.c.bf16 %v5114, %v5114
        %v5126 = vpack.c.bf16 %v5118, %v5118
        %v5128 = vpack.i.b16 %v5123, %v5123
        %v5130 = vlaneseq
        %v5131 = vshrl.u32 %v5130, 7
        %v5132 = vsub.s32 0, %v5131
        %v5133 = vrot.slane %v5128, %v5132
        %v5135 = vpack.i.b16 %v5124, %v5124
        %v5137 = vlaneseq
        %v5138 = vshrl.u32 %v5137, 7
        %v5139 = vsub.s32 0, %v5138
        %v5140 = vrot.slane %v5135, %v5139
        %v5142 = vpack.i.b16 %v5125, %v5125
        %v5144 = vlaneseq
        %v5145 = vshrl.u32 %v5144, 7
        %v5146 = vsub.s32 0, %v5145
        %v5147 = vrot.slane %v5142, %v5146
        %v5149 = vpack.i.b16 %v5126, %v5126
        %v5151 = vlaneseq
        %v5152 = vshrl.u32 %v5151, 7
        %v5153 = vsub.s32 0, %v5152
        %v5154 = vrot.slane %v5149, %v5153
        %v5155 = vadd.bf16 %v5095, %v5133
        %v5156 = vadd.bf16 %v5096, %v5140
        %v5157 = vadd.bf16 %v5097, %v5147
        %v5158 = vadd.bf16 %v5098, %v5154
        %v5159 = vmax.bf16 %v5155, 0
        %v5160 = vmax.bf16 %v5156, 0
        %v5161 = vmax.bf16 %v5157, 0
        %v5162 = vmax.bf16 %v5158, 0
        %s5163 = sadd.s32 0, 256
        %s5164 = smul.addr %s5163, 4
        %s5165 = scalar_lea.vmem %s15, %s5164
        %v5166 = vld [vmem:[%s5165] sm:$0xf]
        %v5167 = vld [vmem:[%s5165 + $0x4] sm:$0xf]
        %v5168 = vld [vmem:[%s5165 + $0x8] sm:$0xf]
        %v5169 = vld [vmem:[%s5165 + $0xc] sm:$0xf]
        %v5170 = vld [vmem:[%s5165 + $0x10] sm:$0xf]
        %v5171 = vld [vmem:[%s5165 + $0x14] sm:$0xf]
        %v5172 = vld [vmem:[%s5165 + $0x18] sm:$0xf]
        %v5173 = vld [vmem:[%s5165 + $0x1c] sm:$0xf]
        %v5174 = vld [vmem:[%s5165 + $0x20] sm:$0xf]
        %v5175 = vld [vmem:[%s5165 + $0x24] sm:$0xf]
        %v5176 = vld [vmem:[%s5165 + $0x28] sm:$0xf]
        %v5177 = vld [vmem:[%s5165 + $0x2c] sm:$0xf]
        %v5178 = vld [vmem:[%s5165 + $0x30] sm:$0xf]
        %v5179 = vld [vmem:[%s5165 + $0x34] sm:$0xf]
        %v5180 = vld [vmem:[%s5165 + $0x38] sm:$0xf]
        %v5181 = vld [vmem:[%s5165 + $0x3c] sm:$0xf]
        %v5182 = vld [vmem:[%s5165 + $0x40] sm:$0xf]
        %v5183 = vld [vmem:[%s5165 + $0x44] sm:$0xf]
        %v5184 = vld [vmem:[%s5165 + $0x48] sm:$0xf]
        %v5185 = vld [vmem:[%s5165 + $0x4c] sm:$0xf]
        %v5186 = vld [vmem:[%s5165 + $0x50] sm:$0xf]
        %v5187 = vld [vmem:[%s5165 + $0x54] sm:$0xf]
        %v5188 = vld [vmem:[%s5165 + $0x58] sm:$0xf]
        %v5189 = vld [vmem:[%s5165 + $0x5c] sm:$0xf]
        %v5190 = vld [vmem:[%s5165 + $0x60] sm:$0xf]
        %v5191 = vld [vmem:[%s5165 + $0x64] sm:$0xf]
        %v5192 = vld [vmem:[%s5165 + $0x68] sm:$0xf]
        %v5193 = vld [vmem:[%s5165 + $0x6c] sm:$0xf]
        %v5194 = vld [vmem:[%s5165 + $0x70] sm:$0xf]
        %v5195 = vld [vmem:[%s5165 + $0x74] sm:$0xf]
        %v5196 = vld [vmem:[%s5165 + $0x78] sm:$0xf]
        %v5197 = vld [vmem:[%s5165 + $0x7c] sm:$0xf]
        %v5198 = vld [vmem:[%s5165 + $0x80] sm:$0xf]
        %v5199 = vld [vmem:[%s5165 + $0x84] sm:$0xf]
        %v5200 = vld [vmem:[%s5165 + $0x88] sm:$0xf]
        %v5201 = vld [vmem:[%s5165 + $0x8c] sm:$0xf]
        %v5202 = vld [vmem:[%s5165 + $0x90] sm:$0xf]
        %v5203 = vld [vmem:[%s5165 + $0x94] sm:$0xf]
        %v5204 = vld [vmem:[%s5165 + $0x98] sm:$0xf]
        %v5205 = vld [vmem:[%s5165 + $0x9c] sm:$0xf]
        %v5206 = vld [vmem:[%s5165 + $0xa0] sm:$0xf]
        %v5207 = vld [vmem:[%s5165 + $0xa4] sm:$0xf]
        %v5208 = vld [vmem:[%s5165 + $0xa8] sm:$0xf]
        %v5209 = vld [vmem:[%s5165 + $0xac] sm:$0xf]
        %v5210 = vld [vmem:[%s5165 + $0xb0] sm:$0xf]
        %v5211 = vld [vmem:[%s5165 + $0xb4] sm:$0xf]
        %v5212 = vld [vmem:[%s5165 + $0xb8] sm:$0xf]
        %v5213 = vld [vmem:[%s5165 + $0xbc] sm:$0xf]
        %v5214 = vld [vmem:[%s5165 + $0xc0] sm:$0xf]
        %v5215 = vld [vmem:[%s5165 + $0xc4] sm:$0xf]
        %v5216 = vld [vmem:[%s5165 + $0xc8] sm:$0xf]
        %v5217 = vld [vmem:[%s5165 + $0xcc] sm:$0xf]
        %v5218 = vld [vmem:[%s5165 + $0xd0] sm:$0xf]
        %v5219 = vld [vmem:[%s5165 + $0xd4] sm:$0xf]
        %v5220 = vld [vmem:[%s5165 + $0xd8] sm:$0xf]
        %v5221 = vld [vmem:[%s5165 + $0xdc] sm:$0xf]
        %v5222 = vld [vmem:[%s5165 + $0xe0] sm:$0xf]
        %v5223 = vld [vmem:[%s5165 + $0xe4] sm:$0xf]
        %v5224 = vld [vmem:[%s5165 + $0xe8] sm:$0xf]
        %v5225 = vld [vmem:[%s5165 + $0xec] sm:$0xf]
        %v5226 = vld [vmem:[%s5165 + $0xf0] sm:$0xf]
        %v5227 = vld [vmem:[%s5165 + $0xf4] sm:$0xf]
        %v5228 = vld [vmem:[%s5165 + $0xf8] sm:$0xf]
        %v5229 = vld [vmem:[%s5165 + $0xfc] sm:$0xf]
        %s5230 = sadd.s32 4, 64
        %s5231 = smul.addr %s5230, 4
        %s5232 = scalar_lea.vmem %s13, %s5231
        %v5233 = vld [vmem:[%s5232] sm:$0xff]
        %v5234 = vld [vmem:[%s5232 + $0x8] sm:$0xff]
        %v5235 = vld [vmem:[%s5232 + $0x40] sm:$0xff]
        %v5236 = vld [vmem:[%s5232 + $0x48] sm:$0xff]
        %v5237 = vld [vmem:[%s5232 + $0x80] sm:$0xff]
        %v5238 = vld [vmem:[%s5232 + $0x88] sm:$0xff]
        %v5239 = vld [vmem:[%s5232 + $0xc0] sm:$0xff]
        %v5240 = vld [vmem:[%s5232 + $0xc8] sm:$0xff]
        %v5249 = vunpack.c.l.b16 %v5233
        %v5250 = vunpack.c.h.b16 %v5233
        %v5251 = vunpack.c.l.b16 %v5234
        %v5252 = vunpack.c.h.b16 %v5234
        %v5253 = vunpack.c.l.b16 %v5235
        %v5254 = vunpack.c.h.b16 %v5235
        %v5255 = vunpack.c.l.b16 %v5236
        %v5256 = vunpack.c.h.b16 %v5236
        %v5257 = vunpack.c.l.b16 %v5237
        %v5258 = vunpack.c.h.b16 %v5237
        %v5259 = vunpack.c.l.b16 %v5238
        %v5260 = vunpack.c.h.b16 %v5238
        %v5261 = vunpack.c.l.b16 %v5239
        %v5262 = vunpack.c.h.b16 %v5239
        %v5263 = vunpack.c.l.b16 %v5240
        %v5264 = vunpack.c.h.b16 %v5240
        %v5265 = vpack.c.b16 %v5253, %v5249
        %v5266 = vpack.c.b16 %v5254, %v5250
        %v5267 = vpack.c.b16 %v5255, %v5251
        %v5268 = vpack.c.b16 %v5256, %v5252
        %v5269 = vpack.c.b16 %v5261, %v5257
        %v5270 = vpack.c.b16 %v5262, %v5258
        %v5271 = vpack.c.b16 %v5263, %v5259
        %v5272 = vpack.c.b16 %v5264, %v5260
        %5281 = vmatprep.subr.bf16.mxu0 %v5266
        %5282 = vmatpush1.bf16.msra.mxu0 %v5265
        %5283 = vmatprep.subr.bf16.mxu0 %v5270
        %5284 = vmatpush1.bf16.msra.mxu0 %v5269
        %5285 = vmatprep.subr.bf16.mxu0 0
        %5286 = vmatpush1.bf16.msra.mxu0 0
        %5287 = vmatprep.subr.bf16.mxu0 0
        %5288 = vmatpush1.bf16.msra.mxu0 0
        %5289 = vmatprep.subr.bf16.mxu0 0
        %5290 = vmatpush1.bf16.msra.mxu0 0
        %5291 = vmatprep.subr.bf16.mxu0 0
        %5292 = vmatpush1.bf16.msra.mxu0 0
        %5293 = vmatprep.subr.bf16.mxu0 0
        %5294 = vmatpush1.bf16.msra.mxu0 0
        %5295 = vmatprep.subr.bf16.mxu0 0
        %5296 = vmatpush1.bf16.msra.mxu0 0
        %5297 = vmatprep.subr.bf16.mxu0 0
        %5298 = vmatpush1.bf16.msra.mxu0 0
        %5299 = vmatprep.subr.bf16.mxu0 0
        %5300 = vmatpush1.bf16.msra.mxu0 0
        %5301 = vmatprep.subr.bf16.mxu0 0
        %5302 = vmatpush1.bf16.msra.mxu0 0
        %5303 = vmatprep.subr.bf16.mxu0 0
        %5304 = vmatpush1.bf16.msra.mxu0 0
        %5305 = vmatprep.subr.bf16.mxu0 0
        %5306 = vmatpush1.bf16.msra.mxu0 0
        %5307 = vmatprep.subr.bf16.mxu0 0
        %5308 = vmatpush1.bf16.msra.mxu0 0
        %5309 = vmatprep.subr.bf16.mxu0 0
        %5310 = vmatpush1.bf16.msra.mxu0 0
        %5311 = vmatprep.subr.bf16.mxu0 0
        %5312 = vmatpush1.bf16.msra.mxu0 0
        %5313 = vmatprep.mubr.bf16.mxu0 0
        %5314 = vmatmul.mubr.bf16.gmra.mrb[0].mxu0 %v5007
        %v5315 = vpop.f32.mrb[0].mxu0
        %v5316 = vadd.f32 0.0, %v5315
        %v5317 = vpop.f32.mrb[0].mxu0
        %v5318 = vadd.f32 0.0, %v5317
        %v5319 = vpop.f32.mrb[0].mxu0
        %v5320 = vadd.f32 0.0, %v5319
        %v5321 = vpop.f32.mrb[0].mxu0
        %v5322 = vadd.f32 0.0, %v5321
        %5323 = vdwg.mxu0
        %5324 = vmatprep.subr.bf16.mxu0 %v5268
        %5325 = vmatpush1.bf16.msra.mxu0 %v5267
        %5326 = vmatprep.subr.bf16.mxu0 %v5272
        %5327 = vmatpush1.bf16.msra.mxu0 %v5271
        %5328 = vmatprep.subr.bf16.mxu0 0
        %5329 = vmatpush1.bf16.msra.mxu0 0
        %5330 = vmatprep.subr.bf16.mxu0 0
        %5331 = vmatpush1.bf16.msra.mxu0 0
        %5332 = vmatprep.subr.bf16.mxu0 0
        %5333 = vmatpush1.bf16.msra.mxu0 0
        %5334 = vmatprep.subr.bf16.mxu0 0
        %5335 = vmatpush1.bf16.msra.mxu0 0
        %5336 = vmatprep.subr.bf16.mxu0 0
        %5337 = vmatpush1.bf16.msra.mxu0 0
        %5338 = vmatprep.subr.bf16.mxu0 0
        %5339 = vmatpush1.bf16.msra.mxu0 0
        %5340 = vmatprep.subr.bf16.mxu0 0
        %5341 = vmatpush1.bf16.msra.mxu0 0
        %5342 = vmatprep.subr.bf16.mxu0 0
        %5343 = vmatpush1.bf16.msra.mxu0 0
        %5344 = vmatprep.subr.bf16.mxu0 0
        %5345 = vmatpush1.bf16.msra.mxu0 0
        %5346 = vmatprep.subr.bf16.mxu0 0
        %5347 = vmatpush1.bf16.msra.mxu0 0
        %5348 = vmatprep.subr.bf16.mxu0 0
        %5349 = vmatpush1.bf16.msra.mxu0 0
        %5350 = vmatprep.subr.bf16.mxu0 0
        %5351 = vmatpush1.bf16.msra.mxu0 0
        %5352 = vmatprep.subr.bf16.mxu0 0
        %5353 = vmatpush1.bf16.msra.mxu0 0
        %5354 = vmatprep.subr.bf16.mxu0 0
        %5355 = vmatpush1.bf16.msra.mxu0 0
        %5356 = vmatprep.mubr.bf16.mxu0 0
        %5357 = vmatmul.mubr.bf16.gmra.mrb[0].mxu0 %v5007
        %v5358 = vpop.f32.mrb[0].mxu0
        %v5359 = vadd.f32 0.0, %v5358
        %v5360 = vpop.f32.mrb[0].mxu0
        %v5361 = vadd.f32 0.0, %v5360
        %v5362 = vpop.f32.mrb[0].mxu0
        %v5363 = vadd.f32 0.0, %v5362
        %v5364 = vpop.f32.mrb[0].mxu0
        %v5365 = vadd.f32 0.0, %v5364
        %5366 = vdwg.mxu0
        %v5367 = vpack.c.bf16 %v5320, %v5316
        %v5368 = vpack.c.bf16 %v5322, %v5318
        %v5369 = vpack.c.bf16 %v5363, %v5359
        %v5370 = vpack.c.bf16 %v5365, %v5361
        %s5371 = sadd.s32 4, 16
        %s5372 = scalar_lea.vmem %s14, %s5371
        %v5373 = vld [vmem:[%s5372] sm:$0xf]
        %v5375 = vlaneseq
        %v5376 = vshrl.u32 %v5375, 7
        %v5377 = vsub.s32 0, %v5376
        %v5378 = vrot.slane %v5373, %v5377
        %v5379 = vlaneseq
        %v5380 = vshrl.u32 %v5379, 7
        %v5381 = vsub.s32 1, %v5380
        %v5382 = vrot.slane %v5373, %v5381
        %v5383 = vlaneseq
        %v5384 = vshrl.u32 %v5383, 7
        %v5385 = vsub.s32 2, %v5384
        %v5386 = vrot.slane %v5373, %v5385
        %v5387 = vlaneseq
        %v5388 = vshrl.u32 %v5387, 7
        %v5389 = vsub.s32 3, %v5388
        %v5390 = vrot.slane %v5373, %v5389
        %v5395 = vpack.c.bf16 %v5378, %v5378
        %v5396 = vpack.c.bf16 %v5382, %v5382
        %v5397 = vpack.c.bf16 %v5386, %v5386
        %v5398 = vpack.c.bf16 %v5390, %v5390
        %v5400 = vpack.i.b16 %v5395, %v5395
        %v5402 = vlaneseq
        %v5403 = vshrl.u32 %v5402, 7
        %v5404 = vsub.s32 0, %v5403
        %v5405 = vrot.slane %v5400, %v5404
        %v5407 = vpack.i.b16 %v5396, %v5396
        %v5409 = vlaneseq
        %v5410 = vshrl.u32 %v5409, 7
        %v5411 = vsub.s32 0, %v5410
        %v5412 = vrot.slane %v5407, %v5411
        %v5414 = vpack.i.b16 %v5397, %v5397
        %v5416 = vlaneseq
        %v5417 = vshrl.u32 %v5416, 7
        %v5418 = vsub.s32 0, %v5417
        %v5419 = vrot.slane %v5414, %v5418
        %v5421 = vpack.i.b16 %v5398, %v5398
        %v5423 = vlaneseq
        %v5424 = vshrl.u32 %v5423, 7
        %v5425 = vsub.s32 0, %v5424
        %v5426 = vrot.slane %v5421, %v5425
        %v5427 = vadd.bf16 %v5367, %v5405
        %v5428 = vadd.bf16 %v5368, %v5412
        %v5429 = vadd.bf16 %v5369, %v5419
        %v5430 = vadd.bf16 %v5370, %v5426
        %v5431 = vmax.bf16 %v5427, 0
        %v5432 = vmax.bf16 %v5428, 0
        %v5433 = vmax.bf16 %v5429, 0
        %v5434 = vmax.bf16 %v5430, 0
        %s5435 = sadd.s32 64, 256
        %s5436 = smul.addr %s5435, 4
        %s5437 = scalar_lea.vmem %s15, %s5436
        %v5438 = vld [vmem:[%s5437] sm:$0xf]
        %v5439 = vld [vmem:[%s5437 + $0x4] sm:$0xf]
        %v5440 = vld [vmem:[%s5437 + $0x8] sm:$0xf]
        %v5441 = vld [vmem:[%s5437 + $0xc] sm:$0xf]
        %v5442 = vld [vmem:[%s5437 + $0x10] sm:$0xf]
        %v5443 = vld [vmem:[%s5437 + $0x14] sm:$0xf]
        %v5444 = vld [vmem:[%s5437 + $0x18] sm:$0xf]
        %v5445 = vld [vmem:[%s5437 + $0x1c] sm:$0xf]
        %v5446 = vld [vmem:[%s5437 + $0x20] sm:$0xf]
        %v5447 = vld [vmem:[%s5437 + $0x24] sm:$0xf]
        %v5448 = vld [vmem:[%s5437 + $0x28] sm:$0xf]
        %v5449 = vld [vmem:[%s5437 + $0x2c] sm:$0xf]
        %v5450 = vld [vmem:[%s5437 + $0x30] sm:$0xf]
        %v5451 = vld [vmem:[%s5437 + $0x34] sm:$0xf]
        %v5452 = vld [vmem:[%s5437 + $0x38] sm:$0xf]
        %v5453 = vld [vmem:[%s5437 + $0x3c] sm:$0xf]
        %v5454 = vld [vmem:[%s5437 + $0x40] sm:$0xf]
        %v5455 = vld [vmem:[%s5437 + $0x44] sm:$0xf]
        %v5456 = vld [vmem:[%s5437 + $0x48] sm:$0xf]
        %v5457 = vld [vmem:[%s5437 + $0x4c] sm:$0xf]
        %v5458 = vld [vmem:[%s5437 + $0x50] sm:$0xf]
        %v5459 = vld [vmem:[%s5437 + $0x54] sm:$0xf]
        %v5460 = vld [vmem:[%s5437 + $0x58] sm:$0xf]
        %v5461 = vld [vmem:[%s5437 + $0x5c] sm:$0xf]
        %v5462 = vld [vmem:[%s5437 + $0x60] sm:$0xf]
        %v5463 = vld [vmem:[%s5437 + $0x64] sm:$0xf]
        %v5464 = vld [vmem:[%s5437 + $0x68] sm:$0xf]
        %v5465 = vld [vmem:[%s5437 + $0x6c] sm:$0xf]
        %v5466 = vld [vmem:[%s5437 + $0x70] sm:$0xf]
        %v5467 = vld [vmem:[%s5437 + $0x74] sm:$0xf]
        %v5468 = vld [vmem:[%s5437 + $0x78] sm:$0xf]
        %v5469 = vld [vmem:[%s5437 + $0x7c] sm:$0xf]
        %v5470 = vld [vmem:[%s5437 + $0x80] sm:$0xf]
        %v5471 = vld [vmem:[%s5437 + $0x84] sm:$0xf]
        %v5472 = vld [vmem:[%s5437 + $0x88] sm:$0xf]
        %v5473 = vld [vmem:[%s5437 + $0x8c] sm:$0xf]
        %v5474 = vld [vmem:[%s5437 + $0x90] sm:$0xf]
        %v5475 = vld [vmem:[%s5437 + $0x94] sm:$0xf]
        %v5476 = vld [vmem:[%s5437 + $0x98] sm:$0xf]
        %v5477 = vld [vmem:[%s5437 + $0x9c] sm:$0xf]
        %v5478 = vld [vmem:[%s5437 + $0xa0] sm:$0xf]
        %v5479 = vld [vmem:[%s5437 + $0xa4] sm:$0xf]
        %v5480 = vld [vmem:[%s5437 + $0xa8] sm:$0xf]
        %v5481 = vld [vmem:[%s5437 + $0xac] sm:$0xf]
        %v5482 = vld [vmem:[%s5437 + $0xb0] sm:$0xf]
        %v5483 = vld [vmem:[%s5437 + $0xb4] sm:$0xf]
        %v5484 = vld [vmem:[%s5437 + $0xb8] sm:$0xf]
        %v5485 = vld [vmem:[%s5437 + $0xbc] sm:$0xf]
        %v5486 = vld [vmem:[%s5437 + $0xc0] sm:$0xf]
        %v5487 = vld [vmem:[%s5437 + $0xc4] sm:$0xf]
        %v5488 = vld [vmem:[%s5437 + $0xc8] sm:$0xf]
        %v5489 = vld [vmem:[%s5437 + $0xcc] sm:$0xf]
        %v5490 = vld [vmem:[%s5437 + $0xd0] sm:$0xf]
        %v5491 = vld [vmem:[%s5437 + $0xd4] sm:$0xf]
        %v5492 = vld [vmem:[%s5437 + $0xd8] sm:$0xf]
        %v5493 = vld [vmem:[%s5437 + $0xdc] sm:$0xf]
        %v5494 = vld [vmem:[%s5437 + $0xe0] sm:$0xf]
        %v5495 = vld [vmem:[%s5437 + $0xe4] sm:$0xf]
        %v5496 = vld [vmem:[%s5437 + $0xe8] sm:$0xf]
        %v5497 = vld [vmem:[%s5437 + $0xec] sm:$0xf]
        %v5498 = vld [vmem:[%s5437 + $0xf0] sm:$0xf]
        %v5499 = vld [vmem:[%s5437 + $0xf4] sm:$0xf]
        %v5500 = vld [vmem:[%s5437 + $0xf8] sm:$0xf]
        %v5501 = vld [vmem:[%s5437 + $0xfc] sm:$0xf]
        %v5566 = vunpack.c.l.b16 %v5438
        %v5567 = vunpack.c.l.b16 %v5439
        %v5568 = vunpack.c.l.b16 %v5440
        %v5569 = vunpack.c.l.b16 %v5441
        %v5570 = vunpack.c.l.b16 %v5442
        %v5571 = vunpack.c.l.b16 %v5443
        %v5572 = vunpack.c.l.b16 %v5444
        %v5573 = vunpack.c.l.b16 %v5445
        %v5574 = vunpack.c.l.b16 %v5446
        %v5575 = vunpack.c.l.b16 %v5447
        %v5576 = vunpack.c.l.b16 %v5448
        %v5577 = vunpack.c.l.b16 %v5449
        %v5578 = vunpack.c.l.b16 %v5450
        %v5579 = vunpack.c.l.b16 %v5451
        %v5580 = vunpack.c.l.b16 %v5452
        %v5581 = vunpack.c.l.b16 %v5453
        %v5582 = vunpack.c.l.b16 %v5454
        %v5583 = vunpack.c.l.b16 %v5455
        %v5584 = vunpack.c.l.b16 %v5456
        %v5585 = vunpack.c.l.b16 %v5457
        %v5586 = vunpack.c.l.b16 %v5458
        %v5587 = vunpack.c.l.b16 %v5459
        %v5588 = vunpack.c.l.b16 %v5460
        %v5589 = vunpack.c.l.b16 %v5461
        %v5590 = vunpack.c.l.b16 %v5462
        %v5591 = vunpack.c.l.b16 %v5463
        %v5592 = vunpack.c.l.b16 %v5464
        %v5593 = vunpack.c.l.b16 %v5465
        %v5594 = vunpack.c.l.b16 %v5466
        %v5595 = vunpack.c.l.b16 %v5467
        %v5596 = vunpack.c.l.b16 %v5468
        %v5597 = vunpack.c.l.b16 %v5469
        %v5598 = vunpack.c.l.b16 %v5470
        %v5599 = vunpack.c.l.b16 %v5471
        %v5600 = vunpack.c.l.b16 %v5472
        %v5601 = vunpack.c.l.b16 %v5473
        %v5602 = vunpack.c.l.b16 %v5474
        %v5603 = vunpack.c.l.b16 %v5475
        %v5604 = vunpack.c.l.b16 %v5476
        %v5605 = vunpack.c.l.b16 %v5477
        %v5606 = vunpack.c.l.b16 %v5478
        %v5607 = vunpack.c.l.b16 %v5479
        %v5608 = vunpack.c.l.b16 %v5480
        %v5609 = vunpack.c.l.b16 %v5481
        %v5610 = vunpack.c.l.b16 %v5482
        %v5611 = vunpack.c.l.b16 %v5483
        %v5612 = vunpack.c.l.b16 %v5484
        %v5613 = vunpack.c.l.b16 %v5485
        %v5614 = vunpack.c.l.b16 %v5486
        %v5615 = vunpack.c.l.b16 %v5487
        %v5616 = vunpack.c.l.b16 %v5488
        %v5617 = vunpack.c.l.b16 %v5489
        %v5618 = vunpack.c.l.b16 %v5490
        %v5619 = vunpack.c.l.b16 %v5491
        %v5620 = vunpack.c.l.b16 %v5492
        %v5621 = vunpack.c.l.b16 %v5493
        %v5622 = vunpack.c.l.b16 %v5494
        %v5623 = vunpack.c.l.b16 %v5495
        %v5624 = vunpack.c.l.b16 %v5496
        %v5625 = vunpack.c.l.b16 %v5497
        %v5626 = vunpack.c.l.b16 %v5498
        %v5627 = vunpack.c.l.b16 %v5499
        %v5628 = vunpack.c.l.b16 %v5500
        %v5629 = vunpack.c.l.b16 %v5501
        %v5630 = vpack.c.b16 %v5567, %v5566
        %v5631 = vpack.c.b16 %v5569, %v5568
        %v5632 = vpack.c.b16 %v5571, %v5570
        %v5633 = vpack.c.b16 %v5573, %v5572
        %v5634 = vpack.c.b16 %v5575, %v5574
        %v5635 = vpack.c.b16 %v5577, %v5576
        %v5636 = vpack.c.b16 %v5579, %v5578
        %v5637 = vpack.c.b16 %v5581, %v5580
        %v5638 = vpack.c.b16 %v5583, %v5582
        %v5639 = vpack.c.b16 %v5585, %v5584
        %v5640 = vpack.c.b16 %v5587, %v5586
        %v5641 = vpack.c.b16 %v5589, %v5588
        %v5642 = vpack.c.b16 %v5591, %v5590
        %v5643 = vpack.c.b16 %v5593, %v5592
        %v5644 = vpack.c.b16 %v5595, %v5594
        %v5645 = vpack.c.b16 %v5597, %v5596
        %v5646 = vpack.c.b16 %v5599, %v5598
        %v5647 = vpack.c.b16 %v5601, %v5600
        %v5648 = vpack.c.b16 %v5603, %v5602
        %v5649 = vpack.c.b16 %v5605, %v5604
        %v5650 = vpack.c.b16 %v5607, %v5606
        %v5651 = vpack.c.b16 %v5609, %v5608
        %v5652 = vpack.c.b16 %v5611, %v5610
        %v5653 = vpack.c.b16 %v5613, %v5612
        %v5654 = vpack.c.b16 %v5615, %v5614
        %v5655 = vpack.c.b16 %v5617, %v5616
        %v5656 = vpack.c.b16 %v5619, %v5618
        %v5657 = vpack.c.b16 %v5621, %v5620
        %v5658 = vpack.c.b16 %v5623, %v5622
        %v5659 = vpack.c.b16 %v5625, %v5624
        %v5660 = vpack.c.b16 %v5627, %v5626
        %v5661 = vpack.c.b16 %v5629, %v5628
        %5694 = vmatprep.subr.bf16.mxu0 0
        %5695 = vmatpush1.bf16.msra.mxu0 %v5630
        %5696 = vmatprep.subr.bf16.mxu0 0
        %5697 = vmatpush1.bf16.msra.mxu0 %v5631
        %5698 = vmatprep.subr.bf16.mxu0 0
        %5699 = vmatpush1.bf16.msra.mxu0 %v5632
        %5700 = vmatprep.subr.bf16.mxu0 0
        %5701 = vmatpush1.bf16.msra.mxu0 %v5633
        %5702 = vmatprep.subr.bf16.mxu0 0
        %5703 = vmatpush1.bf16.msra.mxu0 %v5634
        %5704 = vmatprep.subr.bf16.mxu0 0
        %5705 = vmatpush1.bf16.msra.mxu0 %v5635
        %5706 = vmatprep.subr.bf16.mxu0 0
        %5707 = vmatpush1.bf16.msra.mxu0 %v5636
        %5708 = vmatprep.subr.bf16.mxu0 0
        %5709 = vmatpush1.bf16.msra.mxu0 %v5637
        %5710 = vmatprep.subr.bf16.mxu0 0
        %5711 = vmatpush1.bf16.msra.mxu0 %v5638
        %5712 = vmatprep.subr.bf16.mxu0 0
        %5713 = vmatpush1.bf16.msra.mxu0 %v5639
        %5714 = vmatprep.subr.bf16.mxu0 0
        %5715 = vmatpush1.bf16.msra.mxu0 %v5640
        %5716 = vmatprep.subr.bf16.mxu0 0
        %5717 = vmatpush1.bf16.msra.mxu0 %v5641
        %5718 = vmatprep.subr.bf16.mxu0 0
        %5719 = vmatpush1.bf16.msra.mxu0 %v5642
        %5720 = vmatprep.subr.bf16.mxu0 0
        %5721 = vmatpush1.bf16.msra.mxu0 %v5643
        %5722 = vmatprep.subr.bf16.mxu0 0
        %5723 = vmatpush1.bf16.msra.mxu0 %v5644
        %5724 = vmatprep.subr.bf16.mxu0 0
        %5725 = vmatpush1.bf16.msra.mxu0 %v5645
        %5726 = vmatprep.mubr.bf16.mxu0 %v5432
        %5727 = vmatmul.mubr.bf16.gmra.mrb[0].mxu0 %v5431
        %v5728 = vpop.f32.mrb[0].mxu0
        %v5729 = vadd.f32 0.0, %v5728
        %v5730 = vpop.f32.mrb[0].mxu0
        %v5731 = vpop.f32.mrb[0].mxu0
        %v5732 = vadd.f32 0.0, %v5731
        %v5733 = vpop.f32.mrb[0].mxu0
        %5734 = vdwg.mxu0
        %5735 = vmatprep.subr.bf16.mxu0 0
        %5736 = vmatpush1.bf16.msra.mxu0 %v5646
        %5737 = vmatprep.subr.bf16.mxu0 0
        %5738 = vmatpush1.bf16.msra.mxu0 %v5647
        %5739 = vmatprep.subr.bf16.mxu0 0
        %5740 = vmatpush1.bf16.msra.mxu0 %v5648
        %5741 = vmatprep.subr.bf16.mxu0 0
        %5742 = vmatpush1.bf16.msra.mxu0 %v5649
        %5743 = vmatprep.subr.bf16.mxu0 0
        %5744 = vmatpush1.bf16.msra.mxu0 %v5650
        %5745 = vmatprep.subr.bf16.mxu0 0
        %5746 = vmatpush1.bf16.msra.mxu0 %v5651
        %5747 = vmatprep.subr.bf16.mxu0 0
        %5748 = vmatpush1.bf16.msra.mxu0 %v5652
        %5749 = vmatprep.subr.bf16.mxu0 0
        %5750 = vmatpush1.bf16.msra.mxu0 %v5653
        %5751 = vmatprep.subr.bf16.mxu0 0
        %5752 = vmatpush1.bf16.msra.mxu0 %v5654
        %5753 = vmatprep.subr.bf16.mxu0 0
        %5754 = vmatpush1.bf16.msra.mxu0 %v5655
        %5755 = vmatprep.subr.bf16.mxu0 0
        %5756 = vmatpush1.bf16.msra.mxu0 %v5656
        %5757 = vmatprep.subr.bf16.mxu0 0
        %5758 = vmatpush1.bf16.msra.mxu0 %v5657
        %5759 = vmatprep.subr.bf16.mxu0 0
        %5760 = vmatpush1.bf16.msra.mxu0 %v5658
        %5761 = vmatprep.subr.bf16.mxu0 0
        %5762 = vmatpush1.bf16.msra.mxu0 %v5659
        %5763 = vmatprep.subr.bf16.mxu0 0
        %5764 = vmatpush1.bf16.msra.mxu0 %v5660
        %5765 = vmatprep.subr.bf16.mxu0 0
        %5766 = vmatpush1.bf16.msra.mxu0 %v5661
        %5767 = vmatprep.mubr.bf16.mxu0 %v5434
        %5768 = vmatmul.mubr.bf16.gmra.mrb[0].mxu0 %v5433
        %v5769 = vpop.f32.mrb[0].mxu0
        %v5770 = vadd.f32 %v5729, %v5769
        %v5771 = vpop.f32.mrb[0].mxu0
        %v5772 = vpop.f32.mrb[0].mxu0
        %v5773 = vadd.f32 %v5732, %v5772
        %v5774 = vpop.f32.mrb[0].mxu0
        %5775 = vdwg.mxu0
        %v5840 = vunpack.c.l.b16 %v5166
        %v5841 = vunpack.c.l.b16 %v5167
        %v5842 = vunpack.c.l.b16 %v5168
        %v5843 = vunpack.c.l.b16 %v5169
        %v5844 = vunpack.c.l.b16 %v5170
        %v5845 = vunpack.c.l.b16 %v5171
        %v5846 = vunpack.c.l.b16 %v5172
        %v5847 = vunpack.c.l.b16 %v5173
        %v5848 = vunpack.c.l.b16 %v5174
        %v5849 = vunpack.c.l.b16 %v5175
        %v5850 = vunpack.c.l.b16 %v5176
        %v5851 = vunpack.c.l.b16 %v5177
        %v5852 = vunpack.c.l.b16 %v5178
        %v5853 = vunpack.c.l.b16 %v5179
        %v5854 = vunpack.c.l.b16 %v5180
        %v5855 = vunpack.c.l.b16 %v5181
        %v5856 = vunpack.c.l.b16 %v5182
        %v5857 = vunpack.c.l.b16 %v5183
        %v5858 = vunpack.c.l.b16 %v5184
        %v5859 = vunpack.c.l.b16 %v5185
        %v5860 = vunpack.c.l.b16 %v5186
        %v5861 = vunpack.c.l.b16 %v5187
        %v5862 = vunpack.c.l.b16 %v5188
        %v5863 = vunpack.c.l.b16 %v5189
        %v5864 = vunpack.c.l.b16 %v5190
        %v5865 = vunpack.c.l.b16 %v5191
        %v5866 = vunpack.c.l.b16 %v5192
        %v5867 = vunpack.c.l.b16 %v5193
        %v5868 = vunpack.c.l.b16 %v5194
        %v5869 = vunpack.c.l.b16 %v5195
        %v5870 = vunpack.c.l.b16 %v5196
        %v5871 = vunpack.c.l.b16 %v5197
        %v5872 = vunpack.c.l.b16 %v5198
        %v5873 = vunpack.c.l.b16 %v5199
        %v5874 = vunpack.c.l.b16 %v5200
        %v5875 = vunpack.c.l.b16 %v5201
        %v5876 = vunpack.c.l.b16 %v5202
        %v5877 = vunpack.c.l.b16 %v5203
        %v5878 = vunpack.c.l.b16 %v5204
        %v5879 = vunpack.c.l.b16 %v5205
        %v5880 = vunpack.c.l.b16 %v5206
        %v5881 = vunpack.c.l.b16 %v5207
        %v5882 = vunpack.c.l.b16 %v5208
        %v5883 = vunpack.c.l.b16 %v5209
        %v5884 = vunpack.c.l.b16 %v5210
        %v5885 = vunpack.c.l.b16 %v5211
        %v5886 = vunpack.c.l.b16 %v5212
        %v5887 = vunpack.c.l.b16 %v5213
        %v5888 = vunpack.c.l.b16 %v5214
        %v5889 = vunpack.c.l.b16 %v5215
        %v5890 = vunpack.c.l.b16 %v5216
        %v5891 = vunpack.c.l.b16 %v5217
        %v5892 = vunpack.c.l.b16 %v5218
        %v5893 = vunpack.c.l.b16 %v5219
        %v5894 = vunpack.c.l.b16 %v5220
        %v5895 = vunpack.c.l.b16 %v5221
        %v5896 = vunpack.c.l.b16 %v5222
        %v5897 = vunpack.c.l.b16 %v5223
        %v5898 = vunpack.c.l.b16 %v5224
        %v5899 = vunpack.c.l.b16 %v5225
        %v5900 = vunpack.c.l.b16 %v5226
        %v5901 = vunpack.c.l.b16 %v5227
        %v5902 = vunpack.c.l.b16 %v5228
        %v5903 = vunpack.c.l.b16 %v5229
        %v5904 = vpack.c.b16 %v5841, %v5840
        %v5905 = vpack.c.b16 %v5843, %v5842
        %v5906 = vpack.c.b16 %v5845, %v5844
        %v5907 = vpack.c.b16 %v5847, %v5846
        %v5908 = vpack.c.b16 %v5849, %v5848
        %v5909 = vpack.c.b16 %v5851, %v5850
        %v5910 = vpack.c.b16 %v5853, %v5852
        %v5911 = vpack.c.b16 %v5855, %v5854
        %v5912 = vpack.c.b16 %v5857, %v5856
        %v5913 = vpack.c.b16 %v5859, %v5858
        %v5914 = vpack.c.b16 %v5861, %v5860
        %v5915 = vpack.c.b16 %v5863, %v5862
        %v5916 = vpack.c.b16 %v5865, %v5864
        %v5917 = vpack.c.b16 %v5867, %v5866
        %v5918 = vpack.c.b16 %v5869, %v5868
        %v5919 = vpack.c.b16 %v5871, %v5870
        %v5920 = vpack.c.b16 %v5873, %v5872
        %v5921 = vpack.c.b16 %v5875, %v5874
        %v5922 = vpack.c.b16 %v5877, %v5876
        %v5923 = vpack.c.b16 %v5879, %v5878
        %v5924 = vpack.c.b16 %v5881, %v5880
        %v5925 = vpack.c.b16 %v5883, %v5882
        %v5926 = vpack.c.b16 %v5885, %v5884
        %v5927 = vpack.c.b16 %v5887, %v5886
        %v5928 = vpack.c.b16 %v5889, %v5888
        %v5929 = vpack.c.b16 %v5891, %v5890
        %v5930 = vpack.c.b16 %v5893, %v5892
        %v5931 = vpack.c.b16 %v5895, %v5894
        %v5932 = vpack.c.b16 %v5897, %v5896
        %v5933 = vpack.c.b16 %v5899, %v5898
        %v5934 = vpack.c.b16 %v5901, %v5900
        %v5935 = vpack.c.b16 %v5903, %v5902
        %5968 = vmatprep.subr.bf16.mxu0 0
        %5969 = vmatpush1.bf16.msra.mxu0 %v5904
        %5970 = vmatprep.subr.bf16.mxu0 0
        %5971 = vmatpush1.bf16.msra.mxu0 %v5905
        %5972 = vmatprep.subr.bf16.mxu0 0
        %5973 = vmatpush1.bf16.msra.mxu0 %v5906
        %5974 = vmatprep.subr.bf16.mxu0 0
        %5975 = vmatpush1.bf16.msra.mxu0 %v5907
        %5976 = vmatprep.subr.bf16.mxu0 0
        %5977 = vmatpush1.bf16.msra.mxu0 %v5908
        %5978 = vmatprep.subr.bf16.mxu0 0
        %5979 = vmatpush1.bf16.msra.mxu0 %v5909
        %5980 = vmatprep.subr.bf16.mxu0 0
        %5981 = vmatpush1.bf16.msra.mxu0 %v5910
        %5982 = vmatprep.subr.bf16.mxu0 0
        %5983 = vmatpush1.bf16.msra.mxu0 %v5911
        %5984 = vmatprep.subr.bf16.mxu0 0
        %5985 = vmatpush1.bf16.msra.mxu0 %v5912
        %5986 = vmatprep.subr.bf16.mxu0 0
        %5987 = vmatpush1.bf16.msra.mxu0 %v5913
        %5988 = vmatprep.subr.bf16.mxu0 0
        %5989 = vmatpush1.bf16.msra.mxu0 %v5914
        %5990 = vmatprep.subr.bf16.mxu0 0
        %5991 = vmatpush1.bf16.msra.mxu0 %v5915
        %5992 = vmatprep.subr.bf16.mxu0 0
        %5993 = vmatpush1.bf16.msra.mxu0 %v5916
        %5994 = vmatprep.subr.bf16.mxu0 0
        %5995 = vmatpush1.bf16.msra.mxu0 %v5917
        %5996 = vmatprep.subr.bf16.mxu0 0
        %5997 = vmatpush1.bf16.msra.mxu0 %v5918
        %5998 = vmatprep.subr.bf16.mxu0 0
        %5999 = vmatpush1.bf16.msra.mxu0 %v5919
        %6000 = vmatprep.mubr.bf16.mxu0 %v5160
        %6001 = vmatmul.mubr.bf16.gmra.mrb[0].mxu0 %v5159
        %v6002 = vpop.f32.mrb[0].mxu0
        %v6003 = vadd.f32 %v5770, %v6002
        %v6004 = vpop.f32.mrb[0].mxu0
        %v6005 = vpop.f32.mrb[0].mxu0
        %v6006 = vadd.f32 %v5773, %v6005
        %v6007 = vpop.f32.mrb[0].mxu0
        %6008 = vdwg.mxu0
        %6009 = vmatprep.subr.bf16.mxu0 0
        %6010 = vmatpush1.bf16.msra.mxu0 %v5920
        %6011 = vmatprep.subr.bf16.mxu0 0
        %6012 = vmatpush1.bf16.msra.mxu0 %v5921
        %6013 = vmatprep.subr.bf16.mxu0 0
        %6014 = vmatpush1.bf16.msra.mxu0 %v5922
        %6015 = vmatprep.subr.bf16.mxu0 0
        %6016 = vmatpush1.bf16.msra.mxu0 %v5923
        %6017 = vmatprep.subr.bf16.mxu0 0
        %6018 = vmatpush1.bf16.msra.mxu0 %v5924
        %6019 = vmatprep.subr.bf16.mxu0 0
        %6020 = vmatpush1.bf16.msra.mxu0 %v5925
        %6021 = vmatprep.subr.bf16.mxu0 0
        %6022 = vmatpush1.bf16.msra.mxu0 %v5926
        %6023 = vmatprep.subr.bf16.mxu0 0
        %6024 = vmatpush1.bf16.msra.mxu0 %v5927
        %6025 = vmatprep.subr.bf16.mxu0 0
        %6026 = vmatpush1.bf16.msra.mxu0 %v5928
        %6027 = vmatprep.subr.bf16.mxu0 0
        %6028 = vmatpush1.bf16.msra.mxu0 %v5929
        %6029 = vmatprep.subr.bf16.mxu0 0
        %6030 = vmatpush1.bf16.msra.mxu0 %v5930
        %6031 = vmatprep.subr.bf16.mxu0 0
        %6032 = vmatpush1.bf16.msra.mxu0 %v5931
        %6033 = vmatprep.subr.bf16.mxu0 0
        %6034 = vmatpush1.bf16.msra.mxu0 %v5932
        %6035 = vmatprep.subr.bf16.mxu0 0
        %6036 = vmatpush1.bf16.msra.mxu0 %v5933
        %6037 = vmatprep.subr.bf16.mxu0 0
        %6038 = vmatpush1.bf16.msra.mxu0 %v5934
        %6039 = vmatprep.subr.bf16.mxu0 0
        %6040 = vmatpush1.bf16.msra.mxu0 %v5935
        %6041 = vmatprep.mubr.bf16.mxu0 %v5162
        %6042 = vmatmul.mubr.bf16.gmra.mrb[0].mxu0 %v5161
        %v6043 = vpop.f32.mrb[0].mxu0
        %v6044 = vadd.f32 %v6003, %v6043
        %v6045 = vpop.f32.mrb[0].mxu0
        %v6046 = vpop.f32.mrb[0].mxu0
        %v6047 = vadd.f32 %v6006, %v6046
        %v6048 = vpop.f32.mrb[0].mxu0
        %6049 = vdwg.mxu0
        %s6050 = sadd.s32 8, 64
        %s6051 = smul.addr %s6050, 4
        %s6052 = scalar_lea.vmem %s13, %s6051
        %v6053 = vld [vmem:[%s6052] sm:$0xff]
        %v6054 = vld [vmem:[%s6052 + $0x8] sm:$0xff]
        %v6055 = vld [vmem:[%s6052 + $0x40] sm:$0xff]
        %v6056 = vld [vmem:[%s6052 + $0x48] sm:$0xff]
        %v6057 = vld [vmem:[%s6052 + $0x80] sm:$0xff]
        %v6058 = vld [vmem:[%s6052 + $0x88] sm:$0xff]
        %v6059 = vld [vmem:[%s6052 + $0xc0] sm:$0xff]
        %v6060 = vld [vmem:[%s6052 + $0xc8] sm:$0xff]
        %v6069 = vunpack.c.l.b16 %v6053
        %v6070 = vunpack.c.h.b16 %v6053
        %v6071 = vunpack.c.l.b16 %v6054
        %v6072 = vunpack.c.h.b16 %v6054
        %v6073 = vunpack.c.l.b16 %v6055
        %v6074 = vunpack.c.h.b16 %v6055
        %v6075 = vunpack.c.l.b16 %v6056
        %v6076 = vunpack.c.h.b16 %v6056
        %v6077 = vunpack.c.l.b16 %v6057
        %v6078 = vunpack.c.h.b16 %v6057
        %v6079 = vunpack.c.l.b16 %v6058
        %v6080 = vunpack.c.h.b16 %v6058
        %v6081 = vunpack.c.l.b16 %v6059
        %v6082 = vunpack.c.h.b16 %v6059
        %v6083 = vunpack.c.l.b16 %v6060
        %v6084 = vunpack.c.h.b16 %v6060
        %v6085 = vpack.c.b16 %v6073, %v6069
        %v6086 = vpack.c.b16 %v6074, %v6070
        %v6087 = vpack.c.b16 %v6075, %v6071
        %v6088 = vpack.c.b16 %v6076, %v6072
        %v6089 = vpack.c.b16 %v6081, %v6077
        %v6090 = vpack.c.b16 %v6082, %v6078
        %v6091 = vpack.c.b16 %v6083, %v6079
        %v6092 = vpack.c.b16 %v6084, %v6080
        %6101 = vmatprep.subr.bf16.mxu0 %v6086
        %6102 = vmatpush1.bf16.msra.mxu0 %v6085
        %6103 = vmatprep.subr.bf16.mxu0 %v6090
        %6104 = vmatpush1.bf16.msra.mxu0 %v6089
        %6105 = vmatprep.subr.bf16.mxu0 0
        %6106 = vmatpush1.bf16.msra.mxu0 0
        %6107 = vmatprep.subr.bf16.mxu0 0
        %6108 = vmatpush1.bf16.msra.mxu0 0
        %6109 = vmatprep.subr.bf16.mxu0 0
        %6110 = vmatpush1.bf16.msra.mxu0 0
        %6111 = vmatprep.subr.bf16.mxu0 0
        %6112 = vmatpush1.bf16.msra.mxu0 0
        %6113 = vmatprep.subr.bf16.mxu0 0
        %6114 = vmatpush1.bf16.msra.mxu0 0
        %6115 = vmatprep.subr.bf16.mxu0 0
        %6116 = vmatpush1.bf16.msra.mxu0 0
        %6117 = vmatprep.subr.bf16.mxu0 0
        %6118 = vmatpush1.bf16.msra.mxu0 0
        %6119 = vmatprep.subr.bf16.mxu0 0
        %6120 = vmatpush1.bf16.msra.mxu0 0
        %6121 = vmatprep.subr.bf16.mxu0 0
        %6122 = vmatpush1.bf16.msra.mxu0 0
        %6123 = vmatprep.subr.bf16.mxu0 0
        %6124 = vmatpush1.bf16.msra.mxu0 0
        %6125 = vmatprep.subr.bf16.mxu0 0
        %6126 = vmatpush1.bf16.msra.mxu0 0
        %6127 = vmatprep.subr.bf16.mxu0 0
        %6128 = vmatpush1.bf16.msra.mxu0 0
        %6129 = vmatprep.subr.bf16.mxu0 0
        %6130 = vmatpush1.bf16.msra.mxu0 0
        %6131 = vmatprep.subr.bf16.mxu0 0
        %6132 = vmatpush1.bf16.msra.mxu0 0
        %6133 = vmatprep.mubr.bf16.mxu0 0
        %6134 = vmatmul.mubr.bf16.gmra.mrb[0].mxu0 %v5007
        %v6135 = vpop.f32.mrb[0].mxu0
        %v6136 = vadd.f32 0.0, %v6135
        %v6137 = vpop.f32.mrb[0].mxu0
        %v6138 = vadd.f32 0.0, %v6137
        %v6139 = vpop.f32.mrb[0].mxu0
        %v6140 = vadd.f32 0.0, %v6139
        %v6141 = vpop.f32.mrb[0].mxu0
        %v6142 = vadd.f32 0.0, %v6141
        %6143 = vdwg.mxu0
        %6144 = vmatprep.subr.bf16.mxu0 %v6088
        %6145 = vmatpush1.bf16.msra.mxu0 %v6087
        %6146 = vmatprep.subr.bf16.mxu0 %v6092
        %6147 = vmatpush1.bf16.msra.mxu0 %v6091
        %6148 = vmatprep.subr.bf16.mxu0 0
        %6149 = vmatpush1.bf16.msra.mxu0 0
        %6150 = vmatprep.subr.bf16.mxu0 0
        %6151 = vmatpush1.bf16.msra.mxu0 0
        %6152 = vmatprep.subr.bf16.mxu0 0
        %6153 = vmatpush1.bf16.msra.mxu0 0
        %6154 = vmatprep.subr.bf16.mxu0 0
        %6155 = vmatpush1.bf16.msra.mxu0 0
        %6156 = vmatprep.subr.bf16.mxu0 0
        %6157 = vmatpush1.bf16.msra.mxu0 0
        %6158 = vmatprep.subr.bf16.mxu0 0
        %6159 = vmatpush1.bf16.msra.mxu0 0
        %6160 = vmatprep.subr.bf16.mxu0 0
        %6161 = vmatpush1.bf16.msra.mxu0 0
        %6162 = vmatprep.subr.bf16.mxu0 0
        %6163 = vmatpush1.bf16.msra.mxu0 0
        %6164 = vmatprep.subr.bf16.mxu0 0
        %6165 = vmatpush1.bf16.msra.mxu0 0
        %6166 = vmatprep.subr.bf16.mxu0 0
        %6167 = vmatpush1.bf16.msra.mxu0 0
        %6168 = vmatprep.subr.bf16.mxu0 0
        %6169 = vmatpush1.bf16.msra.mxu0 0
        %6170 = vmatprep.subr.bf16.mxu0 0
        %6171 = vmatpush1.bf16.msra.mxu0 0
        %6172 = vmatprep.subr.bf16.mxu0 0
        %6173 = vmatpush1.bf16.msra.mxu0 0
        %6174 = vmatprep.subr.bf16.mxu0 0
        %6175 = vmatpush1.bf16.msra.mxu0 0
        %6176 = vmatprep.mubr.bf16.mxu0 0
        %6177 = vmatmul.mubr.bf16.gmra.mrb[0].mxu0 %v5007
        %v6178 = vpop.f32.mrb[0].mxu0
        %v6179 = vadd.f32 0.0, %v6178
        %v6180 = vpop.f32.mrb[0].mxu0
        %v6181 = vadd.f32 0.0, %v6180
        %v6182 = vpop.f32.mrb[0].mxu0
        %v6183 = vadd.f32 0.0, %v6182
        %v6184 = vpop.f32.mrb[0].mxu0
        %v6185 = vadd.f32 0.0, %v6184
        %6186 = vdwg.mxu0
        %v6187 = vpack.c.bf16 %v6140, %v6136
        %v6188 = vpack.c.bf16 %v6142, %v6138
        %v6189 = vpack.c.bf16 %v6183, %v6179
        %v6190 = vpack.c.bf16 %v6185, %v6181
        %s6191 = sadd.s32 8, 16
        %s6192 = scalar_lea.vmem %s14, %s6191
        %v6193 = vld [vmem:[%s6192] sm:$0xf]
        %v6195 = vlaneseq
        %v6196 = vshrl.u32 %v6195, 7
        %v6197 = vsub.s32 0, %v6196
        %v6198 = vrot.slane %v6193, %v6197
        %v6199 = vlaneseq
        %v6200 = vshrl.u32 %v6199, 7
        %v6201 = vsub.s32 1, %v6200
        %v6202 = vrot.slane %v6193, %v6201
        %v6203 = vlaneseq
        %v6204 = vshrl.u32 %v6203, 7
        %v6205 = vsub.s32 2, %v6204
        %v6206 = vrot.slane %v6193, %v6205
        %v6207 = vlaneseq
        %v6208 = vshrl.u32 %v6207, 7
        %v6209 = vsub.s32 3, %v6208
        %v6210 = vrot.slane %v6193, %v6209
        %v6215 = vpack.c.bf16 %v6198, %v6198
        %v6216 = vpack.c.bf16 %v6202, %v6202
        %v6217 = vpack.c.bf16 %v6206, %v6206
        %v6218 = vpack.c.bf16 %v6210, %v6210
        %v6220 = vpack.i.b16 %v6215, %v6215
        %v6222 = vlaneseq
        %v6223 = vshrl.u32 %v6222, 7
        %v6224 = vsub.s32 0, %v6223
        %v6225 = vrot.slane %v6220, %v6224
        %v6227 = vpack.i.b16 %v6216, %v6216
        %v6229 = vlaneseq
        %v6230 = vshrl.u32 %v6229, 7
        %v6231 = vsub.s32 0, %v6230
        %v6232 = vrot.slane %v6227, %v6231
        %v6234 = vpack.i.b16 %v6217, %v6217
        %v6236 = vlaneseq
        %v6237 = vshrl.u32 %v6236, 7
        %v6238 = vsub.s32 0, %v6237
        %v6239 = vrot.slane %v6234, %v6238
        %v6241 = vpack.i.b16 %v6218, %v6218
        %v6243 = vlaneseq
        %v6244 = vshrl.u32 %v6243, 7
        %v6245 = vsub.s32 0, %v6244
        %v6246 = vrot.slane %v6241, %v6245
        %v6247 = vadd.bf16 %v6187, %v6225
        %v6248 = vadd.bf16 %v6188, %v6232
        %v6249 = vadd.bf16 %v6189, %v6239
        %v6250 = vadd.bf16 %v6190, %v6246
        %v6251 = vmax.bf16 %v6247, 0
        %v6252 = vmax.bf16 %v6248, 0
        %v6253 = vmax.bf16 %v6249, 0
        %v6254 = vmax.bf16 %v6250, 0
        %s6255 = sadd.s32 128, 256
        %s6256 = smul.addr %s6255, 4
        %s6257 = scalar_lea.vmem %s15, %s6256
        %v6258 = vld [vmem:[%s6257] sm:$0xf]
        %v6259 = vld [vmem:[%s6257 + $0x4] sm:$0xf]
        %v6260 = vld [vmem:[%s6257 + $0x8] sm:$0xf]
        %v6261 = vld [vmem:[%s6257 + $0xc] sm:$0xf]
        %v6262 = vld [vmem:[%s6257 + $0x10] sm:$0xf]
        %v6263 = vld [vmem:[%s6257 + $0x14] sm:$0xf]
        %v6264 = vld [vmem:[%s6257 + $0x18] sm:$0xf]
        %v6265 = vld [vmem:[%s6257 + $0x1c] sm:$0xf]
        %v6266 = vld [vmem:[%s6257 + $0x20] sm:$0xf]
        %v6267 = vld [vmem:[%s6257 + $0x24] sm:$0xf]
        %v6268 = vld [vmem:[%s6257 + $0x28] sm:$0xf]
        %v6269 = vld [vmem:[%s6257 + $0x2c] sm:$0xf]
        %v6270 = vld [vmem:[%s6257 + $0x30] sm:$0xf]
        %v6271 = vld [vmem:[%s6257 + $0x34] sm:$0xf]
        %v6272 = vld [vmem:[%s6257 + $0x38] sm:$0xf]
        %v6273 = vld [vmem:[%s6257 + $0x3c] sm:$0xf]
        %v6274 = vld [vmem:[%s6257 + $0x40] sm:$0xf]
        %v6275 = vld [vmem:[%s6257 + $0x44] sm:$0xf]
        %v6276 = vld [vmem:[%s6257 + $0x48] sm:$0xf]
        %v6277 = vld [vmem:[%s6257 + $0x4c] sm:$0xf]
        %v6278 = vld [vmem:[%s6257 + $0x50] sm:$0xf]
        %v6279 = vld [vmem:[%s6257 + $0x54] sm:$0xf]
        %v6280 = vld [vmem:[%s6257 + $0x58] sm:$0xf]
        %v6281 = vld [vmem:[%s6257 + $0x5c] sm:$0xf]
        %v6282 = vld [vmem:[%s6257 + $0x60] sm:$0xf]
        %v6283 = vld [vmem:[%s6257 + $0x64] sm:$0xf]
        %v6284 = vld [vmem:[%s6257 + $0x68] sm:$0xf]
        %v6285 = vld [vmem:[%s6257 + $0x6c] sm:$0xf]
        %v6286 = vld [vmem:[%s6257 + $0x70] sm:$0xf]
        %v6287 = vld [vmem:[%s6257 + $0x74] sm:$0xf]
        %v6288 = vld [vmem:[%s6257 + $0x78] sm:$0xf]
        %v6289 = vld [vmem:[%s6257 + $0x7c] sm:$0xf]
        %v6290 = vld [vmem:[%s6257 + $0x80] sm:$0xf]
        %v6291 = vld [vmem:[%s6257 + $0x84] sm:$0xf]
        %v6292 = vld [vmem:[%s6257 + $0x88] sm:$0xf]
        %v6293 = vld [vmem:[%s6257 + $0x8c] sm:$0xf]
        %v6294 = vld [vmem:[%s6257 + $0x90] sm:$0xf]
        %v6295 = vld [vmem:[%s6257 + $0x94] sm:$0xf]
        %v6296 = vld [vmem:[%s6257 + $0x98] sm:$0xf]
        %v6297 = vld [vmem:[%s6257 + $0x9c] sm:$0xf]
        %v6298 = vld [vmem:[%s6257 + $0xa0] sm:$0xf]
        %v6299 = vld [vmem:[%s6257 + $0xa4] sm:$0xf]
        %v6300 = vld [vmem:[%s6257 + $0xa8] sm:$0xf]
        %v6301 = vld [vmem:[%s6257 + $0xac] sm:$0xf]
        %v6302 = vld [vmem:[%s6257 + $0xb0] sm:$0xf]
        %v6303 = vld [vmem:[%s6257 + $0xb4] sm:$0xf]
        %v6304 = vld [vmem:[%s6257 + $0xb8] sm:$0xf]
        %v6305 = vld [vmem:[%s6257 + $0xbc] sm:$0xf]
        %v6306 = vld [vmem:[%s6257 + $0xc0] sm:$0xf]
        %v6307 = vld [vmem:[%s6257 + $0xc4] sm:$0xf]
        %v6308 = vld [vmem:[%s6257 + $0xc8] sm:$0xf]
        %v6309 = vld [vmem:[%s6257 + $0xcc] sm:$0xf]
        %v6310 = vld [vmem:[%s6257 + $0xd0] sm:$0xf]
        %v6311 = vld [vmem:[%s6257 + $0xd4] sm:$0xf]
        %v6312 = vld [vmem:[%s6257 + $0xd8] sm:$0xf]
        %v6313 = vld [vmem:[%s6257 + $0xdc] sm:$0xf]
        %v6314 = vld [vmem:[%s6257 + $0xe0] sm:$0xf]
        %v6315 = vld [vmem:[%s6257 + $0xe4] sm:$0xf]
        %v6316 = vld [vmem:[%s6257 + $0xe8] sm:$0xf]
        %v6317 = vld [vmem:[%s6257 + $0xec] sm:$0xf]
        %v6318 = vld [vmem:[%s6257 + $0xf0] sm:$0xf]
        %v6319 = vld [vmem:[%s6257 + $0xf4] sm:$0xf]
        %v6320 = vld [vmem:[%s6257 + $0xf8] sm:$0xf]
        %v6321 = vld [vmem:[%s6257 + $0xfc] sm:$0xf]
        %v6386 = vunpack.c.l.b16 %v6258
        %v6387 = vunpack.c.l.b16 %v6259
        %v6388 = vunpack.c.l.b16 %v6260
        %v6389 = vunpack.c.l.b16 %v6261
        %v6390 = vunpack.c.l.b16 %v6262
        %v6391 = vunpack.c.l.b16 %v6263
        %v6392 = vunpack.c.l.b16 %v6264
        %v6393 = vunpack.c.l.b16 %v6265
        %v6394 = vunpack.c.l.b16 %v6266
        %v6395 = vunpack.c.l.b16 %v6267
        %v6396 = vunpack.c.l.b16 %v6268
        %v6397 = vunpack.c.l.b16 %v6269
        %v6398 = vunpack.c.l.b16 %v6270
        %v6399 = vunpack.c.l.b16 %v6271
        %v6400 = vunpack.c.l.b16 %v6272
        %v6401 = vunpack.c.l.b16 %v6273
        %v6402 = vunpack.c.l.b16 %v6274
        %v6403 = vunpack.c.l.b16 %v6275
        %v6404 = vunpack.c.l.b16 %v6276
        %v6405 = vunpack.c.l.b16 %v6277
        %v6406 = vunpack.c.l.b16 %v6278
        %v6407 = vunpack.c.l.b16 %v6279
        %v6408 = vunpack.c.l.b16 %v6280
        %v6409 = vunpack.c.l.b16 %v6281
        %v6410 = vunpack.c.l.b16 %v6282
        %v6411 = vunpack.c.l.b16 %v6283
        %v6412 = vunpack.c.l.b16 %v6284
        %v6413 = vunpack.c.l.b16 %v6285
        %v6414 = vunpack.c.l.b16 %v6286
        %v6415 = vunpack.c.l.b16 %v6287
        %v6416 = vunpack.c.l.b16 %v6288
        %v6417 = vunpack.c.l.b16 %v6289
        %v6418 = vunpack.c.l.b16 %v6290
        %v6419 = vunpack.c.l.b16 %v6291
        %v6420 = vunpack.c.l.b16 %v6292
        %v6421 = vunpack.c.l.b16 %v6293
        %v6422 = vunpack.c.l.b16 %v6294
        %v6423 = vunpack.c.l.b16 %v6295
        %v6424 = vunpack.c.l.b16 %v6296
        %v6425 = vunpack.c.l.b16 %v6297
        %v6426 = vunpack.c.l.b16 %v6298
        %v6427 = vunpack.c.l.b16 %v6299
        %v6428 = vunpack.c.l.b16 %v6300
        %v6429 = vunpack.c.l.b16 %v6301
        %v6430 = vunpack.c.l.b16 %v6302
        %v6431 = vunpack.c.l.b16 %v6303
        %v6432 = vunpack.c.l.b16 %v6304
        %v6433 = vunpack.c.l.b16 %v6305
        %v6434 = vunpack.c.l.b16 %v6306
        %v6435 = vunpack.c.l.b16 %v6307
        %v6436 = vunpack.c.l.b16 %v6308
        %v6437 = vunpack.c.l.b16 %v6309
        %v6438 = vunpack.c.l.b16 %v6310
        %v6439 = vunpack.c.l.b16 %v6311
        %v6440 = vunpack.c.l.b16 %v6312
        %v6441 = vunpack.c.l.b16 %v6313
        %v6442 = vunpack.c.l.b16 %v6314
        %v6443 = vunpack.c.l.b16 %v6315
        %v6444 = vunpack.c.l.b16 %v6316
        %v6445 = vunpack.c.l.b16 %v6317
        %v6446 = vunpack.c.l.b16 %v6318
        %v6447 = vunpack.c.l.b16 %v6319
        %v6448 = vunpack.c.l.b16 %v6320
        %v6449 = vunpack.c.l.b16 %v6321
        %v6450 = vpack.c.b16 %v6387, %v6386
        %v6451 = vpack.c.b16 %v6389, %v6388
        %v6452 = vpack.c.b16 %v6391, %v6390
        %v6453 = vpack.c.b16 %v6393, %v6392
        %v6454 = vpack.c.b16 %v6395, %v6394
        %v6455 = vpack.c.b16 %v6397, %v6396
        %v6456 = vpack.c.b16 %v6399, %v6398
        %v6457 = vpack.c.b16 %v6401, %v6400
        %v6458 = vpack.c.b16 %v6403, %v6402
        %v6459 = vpack.c.b16 %v6405, %v6404
        %v6460 = vpack.c.b16 %v6407, %v6406
        %v6461 = vpack.c.b16 %v6409, %v6408
        %v6462 = vpack.c.b16 %v6411, %v6410
        %v6463 = vpack.c.b16 %v6413, %v6412
        %v6464 = vpack.c.b16 %v6415, %v6414
        %v6465 = vpack.c.b16 %v6417, %v6416
        %v6466 = vpack.c.b16 %v6419, %v6418
        %v6467 = vpack.c.b16 %v6421, %v6420
        %v6468 = vpack.c.b16 %v6423, %v6422
        %v6469 = vpack.c.b16 %v6425, %v6424
        %v6470 = vpack.c.b16 %v6427, %v6426
        %v6471 = vpack.c.b16 %v6429, %v6428
        %v6472 = vpack.c.b16 %v6431, %v6430
        %v6473 = vpack.c.b16 %v6433, %v6432
        %v6474 = vpack.c.b16 %v6435, %v6434
        %v6475 = vpack.c.b16 %v6437, %v6436
        %v6476 = vpack.c.b16 %v6439, %v6438
        %v6477 = vpack.c.b16 %v6441, %v6440
        %v6478 = vpack.c.b16 %v6443, %v6442
        %v6479 = vpack.c.b16 %v6445, %v6444
        %v6480 = vpack.c.b16 %v6447, %v6446
        %v6481 = vpack.c.b16 %v6449, %v6448
        %6514 = vmatprep.subr.bf16.mxu0 0
        %6515 = vmatpush1.bf16.msra.mxu0 %v6450
        %6516 = vmatprep.subr.bf16.mxu0 0
        %6517 = vmatpush1.bf16.msra.mxu0 %v6451
        %6518 = vmatprep.subr.bf16.mxu0 0
        %6519 = vmatpush1.bf16.msra.mxu0 %v6452
        %6520 = vmatprep.subr.bf16.mxu0 0
        %6521 = vmatpush1.bf16.msra.mxu0 %v6453
        %6522 = vmatprep.subr.bf16.mxu0 0
        %6523 = vmatpush1.bf16.msra.mxu0 %v6454
        %6524 = vmatprep.subr.bf16.mxu0 0
        %6525 = vmatpush1.bf16.msra.mxu0 %v6455
        %6526 = vmatprep.subr.bf16.mxu0 0
        %6527 = vmatpush1.bf16.msra.mxu0 %v6456
        %6528 = vmatprep.subr.bf16.mxu0 0
        %6529 = vmatpush1.bf16.msra.mxu0 %v6457
        %6530 = vmatprep.subr.bf16.mxu0 0
        %6531 = vmatpush1.bf16.msra.mxu0 %v6458
        %6532 = vmatprep.subr.bf16.mxu0 0
        %6533 = vmatpush1.bf16.msra.mxu0 %v6459
        %6534 = vmatprep.subr.bf16.mxu0 0
        %6535 = vmatpush1.bf16.msra.mxu0 %v6460
        %6536 = vmatprep.subr.bf16.mxu0 0
        %6537 = vmatpush1.bf16.msra.mxu0 %v6461
        %6538 = vmatprep.subr.bf16.mxu0 0
        %6539 = vmatpush1.bf16.msra.mxu0 %v6462
        %6540 = vmatprep.subr.bf16.mxu0 0
        %6541 = vmatpush1.bf16.msra.mxu0 %v6463
        %6542 = vmatprep.subr.bf16.mxu0 0
        %6543 = vmatpush1.bf16.msra.mxu0 %v6464
        %6544 = vmatprep.subr.bf16.mxu0 0
        %6545 = vmatpush1.bf16.msra.mxu0 %v6465
        %6546 = vmatprep.mubr.bf16.mxu0 %v6252
        %6547 = vmatmul.mubr.bf16.gmra.mrb[0].mxu0 %v6251
        %v6548 = vpop.f32.mrb[0].mxu0
        %v6549 = vadd.f32 0.0, %v6548
        %v6550 = vpop.f32.mrb[0].mxu0
        %v6551 = vpop.f32.mrb[0].mxu0
        %v6552 = vadd.f32 0.0, %v6551
        %v6553 = vpop.f32.mrb[0].mxu0
        %6554 = vdwg.mxu0
        %6555 = vmatprep.subr.bf16.mxu0 0
        %6556 = vmatpush1.bf16.msra.mxu0 %v6466
        %6557 = vmatprep.subr.bf16.mxu0 0
        %6558 = vmatpush1.bf16.msra.mxu0 %v6467
        %6559 = vmatprep.subr.bf16.mxu0 0
        %6560 = vmatpush1.bf16.msra.mxu0 %v6468
        %6561 = vmatprep.subr.bf16.mxu0 0
        %6562 = vmatpush1.bf16.msra.mxu0 %v6469
        %6563 = vmatprep.subr.bf16.mxu0 0
        %6564 = vmatpush1.bf16.msra.mxu0 %v6470
        %6565 = vmatprep.subr.bf16.mxu0 0
        %6566 = vmatpush1.bf16.msra.mxu0 %v6471
        %6567 = vmatprep.subr.bf16.mxu0 0
        %6568 = vmatpush1.bf16.msra.mxu0 %v6472
        %6569 = vmatprep.subr.bf16.mxu0 0
        %6570 = vmatpush1.bf16.msra.mxu0 %v6473
        %6571 = vmatprep.subr.bf16.mxu0 0
        %6572 = vmatpush1.bf16.msra.mxu0 %v6474
        %6573 = vmatprep.subr.bf16.mxu0 0
        %6574 = vmatpush1.bf16.msra.mxu0 %v6475
        %6575 = vmatprep.subr.bf16.mxu0 0
        %6576 = vmatpush1.bf16.msra.mxu0 %v6476
        %6577 = vmatprep.subr.bf16.mxu0 0
        %6578 = vmatpush1.bf16.msra.mxu0 %v6477
        %6579 = vmatprep.subr.bf16.mxu0 0
        %6580 = vmatpush1.bf16.msra.mxu0 %v6478
        %6581 = vmatprep.subr.bf16.mxu0 0
        %6582 = vmatpush1.bf16.msra.mxu0 %v6479
        %6583 = vmatprep.subr.bf16.mxu0 0
        %6584 = vmatpush1.bf16.msra.mxu0 %v6480
        %6585 = vmatprep.subr.bf16.mxu0 0
        %6586 = vmatpush1.bf16.msra.mxu0 %v6481
        %6587 = vmatprep.mubr.bf16.mxu0 %v6254
        %6588 = vmatmul.mubr.bf16.gmra.mrb[0].mxu0 %v6253
        %v6589 = vpop.f32.mrb[0].mxu0
        %v6590 = vadd.f32 %v6549, %v6589
        %v6591 = vpop.f32.mrb[0].mxu0
        %v6592 = vpop.f32.mrb[0].mxu0
        %v6593 = vadd.f32 %v6552, %v6592
        %v6594 = vpop.f32.mrb[0].mxu0
        %6595 = vdwg.mxu0
        %v6596 = vadd.f32 %v6044, %v6590
        %v6597 = vadd.f32 %v6047, %v6593
        %s6598 = sadd.s32 12, 64
        %s6599 = smul.addr %s6598, 4
        %s6600 = scalar_lea.vmem %s13, %s6599
        %v6601 = vld [vmem:[%s6600] sm:$0xff]
        %v6602 = vld [vmem:[%s6600 + $0x8] sm:$0xff]
        %v6603 = vld [vmem:[%s6600 + $0x40] sm:$0xff]
        %v6604 = vld [vmem:[%s6600 + $0x48] sm:$0xff]
        %v6605 = vld [vmem:[%s6600 + $0x80] sm:$0xff]
        %v6606 = vld [vmem:[%s6600 + $0x88] sm:$0xff]
        %v6607 = vld [vmem:[%s6600 + $0xc0] sm:$0xff]
        %v6608 = vld [vmem:[%s6600 + $0xc8] sm:$0xff]
        %v6617 = vunpack.c.l.b16 %v6601
        %v6618 = vunpack.c.h.b16 %v6601
        %v6619 = vunpack.c.l.b16 %v6602
        %v6620 = vunpack.c.h.b16 %v6602
        %v6621 = vunpack.c.l.b16 %v6603
        %v6622 = vunpack.c.h.b16 %v6603
        %v6623 = vunpack.c.l.b16 %v6604
        %v6624 = vunpack.c.h.b16 %v6604
        %v6625 = vunpack.c.l.b16 %v6605
        %v6626 = vunpack.c.h.b16 %v6605
        %v6627 = vunpack.c.l.b16 %v6606
        %v6628 = vunpack.c.h.b16 %v6606
        %v6629 = vunpack.c.l.b16 %v6607
        %v6630 = vunpack.c.h.b16 %v6607
        %v6631 = vunpack.c.l.b16 %v6608
        %v6632 = vunpack.c.h.b16 %v6608
        %v6633 = vpack.c.b16 %v6621, %v6617
        %v6634 = vpack.c.b16 %v6622, %v6618
        %v6635 = vpack.c.b16 %v6623, %v6619
        %v6636 = vpack.c.b16 %v6624, %v6620
        %v6637 = vpack.c.b16 %v6629, %v6625
        %v6638 = vpack.c.b16 %v6630, %v6626
        %v6639 = vpack.c.b16 %v6631, %v6627
        %v6640 = vpack.c.b16 %v6632, %v6628
        %6649 = vmatprep.subr.bf16.mxu0 %v6634
        %6650 = vmatpush1.bf16.msra.mxu0 %v6633
        %6651 = vmatprep.subr.bf16.mxu0 %v6638
        %6652 = vmatpush1.bf16.msra.mxu0 %v6637
        %6653 = vmatprep.subr.bf16.mxu0 0
        %6654 = vmatpush1.bf16.msra.mxu0 0
        %6655 = vmatprep.subr.bf16.mxu0 0
        %6656 = vmatpush1.bf16.msra.mxu0 0
        %6657 = vmatprep.subr.bf16.mxu0 0
        %6658 = vmatpush1.bf16.msra.mxu0 0
        %6659 = vmatprep.subr.bf16.mxu0 0
        %6660 = vmatpush1.bf16.msra.mxu0 0
        %6661 = vmatprep.subr.bf16.mxu0 0
        %6662 = vmatpush1.bf16.msra.mxu0 0
        %6663 = vmatprep.subr.bf16.mxu0 0
        %6664 = vmatpush1.bf16.msra.mxu0 0
        %6665 = vmatprep.subr.bf16.mxu0 0
        %6666 = vmatpush1.bf16.msra.mxu0 0
        %6667 = vmatprep.subr.bf16.mxu0 0
        %6668 = vmatpush1.bf16.msra.mxu0 0
        %6669 = vmatprep.subr.bf16.mxu0 0
        %6670 = vmatpush1.bf16.msra.mxu0 0
        %6671 = vmatprep.subr.bf16.mxu0 0
        %6672 = vmatpush1.bf16.msra.mxu0 0
        %6673 = vmatprep.subr.bf16.mxu0 0
        %6674 = vmatpush1.bf16.msra.mxu0 0
        %6675 = vmatprep.subr.bf16.mxu0 0
        %6676 = vmatpush1.bf16.msra.mxu0 0
        %6677 = vmatprep.subr.bf16.mxu0 0
        %6678 = vmatpush1.bf16.msra.mxu0 0
        %6679 = vmatprep.subr.bf16.mxu0 0
        %6680 = vmatpush1.bf16.msra.mxu0 0
        %6681 = vmatprep.mubr.bf16.mxu0 0
        %6682 = vmatmul.mubr.bf16.gmra.mrb[0].mxu0 %v5007
        %v6683 = vpop.f32.mrb[0].mxu0
        %v6684 = vadd.f32 0.0, %v6683
        %v6685 = vpop.f32.mrb[0].mxu0
        %v6686 = vadd.f32 0.0, %v6685
        %v6687 = vpop.f32.mrb[0].mxu0
        %v6688 = vadd.f32 0.0, %v6687
        %v6689 = vpop.f32.mrb[0].mxu0
        %v6690 = vadd.f32 0.0, %v6689
        %6691 = vdwg.mxu0
        %6692 = vmatprep.subr.bf16.mxu0 %v6636
        %6693 = vmatpush1.bf16.msra.mxu0 %v6635
        %6694 = vmatprep.subr.bf16.mxu0 %v6640
        %6695 = vmatpush1.bf16.msra.mxu0 %v6639
        %6696 = vmatprep.subr.bf16.mxu0 0
        %6697 = vmatpush1.bf16.msra.mxu0 0
        %6698 = vmatprep.subr.bf16.mxu0 0
        %6699 = vmatpush1.bf16.msra.mxu0 0
        %6700 = vmatprep.subr.bf16.mxu0 0
        %6701 = vmatpush1.bf16.msra.mxu0 0
        %6702 = vmatprep.subr.bf16.mxu0 0
        %6703 = vmatpush1.bf16.msra.mxu0 0
        %6704 = vmatprep.subr.bf16.mxu0 0
        %6705 = vmatpush1.bf16.msra.mxu0 0
        %6706 = vmatprep.subr.bf16.mxu0 0
        %6707 = vmatpush1.bf16.msra.mxu0 0
        %6708 = vmatprep.subr.bf16.mxu0 0
        %6709 = vmatpush1.bf16.msra.mxu0 0
        %6710 = vmatprep.subr.bf16.mxu0 0
        %6711 = vmatpush1.bf16.msra.mxu0 0
        %6712 = vmatprep.subr.bf16.mxu0 0
        %6713 = vmatpush1.bf16.msra.mxu0 0
        %6714 = vmatprep.subr.bf16.mxu0 0
        %6715 = vmatpush1.bf16.msra.mxu0 0
        %6716 = vmatprep.subr.bf16.mxu0 0
        %6717 = vmatpush1.bf16.msra.mxu0 0
        %6718 = vmatprep.subr.bf16.mxu0 0
        %6719 = vmatpush1.bf16.msra.mxu0 0
        %6720 = vmatprep.subr.bf16.mxu0 0
        %6721 = vmatpush1.bf16.msra.mxu0 0
        %6722 = vmatprep.subr.bf16.mxu0 0
        %6723 = vmatpush1.bf16.msra.mxu0 0
        %6724 = vmatprep.mubr.bf16.mxu0 0
        %6725 = vmatmul.mubr.bf16.gmra.mrb[0].mxu0 %v5007
        %v6726 = vpop.f32.mrb[0].mxu0
        %v6727 = vadd.f32 0.0, %v6726
        %v6728 = vpop.f32.mrb[0].mxu0
        %v6729 = vadd.f32 0.0, %v6728
        %v6730 = vpop.f32.mrb[0].mxu0
        %v6731 = vadd.f32 0.0, %v6730
        %v6732 = vpop.f32.mrb[0].mxu0
        %v6733 = vadd.f32 0.0, %v6732
        %6734 = vdwg.mxu0
        %v6735 = vpack.c.bf16 %v6688, %v6684
        %v6736 = vpack.c.bf16 %v6690, %v6686
        %v6737 = vpack.c.bf16 %v6731, %v6727
        %v6738 = vpack.c.bf16 %v6733, %v6729
        %s6739 = sadd.s32 12, 16
        %s6740 = scalar_lea.vmem %s14, %s6739
        %v6741 = vld [vmem:[%s6740] sm:$0xf]
        %v6743 = vlaneseq
        %v6744 = vshrl.u32 %v6743, 7
        %v6745 = vsub.s32 0, %v6744
        %v6746 = vrot.slane %v6741, %v6745
        %v6747 = vlaneseq
        %v6748 = vshrl.u32 %v6747, 7
        %v6749 = vsub.s32 1, %v6748
        %v6750 = vrot.slane %v6741, %v6749
        %v6751 = vlaneseq
        %v6752 = vshrl.u32 %v6751, 7
        %v6753 = vsub.s32 2, %v6752
        %v6754 = vrot.slane %v6741, %v6753
        %v6755 = vlaneseq
        %v6756 = vshrl.u32 %v6755, 7
        %v6757 = vsub.s32 3, %v6756
        %v6758 = vrot.slane %v6741, %v6757
        %v6763 = vpack.c.bf16 %v6746, %v6746
        %v6764 = vpack.c.bf16 %v6750, %v6750
        %v6765 = vpack.c.bf16 %v6754, %v6754
        %v6766 = vpack.c.bf16 %v6758, %v6758
        %v6768 = vpack.i.b16 %v6763, %v6763
        %v6770 = vlaneseq
        %v6771 = vshrl.u32 %v6770, 7
        %v6772 = vsub.s32 0, %v6771
        %v6773 = vrot.slane %v6768, %v6772
        %v6775 = vpack.i.b16 %v6764, %v6764
        %v6777 = vlaneseq
        %v6778 = vshrl.u32 %v6777, 7
        %v6779 = vsub.s32 0, %v6778
        %v6780 = vrot.slane %v6775, %v6779
        %v6782 = vpack.i.b16 %v6765, %v6765
        %v6784 = vlaneseq
        %v6785 = vshrl.u32 %v6784, 7
        %v6786 = vsub.s32 0, %v6785
        %v6787 = vrot.slane %v6782, %v6786
        %v6789 = vpack.i.b16 %v6766, %v6766
        %v6791 = vlaneseq
        %v6792 = vshrl.u32 %v6791, 7
        %v6793 = vsub.s32 0, %v6792
        %v6794 = vrot.slane %v6789, %v6793
        %v6795 = vadd.bf16 %v6735, %v6773
        %v6796 = vadd.bf16 %v6736, %v6780
        %v6797 = vadd.bf16 %v6737, %v6787
        %v6798 = vadd.bf16 %v6738, %v6794
        %v6799 = vmax.bf16 %v6795, 0
        %v6800 = vmax.bf16 %v6796, 0
        %v6801 = vmax.bf16 %v6797, 0
        %v6802 = vmax.bf16 %v6798, 0
        %s6803 = sadd.s32 192, 256
        %s6804 = smul.addr %s6803, 4
        %s6805 = scalar_lea.vmem %s15, %s6804
        %v6806 = vld [vmem:[%s6805] sm:$0xf]
        %v6807 = vld [vmem:[%s6805 + $0x4] sm:$0xf]
        %v6808 = vld [vmem:[%s6805 + $0x8] sm:$0xf]
        %v6809 = vld [vmem:[%s6805 + $0xc] sm:$0xf]
        %v6810 = vld [vmem:[%s6805 + $0x10] sm:$0xf]
        %v6811 = vld [vmem:[%s6805 + $0x14] sm:$0xf]
        %v6812 = vld [vmem:[%s6805 + $0x18] sm:$0xf]
        %v6813 = vld [vmem:[%s6805 + $0x1c] sm:$0xf]
        %v6814 = vld [vmem:[%s6805 + $0x20] sm:$0xf]
        %v6815 = vld [vmem:[%s6805 + $0x24] sm:$0xf]
        %v6816 = vld [vmem:[%s6805 + $0x28] sm:$0xf]
        %v6817 = vld [vmem:[%s6805 + $0x2c] sm:$0xf]
        %v6818 = vld [vmem:[%s6805 + $0x30] sm:$0xf]
        %v6819 = vld [vmem:[%s6805 + $0x34] sm:$0xf]
        %v6820 = vld [vmem:[%s6805 + $0x38] sm:$0xf]
        %v6821 = vld [vmem:[%s6805 + $0x3c] sm:$0xf]
        %v6822 = vld [vmem:[%s6805 + $0x40] sm:$0xf]
        %v6823 = vld [vmem:[%s6805 + $0x44] sm:$0xf]
        %v6824 = vld [vmem:[%s6805 + $0x48] sm:$0xf]
        %v6825 = vld [vmem:[%s6805 + $0x4c] sm:$0xf]
        %v6826 = vld [vmem:[%s6805 + $0x50] sm:$0xf]
        %v6827 = vld [vmem:[%s6805 + $0x54] sm:$0xf]
        %v6828 = vld [vmem:[%s6805 + $0x58] sm:$0xf]
        %v6829 = vld [vmem:[%s6805 + $0x5c] sm:$0xf]
        %v6830 = vld [vmem:[%s6805 + $0x60] sm:$0xf]
        %v6831 = vld [vmem:[%s6805 + $0x64] sm:$0xf]
        %v6832 = vld [vmem:[%s6805 + $0x68] sm:$0xf]
        %v6833 = vld [vmem:[%s6805 + $0x6c] sm:$0xf]
        %v6834 = vld [vmem:[%s6805 + $0x70] sm:$0xf]
        %v6835 = vld [vmem:[%s6805 + $0x74] sm:$0xf]
        %v6836 = vld [vmem:[%s6805 + $0x78] sm:$0xf]
        %v6837 = vld [vmem:[%s6805 + $0x7c] sm:$0xf]
        %v6838 = vld [vmem:[%s6805 + $0x80] sm:$0xf]
        %v6839 = vld [vmem:[%s6805 + $0x84] sm:$0xf]
        %v6840 = vld [vmem:[%s6805 + $0x88] sm:$0xf]
        %v6841 = vld [vmem:[%s6805 + $0x8c] sm:$0xf]
        %v6842 = vld [vmem:[%s6805 + $0x90] sm:$0xf]
        %v6843 = vld [vmem:[%s6805 + $0x94] sm:$0xf]
        %v6844 = vld [vmem:[%s6805 + $0x98] sm:$0xf]
        %v6845 = vld [vmem:[%s6805 + $0x9c] sm:$0xf]
        %v6846 = vld [vmem:[%s6805 + $0xa0] sm:$0xf]
        %v6847 = vld [vmem:[%s6805 + $0xa4] sm:$0xf]
        %v6848 = vld [vmem:[%s6805 + $0xa8] sm:$0xf]
        %v6849 = vld [vmem:[%s6805 + $0xac] sm:$0xf]
        %v6850 = vld [vmem:[%s6805 + $0xb0] sm:$0xf]
        %v6851 = vld [vmem:[%s6805 + $0xb4] sm:$0xf]
        %v6852 = vld [vmem:[%s6805 + $0xb8] sm:$0xf]
        %v6853 = vld [vmem:[%s6805 + $0xbc] sm:$0xf]
        %v6854 = vld [vmem:[%s6805 + $0xc0] sm:$0xf]
        %v6855 = vld [vmem:[%s6805 + $0xc4] sm:$0xf]
        %v6856 = vld [vmem:[%s6805 + $0xc8] sm:$0xf]
        %v6857 = vld [vmem:[%s6805 + $0xcc] sm:$0xf]
        %v6858 = vld [vmem:[%s6805 + $0xd0] sm:$0xf]
        %v6859 = vld [vmem:[%s6805 + $0xd4] sm:$0xf]
        %v6860 = vld [vmem:[%s6805 + $0xd8] sm:$0xf]
        %v6861 = vld [vmem:[%s6805 + $0xdc] sm:$0xf]
        %v6862 = vld [vmem:[%s6805 + $0xe0] sm:$0xf]
        %v6863 = vld [vmem:[%s6805 + $0xe4] sm:$0xf]
        %v6864 = vld [vmem:[%s6805 + $0xe8] sm:$0xf]
        %v6865 = vld [vmem:[%s6805 + $0xec] sm:$0xf]
        %v6866 = vld [vmem:[%s6805 + $0xf0] sm:$0xf]
        %v6867 = vld [vmem:[%s6805 + $0xf4] sm:$0xf]
        %v6868 = vld [vmem:[%s6805 + $0xf8] sm:$0xf]
        %v6869 = vld [vmem:[%s6805 + $0xfc] sm:$0xf]
        %v6934 = vunpack.c.l.b16 %v6806
        %v6935 = vunpack.c.l.b16 %v6807
        %v6936 = vunpack.c.l.b16 %v6808
        %v6937 = vunpack.c.l.b16 %v6809
        %v6938 = vunpack.c.l.b16 %v6810
        %v6939 = vunpack.c.l.b16 %v6811
        %v6940 = vunpack.c.l.b16 %v6812
        %v6941 = vunpack.c.l.b16 %v6813
        %v6942 = vunpack.c.l.b16 %v6814
        %v6943 = vunpack.c.l.b16 %v6815
        %v6944 = vunpack.c.l.b16 %v6816
        %v6945 = vunpack.c.l.b16 %v6817
        %v6946 = vunpack.c.l.b16 %v6818
        %v6947 = vunpack.c.l.b16 %v6819
        %v6948 = vunpack.c.l.b16 %v6820
        %v6949 = vunpack.c.l.b16 %v6821
        %v6950 = vunpack.c.l.b16 %v6822
        %v6951 = vunpack.c.l.b16 %v6823
        %v6952 = vunpack.c.l.b16 %v6824
        %v6953 = vunpack.c.l.b16 %v6825
        %v6954 = vunpack.c.l.b16 %v6826
        %v6955 = vunpack.c.l.b16 %v6827
        %v6956 = vunpack.c.l.b16 %v6828
        %v6957 = vunpack.c.l.b16 %v6829
        %v6958 = vunpack.c.l.b16 %v6830
        %v6959 = vunpack.c.l.b16 %v6831
        %v6960 = vunpack.c.l.b16 %v6832
        %v6961 = vunpack.c.l.b16 %v6833
        %v6962 = vunpack.c.l.b16 %v6834
        %v6963 = vunpack.c.l.b16 %v6835
        %v6964 = vunpack.c.l.b16 %v6836
        %v6965 = vunpack.c.l.b16 %v6837
        %v6966 = vunpack.c.l.b16 %v6838
        %v6967 = vunpack.c.l.b16 %v6839
        %v6968 = vunpack.c.l.b16 %v6840
        %v6969 = vunpack.c.l.b16 %v6841
        %v6970 = vunpack.c.l.b16 %v6842
        %v6971 = vunpack.c.l.b16 %v6843
        %v6972 = vunpack.c.l.b16 %v6844
        %v6973 = vunpack.c.l.b16 %v6845
        %v6974 = vunpack.c.l.b16 %v6846
        %v6975 = vunpack.c.l.b16 %v6847
        %v6976 = vunpack.c.l.b16 %v6848
        %v6977 = vunpack.c.l.b16 %v6849
        %v6978 = vunpack.c.l.b16 %v6850
        %v6979 = vunpack.c.l.b16 %v6851
        %v6980 = vunpack.c.l.b16 %v6852
        %v6981 = vunpack.c.l.b16 %v6853
        %v6982 = vunpack.c.l.b16 %v6854
        %v6983 = vunpack.c.l.b16 %v6855
        %v6984 = vunpack.c.l.b16 %v6856
        %v6985 = vunpack.c.l.b16 %v6857
        %v6986 = vunpack.c.l.b16 %v6858
        %v6987 = vunpack.c.l.b16 %v6859
        %v6988 = vunpack.c.l.b16 %v6860
        %v6989 = vunpack.c.l.b16 %v6861
        %v6990 = vunpack.c.l.b16 %v6862
        %v6991 = vunpack.c.l.b16 %v6863
        %v6992 = vunpack.c.l.b16 %v6864
        %v6993 = vunpack.c.l.b16 %v6865
        %v6994 = vunpack.c.l.b16 %v6866
        %v6995 = vunpack.c.l.b16 %v6867
        %v6996 = vunpack.c.l.b16 %v6868
        %v6997 = vunpack.c.l.b16 %v6869
        %v6998 = vpack.c.b16 %v6935, %v6934
        %v6999 = vpack.c.b16 %v6937, %v6936
        %v7000 = vpack.c.b16 %v6939, %v6938
        %v7001 = vpack.c.b16 %v6941, %v6940
        %v7002 = vpack.c.b16 %v6943, %v6942
        %v7003 = vpack.c.b16 %v6945, %v6944
        %v7004 = vpack.c.b16 %v6947, %v6946
        %v7005 = vpack.c.b16 %v6949, %v6948
        %v7006 = vpack.c.b16 %v6951, %v6950
        %v7007 = vpack.c.b16 %v6953, %v6952
        %v7008 = vpack.c.b16 %v6955, %v6954
        %v7009 = vpack.c.b16 %v6957, %v6956
        %v7010 = vpack.c.b16 %v6959, %v6958
        %v7011 = vpack.c.b16 %v6961, %v6960
        %v7012 = vpack.c.b16 %v6963, %v6962
        %v7013 = vpack.c.b16 %v6965, %v6964
        %v7014 = vpack.c.b16 %v6967, %v6966
        %v7015 = vpack.c.b16 %v6969, %v6968
        %v7016 = vpack.c.b16 %v6971, %v6970
        %v7017 = vpack.c.b16 %v6973, %v6972
        %v7018 = vpack.c.b16 %v6975, %v6974
        %v7019 = vpack.c.b16 %v6977, %v6976
        %v7020 = vpack.c.b16 %v6979, %v6978
        %v7021 = vpack.c.b16 %v6981, %v6980
        %v7022 = vpack.c.b16 %v6983, %v6982
        %v7023 = vpack.c.b16 %v6985, %v6984
        %v7024 = vpack.c.b16 %v6987, %v6986
        %v7025 = vpack.c.b16 %v6989, %v6988
        %v7026 = vpack.c.b16 %v6991, %v6990
        %v7027 = vpack.c.b16 %v6993, %v6992
        %v7028 = vpack.c.b16 %v6995, %v6994
        %v7029 = vpack.c.b16 %v6997, %v6996
        %7062 = vmatprep.subr.bf16.mxu0 0
        %7063 = vmatpush1.bf16.msra.mxu0 %v6998
        %7064 = vmatprep.subr.bf16.mxu0 0
        %7065 = vmatpush1.bf16.msra.mxu0 %v6999
        %7066 = vmatprep.subr.bf16.mxu0 0
        %7067 = vmatpush1.bf16.msra.mxu0 %v7000
        %7068 = vmatprep.subr.bf16.mxu0 0
        %7069 = vmatpush1.bf16.msra.mxu0 %v7001
        %7070 = vmatprep.subr.bf16.mxu0 0
        %7071 = vmatpush1.bf16.msra.mxu0 %v7002
        %7072 = vmatprep.subr.bf16.mxu0 0
        %7073 = vmatpush1.bf16.msra.mxu0 %v7003
        %7074 = vmatprep.subr.bf16.mxu0 0
        %7075 = vmatpush1.bf16.msra.mxu0 %v7004
        %7076 = vmatprep.subr.bf16.mxu0 0
        %7077 = vmatpush1.bf16.msra.mxu0 %v7005
        %7078 = vmatprep.subr.bf16.mxu0 0
        %7079 = vmatpush1.bf16.msra.mxu0 %v7006
        %7080 = vmatprep.subr.bf16.mxu0 0
        %7081 = vmatpush1.bf16.msra.mxu0 %v7007
        %7082 = vmatprep.subr.bf16.mxu0 0
        %7083 = vmatpush1.bf16.msra.mxu0 %v7008
        %7084 = vmatprep.subr.bf16.mxu0 0
        %7085 = vmatpush1.bf16.msra.mxu0 %v7009
        %7086 = vmatprep.subr.bf16.mxu0 0
        %7087 = vmatpush1.bf16.msra.mxu0 %v7010
        %7088 = vmatprep.subr.bf16.mxu0 0
        %7089 = vmatpush1.bf16.msra.mxu0 %v7011
        %7090 = vmatprep.subr.bf16.mxu0 0
        %7091 = vmatpush1.bf16.msra.mxu0 %v7012
        %7092 = vmatprep.subr.bf16.mxu0 0
        %7093 = vmatpush1.bf16.msra.mxu0 %v7013
        %7094 = vmatprep.mubr.bf16.mxu0 %v6800
        %7095 = vmatmul.mubr.bf16.gmra.mrb[0].mxu0 %v6799
        %v7096 = vpop.f32.mrb[0].mxu0
        %v7097 = vadd.f32 0.0, %v7096
        %v7098 = vpop.f32.mrb[0].mxu0
        %v7099 = vpop.f32.mrb[0].mxu0
        %v7100 = vadd.f32 0.0, %v7099
        %v7101 = vpop.f32.mrb[0].mxu0
        %7102 = vdwg.mxu0
        %7103 = vmatprep.subr.bf16.mxu0 0
        %7104 = vmatpush1.bf16.msra.mxu0 %v7014
        %7105 = vmatprep.subr.bf16.mxu0 0
        %7106 = vmatpush1.bf16.msra.mxu0 %v7015
        %7107 = vmatprep.subr.bf16.mxu0 0
        %7108 = vmatpush1.bf16.msra.mxu0 %v7016
        %7109 = vmatprep.subr.bf16.mxu0 0
        %7110 = vmatpush1.bf16.msra.mxu0 %v7017
        %7111 = vmatprep.subr.bf16.mxu0 0
        %7112 = vmatpush1.bf16.msra.mxu0 %v7018
        %7113 = vmatprep.subr.bf16.mxu0 0
        %7114 = vmatpush1.bf16.msra.mxu0 %v7019
        %7115 = vmatprep.subr.bf16.mxu0 0
        %7116 = vmatpush1.bf16.msra.mxu0 %v7020
        %7117 = vmatprep.subr.bf16.mxu0 0
        %7118 = vmatpush1.bf16.msra.mxu0 %v7021
        %7119 = vmatprep.subr.bf16.mxu0 0
        %7120 = vmatpush1.bf16.msra.mxu0 %v7022
        %7121 = vmatprep.subr.bf16.mxu0 0
        %7122 = vmatpush1.bf16.msra.mxu0 %v7023
        %7123 = vmatprep.subr.bf16.mxu0 0
        %7124 = vmatpush1.bf16.msra.mxu0 %v7024
        %7125 = vmatprep.subr.bf16.mxu0 0
        %7126 = vmatpush1.bf16.msra.mxu0 %v7025
        %7127 = vmatprep.subr.bf16.mxu0 0
        %7128 = vmatpush1.bf16.msra.mxu0 %v7026
        %7129 = vmatprep.subr.bf16.mxu0 0
        %7130 = vmatpush1.bf16.msra.mxu0 %v7027
        %7131 = vmatprep.subr.bf16.mxu0 0
        %7132 = vmatpush1.bf16.msra.mxu0 %v7028
        %7133 = vmatprep.subr.bf16.mxu0 0
        %7134 = vmatpush1.bf16.msra.mxu0 %v7029
        %7135 = vmatprep.mubr.bf16.mxu0 %v6802
        %7136 = vmatmul.mubr.bf16.gmra.mrb[0].mxu0 %v6801
        %v7137 = vpop.f32.mrb[0].mxu0
        %v7138 = vadd.f32 %v7097, %v7137
        %v7139 = vpop.f32.mrb[0].mxu0
        %v7140 = vpop.f32.mrb[0].mxu0
        %v7141 = vadd.f32 %v7100, %v7140
        %v7142 = vpop.f32.mrb[0].mxu0
        %7143 = vdwg.mxu0
        %v7144 = vadd.f32 %v6596, %v7138
        %v7145 = vadd.f32 %v6597, %v7141
        %s7146 = scalar_lea.vmem %s16, 1
        %v7147 = vld [vmem:[%s7146] sm:$0x1]
        %v7149 = vlaneseq
        %v7150 = vshrl.u32 %v7149, 7
        %v7151 = vsub.s32 0, %v7150
        %v7152 = vrot.slane %v7147, %v7151
        %v7154 = vadd.f32 %v7144, %v7152
        %v7155 = vadd.f32 %v7145, %v7152
        %v7156 = vadd.f32 %v4952, %v7154
        %v7157 = vadd.f32 %v4953, %v7155
        %v7158 = vsel %vm935, %v7156, 0.0
        %7159 = vadd.xlane.f32.xlu0 %v7158
        %v7160 = vpop.xlane.xlu0 %7159
        %v7161 = vsel %vm935, %v7157, 0.0
        %7162 = vadd.xlane.f32.xlu0 %v7161
        %v7163 = vpop.xlane.xlu0 %7162
        %v7164 = vmul.f32 %v7160, %v1797
        %v7165 = vmul.f32 %v7163, %v1797
        %v7166 = vsub.f32 %v7156, %v7164
        %v7167 = vsub.f32 %v7157, %v7165
        %v7168 = vmul.f32 %v7166, %v7166
        %v7169 = vmul.f32 %v7167, %v7167
        %v7170 = vsel %vm935, %v7168, 0.0
        %7171 = vadd.xlane.f32.xlu0 %v7170
        %v7172 = vpop.xlane.xlu0 %7171
        %v7173 = vsel %vm935, %v7169, 0.0
        %7174 = vadd.xlane.f32.xlu0 %v7173
        %v7175 = vpop.xlane.xlu0 %7174
        %v7176 = vmul.f32 %v7172, %v1797
        %v7177 = vmul.f32 %v7175, %v1797
        %v7178 = vadd.f32 %v7176, 1e-05
        %v7179 = vadd.f32 %v7177, 1e-05
        %v7180 = vrsqrt.pop %v7178
        %v7181 = vrsqrt.pop %v7179
        %v7182 = vmul.f32 %v7166, %v7180
        %v7183 = vmul.f32 %v7167, %v7181
        %s7184 = scalar_lea.vmem %s11, 1
        %v7185 = vld [vmem:[%s7184] sm:$0x1]
        %v7187 = vlaneseq
        %v7188 = vshrl.u32 %v7187, 7
        %v7189 = vsub.s32 0, %v7188
        %v7190 = vrot.slane %v7185, %v7189
        %v7192 = vmul.f32 %v7182, %v7190
        %v7193 = vmul.f32 %v7183, %v7190
        %s7194 = scalar_lea.vmem %s12, 1
        %v7195 = vld [vmem:[%s7194] sm:$0x1]
        %v7197 = vlaneseq
        %v7198 = vshrl.u32 %v7197, 7
        %v7199 = vsub.s32 0, %v7198
        %v7200 = vrot.slane %v7195, %v7199
        %v7202 = vadd.f32 %v7192, %v7200
        %v7203 = vadd.f32 %v7193, %v7200
        %v7204 = vld [vmem:[%s17] sm:$0xff]
        %v7205 = vld [vmem:[%s17 + $0x8] sm:$0xff]
        %v7206 = vld [vmem:[%s17 + $0x10] sm:$0xff]
        %v7207 = vld [vmem:[%s17 + $0x18] sm:$0xff]
        %v7208 = vld [vmem:[%s18] sm:$0x1]
        %v7210 = vlaneseq
        %v7211 = vshrl.u32 %v7210, 7
        %v7212 = vsub.s32 0, %v7211
        %v7213 = vrot.slane %v7208, %v7212
        %v7216 = vsel %vm935, %v7202, 0
        %v7219 = vsel %vm935, %v7203, 0
        %7221 = vmatprep.subr.mxu0 0.0
        %7222 = vmatpush1.msra.mxu0 %v7204
        %7223 = vmatprep.subr.mxu0 0.0
        %7224 = vmatpush1.msra.mxu0 %v7205
        %7225 = vmatprep.subr.mxu0 0.0
        %7226 = vmatpush1.msra.mxu0 %v7206
        %7227 = vmatprep.subr.mxu0 0.0
        %7228 = vmatpush1.msra.mxu0 %v7207
        %7229 = vmatprep.subr.mxu0 0.0
        %7230 = vmatpush1.msra.mxu0 0.0
        %7231 = vmatprep.subr.mxu0 0.0
        %7232 = vmatpush1.msra.mxu0 0.0
        %7233 = vmatprep.subr.mxu0 0.0
        %7234 = vmatpush1.msra.mxu0 0.0
        %7235 = vmatprep.subr.mxu0 0.0
        %7236 = vmatpush1.msra.mxu0 0.0
        %7237 = vmatprep.subr.mxu0 0.0
        %7238 = vmatpush1.msra.mxu0 0.0
        %7239 = vmatprep.subr.mxu0 0.0
        %7240 = vmatpush1.msra.mxu0 0.0
        %7241 = vmatprep.subr.mxu0 0.0
        %7242 = vmatpush1.msra.mxu0 0.0
        %7243 = vmatprep.subr.mxu0 0.0
        %7244 = vmatpush1.msra.mxu0 0.0
        %7245 = vmatprep.subr.mxu0 0.0
        %7246 = vmatpush1.msra.mxu0 0.0
        %7247 = vmatprep.subr.mxu0 0.0
        %7248 = vmatpush1.msra.mxu0 0.0
        %7249 = vmatprep.subr.mxu0 0.0
        %7250 = vmatpush1.msra.mxu0 0.0
        %7251 = vmatprep.subr.mxu0 0.0
        %7252 = vmatpush1.msra.mxu0 0.0
        %7253 = vmatprep.subr.mxu0 0.0
        %7254 = vmatpush1.msra.mxu0 0.0
        %7255 = vmatprep.subr.mxu0 0.0
        %7256 = vmatpush1.msra.mxu0 0.0
        %7257 = vmatprep.subr.mxu0 0.0
        %7258 = vmatpush1.msra.mxu0 0.0
        %7259 = vmatprep.subr.mxu0 0.0
        %7260 = vmatpush1.msra.mxu0 0.0
        %7261 = vmatprep.subr.mxu0 0.0
        %7262 = vmatpush1.msra.mxu0 0.0
        %7263 = vmatprep.subr.mxu0 0.0
        %7264 = vmatpush1.msra.mxu0 0.0
        %7265 = vmatprep.subr.mxu0 0.0
        %7266 = vmatpush1.msra.mxu0 0.0
        %7267 = vmatprep.subr.mxu0 0.0
        %7268 = vmatpush1.msra.mxu0 0.0
        %7269 = vmatprep.subr.mxu0 0.0
        %7270 = vmatpush1.msra.mxu0 0.0
        %7271 = vmatprep.subr.mxu0 0.0
        %7272 = vmatpush1.msra.mxu0 0.0
        %7273 = vmatprep.subr.mxu0 0.0
        %7274 = vmatpush1.msra.mxu0 0.0
        %7275 = vmatprep.subr.mxu0 0.0
        %7276 = vmatpush1.msra.mxu0 0.0
        %7277 = vmatprep.subr.mxu0 0.0
        %7278 = vmatpush1.msra.mxu0 0.0
        %7279 = vmatprep.subr.mxu0 0.0
        %7280 = vmatpush1.msra.mxu0 0.0
        %7281 = vmatprep.subr.mxu0 0.0
        %7282 = vmatpush1.msra.mxu0 0.0
        %7283 = vmatprep.subr.mxu0 0.0
        %7284 = vmatpush1.msra.mxu0 0.0
        %7285 = vmatprep.mubr.f32.mxu0 0.0
        %7286 = vmatmul.mubr.f32.gmra.mrb[0].mxu0 %v7216
        %v7287 = vpop.f32.mrb[0].mxu0
        %v7288 = vadd.f32 %v7213, %v7287
        %v7289 = vpop.f32.mrb[0].mxu0
        %7290 = vmatprep.mubr.f32.mxu0 0.0
        %7291 = vmatmul.mubr.f32.gmra.mrb[0].mxu0 %v7219
        %v7292 = vpop.f32.mrb[0].mxu0
        %v7293 = vadd.f32 %v7213, %v7292
        %v7294 = vpop.f32.mrb[0].mxu0
        %7295 = vdwg.mxu0
        %v7296 = vld [vmem:[%s902] sm:$0x1]
        %v7297 = vld [vmem:[%s19] sm:$0xff]
        %v7298 = vld [vmem:[%s19 + $0x8] sm:$0xff]
        %v7299 = vld [vmem:[%s19 + $0x10] sm:$0xff]
        %v7300 = vld [vmem:[%s20] sm:$0x1]
        %vm7301 = vcmask 195584
        %v7303 = vsel %vm7301, %v7296, 0
        %7305 = vmatprep.subr.mxu0 0.0
        %7306 = vmatpush1.msra.mxu0 %v7297
        %7307 = vmatprep.subr.mxu0 0.0
        %7308 = vmatpush1.msra.mxu0 %v7298
        %7309 = vmatprep.subr.mxu0 0.0
        %7310 = vmatpush1.msra.mxu0 %v7299
        %7311 = vmatprep.subr.mxu0 0.0
        %7312 = vmatpush1.msra.mxu0 0.0
        %7313 = vmatprep.subr.mxu0 0.0
        %7314 = vmatpush1.msra.mxu0 0.0
        %7315 = vmatprep.subr.mxu0 0.0
        %7316 = vmatpush1.msra.mxu0 0.0
        %7317 = vmatprep.subr.mxu0 0.0
        %7318 = vmatpush1.msra.mxu0 0.0
        %7319 = vmatprep.subr.mxu0 0.0
        %7320 = vmatpush1.msra.mxu0 0.0
        %7321 = vmatprep.subr.mxu0 0.0
        %7322 = vmatpush1.msra.mxu0 0.0
        %7323 = vmatprep.subr.mxu0 0.0
        %7324 = vmatpush1.msra.mxu0 0.0
        %7325 = vmatprep.subr.mxu0 0.0
        %7326 = vmatpush1.msra.mxu0 0.0
        %7327 = vmatprep.subr.mxu0 0.0
        %7328 = vmatpush1.msra.mxu0 0.0
        %7329 = vmatprep.subr.mxu0 0.0
        %7330 = vmatpush1.msra.mxu0 0.0
        %7331 = vmatprep.subr.mxu0 0.0
        %7332 = vmatpush1.msra.mxu0 0.0
        %7333 = vmatprep.subr.mxu0 0.0
        %7334 = vmatpush1.msra.mxu0 0.0
        %7335 = vmatprep.subr.mxu0 0.0
        %7336 = vmatpush1.msra.mxu0 0.0
        %7337 = vmatprep.subr.mxu0 0.0
        %7338 = vmatpush1.msra.mxu0 0.0
        %7339 = vmatprep.subr.mxu0 0.0
        %7340 = vmatpush1.msra.mxu0 0.0
        %7341 = vmatprep.subr.mxu0 0.0
        %7342 = vmatpush1.msra.mxu0 0.0
        %7343 = vmatprep.subr.mxu0 0.0
        %7344 = vmatpush1.msra.mxu0 0.0
        %7345 = vmatprep.subr.mxu0 0.0
        %7346 = vmatpush1.msra.mxu0 0.0
        %7347 = vmatprep.subr.mxu0 0.0
        %7348 = vmatpush1.msra.mxu0 0.0
        %7349 = vmatprep.subr.mxu0 0.0
        %7350 = vmatpush1.msra.mxu0 0.0
        %7351 = vmatprep.subr.mxu0 0.0
        %7352 = vmatpush1.msra.mxu0 0.0
        %7353 = vmatprep.subr.mxu0 0.0
        %7354 = vmatpush1.msra.mxu0 0.0
        %7355 = vmatprep.subr.mxu0 0.0
        %7356 = vmatpush1.msra.mxu0 0.0
        %7357 = vmatprep.subr.mxu0 0.0
        %7358 = vmatpush1.msra.mxu0 0.0
        %7359 = vmatprep.subr.mxu0 0.0
        %7360 = vmatpush1.msra.mxu0 0.0
        %7361 = vmatprep.subr.mxu0 0.0
        %7362 = vmatpush1.msra.mxu0 0.0
        %7363 = vmatprep.subr.mxu0 0.0
        %7364 = vmatpush1.msra.mxu0 0.0
        %7365 = vmatprep.subr.mxu0 0.0
        %7366 = vmatpush1.msra.mxu0 0.0
        %7367 = vmatprep.subr.mxu0 0.0
        %7368 = vmatpush1.msra.mxu0 0.0
        %7369 = vmatprep.mubr.f32.mxu0 0.0
        %7370 = vmatmul.mubr.f32.gmra.mrb[0].mxu0 %v7303
        %v7371 = vpop.f32.mrb[0].mxu0
        %v7372 = vadd.f32 %v7300, %v7371
        %v7373 = vpop.f32.mrb[0].mxu0
        %7374 = vdwg.mxu0
        %v7375 = vld [vmem:[%s905] sm:$0x1]
        %v7376 = vld [vmem:[%s21] sm:$0xff]
        %v7377 = vld [vmem:[%s21 + $0x8] sm:$0xff]
        %v7378 = vld [vmem:[%s21 + $0x10] sm:$0xf]
        %v7379 = vld [vmem:[%s22] sm:$0x1]
        %vm7380 = vcmask 162816
        %v7382 = vsel %vm7380, %v7375, 0
        %vm7384 = vcmask 1043456
        %v7386 = vsel %vm7384, %v7378, 0
        %7388 = vmatprep.subr.mxu0 0.0
        %7389 = vmatpush1.msra.mxu0 %v7376
        %7390 = vmatprep.subr.mxu0 0.0
        %7391 = vmatpush1.msra.mxu0 %v7377
        %7392 = vmatprep.subr.mxu0 0.0
        %7393 = vmatpush1.msra.mxu0 %v7386
        %7394 = vmatprep.subr.mxu0 0.0
        %7395 = vmatpush1.msra.mxu0 0.0
        %7396 = vmatprep.subr.mxu0 0.0
        %7397 = vmatpush1.msra.mxu0 0.0
        %7398 = vmatprep.subr.mxu0 0.0
        %7399 = vmatpush1.msra.mxu0 0.0
        %7400 = vmatprep.subr.mxu0 0.0
        %7401 = vmatpush1.msra.mxu0 0.0
        %7402 = vmatprep.subr.mxu0 0.0
        %7403 = vmatpush1.msra.mxu0 0.0
        %7404 = vmatprep.subr.mxu0 0.0
        %7405 = vmatpush1.msra.mxu0 0.0
        %7406 = vmatprep.subr.mxu0 0.0
        %7407 = vmatpush1.msra.mxu0 0.0
        %7408 = vmatprep.subr.mxu0 0.0
        %7409 = vmatpush1.msra.mxu0 0.0
        %7410 = vmatprep.subr.mxu0 0.0
        %7411 = vmatpush1.msra.mxu0 0.0
        %7412 = vmatprep.subr.mxu0 0.0
        %7413 = vmatpush1.msra.mxu0 0.0
        %7414 = vmatprep.subr.mxu0 0.0
        %7415 = vmatpush1.msra.mxu0 0.0
        %7416 = vmatprep.subr.mxu0 0.0
        %7417 = vmatpush1.msra.mxu0 0.0
        %7418 = vmatprep.subr.mxu0 0.0
        %7419 = vmatpush1.msra.mxu0 0.0
        %7420 = vmatprep.subr.mxu0 0.0
        %7421 = vmatpush1.msra.mxu0 0.0
        %7422 = vmatprep.subr.mxu0 0.0
        %7423 = vmatpush1.msra.mxu0 0.0
        %7424 = vmatprep.subr.mxu0 0.0
        %7425 = vmatpush1.msra.mxu0 0.0
        %7426 = vmatprep.subr.mxu0 0.0
        %7427 = vmatpush1.msra.mxu0 0.0
        %7428 = vmatprep.subr.mxu0 0.0
        %7429 = vmatpush1.msra.mxu0 0.0
        %7430 = vmatprep.subr.mxu0 0.0
        %7431 = vmatpush1.msra.mxu0 0.0
        %7432 = vmatprep.subr.mxu0 0.0
        %7433 = vmatpush1.msra.mxu0 0.0
        %7434 = vmatprep.subr.mxu0 0.0
        %7435 = vmatpush1.msra.mxu0 0.0
        %7436 = vmatprep.subr.mxu0 0.0
        %7437 = vmatpush1.msra.mxu0 0.0
        %7438 = vmatprep.subr.mxu0 0.0
        %7439 = vmatpush1.msra.mxu0 0.0
        %7440 = vmatprep.subr.mxu0 0.0
        %7441 = vmatpush1.msra.mxu0 0.0
        %7442 = vmatprep.subr.mxu0 0.0
        %7443 = vmatpush1.msra.mxu0 0.0
        %7444 = vmatprep.subr.mxu0 0.0
        %7445 = vmatpush1.msra.mxu0 0.0
        %7446 = vmatprep.subr.mxu0 0.0
        %7447 = vmatpush1.msra.mxu0 0.0
        %7448 = vmatprep.subr.mxu0 0.0
        %7449 = vmatpush1.msra.mxu0 0.0
        %7450 = vmatprep.subr.mxu0 0.0
        %7451 = vmatpush1.msra.mxu0 0.0
        %7452 = vmatprep.mubr.f32.mxu0 0.0
        %7453 = vmatmul.mubr.f32.gmra.mrb[0].mxu0 %v7382
        %v7454 = vpop.f32.mrb[0].mxu0
        %v7455 = vadd.f32 %v7379, %v7454
        %v7456 = vpop.f32.mrb[0].mxu0
        %7457 = vdwg.mxu0
        %v7459 = vrot.slane %v7455, 7
        %vm7461 = vcmask 1040384
        %v7462 = vsel %vm7461, %v7372, %v7459
        %v7465 = vunpack.c.l.s4 1966171168
        %v7466 = vunpack.c.0.s8 %v7465
        %v7467 = vlaneseq
        %v7468 = vshrl.u32 %v7467, 7
        %v7469 = vsub.s32 %v7466, %v7468
        %v7470 = vrot.slane %v7462, %v7469
        %v7471 = vcombine.high %v7470, %v7470
        %v7473 = vunpack.c.l.s4 1966171168
        %v7474 = vunpack.c.0.s8 %v7473
        %v7475 = vlaneseq
        %v7476 = vshrl.u32 %v7475, 7
        %v7477 = vsub.s32 %v7474, %v7476
        %v7478 = vrot.slane %v7470, %v7477
        %v7480 = vunpack.c.l.s4 1966171168
        %v7481 = vunpack.c.0.s8 %v7480
        %v7482 = vlaneseq
        %v7483 = vshrl.u32 %v7482, 7
        %v7484 = vsub.s32 %v7481, %v7483
        %v7485 = vrot.slane %v7471, %v7484
        %v7486 = vlaneseq
        %v7487 = vshrl.u32 %v7486, 7
        %v7488 = vsub.s32 0, %v7487
        %v7489 = vrot.slane %v7478, %v7488
        %v7490 = vlaneseq
        %v7491 = vshrl.u32 %v7490, 7
        %v7492 = vsub.s32 0, %v7491
        %v7493 = vrot.slane %v7485, %v7492
        %v7496 = vmul.f32 %v7288, %v7489
        %v7497 = vmul.f32 %v7293, %v7493
        %v7498 = vsel %vm1016, %v7496, 0.0
        %7499 = vadd.xlane.f32.xlu0 %v7498
        %v7500 = vpop.xlane.xlu0 %7499
        %v7501 = vsel %vm1016, %v7497, 0.0
        %7502 = vadd.xlane.f32.xlu0 %v7501
        %v7503 = vpop.xlane.xlu0 %7502
        %v7504 = vld [vmem:[%s27] sm:$0x3]
        %v7505 = vld [vmem:[%s899] sm:$0x3]
        %7507 = vset.pattern.permute.xlu0 0
        %7508 = vperm.xlu0 %7507, %v7504
        %v7509 = vpop.permute.xlu0 %7508
        %v7511 = vmul.f32 %v7505, %v7509
        %v7513 = vlaneseq
        %v7514 = vshrl.u32 %v7513, 7
        %v7515 = vsub.s32 0, %v7514
        %v7516 = vrot.slane %v7511, %v7515
        %7518 = vbcast.lane.b32.xlu0 %v7516, 256
        %v7519 = vpop.permute.xlu0 %7518
        %v7520 = vlaneseq
        %v7521 = vshrl.u32 %v7520, 7
        %v7522 = vsub.s32 1, %v7521
        %v7523 = vrot.slane %v7511, %v7522
        %7525 = vbcast.lane.b32.xlu0 %v7523, 256
        %v7526 = vpop.permute.xlu0 %7525
        %v7529 = vadd.f32 %v7500, %v7519
        %v7530 = vadd.f32 %v7503, %v7526
        %7531 = vset.pattern.permute.xlu0 1
        %7532 = vperm.xlu0 %7531, %v7504
        %v7533 = vpop.permute.xlu0 %7532
        %v7534 = vlaneseq
        %v7535 = vshrl.u32 %v7534, 7
        %v7536 = vsub.s32 0, %v7535
        %v7537 = vrot.slane %v7533, %v7536
        %v7538 = vlaneseq
        %v7539 = vshrl.u32 %v7538, 7
        %v7540 = vsub.s32 1, %v7539
        %v7541 = vrot.slane %v7533, %v7540
        %v7544 = vadd.f32 %v7529, %v7537
        %v7545 = vadd.f32 %v7530, %v7541
        %7547 = vset.pattern.permute.xlu0 0
        %7548 = vperm.xlu0 %7547, %v7544
        %v7549 = vpop.permute.xlu0 %7548
        %7552 = vset.pattern.permute.xlu0 0
        %7553 = vperm.xlu0 %7552, %v7545
        %v7554 = vpop.permute.xlu0 %7553
        %v7556 = vmul.f32 %v7549, %v7288
        %v7557 = vmul.f32 %v7554, %v7293
        %v7558 = vlaneseq
        %v7559 = vshrl.u32 %v7558, 7
        %v7560 = vsub.s32 0, %v7559
        %v7561 = vrot.slane %v910, %v7560
        %7563 = vbcast.lane.b32.xlu0 %v7561, 256
        %v7564 = vpop.permute.xlu0 %7563
        %v7565 = vlaneseq
        %v7566 = vshrl.u32 %v7565, 7
        %v7567 = vsub.s32 1, %v7566
        %v7568 = vrot.slane %v910, %v7567
        %7570 = vbcast.lane.b32.xlu0 %v7568, 256
        %v7571 = vpop.permute.xlu0 %7570
        %v7572 = vadd.f32 %v7556, %v7564
        %v7573 = vadd.f32 %v7557, %v7571
        %v7574 = vsel %vm1016, %v7572, -inf
        %v7575 = vrot.slane %v7574, 4
        %v7576 = vmax.f32 %v7574, %v7575
        %v7577 = vrot.slane %v7576, 2
        %v7578 = vmax.f32 %v7576, %v7577
        %v7579 = vrot.slane %v7578, 1
        %v7580 = vmax.f32 %v7578, %v7579
        %v7581 = vsel %vm1016, %v7573, -inf
        %v7582 = vrot.slane %v7581, 4
        %v7583 = vmax.f32 %v7581, %v7582
        %v7584 = vrot.slane %v7583, 2
        %v7585 = vmax.f32 %v7583, %v7584
        %v7586 = vrot.slane %v7585, 1
        %v7587 = vmax.f32 %v7585, %v7586
        %v7588 = vld [vmem:[%s23] sm:$0xff]
        %v7589 = vld [vmem:[%s23 + $0x8] sm:$0xff]
        %v7590 = vld [vmem:[%s24] sm:$0x1]
        %v7592 = vsel %vm1016, %v7580, 0
        %7594 = vmatprep.subr.mxu0 0.0
        %7595 = vmatpush1.msra.mxu0 %v7588
        %7596 = vmatprep.subr.mxu0 0.0
        %7597 = vmatpush1.msra.mxu0 %v7589
        %7598 = vmatprep.subr.mxu0 0.0
        %7599 = vmatpush1.msra.mxu0 0.0
        %7600 = vmatprep.subr.mxu0 0.0
        %7601 = vmatpush1.msra.mxu0 0.0
        %7602 = vmatprep.subr.mxu0 0.0
        %7603 = vmatpush1.msra.mxu0 0.0
        %7604 = vmatprep.subr.mxu0 0.0
        %7605 = vmatpush1.msra.mxu0 0.0
        %7606 = vmatprep.subr.mxu0 0.0
        %7607 = vmatpush1.msra.mxu0 0.0
        %7608 = vmatprep.subr.mxu0 0.0
        %7609 = vmatpush1.msra.mxu0 0.0
        %7610 = vmatprep.subr.mxu0 0.0
        %7611 = vmatpush1.msra.mxu0 0.0
        %7612 = vmatprep.subr.mxu0 0.0
        %7613 = vmatpush1.msra.mxu0 0.0
        %7614 = vmatprep.subr.mxu0 0.0
        %7615 = vmatpush1.msra.mxu0 0.0
        %7616 = vmatprep.subr.mxu0 0.0
        %7617 = vmatpush1.msra.mxu0 0.0
        %7618 = vmatprep.subr.mxu0 0.0
        %7619 = vmatpush1.msra.mxu0 0.0
        %7620 = vmatprep.subr.mxu0 0.0
        %7621 = vmatpush1.msra.mxu0 0.0
        %7622 = vmatprep.subr.mxu0 0.0
        %7623 = vmatpush1.msra.mxu0 0.0
        %7624 = vmatprep.subr.mxu0 0.0
        %7625 = vmatpush1.msra.mxu0 0.0
        %7626 = vmatprep.subr.mxu0 0.0
        %7627 = vmatpush1.msra.mxu0 0.0
        %7628 = vmatprep.subr.mxu0 0.0
        %7629 = vmatpush1.msra.mxu0 0.0
        %7630 = vmatprep.subr.mxu0 0.0
        %7631 = vmatpush1.msra.mxu0 0.0
        %7632 = vmatprep.subr.mxu0 0.0
        %7633 = vmatpush1.msra.mxu0 0.0
        %7634 = vmatprep.subr.mxu0 0.0
        %7635 = vmatpush1.msra.mxu0 0.0
        %7636 = vmatprep.subr.mxu0 0.0
        %7637 = vmatpush1.msra.mxu0 0.0
        %7638 = vmatprep.subr.mxu0 0.0
        %7639 = vmatpush1.msra.mxu0 0.0
        %7640 = vmatprep.subr.mxu0 0.0
        %7641 = vmatpush1.msra.mxu0 0.0
        %7642 = vmatprep.subr.mxu0 0.0
        %7643 = vmatpush1.msra.mxu0 0.0
        %7644 = vmatprep.subr.mxu0 0.0
        %7645 = vmatpush1.msra.mxu0 0.0
        %7646 = vmatprep.subr.mxu0 0.0
        %7647 = vmatpush1.msra.mxu0 0.0
        %7648 = vmatprep.subr.mxu0 0.0
        %7649 = vmatpush1.msra.mxu0 0.0
        %7650 = vmatprep.subr.mxu0 0.0
        %7651 = vmatpush1.msra.mxu0 0.0
        %7652 = vmatprep.subr.mxu0 0.0
        %7653 = vmatpush1.msra.mxu0 0.0
        %7654 = vmatprep.subr.mxu0 0.0
        %7655 = vmatpush1.msra.mxu0 0.0
        %7656 = vmatprep.subr.mxu0 0.0
        %7657 = vmatpush1.msra.mxu0 0.0
        %7658 = vmatprep.mubr.f32.mxu0 0.0
        %7659 = vmatmul.mubr.f32.gmra.mrb[0].mxu0 %v7592
        %v7660 = vpop.f32.mrb[0].mxu0
        %v7661 = vadd.f32 %v7590, %v7660
        %v7662 = vpop.f32.mrb[0].mxu0
        %7663 = vdwg.mxu0
        %v7664 = vld [vmem:[%s25] sm:$0xff]
        %v7665 = vld [vmem:[%s25 + $0x8] sm:$0xff]
        %v7666 = vld [vmem:[%s26] sm:$0x1]
        %v7668 = vsel %vm1016, %v7587, 0
        %7670 = vmatprep.subr.mxu0 0.0
        %7671 = vmatpush1.msra.mxu0 %v7664
        %7672 = vmatprep.subr.mxu0 0.0
        %7673 = vmatpush1.msra.mxu0 %v7665
        %7674 = vmatprep.subr.mxu0 0.0
        %7675 = vmatpush1.msra.mxu0 0.0
        %7676 = vmatprep.subr.mxu0 0.0
        %7677 = vmatpush1.msra.mxu0 0.0
        %7678 = vmatprep.subr.mxu0 0.0
        %7679 = vmatpush1.msra.mxu0 0.0
        %7680 = vmatprep.subr.mxu0 0.0
        %7681 = vmatpush1.msra.mxu0 0.0
        %7682 = vmatprep.subr.mxu0 0.0
        %7683 = vmatpush1.msra.mxu0 0.0
        %7684 = vmatprep.subr.mxu0 0.0
        %7685 = vmatpush1.msra.mxu0 0.0
        %7686 = vmatprep.subr.mxu0 0.0
        %7687 = vmatpush1.msra.mxu0 0.0
        %7688 = vmatprep.subr.mxu0 0.0
        %7689 = vmatpush1.msra.mxu0 0.0
        %7690 = vmatprep.subr.mxu0 0.0
        %7691 = vmatpush1.msra.mxu0 0.0
        %7692 = vmatprep.subr.mxu0 0.0
        %7693 = vmatpush1.msra.mxu0 0.0
        %7694 = vmatprep.subr.mxu0 0.0
        %7695 = vmatpush1.msra.mxu0 0.0
        %7696 = vmatprep.subr.mxu0 0.0
        %7697 = vmatpush1.msra.mxu0 0.0
        %7698 = vmatprep.subr.mxu0 0.0
        %7699 = vmatpush1.msra.mxu0 0.0
        %7700 = vmatprep.subr.mxu0 0.0
        %7701 = vmatpush1.msra.mxu0 0.0
        %7702 = vmatprep.subr.mxu0 0.0
        %7703 = vmatpush1.msra.mxu0 0.0
        %7704 = vmatprep.subr.mxu0 0.0
        %7705 = vmatpush1.msra.mxu0 0.0
        %7706 = vmatprep.subr.mxu0 0.0
        %7707 = vmatpush1.msra.mxu0 0.0
        %7708 = vmatprep.subr.mxu0 0.0
        %7709 = vmatpush1.msra.mxu0 0.0
        %7710 = vmatprep.subr.mxu0 0.0
        %7711 = vmatpush1.msra.mxu0 0.0
        %7712 = vmatprep.subr.mxu0 0.0
        %7713 = vmatpush1.msra.mxu0 0.0
        %7714 = vmatprep.subr.mxu0 0.0
        %7715 = vmatpush1.msra.mxu0 0.0
        %7716 = vmatprep.subr.mxu0 0.0
        %7717 = vmatpush1.msra.mxu0 0.0
        %7718 = vmatprep.subr.mxu0 0.0
        %7719 = vmatpush1.msra.mxu0 0.0
        %7720 = vmatprep.subr.mxu0 0.0
        %7721 = vmatpush1.msra.mxu0 0.0
        %7722 = vmatprep.subr.mxu0 0.0
        %7723 = vmatpush1.msra.mxu0 0.0
        %7724 = vmatprep.subr.mxu0 0.0
        %7725 = vmatpush1.msra.mxu0 0.0
        %7726 = vmatprep.subr.mxu0 0.0
        %7727 = vmatpush1.msra.mxu0 0.0
        %7728 = vmatprep.subr.mxu0 0.0
        %7729 = vmatpush1.msra.mxu0 0.0
        %7730 = vmatprep.subr.mxu0 0.0
        %7731 = vmatpush1.msra.mxu0 0.0
        %7732 = vmatprep.subr.mxu0 0.0
        %7733 = vmatpush1.msra.mxu0 0.0
        %7734 = vmatprep.mubr.f32.mxu0 0.0
        %7735 = vmatmul.mubr.f32.gmra.mrb[0].mxu0 %v7668
        %v7736 = vpop.f32.mrb[0].mxu0
        %v7737 = vadd.f32 %v7666, %v7736
        %v7738 = vpop.f32.mrb[0].mxu0
        %7739 = vdwg.mxu0
        %v7741 = vrot.slane %v7737, 7
        %v7743 = vsel %vm7461, %v7661, %v7741
        %vm7744 = vcmask 254976
        %7745 = vst.msk [vmem:[%s886] sm:$0x3] %vm7744, %v7743
        %s7746 = sand.u32 %s663, 1
        %s7747 = scalar_lea.sflag [#allocation3], %s7746
        %s7748 = sand.u32 %s663, 1
        %s7749 = smul.addr %s7748, 2
        %s7750 = scalar_lea.vmem [#allocation2], %s7749
        // Predicated region
        $region133: #{tpu_custom_call.1} parent=131 // pred_check
          %p7751 = pneg %p673
        $region134: #{tpu_custom_call.1} parent=131 // pred_check_branch
          %7753 = sbr.rel (%p7751) target = $region136
        $region135: #{tpu_custom_call.1} parent=131 // pred_region
          %s7755 = ssub.s32 32, 32
          %7756 = vsyncadd %s7747, %s7755
          %s7757 = smul.addr %s42, 32
          %s7758 = scalar_lea.hbm %s28, %s7757
          %s7760 = sshll.u32 %s7750, 4
          %s7761 = int_to_ptr.vmem [resolvable:$true] %s7760
          %7763 = dma.vmem_to_hbm [thread:$0]  %s7761, 32, %s7758, %s7747
        $region136: #{tpu_custom_call.1} parent=131 // pred_fallthru
          _
      $region132: #{tpu_custom_call.1} parent=5 // pred_fallthru
        _
      %p7764 = scmp.le.s32.totalorder 2, %s37
      // Predicated region
      $region137: #{tpu_custom_call.1} parent=5 // pred_check
        %p7765 = pneg %p7764
      $region138: #{tpu_custom_call.1} parent=5 // pred_check_branch
        %7767 = sbr.rel (%p7765) target = $region140
      $region139: #{tpu_custom_call.1} parent=5 // pred_region
        %s7768 = ssub.s32 %s37, 2
        // Predicated region
        $region141: #{tpu_custom_call.1} parent=139 // pred_check
          %p7769 = pneg %p679
        $region142: #{tpu_custom_call.1} parent=139 // pred_check_branch
          %7771 = sbr.rel (%p7769) target = $region144
        $region143: #{tpu_custom_call.1} parent=139 // pred_region
          %s7772 = sand.u32 %s664, 1
          %s7773 = scalar_lea.sflag [#allocation3], %s7772
          %s7774 = sand.u32 %s664, 1
          %s7775 = smul.addr %s7774, 2
          %s7776 = scalar_lea.vmem [#allocation2], %s7775
          %7777 = dma.done %s7773, 32
        $region144: #{tpu_custom_call.1} parent=139 // pred_fallthru
          _
      $region140: #{tpu_custom_call.1} parent=5 // pred_fallthru
        _
    $region6: #{tpu_custom_call.1} parent=1 // loop_footer
      %s41 = sadd.s32 1, %s37
    $region7: #{tpu_custom_call.1} parent=1 // loop_footer_branch
      %36 = sbr.rel target = $region3
    $region8: #{tpu_custom_call.1} parent=1 // loop_exit
      _
    %7778 = vsyncpa [#allocation3], 1
    %s7779 = scalar_lea.sflag [#allocation3], 1
    %7780 = vsyncpa %s7779, 1

</llo_original>
